<compile_context>
chip_gen: v6e
topology: v6e:2x2x1
jax: 0.10.0
libtpu: 0.0.40
codegen_flags: <defaults>
</compile_context>

<pallas_src>
import numpy as np
import jax
import jax.numpy as jnp
from jax.experimental import pallas as pl
from jax.experimental.pallas import tpu as pltpu

EPS = 1e-5


def _build_fused_forward(N, Cin, H, W, C1, K1, C2, K2):
    """Builds the single fused Pallas kernel for the whole Cnn forward.

    Flat-grid convention: coordinate (n, h, w) on the padded layer-1 canvas
    maps to column c = n*(Hp1*Wp1) + h*Wp1 + w.  Every intermediate is a
    (channels, window-of-that-grid) slab: channels on sublanes, grid on lanes.
    """
    P1 = P2 = 1
    Hp1, Wp1 = H + 2 * P1, W + 2 * P1
    Ho1, Wo1 = Hp1 - K1 + 1, Wp1 - K1 + 1            # conv1 output
    Hq1, Wq1 = Ho1 // 2, Wo1 // 2                    # pool1 output
    Ho2, Wo2 = Hq1 + 2 * P2 - K2 + 1, Wq1 + 2 * P2 - K2 + 1  # conv2 output
    Hq2, Wq2 = Ho2 // 2, Wo2 // 2                    # pool2 output
    G = Hp1 * Wp1                                    # flat grid per image
    OFF = 2 * Wp1 + 2                                # margin for conv2 pad ring

    # static shift tables on the flat grid
    conv1_starts = [Wp1 * i + j for i in range(K1) for j in range(K1)]
    conv2_starts = [2 * Wp1 * di + 2 * dj for di in range(K2) for dj in range(K2)]
    pool1_shifts = (0, 1, Wp1, Wp1 + 1)
    pool2_shifts = (0, 2, 2 * Wp1, 2 * Wp1 + 2)

    # extents of the valid data on the flat grid
    max_c1 = (N - 1) * G + (Ho1 - 1) * Wp1 + (Wo1 - 1)           # conv1 outputs
    max_a1 = (N - 1) * G + 2 * (Hq1 - 1) * Wp1 + 2 * (Wq1 - 1)   # pool1 anchors
    max_c2 = (N - 1) * G + 2 * (Ho2 - 1) * Wp1 + 2 * (Wo2 - 1)   # conv2 outputs
    max_a2 = (N - 1) * G + 4 * (Hq2 - 1) * Wp1 + 4 * (Wq2 - 1)   # pool2 anchors

    # working lengths (positions on level-1 arrays = flat column + OFF,
    # positions on level-2 arrays = flat column)
    LM2 = max_a2 + 1
    L2 = max(max_c2, max_a2 + pool2_shifts[-1]) + 1
    LM1 = (L2 - 1) + conv2_starts[-1] + 1
    L1 = max((LM1 - 1) + pool1_shifts[-1], max_c1 + OFF) + 1
    LX = (L1 - 1) + conv1_starts[-1] + 1
    TOUT = N * Hq2 * Wq2

    cnt1 = float(N * Ho1 * Wo1)
    cnt2 = float(N * Ho2 * Wo2)

    # ------- trace-time constant masks / selection matrix (numpy) -------
    bnm1 = np.zeros((1, L1), np.float32)      # valid conv1-output columns
    for n in range(N):
        for h in range(Ho1):
            for w in range(Wo1):
                bnm1[0, OFF + n * G + h * Wp1 + w] = 1.0
    pm1 = np.zeros((1, LM1), np.float32)      # valid pool1-anchor columns
    for n in range(N):
        for ph in range(Hq1):
            for pw in range(Wq1):
                pm1[0, OFF + n * G + 2 * ph * Wp1 + 2 * pw] = 1.0
    bnm2 = np.zeros((1, L2), np.float32)      # valid conv2-output columns
    for n in range(N):
        for oh in range(Ho2):
            for ow in range(Wo2):
                bnm2[0, n * G + 2 * oh * Wp1 + 2 * ow] = 1.0
    s2 = np.zeros((LM2, TOUT), np.float32)    # gather of final pooled values
    for n in range(N):
        for qh in range(Hq2):
            for qw in range(Wq2):
                s2[n * G + 4 * qh * Wp1 + 4 * qw,
                   n * Hq2 * Wq2 + qh * Wq2 + qw] = 1.0

    def kernel(xf_ref, w1_ref, w2_ref, g1_ref, be1_ref, g2_ref, be2_ref,
               bnm1_ref, pm1_ref, bnm2_ref, s2_ref, o_ref):
        # ---- layer1: conv 5x5 as accumulated per-offset matmuls (lane-dense) ----
        acc1 = jnp.zeros((C1, L1), jnp.float32)
        for t, s in enumerate(conv1_starts):
            acc1 = acc1 + jnp.dot(w1_ref[t], xf_ref[:, s:s + L1],
                                  preferred_element_type=jnp.float32)
        # conv bias omitted: cancelled exactly by training-mode BN mean-sub.

        # ---- BatchNorm (training-mode biased batch stats) + ReLU ----
        m1mask = bnm1_ref[...]
        mean1 = jnp.sum(acc1 * m1mask, axis=1, keepdims=True) * (1.0 / cnt1)
        d1 = acc1 - mean1
        var1 = jnp.sum(d1 * d1 * m1mask, axis=1, keepdims=True) * (1.0 / cnt1)
        y1 = d1 * jax.lax.rsqrt(var1 + EPS) * g1_ref[...] + be1_ref[...]
        y1 = jnp.maximum(y1, 0.0)

        # ---- layer2: fused 2x2/2 max-pool = max of 4 shifted views ----
        m1 = jnp.maximum(
            jnp.maximum(y1[:, pool1_shifts[0]:pool1_shifts[0] + LM1],
                        y1[:, pool1_shifts[1]:pool1_shifts[1] + LM1]),
            jnp.maximum(y1[:, pool1_shifts[2]:pool1_shifts[2] + LM1],
                        y1[:, pool1_shifts[3]:pool1_shifts[3] + LM1]))
        # keep only valid pooled anchors; the zeros elsewhere also emulate
        # conv2's spatial zero-padding ring for the shifted reads below.
        m1 = m1 * pm1_ref[...]

        # ---- layer3: conv 4x4 over the (strided) pooled grid ----
        acc2 = jnp.zeros((C2, L2), jnp.float32)
        for t, s in enumerate(conv2_starts):
            acc2 = acc2 + jnp.dot(w2_ref[t], m1[:, s:s + L2],
                                  preferred_element_type=jnp.float32)

        m2mask = bnm2_ref[...]
        mean2 = jnp.sum(acc2 * m2mask, axis=1, keepdims=True) * (1.0 / cnt2)
        d2 = acc2 - mean2
        var2 = jnp.sum(d2 * d2 * m2mask, axis=1, keepdims=True) * (1.0 / cnt2)
        y2 = d2 * jax.lax.rsqrt(var2 + EPS) * g2_ref[...] + be2_ref[...]
        y2 = jnp.maximum(y2, 0.0)

        # ---- layer4: fused 2x2/2 max-pool + compaction to the output ----
        m2 = jnp.maximum(
            jnp.maximum(y2[:, pool2_shifts[0]:pool2_shifts[0] + LM2],
                        y2[:, pool2_shifts[1]:pool2_shifts[1] + LM2]),
            jnp.maximum(y2[:, pool2_shifts[2]:pool2_shifts[2] + LM2],
                        y2[:, pool2_shifts[3]:pool2_shifts[3] + LM2]))
        # constant 0/1 selection matmul gathers the N*Hq2*Wq2 valid columns.
        o_ref[...] = jnp.dot(m2, s2_ref[...], preferred_element_type=jnp.float32)

    vmem = pl.BlockSpec(memory_space=pltpu.MemorySpace.VMEM)
    call = pl.pallas_call(
        kernel,
        out_shape=jax.ShapeDtypeStruct((C2, TOUT), jnp.float32),
        in_specs=[vmem] * 11,
        out_specs=vmem,
    )

    def forward(x, params):
        # NCHW -> channel-major flat slab, zero-padded once (input read once).
        xp = jnp.pad(x.astype(jnp.float32),
                     ((0, 0), (0, 0), (P1, P1), (P1, P1)))        # (N,Cin,Hp1,Wp1)
        xf = jnp.transpose(xp, (1, 0, 2, 3)).reshape(Cin, N * G)
        xf = jnp.pad(xf, ((0, 0), (OFF, LX - OFF - N * G)))       # (Cin, LX)

        # PyTorch OIHW weights -> per-offset (kh*kw, Cout, Cin)
        w1 = jnp.transpose(params["w1"], (2, 3, 0, 1)).reshape(K1 * K1, C1, Cin)
        w2 = jnp.transpose(params["w2"], (2, 3, 0, 1)).reshape(K2 * K2, C2, C1)

        out = call(
            xf, w1, w2,
            params["g1"].reshape(C1, 1), params["beta1"].reshape(C1, 1),
            params["g2"].reshape(C2, 1), params["beta2"].reshape(C2, 1),
            jnp.asarray(bnm1), jnp.asarray(pm1), jnp.asarray(bnm2),
            jnp.asarray(s2))
        # (C2, N*Hq2*Wq2) -> NCHW; 72 floats, negligible glue.
        return out.reshape(C2, N, Hq2, Wq2).transpose(1, 0, 2, 3)

    return forward


@jax.jit
def cnn_forward(x, params):
    N, Cin, H, W = x.shape
    C1, _, K1, _ = params["w1"].shape
    C2, _, K2, _ = params["w2"].shape
    fwd = _build_fused_forward(N, Cin, H, W, C1, K1, C2, K2)
    return fwd(x, params)


def init_params(key, in_channels, out_channels):
    conv1_out, k1s = 3, 5          # from Cnn.__init__
    k2s = 4
    k1, k2, k3, k4 = jax.random.split(key, 4)
    return {
        "w1": jax.random.normal(k1, (conv1_out, in_channels, k1s, k1s), jnp.float32) * 0.1,
        # conv biases kept for interface parity; they cancel under training-mode BN.
        "b1": jax.random.normal(k2, (conv1_out,), jnp.float32) * 0.1,
        "g1": jnp.ones((conv1_out,), jnp.float32),      # BN affine defaults
        "beta1": jnp.zeros((conv1_out,), jnp.float32),
        "w2": jax.random.normal(k3, (out_channels, conv1_out, k2s, k2s), jnp.float32) * 0.1,
        "b2": jax.random.normal(k4, (out_channels,), jnp.float32) * 0.1,
        "g2": jnp.ones((out_channels,), jnp.float32),
        "beta2": jnp.zeros((out_channels,), jnp.float32),
    }


if __name__ == "__main__":
    key = jax.random.PRNGKey(0)
    kx, kp = jax.random.split(key)
    in_channels, out_channels = 4, 4
    x = jax.random.normal(kx, (2, in_channels, 16, 16), jnp.float32)
    params = init_params(kp, in_channels, out_channels)

    y = cnn_forward(x, params)
    jax.block_until_ready(y)
    # (2,4,16,16) -> conv5 pad1 -> (2,3,14,14) -> pool -> (2,3,7,7)
    #             -> conv4 pad1 -> (2,4,6,6)   -> pool -> (2,4,3,3)
    assert y.shape == (2, out_channels, 3, 3), y.shape
    assert bool(jnp.all(jnp.isfinite(y)))
    print("KERNEL_OK")
</pallas_src>

<mosaic_0001>
module attributes {stable_mosaic.version = 11 : i64} {
  func.func @kernel(%arg0: memref<4x724xf32, #tpu.memory_space<vmem>>, %arg1: memref<25x3x4xf32, #tpu.memory_space<vmem>>, %arg2: memref<16x4x3xf32, #tpu.memory_space<vmem>>, %arg3: memref<3x1xf32, #tpu.memory_space<vmem>>, %arg4: memref<3x1xf32, #tpu.memory_space<vmem>>, %arg5: memref<4x1xf32, #tpu.memory_space<vmem>>, %arg6: memref<4x1xf32, #tpu.memory_space<vmem>>, %arg7: memref<1x648xf32, #tpu.memory_space<vmem>>, %arg8: memref<1x629xf32, #tpu.memory_space<vmem>>, %arg9: memref<1x515xf32, #tpu.memory_space<vmem>>, %arg10: memref<477x18xf32, #tpu.memory_space<vmem>>, %arg11: memref<4x18xf32, #tpu.memory_space<vmem>>) attributes {dimension_semantics = [], scalar_prefetch = 0 : i64, scratch_operands = 0 : i64, tpu.core_type = #tpu.core_type<tc>} {
    %cst = arith.constant 0.000000e+00 : f32
    %0 = vector.broadcast %cst : f32 to vector<3x648xf32>
    %c0 = arith.constant 0 : index
    %c0_0 = arith.constant 0 : index
    %c0_1 = arith.constant 0 : index
    %1 = vector.load %arg1[%c0, %c0_0, %c0_1] : memref<25x3x4xf32, #tpu.memory_space<vmem>>, vector<1x3x4xf32>
    %2 = vector.shape_cast %1 : vector<1x3x4xf32> to vector<3x4xf32>
    %c0_2 = arith.constant 0 : index
    %c0_3 = arith.constant 0 : index
    %3 = vector.load %arg0[%c0_2, %c0_3] : memref<4x724xf32, #tpu.memory_space<vmem>>, vector<4x648xf32>
    %cst_4 = arith.constant dense<0.000000e+00> : vector<3x648xf32>
    %4 = tpu.matmul %2, %3, %cst_4 {dimension_numbers = #tpu.dot_dimension_numbers<[1], [0], [0], [1], [0, 0, 1, 1], [], []>} : vector<3x4xf32>, vector<4x648xf32>, vector<3x648xf32> -> vector<3x648xf32>
    %5 = arith.addf %0, %4 : vector<3x648xf32>
    %c1 = arith.constant 1 : index
    %c0_5 = arith.constant 0 : index
    %c0_6 = arith.constant 0 : index
    %6 = vector.load %arg1[%c1, %c0_5, %c0_6] : memref<25x3x4xf32, #tpu.memory_space<vmem>>, vector<1x3x4xf32>
    %7 = vector.shape_cast %6 : vector<1x3x4xf32> to vector<3x4xf32>
    %c0_7 = arith.constant 0 : index
    %c1_8 = arith.constant 1 : index
    %8 = vector.load %arg0[%c0_7, %c1_8] : memref<4x724xf32, #tpu.memory_space<vmem>>, vector<4x648xf32>
    %cst_9 = arith.constant dense<0.000000e+00> : vector<3x648xf32>
    %9 = tpu.matmul %7, %8, %cst_9 {dimension_numbers = #tpu.dot_dimension_numbers<[1], [0], [0], [1], [0, 0, 1, 1], [], []>} : vector<3x4xf32>, vector<4x648xf32>, vector<3x648xf32> -> vector<3x648xf32>
    %10 = arith.addf %5, %9 : vector<3x648xf32>
    %c2 = arith.constant 2 : index
    %c0_10 = arith.constant 0 : index
    %c0_11 = arith.constant 0 : index
    %11 = vector.load %arg1[%c2, %c0_10, %c0_11] : memref<25x3x4xf32, #tpu.memory_space<vmem>>, vector<1x3x4xf32>
    %12 = vector.shape_cast %11 : vector<1x3x4xf32> to vector<3x4xf32>
    %c0_12 = arith.constant 0 : index
    %c2_13 = arith.constant 2 : index
    %13 = vector.load %arg0[%c0_12, %c2_13] : memref<4x724xf32, #tpu.memory_space<vmem>>, vector<4x648xf32>
    %cst_14 = arith.constant dense<0.000000e+00> : vector<3x648xf32>
    %14 = tpu.matmul %12, %13, %cst_14 {dimension_numbers = #tpu.dot_dimension_numbers<[1], [0], [0], [1], [0, 0, 1, 1], [], []>} : vector<3x4xf32>, vector<4x648xf32>, vector<3x648xf32> -> vector<3x648xf32>
    %15 = arith.addf %10, %14 : vector<3x648xf32>
    %c3 = arith.constant 3 : index
    %c0_15 = arith.constant 0 : index
    %c0_16 = arith.constant 0 : index
    %16 = vector.load %arg1[%c3, %c0_15, %c0_16] : memref<25x3x4xf32, #tpu.memory_space<vmem>>, vector<1x3x4xf32>
    %17 = vector.shape_cast %16 : vector<1x3x4xf32> to vector<3x4xf32>
    %c0_17 = arith.constant 0 : index
    %c3_18 = arith.constant 3 : index
    %18 = vector.load %arg0[%c0_17, %c3_18] : memref<4x724xf32, #tpu.memory_space<vmem>>, vector<4x648xf32>
    %cst_19 = arith.constant dense<0.000000e+00> : vector<3x648xf32>
    %19 = tpu.matmul %17, %18, %cst_19 {dimension_numbers = #tpu.dot_dimension_numbers<[1], [0], [0], [1], [0, 0, 1, 1], [], []>} : vector<3x4xf32>, vector<4x648xf32>, vector<3x648xf32> -> vector<3x648xf32>
    %20 = arith.addf %15, %19 : vector<3x648xf32>
    %c4 = arith.constant 4 : index
    %c0_20 = arith.constant 0 : index
    %c0_21 = arith.constant 0 : index
    %21 = vector.load %arg1[%c4, %c0_20, %c0_21] : memref<25x3x4xf32, #tpu.memory_space<vmem>>, vector<1x3x4xf32>
    %22 = vector.shape_cast %21 : vector<1x3x4xf32> to vector<3x4xf32>
    %c0_22 = arith.constant 0 : index
    %c4_23 = arith.constant 4 : index
    %23 = vector.load %arg0[%c0_22, %c4_23] : memref<4x724xf32, #tpu.memory_space<vmem>>, vector<4x648xf32>
    %cst_24 = arith.constant dense<0.000000e+00> : vector<3x648xf32>
    %24 = tpu.matmul %22, %23, %cst_24 {dimension_numbers = #tpu.dot_dimension_numbers<[1], [0], [0], [1], [0, 0, 1, 1], [], []>} : vector<3x4xf32>, vector<4x648xf32>, vector<3x648xf32> -> vector<3x648xf32>
    %25 = arith.addf %20, %24 : vector<3x648xf32>
    %c5 = arith.constant 5 : index
    %c0_25 = arith.constant 0 : index
    %c0_26 = arith.constant 0 : index
    %26 = vector.load %arg1[%c5, %c0_25, %c0_26] : memref<25x3x4xf32, #tpu.memory_space<vmem>>, vector<1x3x4xf32>
    %27 = vector.shape_cast %26 : vector<1x3x4xf32> to vector<3x4xf32>
    %c0_27 = arith.constant 0 : index
    %c18 = arith.constant 18 : index
    %28 = vector.load %arg0[%c0_27, %c18] : memref<4x724xf32, #tpu.memory_space<vmem>>, vector<4x648xf32>
    %cst_28 = arith.constant dense<0.000000e+00> : vector<3x648xf32>
    %29 = tpu.matmul %27, %28, %cst_28 {dimension_numbers = #tpu.dot_dimension_numbers<[1], [0], [0], [1], [0, 0, 1, 1], [], []>} : vector<3x4xf32>, vector<4x648xf32>, vector<3x648xf32> -> vector<3x648xf32>
    %30 = arith.addf %25, %29 : vector<3x648xf32>
    %c6 = arith.constant 6 : index
    %c0_29 = arith.constant 0 : index
    %c0_30 = arith.constant 0 : index
    %31 = vector.load %arg1[%c6, %c0_29, %c0_30] : memref<25x3x4xf32, #tpu.memory_space<vmem>>, vector<1x3x4xf32>
    %32 = vector.shape_cast %31 : vector<1x3x4xf32> to vector<3x4xf32>
    %c0_31 = arith.constant 0 : index
    %c19 = arith.constant 19 : index
    %33 = vector.load %arg0[%c0_31, %c19] : memref<4x724xf32, #tpu.memory_space<vmem>>, vector<4x648xf32>
    %cst_32 = arith.constant dense<0.000000e+00> : vector<3x648xf32>
    %34 = tpu.matmul %32, %33, %cst_32 {dimension_numbers = #tpu.dot_dimension_numbers<[1], [0], [0], [1], [0, 0, 1, 1], [], []>} : vector<3x4xf32>, vector<4x648xf32>, vector<3x648xf32> -> vector<3x648xf32>
    %35 = arith.addf %30, %34 : vector<3x648xf32>
    %c7 = arith.constant 7 : index
    %c0_33 = arith.constant 0 : index
    %c0_34 = arith.constant 0 : index
    %36 = vector.load %arg1[%c7, %c0_33, %c0_34] : memref<25x3x4xf32, #tpu.memory_space<vmem>>, vector<1x3x4xf32>
    %37 = vector.shape_cast %36 : vector<1x3x4xf32> to vector<3x4xf32>
    %c0_35 = arith.constant 0 : index
    %c20 = arith.constant 20 : index
    %38 = vector.load %arg0[%c0_35, %c20] : memref<4x724xf32, #tpu.memory_space<vmem>>, vector<4x648xf32>
    %cst_36 = arith.constant dense<0.000000e+00> : vector<3x648xf32>
    %39 = tpu.matmul %37, %38, %cst_36 {dimension_numbers = #tpu.dot_dimension_numbers<[1], [0], [0], [1], [0, 0, 1, 1], [], []>} : vector<3x4xf32>, vector<4x648xf32>, vector<3x648xf32> -> vector<3x648xf32>
    %40 = arith.addf %35, %39 : vector<3x648xf32>
    %c8 = arith.constant 8 : index
    %c0_37 = arith.constant 0 : index
    %c0_38 = arith.constant 0 : index
    %41 = vector.load %arg1[%c8, %c0_37, %c0_38] : memref<25x3x4xf32, #tpu.memory_space<vmem>>, vector<1x3x4xf32>
    %42 = vector.shape_cast %41 : vector<1x3x4xf32> to vector<3x4xf32>
    %c0_39 = arith.constant 0 : index
    %c21 = arith.constant 21 : index
    %43 = vector.load %arg0[%c0_39, %c21] : memref<4x724xf32, #tpu.memory_space<vmem>>, vector<4x648xf32>
    %cst_40 = arith.constant dense<0.000000e+00> : vector<3x648xf32>
    %44 = tpu.matmul %42, %43, %cst_40 {dimension_numbers = #tpu.dot_dimension_numbers<[1], [0], [0], [1], [0, 0, 1, 1], [], []>} : vector<3x4xf32>, vector<4x648xf32>, vector<3x648xf32> -> vector<3x648xf32>
    %45 = arith.addf %40, %44 : vector<3x648xf32>
    %c9 = arith.constant 9 : index
    %c0_41 = arith.constant 0 : index
    %c0_42 = arith.constant 0 : index
    %46 = vector.load %arg1[%c9, %c0_41, %c0_42] : memref<25x3x4xf32, #tpu.memory_space<vmem>>, vector<1x3x4xf32>
    %47 = vector.shape_cast %46 : vector<1x3x4xf32> to vector<3x4xf32>
    %c0_43 = arith.constant 0 : index
    %c22 = arith.constant 22 : index
    %48 = vector.load %arg0[%c0_43, %c22] : memref<4x724xf32, #tpu.memory_space<vmem>>, vector<4x648xf32>
    %cst_44 = arith.constant dense<0.000000e+00> : vector<3x648xf32>
    %49 = tpu.matmul %47, %48, %cst_44 {dimension_numbers = #tpu.dot_dimension_numbers<[1], [0], [0], [1], [0, 0, 1, 1], [], []>} : vector<3x4xf32>, vector<4x648xf32>, vector<3x648xf32> -> vector<3x648xf32>
    %50 = arith.addf %45, %49 : vector<3x648xf32>
    %c10 = arith.constant 10 : index
    %c0_45 = arith.constant 0 : index
    %c0_46 = arith.constant 0 : index
    %51 = vector.load %arg1[%c10, %c0_45, %c0_46] : memref<25x3x4xf32, #tpu.memory_space<vmem>>, vector<1x3x4xf32>
    %52 = vector.shape_cast %51 : vector<1x3x4xf32> to vector<3x4xf32>
    %c0_47 = arith.constant 0 : index
    %c36 = arith.constant 36 : index
    %53 = vector.load %arg0[%c0_47, %c36] : memref<4x724xf32, #tpu.memory_space<vmem>>, vector<4x648xf32>
    %cst_48 = arith.constant dense<0.000000e+00> : vector<3x648xf32>
    %54 = tpu.matmul %52, %53, %cst_48 {dimension_numbers = #tpu.dot_dimension_numbers<[1], [0], [0], [1], [0, 0, 1, 1], [], []>} : vector<3x4xf32>, vector<4x648xf32>, vector<3x648xf32> -> vector<3x648xf32>
    %55 = arith.addf %50, %54 : vector<3x648xf32>
    %c11 = arith.constant 11 : index
    %c0_49 = arith.constant 0 : index
    %c0_50 = arith.constant 0 : index
    %56 = vector.load %arg1[%c11, %c0_49, %c0_50] : memref<25x3x4xf32, #tpu.memory_space<vmem>>, vector<1x3x4xf32>
    %57 = vector.shape_cast %56 : vector<1x3x4xf32> to vector<3x4xf32>
    %c0_51 = arith.constant 0 : index
    %c37 = arith.constant 37 : index
    %58 = vector.load %arg0[%c0_51, %c37] : memref<4x724xf32, #tpu.memory_space<vmem>>, vector<4x648xf32>
    %cst_52 = arith.constant dense<0.000000e+00> : vector<3x648xf32>
    %59 = tpu.matmul %57, %58, %cst_52 {dimension_numbers = #tpu.dot_dimension_numbers<[1], [0], [0], [1], [0, 0, 1, 1], [], []>} : vector<3x4xf32>, vector<4x648xf32>, vector<3x648xf32> -> vector<3x648xf32>
    %60 = arith.addf %55, %59 : vector<3x648xf32>
    %c12 = arith.constant 12 : index
    %c0_53 = arith.constant 0 : index
    %c0_54 = arith.constant 0 : index
    %61 = vector.load %arg1[%c12, %c0_53, %c0_54] : memref<25x3x4xf32, #tpu.memory_space<vmem>>, vector<1x3x4xf32>
    %62 = vector.shape_cast %61 : vector<1x3x4xf32> to vector<3x4xf32>
    %c0_55 = arith.constant 0 : index
    %c38 = arith.constant 38 : index
    %63 = vector.load %arg0[%c0_55, %c38] : memref<4x724xf32, #tpu.memory_space<vmem>>, vector<4x648xf32>
    %cst_56 = arith.constant dense<0.000000e+00> : vector<3x648xf32>
    %64 = tpu.matmul %62, %63, %cst_56 {dimension_numbers = #tpu.dot_dimension_numbers<[1], [0], [0], [1], [0, 0, 1, 1], [], []>} : vector<3x4xf32>, vector<4x648xf32>, vector<3x648xf32> -> vector<3x648xf32>
    %65 = arith.addf %60, %64 : vector<3x648xf32>
    %c13 = arith.constant 13 : index
    %c0_57 = arith.constant 0 : index
    %c0_58 = arith.constant 0 : index
    %66 = vector.load %arg1[%c13, %c0_57, %c0_58] : memref<25x3x4xf32, #tpu.memory_space<vmem>>, vector<1x3x4xf32>
    %67 = vector.shape_cast %66 : vector<1x3x4xf32> to vector<3x4xf32>
    %c0_59 = arith.constant 0 : index
    %c39 = arith.constant 39 : index
    %68 = vector.load %arg0[%c0_59, %c39] : memref<4x724xf32, #tpu.memory_space<vmem>>, vector<4x648xf32>
    %cst_60 = arith.constant dense<0.000000e+00> : vector<3x648xf32>
    %69 = tpu.matmul %67, %68, %cst_60 {dimension_numbers = #tpu.dot_dimension_numbers<[1], [0], [0], [1], [0, 0, 1, 1], [], []>} : vector<3x4xf32>, vector<4x648xf32>, vector<3x648xf32> -> vector<3x648xf32>
    %70 = arith.addf %65, %69 : vector<3x648xf32>
    %c14 = arith.constant 14 : index
    %c0_61 = arith.constant 0 : index
    %c0_62 = arith.constant 0 : index
    %71 = vector.load %arg1[%c14, %c0_61, %c0_62] : memref<25x3x4xf32, #tpu.memory_space<vmem>>, vector<1x3x4xf32>
    %72 = vector.shape_cast %71 : vector<1x3x4xf32> to vector<3x4xf32>
    %c0_63 = arith.constant 0 : index
    %c40 = arith.constant 40 : index
    %73 = vector.load %arg0[%c0_63, %c40] : memref<4x724xf32, #tpu.memory_space<vmem>>, vector<4x648xf32>
    %cst_64 = arith.constant dense<0.000000e+00> : vector<3x648xf32>
    %74 = tpu.matmul %72, %73, %cst_64 {dimension_numbers = #tpu.dot_dimension_numbers<[1], [0], [0], [1], [0, 0, 1, 1], [], []>} : vector<3x4xf32>, vector<4x648xf32>, vector<3x648xf32> -> vector<3x648xf32>
    %75 = arith.addf %70, %74 : vector<3x648xf32>
    %c15 = arith.constant 15 : index
    %c0_65 = arith.constant 0 : index
    %c0_66 = arith.constant 0 : index
    %76 = vector.load %arg1[%c15, %c0_65, %c0_66] : memref<25x3x4xf32, #tpu.memory_space<vmem>>, vector<1x3x4xf32>
    %77 = vector.shape_cast %76 : vector<1x3x4xf32> to vector<3x4xf32>
    %c0_67 = arith.constant 0 : index
    %c54 = arith.constant 54 : index
    %78 = vector.load %arg0[%c0_67, %c54] : memref<4x724xf32, #tpu.memory_space<vmem>>, vector<4x648xf32>
    %cst_68 = arith.constant dense<0.000000e+00> : vector<3x648xf32>
    %79 = tpu.matmul %77, %78, %cst_68 {dimension_numbers = #tpu.dot_dimension_numbers<[1], [0], [0], [1], [0, 0, 1, 1], [], []>} : vector<3x4xf32>, vector<4x648xf32>, vector<3x648xf32> -> vector<3x648xf32>
    %80 = arith.addf %75, %79 : vector<3x648xf32>
    %c16 = arith.constant 16 : index
    %c0_69 = arith.constant 0 : index
    %c0_70 = arith.constant 0 : index
    %81 = vector.load %arg1[%c16, %c0_69, %c0_70] : memref<25x3x4xf32, #tpu.memory_space<vmem>>, vector<1x3x4xf32>
    %82 = vector.shape_cast %81 : vector<1x3x4xf32> to vector<3x4xf32>
    %c0_71 = arith.constant 0 : index
    %c55 = arith.constant 55 : index
    %83 = vector.load %arg0[%c0_71, %c55] : memref<4x724xf32, #tpu.memory_space<vmem>>, vector<4x648xf32>
    %cst_72 = arith.constant dense<0.000000e+00> : vector<3x648xf32>
    %84 = tpu.matmul %82, %83, %cst_72 {dimension_numbers = #tpu.dot_dimension_numbers<[1], [0], [0], [1], [0, 0, 1, 1], [], []>} : vector<3x4xf32>, vector<4x648xf32>, vector<3x648xf32> -> vector<3x648xf32>
    %85 = arith.addf %80, %84 : vector<3x648xf32>
    %c17 = arith.constant 17 : index
    %c0_73 = arith.constant 0 : index
    %c0_74 = arith.constant 0 : index
    %86 = vector.load %arg1[%c17, %c0_73, %c0_74] : memref<25x3x4xf32, #tpu.memory_space<vmem>>, vector<1x3x4xf32>
    %87 = vector.shape_cast %86 : vector<1x3x4xf32> to vector<3x4xf32>
    %c0_75 = arith.constant 0 : index
    %c56 = arith.constant 56 : index
    %88 = vector.load %arg0[%c0_75, %c56] : memref<4x724xf32, #tpu.memory_space<vmem>>, vector<4x648xf32>
    %cst_76 = arith.constant dense<0.000000e+00> : vector<3x648xf32>
    %89 = tpu.matmul %87, %88, %cst_76 {dimension_numbers = #tpu.dot_dimension_numbers<[1], [0], [0], [1], [0, 0, 1, 1], [], []>} : vector<3x4xf32>, vector<4x648xf32>, vector<3x648xf32> -> vector<3x648xf32>
    %90 = arith.addf %85, %89 : vector<3x648xf32>
    %c18_77 = arith.constant 18 : index
    %c0_78 = arith.constant 0 : index
    %c0_79 = arith.constant 0 : index
    %91 = vector.load %arg1[%c18_77, %c0_78, %c0_79] : memref<25x3x4xf32, #tpu.memory_space<vmem>>, vector<1x3x4xf32>
    %92 = vector.shape_cast %91 : vector<1x3x4xf32> to vector<3x4xf32>
    %c0_80 = arith.constant 0 : index
    %c57 = arith.constant 57 : index
    %93 = vector.load %arg0[%c0_80, %c57] : memref<4x724xf32, #tpu.memory_space<vmem>>, vector<4x648xf32>
    %cst_81 = arith.constant dense<0.000000e+00> : vector<3x648xf32>
    %94 = tpu.matmul %92, %93, %cst_81 {dimension_numbers = #tpu.dot_dimension_numbers<[1], [0], [0], [1], [0, 0, 1, 1], [], []>} : vector<3x4xf32>, vector<4x648xf32>, vector<3x648xf32> -> vector<3x648xf32>
    %95 = arith.addf %90, %94 : vector<3x648xf32>
    %c19_82 = arith.constant 19 : index
    %c0_83 = arith.constant 0 : index
    %c0_84 = arith.constant 0 : index
    %96 = vector.load %arg1[%c19_82, %c0_83, %c0_84] : memref<25x3x4xf32, #tpu.memory_space<vmem>>, vector<1x3x4xf32>
    %97 = vector.shape_cast %96 : vector<1x3x4xf32> to vector<3x4xf32>
    %c0_85 = arith.constant 0 : index
    %c58 = arith.constant 58 : index
    %98 = vector.load %arg0[%c0_85, %c58] : memref<4x724xf32, #tpu.memory_space<vmem>>, vector<4x648xf32>
    %cst_86 = arith.constant dense<0.000000e+00> : vector<3x648xf32>
    %99 = tpu.matmul %97, %98, %cst_86 {dimension_numbers = #tpu.dot_dimension_numbers<[1], [0], [0], [1], [0, 0, 1, 1], [], []>} : vector<3x4xf32>, vector<4x648xf32>, vector<3x648xf32> -> vector<3x648xf32>
    %100 = arith.addf %95, %99 : vector<3x648xf32>
    %c20_87 = arith.constant 20 : index
    %c0_88 = arith.constant 0 : index
    %c0_89 = arith.constant 0 : index
    %101 = vector.load %arg1[%c20_87, %c0_88, %c0_89] : memref<25x3x4xf32, #tpu.memory_space<vmem>>, vector<1x3x4xf32>
    %102 = vector.shape_cast %101 : vector<1x3x4xf32> to vector<3x4xf32>
    %c0_90 = arith.constant 0 : index
    %c72 = arith.constant 72 : index
    %103 = vector.load %arg0[%c0_90, %c72] : memref<4x724xf32, #tpu.memory_space<vmem>>, vector<4x648xf32>
    %cst_91 = arith.constant dense<0.000000e+00> : vector<3x648xf32>
    %104 = tpu.matmul %102, %103, %cst_91 {dimension_numbers = #tpu.dot_dimension_numbers<[1], [0], [0], [1], [0, 0, 1, 1], [], []>} : vector<3x4xf32>, vector<4x648xf32>, vector<3x648xf32> -> vector<3x648xf32>
    %105 = arith.addf %100, %104 : vector<3x648xf32>
    %c21_92 = arith.constant 21 : index
    %c0_93 = arith.constant 0 : index
    %c0_94 = arith.constant 0 : index
    %106 = vector.load %arg1[%c21_92, %c0_93, %c0_94] : memref<25x3x4xf32, #tpu.memory_space<vmem>>, vector<1x3x4xf32>
    %107 = vector.shape_cast %106 : vector<1x3x4xf32> to vector<3x4xf32>
    %c0_95 = arith.constant 0 : index
    %c73 = arith.constant 73 : index
    %108 = vector.load %arg0[%c0_95, %c73] : memref<4x724xf32, #tpu.memory_space<vmem>>, vector<4x648xf32>
    %cst_96 = arith.constant dense<0.000000e+00> : vector<3x648xf32>
    %109 = tpu.matmul %107, %108, %cst_96 {dimension_numbers = #tpu.dot_dimension_numbers<[1], [0], [0], [1], [0, 0, 1, 1], [], []>} : vector<3x4xf32>, vector<4x648xf32>, vector<3x648xf32> -> vector<3x648xf32>
    %110 = arith.addf %105, %109 : vector<3x648xf32>
    %c22_97 = arith.constant 22 : index
    %c0_98 = arith.constant 0 : index
    %c0_99 = arith.constant 0 : index
    %111 = vector.load %arg1[%c22_97, %c0_98, %c0_99] : memref<25x3x4xf32, #tpu.memory_space<vmem>>, vector<1x3x4xf32>
    %112 = vector.shape_cast %111 : vector<1x3x4xf32> to vector<3x4xf32>
    %c0_100 = arith.constant 0 : index
    %c74 = arith.constant 74 : index
    %113 = vector.load %arg0[%c0_100, %c74] : memref<4x724xf32, #tpu.memory_space<vmem>>, vector<4x648xf32>
    %cst_101 = arith.constant dense<0.000000e+00> : vector<3x648xf32>
    %114 = tpu.matmul %112, %113, %cst_101 {dimension_numbers = #tpu.dot_dimension_numbers<[1], [0], [0], [1], [0, 0, 1, 1], [], []>} : vector<3x4xf32>, vector<4x648xf32>, vector<3x648xf32> -> vector<3x648xf32>
    %115 = arith.addf %110, %114 : vector<3x648xf32>
    %c23 = arith.constant 23 : index
    %c0_102 = arith.constant 0 : index
    %c0_103 = arith.constant 0 : index
    %116 = vector.load %arg1[%c23, %c0_102, %c0_103] : memref<25x3x4xf32, #tpu.memory_space<vmem>>, vector<1x3x4xf32>
    %117 = vector.shape_cast %116 : vector<1x3x4xf32> to vector<3x4xf32>
    %c0_104 = arith.constant 0 : index
    %c75 = arith.constant 75 : index
    %118 = vector.load %arg0[%c0_104, %c75] : memref<4x724xf32, #tpu.memory_space<vmem>>, vector<4x648xf32>
    %cst_105 = arith.constant dense<0.000000e+00> : vector<3x648xf32>
    %119 = tpu.matmul %117, %118, %cst_105 {dimension_numbers = #tpu.dot_dimension_numbers<[1], [0], [0], [1], [0, 0, 1, 1], [], []>} : vector<3x4xf32>, vector<4x648xf32>, vector<3x648xf32> -> vector<3x648xf32>
    %120 = arith.addf %115, %119 : vector<3x648xf32>
    %c24 = arith.constant 24 : index
    %c0_106 = arith.constant 0 : index
    %c0_107 = arith.constant 0 : index
    %121 = vector.load %arg1[%c24, %c0_106, %c0_107] : memref<25x3x4xf32, #tpu.memory_space<vmem>>, vector<1x3x4xf32>
    %122 = vector.shape_cast %121 : vector<1x3x4xf32> to vector<3x4xf32>
    %c0_108 = arith.constant 0 : index
    %c76 = arith.constant 76 : index
    %123 = vector.load %arg0[%c0_108, %c76] : memref<4x724xf32, #tpu.memory_space<vmem>>, vector<4x648xf32>
    %cst_109 = arith.constant dense<0.000000e+00> : vector<3x648xf32>
    %124 = tpu.matmul %122, %123, %cst_109 {dimension_numbers = #tpu.dot_dimension_numbers<[1], [0], [0], [1], [0, 0, 1, 1], [], []>} : vector<3x4xf32>, vector<4x648xf32>, vector<3x648xf32> -> vector<3x648xf32>
    %125 = arith.addf %120, %124 : vector<3x648xf32>
    %c0_110 = arith.constant 0 : index
    %c0_111 = arith.constant 0 : index
    %126 = vector.load %arg7[%c0_110, %c0_111] : memref<1x648xf32, #tpu.memory_space<vmem>>, vector<1x648xf32>
    %127 = vector.broadcast %126 : vector<1x648xf32> to vector<3x648xf32>
    %128 = arith.mulf %125, %127 : vector<3x648xf32>
    %cst_112 = arith.constant dense<0.000000e+00> : vector<3xf32>
    %129 = vector.multi_reduction <add>, %128, %cst_112 [1] : vector<3x648xf32> to vector<3xf32>
    %130 = vector.shape_cast %129 : vector<3xf32> to vector<3x1xf32>
    %cst_113 = arith.constant 0.00255102036 : f32
    %131 = vector.broadcast %cst_113 : f32 to vector<3x1xf32>
    %132 = arith.mulf %130, %131 : vector<3x1xf32>
    %133 = vector.broadcast %132 : vector<3x1xf32> to vector<3x648xf32>
    %134 = arith.subf %125, %133 : vector<3x648xf32>
    %135 = arith.mulf %134, %134 : vector<3x648xf32>
    %136 = vector.broadcast %126 : vector<1x648xf32> to vector<3x648xf32>
    %137 = arith.mulf %135, %136 : vector<3x648xf32>
    %cst_114 = arith.constant dense<0.000000e+00> : vector<3xf32>
    %138 = vector.multi_reduction <add>, %137, %cst_114 [1] : vector<3x648xf32> to vector<3xf32>
    %139 = vector.shape_cast %138 : vector<3xf32> to vector<3x1xf32>
    %cst_115 = arith.constant 0.00255102036 : f32
    %140 = vector.broadcast %cst_115 : f32 to vector<3x1xf32>
    %141 = arith.mulf %139, %140 : vector<3x1xf32>
    %cst_116 = arith.constant 9.99999974E-6 : f32
    %142 = vector.broadcast %cst_116 : f32 to vector<3x1xf32>
    %143 = arith.addf %141, %142 : vector<3x1xf32>
    %144 = math.rsqrt %143 : vector<3x1xf32>
    %145 = vector.broadcast %144 : vector<3x1xf32> to vector<3x648xf32>
    %146 = arith.mulf %134, %145 : vector<3x648xf32>
    %c0_117 = arith.constant 0 : index
    %c0_118 = arith.constant 0 : index
    %147 = vector.load %arg3[%c0_117, %c0_118] : memref<3x1xf32, #tpu.memory_space<vmem>>, vector<3x1xf32>
    %148 = vector.broadcast %147 : vector<3x1xf32> to vector<3x648xf32>
    %149 = arith.mulf %146, %148 : vector<3x648xf32>
    %c0_119 = arith.constant 0 : index
    %c0_120 = arith.constant 0 : index
    %150 = vector.load %arg4[%c0_119, %c0_120] : memref<3x1xf32, #tpu.memory_space<vmem>>, vector<3x1xf32>
    %151 = vector.broadcast %150 : vector<3x1xf32> to vector<3x648xf32>
    %152 = arith.addf %149, %151 : vector<3x648xf32>
    %cst_121 = arith.constant 0.000000e+00 : f32
    %153 = vector.broadcast %cst_121 : f32 to vector<3x648xf32>
    %154 = arith.maximumf %152, %153 : vector<3x648xf32>
    %155 = vector.extract_strided_slice %154 {offsets = [0, 0], sizes = [3, 629], strides = [1, 1]} : vector<3x648xf32> to vector<3x629xf32>
    %156 = vector.extract_strided_slice %154 {offsets = [0, 1], sizes = [3, 629], strides = [1, 1]} : vector<3x648xf32> to vector<3x629xf32>
    %157 = arith.maximumf %155, %156 : vector<3x629xf32>
    %158 = vector.extract_strided_slice %154 {offsets = [0, 18], sizes = [3, 629], strides = [1, 1]} : vector<3x648xf32> to vector<3x629xf32>
    %159 = vector.extract_strided_slice %154 {offsets = [0, 19], sizes = [3, 629], strides = [1, 1]} : vector<3x648xf32> to vector<3x629xf32>
    %160 = arith.maximumf %158, %159 : vector<3x629xf32>
    %161 = arith.maximumf %157, %160 : vector<3x629xf32>
    %c0_122 = arith.constant 0 : index
    %c0_123 = arith.constant 0 : index
    %162 = vector.load %arg8[%c0_122, %c0_123] : memref<1x629xf32, #tpu.memory_space<vmem>>, vector<1x629xf32>
    %163 = vector.broadcast %162 : vector<1x629xf32> to vector<3x629xf32>
    %164 = arith.mulf %161, %163 : vector<3x629xf32>
    %cst_124 = arith.constant 0.000000e+00 : f32
    %165 = vector.broadcast %cst_124 : f32 to vector<4x515xf32>
    %c0_125 = arith.constant 0 : index
    %c0_126 = arith.constant 0 : index
    %c0_127 = arith.constant 0 : index
    %166 = vector.load %arg2[%c0_125, %c0_126, %c0_127] : memref<16x4x3xf32, #tpu.memory_space<vmem>>, vector<1x4x3xf32>
    %167 = vector.shape_cast %166 : vector<1x4x3xf32> to vector<4x3xf32>
    %168 = vector.extract_strided_slice %164 {offsets = [0, 0], sizes = [3, 515], strides = [1, 1]} : vector<3x629xf32> to vector<3x515xf32>
    %cst_128 = arith.constant dense<0.000000e+00> : vector<4x515xf32>
    %169 = tpu.matmul %167, %168, %cst_128 {dimension_numbers = #tpu.dot_dimension_numbers<[1], [0], [0], [1], [0, 0, 1, 1], [], []>} : vector<4x3xf32>, vector<3x515xf32>, vector<4x515xf32> -> vector<4x515xf32>
    %170 = arith.addf %165, %169 : vector<4x515xf32>
    %c1_129 = arith.constant 1 : index
    %c0_130 = arith.constant 0 : index
    %c0_131 = arith.constant 0 : index
    %171 = vector.load %arg2[%c1_129, %c0_130, %c0_131] : memref<16x4x3xf32, #tpu.memory_space<vmem>>, vector<1x4x3xf32>
    %172 = vector.shape_cast %171 : vector<1x4x3xf32> to vector<4x3xf32>
    %173 = vector.extract_strided_slice %164 {offsets = [0, 2], sizes = [3, 515], strides = [1, 1]} : vector<3x629xf32> to vector<3x515xf32>
    %cst_132 = arith.constant dense<0.000000e+00> : vector<4x515xf32>
    %174 = tpu.matmul %172, %173, %cst_132 {dimension_numbers = #tpu.dot_dimension_numbers<[1], [0], [0], [1], [0, 0, 1, 1], [], []>} : vector<4x3xf32>, vector<3x515xf32>, vector<4x515xf32> -> vector<4x515xf32>
    %175 = arith.addf %170, %174 : vector<4x515xf32>
    %c2_133 = arith.constant 2 : index
    %c0_134 = arith.constant 0 : index
    %c0_135 = arith.constant 0 : index
    %176 = vector.load %arg2[%c2_133, %c0_134, %c0_135] : memref<16x4x3xf32, #tpu.memory_space<vmem>>, vector<1x4x3xf32>
    %177 = vector.shape_cast %176 : vector<1x4x3xf32> to vector<4x3xf32>
    %178 = vector.extract_strided_slice %164 {offsets = [0, 4], sizes = [3, 515], strides = [1, 1]} : vector<3x629xf32> to vector<3x515xf32>
    %cst_136 = arith.constant dense<0.000000e+00> : vector<4x515xf32>
    %179 = tpu.matmul %177, %178, %cst_136 {dimension_numbers = #tpu.dot_dimension_numbers<[1], [0], [0], [1], [0, 0, 1, 1], [], []>} : vector<4x3xf32>, vector<3x515xf32>, vector<4x515xf32> -> vector<4x515xf32>
    %180 = arith.addf %175, %179 : vector<4x515xf32>
    %c3_137 = arith.constant 3 : index
    %c0_138 = arith.constant 0 : index
    %c0_139 = arith.constant 0 : index
    %181 = vector.load %arg2[%c3_137, %c0_138, %c0_139] : memref<16x4x3xf32, #tpu.memory_space<vmem>>, vector<1x4x3xf32>
    %182 = vector.shape_cast %181 : vector<1x4x3xf32> to vector<4x3xf32>
    %183 = vector.extract_strided_slice %164 {offsets = [0, 6], sizes = [3, 515], strides = [1, 1]} : vector<3x629xf32> to vector<3x515xf32>
    %cst_140 = arith.constant dense<0.000000e+00> : vector<4x515xf32>
    %184 = tpu.matmul %182, %183, %cst_140 {dimension_numbers = #tpu.dot_dimension_numbers<[1], [0], [0], [1], [0, 0, 1, 1], [], []>} : vector<4x3xf32>, vector<3x515xf32>, vector<4x515xf32> -> vector<4x515xf32>
    %185 = arith.addf %180, %184 : vector<4x515xf32>
    %c4_141 = arith.constant 4 : index
    %c0_142 = arith.constant 0 : index
    %c0_143 = arith.constant 0 : index
    %186 = vector.load %arg2[%c4_141, %c0_142, %c0_143] : memref<16x4x3xf32, #tpu.memory_space<vmem>>, vector<1x4x3xf32>
    %187 = vector.shape_cast %186 : vector<1x4x3xf32> to vector<4x3xf32>
    %188 = vector.extract_strided_slice %164 {offsets = [0, 36], sizes = [3, 515], strides = [1, 1]} : vector<3x629xf32> to vector<3x515xf32>
    %cst_144 = arith.constant dense<0.000000e+00> : vector<4x515xf32>
    %189 = tpu.matmul %187, %188, %cst_144 {dimension_numbers = #tpu.dot_dimension_numbers<[1], [0], [0], [1], [0, 0, 1, 1], [], []>} : vector<4x3xf32>, vector<3x515xf32>, vector<4x515xf32> -> vector<4x515xf32>
    %190 = arith.addf %185, %189 : vector<4x515xf32>
    %c5_145 = arith.constant 5 : index
    %c0_146 = arith.constant 0 : index
    %c0_147 = arith.constant 0 : index
    %191 = vector.load %arg2[%c5_145, %c0_146, %c0_147] : memref<16x4x3xf32, #tpu.memory_space<vmem>>, vector<1x4x3xf32>
    %192 = vector.shape_cast %191 : vector<1x4x3xf32> to vector<4x3xf32>
    %193 = vector.extract_strided_slice %164 {offsets = [0, 38], sizes = [3, 515], strides = [1, 1]} : vector<3x629xf32> to vector<3x515xf32>
    %cst_148 = arith.constant dense<0.000000e+00> : vector<4x515xf32>
    %194 = tpu.matmul %192, %193, %cst_148 {dimension_numbers = #tpu.dot_dimension_numbers<[1], [0], [0], [1], [0, 0, 1, 1], [], []>} : vector<4x3xf32>, vector<3x515xf32>, vector<4x515xf32> -> vector<4x515xf32>
    %195 = arith.addf %190, %194 : vector<4x515xf32>
    %c6_149 = arith.constant 6 : index
    %c0_150 = arith.constant 0 : index
    %c0_151 = arith.constant 0 : index
    %196 = vector.load %arg2[%c6_149, %c0_150, %c0_151] : memref<16x4x3xf32, #tpu.memory_space<vmem>>, vector<1x4x3xf32>
    %197 = vector.shape_cast %196 : vector<1x4x3xf32> to vector<4x3xf32>
    %198 = vector.extract_strided_slice %164 {offsets = [0, 40], sizes = [3, 515], strides = [1, 1]} : vector<3x629xf32> to vector<3x515xf32>
    %cst_152 = arith.constant dense<0.000000e+00> : vector<4x515xf32>
    %199 = tpu.matmul %197, %198, %cst_152 {dimension_numbers = #tpu.dot_dimension_numbers<[1], [0], [0], [1], [0, 0, 1, 1], [], []>} : vector<4x3xf32>, vector<3x515xf32>, vector<4x515xf32> -> vector<4x515xf32>
    %200 = arith.addf %195, %199 : vector<4x515xf32>
    %c7_153 = arith.constant 7 : index
    %c0_154 = arith.constant 0 : index
    %c0_155 = arith.constant 0 : index
    %201 = vector.load %arg2[%c7_153, %c0_154, %c0_155] : memref<16x4x3xf32, #tpu.memory_space<vmem>>, vector<1x4x3xf32>
    %202 = vector.shape_cast %201 : vector<1x4x3xf32> to vector<4x3xf32>
    %203 = vector.extract_strided_slice %164 {offsets = [0, 42], sizes = [3, 515], strides = [1, 1]} : vector<3x629xf32> to vector<3x515xf32>
    %cst_156 = arith.constant dense<0.000000e+00> : vector<4x515xf32>
    %204 = tpu.matmul %202, %203, %cst_156 {dimension_numbers = #tpu.dot_dimension_numbers<[1], [0], [0], [1], [0, 0, 1, 1], [], []>} : vector<4x3xf32>, vector<3x515xf32>, vector<4x515xf32> -> vector<4x515xf32>
    %205 = arith.addf %200, %204 : vector<4x515xf32>
    %c8_157 = arith.constant 8 : index
    %c0_158 = arith.constant 0 : index
    %c0_159 = arith.constant 0 : index
    %206 = vector.load %arg2[%c8_157, %c0_158, %c0_159] : memref<16x4x3xf32, #tpu.memory_space<vmem>>, vector<1x4x3xf32>
    %207 = vector.shape_cast %206 : vector<1x4x3xf32> to vector<4x3xf32>
    %208 = vector.extract_strided_slice %164 {offsets = [0, 72], sizes = [3, 515], strides = [1, 1]} : vector<3x629xf32> to vector<3x515xf32>
    %cst_160 = arith.constant dense<0.000000e+00> : vector<4x515xf32>
    %209 = tpu.matmul %207, %208, %cst_160 {dimension_numbers = #tpu.dot_dimension_numbers<[1], [0], [0], [1], [0, 0, 1, 1], [], []>} : vector<4x3xf32>, vector<3x515xf32>, vector<4x515xf32> -> vector<4x515xf32>
    %210 = arith.addf %205, %209 : vector<4x515xf32>
    %c9_161 = arith.constant 9 : index
    %c0_162 = arith.constant 0 : index
    %c0_163 = arith.constant 0 : index
    %211 = vector.load %arg2[%c9_161, %c0_162, %c0_163] : memref<16x4x3xf32, #tpu.memory_space<vmem>>, vector<1x4x3xf32>
    %212 = vector.shape_cast %211 : vector<1x4x3xf32> to vector<4x3xf32>
    %213 = vector.extract_strided_slice %164 {offsets = [0, 74], sizes = [3, 515], strides = [1, 1]} : vector<3x629xf32> to vector<3x515xf32>
    %cst_164 = arith.constant dense<0.000000e+00> : vector<4x515xf32>
    %214 = tpu.matmul %212, %213, %cst_164 {dimension_numbers = #tpu.dot_dimension_numbers<[1], [0], [0], [1], [0, 0, 1, 1], [], []>} : vector<4x3xf32>, vector<3x515xf32>, vector<4x515xf32> -> vector<4x515xf32>
    %215 = arith.addf %210, %214 : vector<4x515xf32>
    %c10_165 = arith.constant 10 : index
    %c0_166 = arith.constant 0 : index
    %c0_167 = arith.constant 0 : index
    %216 = vector.load %arg2[%c10_165, %c0_166, %c0_167] : memref<16x4x3xf32, #tpu.memory_space<vmem>>, vector<1x4x3xf32>
    %217 = vector.shape_cast %216 : vector<1x4x3xf32> to vector<4x3xf32>
    %218 = vector.extract_strided_slice %164 {offsets = [0, 76], sizes = [3, 515], strides = [1, 1]} : vector<3x629xf32> to vector<3x515xf32>
    %cst_168 = arith.constant dense<0.000000e+00> : vector<4x515xf32>
    %219 = tpu.matmul %217, %218, %cst_168 {dimension_numbers = #tpu.dot_dimension_numbers<[1], [0], [0], [1], [0, 0, 1, 1], [], []>} : vector<4x3xf32>, vector<3x515xf32>, vector<4x515xf32> -> vector<4x515xf32>
    %220 = arith.addf %215, %219 : vector<4x515xf32>
    %c11_169 = arith.constant 11 : index
    %c0_170 = arith.constant 0 : index
    %c0_171 = arith.constant 0 : index
    %221 = vector.load %arg2[%c11_169, %c0_170, %c0_171] : memref<16x4x3xf32, #tpu.memory_space<vmem>>, vector<1x4x3xf32>
    %222 = vector.shape_cast %221 : vector<1x4x3xf32> to vector<4x3xf32>
    %223 = vector.extract_strided_slice %164 {offsets = [0, 78], sizes = [3, 515], strides = [1, 1]} : vector<3x629xf32> to vector<3x515xf32>
    %cst_172 = arith.constant dense<0.000000e+00> : vector<4x515xf32>
    %224 = tpu.matmul %222, %223, %cst_172 {dimension_numbers = #tpu.dot_dimension_numbers<[1], [0], [0], [1], [0, 0, 1, 1], [], []>} : vector<4x3xf32>, vector<3x515xf32>, vector<4x515xf32> -> vector<4x515xf32>
    %225 = arith.addf %220, %224 : vector<4x515xf32>
    %c12_173 = arith.constant 12 : index
    %c0_174 = arith.constant 0 : index
    %c0_175 = arith.constant 0 : index
    %226 = vector.load %arg2[%c12_173, %c0_174, %c0_175] : memref<16x4x3xf32, #tpu.memory_space<vmem>>, vector<1x4x3xf32>
    %227 = vector.shape_cast %226 : vector<1x4x3xf32> to vector<4x3xf32>
    %228 = vector.extract_strided_slice %164 {offsets = [0, 108], sizes = [3, 515], strides = [1, 1]} : vector<3x629xf32> to vector<3x515xf32>
    %cst_176 = arith.constant dense<0.000000e+00> : vector<4x515xf32>
    %229 = tpu.matmul %227, %228, %cst_176 {dimension_numbers = #tpu.dot_dimension_numbers<[1], [0], [0], [1], [0, 0, 1, 1], [], []>} : vector<4x3xf32>, vector<3x515xf32>, vector<4x515xf32> -> vector<4x515xf32>
    %230 = arith.addf %225, %229 : vector<4x515xf32>
    %c13_177 = arith.constant 13 : index
    %c0_178 = arith.constant 0 : index
    %c0_179 = arith.constant 0 : index
    %231 = vector.load %arg2[%c13_177, %c0_178, %c0_179] : memref<16x4x3xf32, #tpu.memory_space<vmem>>, vector<1x4x3xf32>
    %232 = vector.shape_cast %231 : vector<1x4x3xf32> to vector<4x3xf32>
    %233 = vector.extract_strided_slice %164 {offsets = [0, 110], sizes = [3, 515], strides = [1, 1]} : vector<3x629xf32> to vector<3x515xf32>
    %cst_180 = arith.constant dense<0.000000e+00> : vector<4x515xf32>
    %234 = tpu.matmul %232, %233, %cst_180 {dimension_numbers = #tpu.dot_dimension_numbers<[1], [0], [0], [1], [0, 0, 1, 1], [], []>} : vector<4x3xf32>, vector<3x515xf32>, vector<4x515xf32> -> vector<4x515xf32>
    %235 = arith.addf %230, %234 : vector<4x515xf32>
    %c14_181 = arith.constant 14 : index
    %c0_182 = arith.constant 0 : index
    %c0_183 = arith.constant 0 : index
    %236 = vector.load %arg2[%c14_181, %c0_182, %c0_183] : memref<16x4x3xf32, #tpu.memory_space<vmem>>, vector<1x4x3xf32>
    %237 = vector.shape_cast %236 : vector<1x4x3xf32> to vector<4x3xf32>
    %238 = vector.extract_strided_slice %164 {offsets = [0, 112], sizes = [3, 515], strides = [1, 1]} : vector<3x629xf32> to vector<3x515xf32>
    %cst_184 = arith.constant dense<0.000000e+00> : vector<4x515xf32>
    %239 = tpu.matmul %237, %238, %cst_184 {dimension_numbers = #tpu.dot_dimension_numbers<[1], [0], [0], [1], [0, 0, 1, 1], [], []>} : vector<4x3xf32>, vector<3x515xf32>, vector<4x515xf32> -> vector<4x515xf32>
    %240 = arith.addf %235, %239 : vector<4x515xf32>
    %c15_185 = arith.constant 15 : index
    %c0_186 = arith.constant 0 : index
    %c0_187 = arith.constant 0 : index
    %241 = vector.load %arg2[%c15_185, %c0_186, %c0_187] : memref<16x4x3xf32, #tpu.memory_space<vmem>>, vector<1x4x3xf32>
    %242 = vector.shape_cast %241 : vector<1x4x3xf32> to vector<4x3xf32>
    %243 = vector.extract_strided_slice %164 {offsets = [0, 114], sizes = [3, 515], strides = [1, 1]} : vector<3x629xf32> to vector<3x515xf32>
    %cst_188 = arith.constant dense<0.000000e+00> : vector<4x515xf32>
    %244 = tpu.matmul %242, %243, %cst_188 {dimension_numbers = #tpu.dot_dimension_numbers<[1], [0], [0], [1], [0, 0, 1, 1], [], []>} : vector<4x3xf32>, vector<3x515xf32>, vector<4x515xf32> -> vector<4x515xf32>
    %245 = arith.addf %240, %244 : vector<4x515xf32>
    %c0_189 = arith.constant 0 : index
    %c0_190 = arith.constant 0 : index
    %246 = vector.load %arg9[%c0_189, %c0_190] : memref<1x515xf32, #tpu.memory_space<vmem>>, vector<1x515xf32>
    %247 = vector.broadcast %246 : vector<1x515xf32> to vector<4x515xf32>
    %248 = arith.mulf %245, %247 : vector<4x515xf32>
    %cst_191 = arith.constant dense<0.000000e+00> : vector<4xf32>
    %249 = vector.multi_reduction <add>, %248, %cst_191 [1] : vector<4x515xf32> to vector<4xf32>
    %250 = vector.shape_cast %249 : vector<4xf32> to vector<4x1xf32>
    %cst_192 = arith.constant 0.013888889 : f32
    %251 = vector.broadcast %cst_192 : f32 to vector<4x1xf32>
    %252 = arith.mulf %250, %251 : vector<4x1xf32>
    %253 = vector.broadcast %252 : vector<4x1xf32> to vector<4x515xf32>
    %254 = arith.subf %245, %253 : vector<4x515xf32>
    %255 = arith.mulf %254, %254 : vector<4x515xf32>
    %256 = vector.broadcast %246 : vector<1x515xf32> to vector<4x515xf32>
    %257 = arith.mulf %255, %256 : vector<4x515xf32>
    %cst_193 = arith.constant dense<0.000000e+00> : vector<4xf32>
    %258 = vector.multi_reduction <add>, %257, %cst_193 [1] : vector<4x515xf32> to vector<4xf32>
    %259 = vector.shape_cast %258 : vector<4xf32> to vector<4x1xf32>
    %cst_194 = arith.constant 0.013888889 : f32
    %260 = vector.broadcast %cst_194 : f32 to vector<4x1xf32>
    %261 = arith.mulf %259, %260 : vector<4x1xf32>
    %cst_195 = arith.constant 9.99999974E-6 : f32
    %262 = vector.broadcast %cst_195 : f32 to vector<4x1xf32>
    %263 = arith.addf %261, %262 : vector<4x1xf32>
    %264 = math.rsqrt %263 : vector<4x1xf32>
    %265 = vector.broadcast %264 : vector<4x1xf32> to vector<4x515xf32>
    %266 = arith.mulf %254, %265 : vector<4x515xf32>
    %c0_196 = arith.constant 0 : index
    %c0_197 = arith.constant 0 : index
    %267 = vector.load %arg5[%c0_196, %c0_197] : memref<4x1xf32, #tpu.memory_space<vmem>>, vector<4x1xf32>
    %268 = vector.broadcast %267 : vector<4x1xf32> to vector<4x515xf32>
    %269 = arith.mulf %266, %268 : vector<4x515xf32>
    %c0_198 = arith.constant 0 : index
    %c0_199 = arith.constant 0 : index
    %270 = vector.load %arg6[%c0_198, %c0_199] : memref<4x1xf32, #tpu.memory_space<vmem>>, vector<4x1xf32>
    %271 = vector.broadcast %270 : vector<4x1xf32> to vector<4x515xf32>
    %272 = arith.addf %269, %271 : vector<4x515xf32>
    %cst_200 = arith.constant 0.000000e+00 : f32
    %273 = vector.broadcast %cst_200 : f32 to vector<4x515xf32>
    %274 = arith.maximumf %272, %273 : vector<4x515xf32>
    %275 = vector.extract_strided_slice %274 {offsets = [0, 0], sizes = [4, 477], strides = [1, 1]} : vector<4x515xf32> to vector<4x477xf32>
    %276 = vector.extract_strided_slice %274 {offsets = [0, 2], sizes = [4, 477], strides = [1, 1]} : vector<4x515xf32> to vector<4x477xf32>
    %277 = arith.maximumf %275, %276 : vector<4x477xf32>
    %278 = vector.extract_strided_slice %274 {offsets = [0, 36], sizes = [4, 477], strides = [1, 1]} : vector<4x515xf32> to vector<4x477xf32>
    %279 = vector.extract_strided_slice %274 {offsets = [0, 38], sizes = [4, 477], strides = [1, 1]} : vector<4x515xf32> to vector<4x477xf32>
    %280 = arith.maximumf %278, %279 : vector<4x477xf32>
    %281 = arith.maximumf %277, %280 : vector<4x477xf32>
    %c0_201 = arith.constant 0 : index
    %c0_202 = arith.constant 0 : index
    %282 = vector.load %arg10[%c0_201, %c0_202] : memref<477x18xf32, #tpu.memory_space<vmem>>, vector<477x18xf32>
    %cst_203 = arith.constant dense<0.000000e+00> : vector<4x18xf32>
    %283 = tpu.matmul %281, %282, %cst_203 {dimension_numbers = #tpu.dot_dimension_numbers<[1], [0], [0], [1], [0, 0, 1, 1], [], []>} : vector<4x477xf32>, vector<477x18xf32>, vector<4x18xf32> -> vector<4x18xf32>
    %c0_204 = arith.constant 0 : index
    %c0_205 = arith.constant 0 : index
    %284 = vector.load %arg11[%c0_204, %c0_205] : memref<4x18xf32, #tpu.memory_space<vmem>>, vector<4x18xf32>
    tpu.vector_store %arg11[%c0_204, %c0_205], %283 {strides = array<i32>} : memref<4x18xf32, #tpu.memory_space<vmem>>, vector<4x18xf32>,
    return
  }
}

</mosaic_0001>

<llo_original>
// kernel: cnn_forward.1
$region0: #{cnn_forward.1}
  #allocation0 [shape = 'u32[]', space=smem, size = 0x4, offset = 0x4, fixed_abs, tag = 'smem constant byte address 0x4 - core index']
  #allocation1 [shape = 'u32[144,128]{1,0:T(1,128)}', space=vmem, size = 0x12000, scoped, tag = 'internal scratch']
  %s0 = inlined_call_operand.vmem [shape: f32[4,724], index: 0, kind: input, shape index: {}]
  %s1 = inlined_call_operand.vmem [shape: f32[25,3,4], index: 1, kind: input, shape index: {}]
  %s2 = inlined_call_operand.vmem [shape: f32[16,4,3], index: 2, kind: input, shape index: {}]
  %s3 = inlined_call_operand.vmem [shape: f32[3,1], index: 3, kind: input, shape index: {}]
  %s4 = inlined_call_operand.vmem [shape: f32[3,1], index: 4, kind: input, shape index: {}]
  %s5 = inlined_call_operand.vmem [shape: f32[4,1], index: 5, kind: input, shape index: {}]
  %s6 = inlined_call_operand.vmem [shape: f32[4,1], index: 6, kind: input, shape index: {}]
  %s7 = inlined_call_operand.vmem [shape: f32[1,648], index: 7, kind: input, shape index: {}]
  %s8 = inlined_call_operand.vmem [shape: f32[1,629], index: 8, kind: input, shape index: {}]
  %s9 = inlined_call_operand.vmem [shape: f32[1,515], index: 9, kind: input, shape index: {}]
  %s10 = inlined_call_operand.vmem [shape: f32[477,18], index: 10, kind: input, shape index: {}]
  %s11 = inlined_call_operand.vmem [shape: f32[4,18], index: 11, kind: output, shape index: {}]
  %s12 = sld [smem:[#allocation0]]
  $region54: #{cnn_forward.1} parent=0
    _
  %s14 = ssub.s32 1, %s12
  %s15 = scalar_select 0, %s14, %s12
  // Predicated region
  $region2: #{cnn_forward.1} parent=0 // pred_check
    _
  $region3: #{cnn_forward.1} parent=0 // pred_check_branch
    %17 = sbr.rel (0) target = $region5
  $region4: #{cnn_forward.1} parent=0 // pred_region
    _
  $region5: #{cnn_forward.1} parent=0 // pred_fallthru
    _
  // Predicated region
  $region6: #{cnn_forward.1} parent=0 // pred_check
    _
  $region7: #{cnn_forward.1} parent=0 // pred_check_branch
    %19 = sbr.rel (0) target = $region9
  $region8: #{cnn_forward.1} parent=0 // pred_region
    _
  $region9: #{cnn_forward.1} parent=0 // pred_fallthru
    _
  // Predicated region
  $region10: #{cnn_forward.1} parent=0 // pred_check
    _
  $region11: #{cnn_forward.1} parent=0 // pred_check_branch
    %21 = sbr.rel (0) target = $region13
  $region12: #{cnn_forward.1} parent=0 // pred_region
    _
  $region13: #{cnn_forward.1} parent=0 // pred_fallthru
    _
  // Predicated region
  $region14: #{cnn_forward.1} parent=0 // pred_check
    _
  $region15: #{cnn_forward.1} parent=0 // pred_check_branch
    %23 = sbr.rel (0) target = $region17
  $region16: #{cnn_forward.1} parent=0 // pred_region
    _
  $region17: #{cnn_forward.1} parent=0 // pred_fallthru
    _
  // Predicated region
  $region18: #{cnn_forward.1} parent=0 // pred_check
    _
  $region19: #{cnn_forward.1} parent=0 // pred_check_branch
    %25 = sbr.rel (0) target = $region21
  $region20: #{cnn_forward.1} parent=0 // pred_region
    _
  $region21: #{cnn_forward.1} parent=0 // pred_fallthru
    _
  // Predicated region
  $region22: #{cnn_forward.1} parent=0 // pred_check
    _
  $region23: #{cnn_forward.1} parent=0 // pred_check_branch
    %27 = sbr.rel (0) target = $region25
  $region24: #{cnn_forward.1} parent=0 // pred_region
    _
  $region25: #{cnn_forward.1} parent=0 // pred_fallthru
    _
  // Predicated region
  $region26: #{cnn_forward.1} parent=0 // pred_check
    _
  $region27: #{cnn_forward.1} parent=0 // pred_check_branch
    %29 = sbr.rel (0) target = $region29
  $region28: #{cnn_forward.1} parent=0 // pred_region
    _
  $region29: #{cnn_forward.1} parent=0 // pred_fallthru
    _
  // Predicated region
  $region30: #{cnn_forward.1} parent=0 // pred_check
    _
  $region31: #{cnn_forward.1} parent=0 // pred_check_branch
    %31 = sbr.rel (0) target = $region33
  $region32: #{cnn_forward.1} parent=0 // pred_region
    _
  $region33: #{cnn_forward.1} parent=0 // pred_fallthru
    _
  // Predicated region
  $region34: #{cnn_forward.1} parent=0 // pred_check
    _
  $region35: #{cnn_forward.1} parent=0 // pred_check_branch
    %33 = sbr.rel (0) target = $region37
  $region36: #{cnn_forward.1} parent=0 // pred_region
    _
  $region37: #{cnn_forward.1} parent=0 // pred_fallthru
    _
  // Predicated region
  $region38: #{cnn_forward.1} parent=0 // pred_check
    _
  $region39: #{cnn_forward.1} parent=0 // pred_check_branch
    %35 = sbr.rel (0) target = $region41
  $region40: #{cnn_forward.1} parent=0 // pred_region
    _
  $region41: #{cnn_forward.1} parent=0 // pred_fallthru
    _
  // Predicated region
  $region42: #{cnn_forward.1} parent=0 // pred_check
    _
  $region43: #{cnn_forward.1} parent=0 // pred_check_branch
    %37 = sbr.rel (0) target = $region45
  $region44: #{cnn_forward.1} parent=0 // pred_region
    _
  $region45: #{cnn_forward.1} parent=0 // pred_fallthru
    _
  %v38 = vld [vmem:[%s1] sm:$0x7]
  %v39 = vld [vmem:[%s0] sm:$0xff]
  %v40 = vld [vmem:[%s0 + $0x8] sm:$0xff]
  %v41 = vld [vmem:[%s0 + $0x10] sm:$0xff]
  %s42 = scalar_lea.vmem %s1, 4
  %v43 = vld [vmem:[%s42] sm:$0x7]
  %v47 = vcombine.high %v39, %v39
  %v48 = vcombine.high %v40, %v40
  %v49 = vcombine.high %v41, %v41
  %50 = vrot.lane.b32.xlu0 %v39, 127
  %v51 = vpop.permute.xlu0 %50
  %52 = vrot.lane.b32.xlu0 %v47, 127
  %v53 = vpop.permute.xlu0 %52
  %54 = vrot.lane.b32.xlu0 %v40, 127
  %v55 = vpop.permute.xlu0 %54
  %56 = vrot.lane.b32.xlu0 %v48, 127
  %v57 = vpop.permute.xlu0 %56
  %58 = vrot.lane.b32.xlu0 %v41, 127
  %v59 = vpop.permute.xlu0 %58
  %60 = vrot.lane.b32.xlu0 %v49, 127
  %v61 = vpop.permute.xlu0 %60
  %vm62 = vcmask 1039360
  %v63 = vsel %vm62, %v51, %v53
  %v64 = vsel %vm62, %v53, %v55
  %v65 = vsel %vm62, %v55, %v57
  %v66 = vsel %vm62, %v57, %v59
  %v67 = vsel %vm62, %v59, %v61
  %vm68 = vcmask 31744
  %v70 = vsel %vm68, %v43, 0
  %vm72 = vcmask 1043456
  %v73 = vsel %vm72, %v63, 0
  %v75 = vsel %vm72, %v64, 0
  %v77 = vsel %vm72, %v65, 0
  %v79 = vsel %vm72, %v66, 0
  %v81 = vsel %vm72, %v67, 0
  %v83 = vsel %vm72, %v61, 0
  %85 = vmatprep.subr.mxu0 0.0
  %86 = vmatpush1.msra.mxu0 0.0
  %87 = vmatprep.subr.mxu0 0.0
  %88 = vmatpush1.msra.mxu0 0.0
  %89 = vmatprep.subr.mxu0 0.0
  %90 = vmatpush1.msra.mxu0 0.0
  %91 = vmatprep.subr.mxu0 0.0
  %92 = vmatpush1.msra.mxu0 0.0
  %93 = vmatprep.subr.mxu0 0.0
  %94 = vmatpush1.msra.mxu0 0.0
  %95 = vmatprep.subr.mxu0 0.0
  %96 = vmatpush1.msra.mxu0 0.0
  %97 = vmatprep.subr.mxu0 0.0
  %98 = vmatpush1.msra.mxu0 0.0
  %99 = vmatprep.subr.mxu0 0.0
  %100 = vmatpush1.msra.mxu0 0.0
  %101 = vmatprep.subr.mxu0 0.0
  %102 = vmatpush1.msra.mxu0 0.0
  %103 = vmatprep.subr.mxu0 0.0
  %104 = vmatpush1.msra.mxu0 0.0
  %105 = vmatprep.subr.mxu0 0.0
  %106 = vmatpush1.msra.mxu0 0.0
  %107 = vmatprep.subr.mxu0 0.0
  %108 = vmatpush1.msra.mxu0 0.0
  %109 = vmatprep.subr.mxu0 0.0
  %110 = vmatpush1.msra.mxu0 0.0
  %111 = vmatprep.subr.mxu0 0.0
  %112 = vmatpush1.msra.mxu0 0.0
  %113 = vmatprep.subr.mxu0 0.0
  %114 = vmatpush1.msra.mxu0 0.0
  %115 = vmatprep.subr.mxu0 %v75
  %116 = vmatpush1.msra.mxu0 %v73
  %117 = vmatprep.subr.mxu0 0.0
  %118 = vmatpush2.msra.mxu0 0.0
  %119 = vmatprep.subr.mxu0 0.0
  %120 = vmatpush2.msra.mxu0 0.0
  %121 = vmatprep.subr.mxu0 0.0
  %122 = vmatpush2.msra.mxu0 0.0
  %123 = vmatprep.subr.mxu0 0.0
  %124 = vmatpush2.msra.mxu0 0.0
  %125 = vmatprep.subr.mxu0 0.0
  %126 = vmatpush2.msra.mxu0 0.0
  %127 = vmatprep.subr.mxu0 0.0
  %128 = vmatpush2.msra.mxu0 0.0
  %129 = vmatprep.subr.mxu0 0.0
  %130 = vmatpush2.msra.mxu0 0.0
  %131 = vmatprep.subr.mxu0 0.0
  %132 = vmatpush2.msra.mxu0 0.0
  %133 = vmatprep.subr.mxu0 0.0
  %134 = vmatpush2.msra.mxu0 0.0
  %135 = vmatprep.subr.mxu0 0.0
  %136 = vmatpush2.msra.mxu0 0.0
  %137 = vmatprep.subr.mxu0 0.0
  %138 = vmatpush2.msra.mxu0 0.0
  %139 = vmatprep.subr.mxu0 0.0
  %140 = vmatpush2.msra.mxu0 0.0
  %141 = vmatprep.subr.mxu0 0.0
  %142 = vmatpush2.msra.mxu0 0.0
  %143 = vmatprep.subr.mxu0 0.0
  %144 = vmatpush2.msra.mxu0 0.0
  %145 = vmatprep.subr.mxu0 0.0
  %146 = vmatpush2.msra.mxu0 0.0
  %147 = vmatprep.subr.mxu0 0.0
  %148 = vmatpush2.msra.mxu0 0.0
  %149 = vmatprep.mubr.f32.mxu0 0.0
  %150 = vmatmul.mubr.f32.gmra.mxu0 %v70
  %v151 = vpop.f32.mrf.mxu0
  %v152 = vadd.f32 0.0, %v151
  %v153 = vpop.f32.mrf.mxu0
  %v154 = vadd.f32 0.0, %v153
  %155 = vdwg.mxu0
  %156 = vmatprep.subr.mxu0 0.0
  %157 = vmatpush1.msra.mxu0 0.0
  %158 = vmatprep.subr.mxu0 0.0
  %159 = vmatpush1.msra.mxu0 0.0
  %160 = vmatprep.subr.mxu0 0.0
  %161 = vmatpush1.msra.mxu0 0.0
  %162 = vmatprep.subr.mxu0 0.0
  %163 = vmatpush1.msra.mxu0 0.0
  %164 = vmatprep.subr.mxu0 0.0
  %165 = vmatpush1.msra.mxu0 0.0
  %166 = vmatprep.subr.mxu0 0.0
  %167 = vmatpush1.msra.mxu0 0.0
  %168 = vmatprep.subr.mxu0 0.0
  %169 = vmatpush1.msra.mxu0 0.0
  %170 = vmatprep.subr.mxu0 0.0
  %171 = vmatpush1.msra.mxu0 0.0
  %172 = vmatprep.subr.mxu0 0.0
  %173 = vmatpush1.msra.mxu0 0.0
  %174 = vmatprep.subr.mxu0 0.0
  %175 = vmatpush1.msra.mxu0 0.0
  %176 = vmatprep.subr.mxu0 0.0
  %177 = vmatpush1.msra.mxu0 0.0
  %178 = vmatprep.subr.mxu0 0.0
  %179 = vmatpush1.msra.mxu0 0.0
  %180 = vmatprep.subr.mxu0 0.0
  %181 = vmatpush1.msra.mxu0 0.0
  %182 = vmatprep.subr.mxu0 0.0
  %183 = vmatpush1.msra.mxu0 0.0
  %184 = vmatprep.subr.mxu0 0.0
  %185 = vmatpush1.msra.mxu0 0.0
  %186 = vmatprep.subr.mxu0 %v79
  %187 = vmatpush1.msra.mxu0 %v77
  %188 = vmatprep.subr.mxu0 0.0
  %189 = vmatpush2.msra.mxu0 0.0
  %190 = vmatprep.subr.mxu0 0.0
  %191 = vmatpush2.msra.mxu0 0.0
  %192 = vmatprep.subr.mxu0 0.0
  %193 = vmatpush2.msra.mxu0 0.0
  %194 = vmatprep.subr.mxu0 0.0
  %195 = vmatpush2.msra.mxu0 0.0
  %196 = vmatprep.subr.mxu0 0.0
  %197 = vmatpush2.msra.mxu0 0.0
  %198 = vmatprep.subr.mxu0 0.0
  %199 = vmatpush2.msra.mxu0 0.0
  %200 = vmatprep.subr.mxu0 0.0
  %201 = vmatpush2.msra.mxu0 0.0
  %202 = vmatprep.subr.mxu0 0.0
  %203 = vmatpush2.msra.mxu0 0.0
  %204 = vmatprep.subr.mxu0 0.0
  %205 = vmatpush2.msra.mxu0 0.0
  %206 = vmatprep.subr.mxu0 0.0
  %207 = vmatpush2.msra.mxu0 0.0
  %208 = vmatprep.subr.mxu0 0.0
  %209 = vmatpush2.msra.mxu0 0.0
  %210 = vmatprep.subr.mxu0 0.0
  %211 = vmatpush2.msra.mxu0 0.0
  %212 = vmatprep.subr.mxu0 0.0
  %213 = vmatpush2.msra.mxu0 0.0
  %214 = vmatprep.subr.mxu0 0.0
  %215 = vmatpush2.msra.mxu0 0.0
  %216 = vmatprep.subr.mxu0 0.0
  %217 = vmatpush2.msra.mxu0 0.0
  %218 = vmatprep.subr.mxu0 0.0
  %219 = vmatpush2.msra.mxu0 0.0
  %220 = vmatprep.mubr.f32.mxu0 0.0
  %221 = vmatmul.mubr.f32.gmra.mxu0 %v70
  %v222 = vpop.f32.mrf.mxu0
  %v223 = vadd.f32 0.0, %v222
  %v224 = vpop.f32.mrf.mxu0
  %v225 = vadd.f32 0.0, %v224
  %226 = vdwg.mxu0
  %227 = vmatprep.subr.mxu0 0.0
  %228 = vmatpush1.msra.mxu0 0.0
  %229 = vmatprep.subr.mxu0 0.0
  %230 = vmatpush1.msra.mxu0 0.0
  %231 = vmatprep.subr.mxu0 0.0
  %232 = vmatpush1.msra.mxu0 0.0
  %233 = vmatprep.subr.mxu0 0.0
  %234 = vmatpush1.msra.mxu0 0.0
  %235 = vmatprep.subr.mxu0 0.0
  %236 = vmatpush1.msra.mxu0 0.0
  %237 = vmatprep.subr.mxu0 0.0
  %238 = vmatpush1.msra.mxu0 0.0
  %239 = vmatprep.subr.mxu0 0.0
  %240 = vmatpush1.msra.mxu0 0.0
  %241 = vmatprep.subr.mxu0 0.0
  %242 = vmatpush1.msra.mxu0 0.0
  %243 = vmatprep.subr.mxu0 0.0
  %244 = vmatpush1.msra.mxu0 0.0
  %245 = vmatprep.subr.mxu0 0.0
  %246 = vmatpush1.msra.mxu0 0.0
  %247 = vmatprep.subr.mxu0 0.0
  %248 = vmatpush1.msra.mxu0 0.0
  %249 = vmatprep.subr.mxu0 0.0
  %250 = vmatpush1.msra.mxu0 0.0
  %251 = vmatprep.subr.mxu0 0.0
  %252 = vmatpush1.msra.mxu0 0.0
  %253 = vmatprep.subr.mxu0 0.0
  %254 = vmatpush1.msra.mxu0 0.0
  %255 = vmatprep.subr.mxu0 0.0
  %256 = vmatpush1.msra.mxu0 0.0
  %257 = vmatprep.subr.mxu0 %v83
  %258 = vmatpush1.msra.mxu0 %v81
  %259 = vmatprep.subr.mxu0 0.0
  %260 = vmatpush2.msra.mxu0 0.0
  %261 = vmatprep.subr.mxu0 0.0
  %262 = vmatpush2.msra.mxu0 0.0
  %263 = vmatprep.subr.mxu0 0.0
  %264 = vmatpush2.msra.mxu0 0.0
  %265 = vmatprep.subr.mxu0 0.0
  %266 = vmatpush2.msra.mxu0 0.0
  %267 = vmatprep.subr.mxu0 0.0
  %268 = vmatpush2.msra.mxu0 0.0
  %269 = vmatprep.subr.mxu0 0.0
  %270 = vmatpush2.msra.mxu0 0.0
  %271 = vmatprep.subr.mxu0 0.0
  %272 = vmatpush2.msra.mxu0 0.0
  %273 = vmatprep.subr.mxu0 0.0
  %274 = vmatpush2.msra.mxu0 0.0
  %275 = vmatprep.subr.mxu0 0.0
  %276 = vmatpush2.msra.mxu0 0.0
  %277 = vmatprep.subr.mxu0 0.0
  %278 = vmatpush2.msra.mxu0 0.0
  %279 = vmatprep.subr.mxu0 0.0
  %280 = vmatpush2.msra.mxu0 0.0
  %281 = vmatprep.subr.mxu0 0.0
  %282 = vmatpush2.msra.mxu0 0.0
  %283 = vmatprep.subr.mxu0 0.0
  %284 = vmatpush2.msra.mxu0 0.0
  %285 = vmatprep.subr.mxu0 0.0
  %286 = vmatpush2.msra.mxu0 0.0
  %287 = vmatprep.subr.mxu0 0.0
  %288 = vmatpush2.msra.mxu0 0.0
  %289 = vmatprep.subr.mxu0 0.0
  %290 = vmatpush2.msra.mxu0 0.0
  %291 = vmatprep.mubr.f32.mxu0 0.0
  %292 = vmatmul.mubr.f32.gmra.mxu0 %v70
  %v293 = vpop.f32.mrf.mxu0
  %v294 = vadd.f32 0.0, %v293
  %v295 = vpop.f32.mrf.mxu0
  %v296 = vadd.f32 0.0, %v295
  %297 = vdwg.mxu0
  %v299 = vsel %vm68, %v38, 0
  %v301 = vsel %vm72, %v39, 0
  %v303 = vsel %vm72, %v47, 0
  %v305 = vsel %vm72, %v40, 0
  %v307 = vsel %vm72, %v48, 0
  %v309 = vsel %vm72, %v41, 0
  %v311 = vsel %vm72, %v49, 0
  %313 = vmatprep.subr.mxu0 0.0
  %314 = vmatpush1.msra.mxu0 0.0
  %315 = vmatprep.subr.mxu0 0.0
  %316 = vmatpush1.msra.mxu0 0.0
  %317 = vmatprep.subr.mxu0 0.0
  %318 = vmatpush1.msra.mxu0 0.0
  %319 = vmatprep.subr.mxu0 0.0
  %320 = vmatpush1.msra.mxu0 0.0
  %321 = vmatprep.subr.mxu0 0.0
  %322 = vmatpush1.msra.mxu0 0.0
  %323 = vmatprep.subr.mxu0 0.0
  %324 = vmatpush1.msra.mxu0 0.0
  %325 = vmatprep.subr.mxu0 0.0
  %326 = vmatpush1.msra.mxu0 0.0
  %327 = vmatprep.subr.mxu0 0.0
  %328 = vmatpush1.msra.mxu0 0.0
  %329 = vmatprep.subr.mxu0 0.0
  %330 = vmatpush1.msra.mxu0 0.0
  %331 = vmatprep.subr.mxu0 0.0
  %332 = vmatpush1.msra.mxu0 0.0
  %333 = vmatprep.subr.mxu0 0.0
  %334 = vmatpush1.msra.mxu0 0.0
  %335 = vmatprep.subr.mxu0 0.0
  %336 = vmatpush1.msra.mxu0 0.0
  %337 = vmatprep.subr.mxu0 0.0
  %338 = vmatpush1.msra.mxu0 0.0
  %339 = vmatprep.subr.mxu0 0.0
  %340 = vmatpush1.msra.mxu0 0.0
  %341 = vmatprep.subr.mxu0 0.0
  %342 = vmatpush1.msra.mxu0 0.0
  %343 = vmatprep.subr.mxu0 %v303
  %344 = vmatpush1.msra.mxu0 %v301
  %345 = vmatprep.subr.mxu0 0.0
  %346 = vmatpush2.msra.mxu0 0.0
  %347 = vmatprep.subr.mxu0 0.0
  %348 = vmatpush2.msra.mxu0 0.0
  %349 = vmatprep.subr.mxu0 0.0
  %350 = vmatpush2.msra.mxu0 0.0
  %351 = vmatprep.subr.mxu0 0.0
  %352 = vmatpush2.msra.mxu0 0.0
  %353 = vmatprep.subr.mxu0 0.0
  %354 = vmatpush2.msra.mxu0 0.0
  %355 = vmatprep.subr.mxu0 0.0
  %356 = vmatpush2.msra.mxu0 0.0
  %357 = vmatprep.subr.mxu0 0.0
  %358 = vmatpush2.msra.mxu0 0.0
  %359 = vmatprep.subr.mxu0 0.0
  %360 = vmatpush2.msra.mxu0 0.0
  %361 = vmatprep.subr.mxu0 0.0
  %362 = vmatpush2.msra.mxu0 0.0
  %363 = vmatprep.subr.mxu0 0.0
  %364 = vmatpush2.msra.mxu0 0.0
  %365 = vmatprep.subr.mxu0 0.0
  %366 = vmatpush2.msra.mxu0 0.0
  %367 = vmatprep.subr.mxu0 0.0
  %368 = vmatpush2.msra.mxu0 0.0
  %369 = vmatprep.subr.mxu0 0.0
  %370 = vmatpush2.msra.mxu0 0.0
  %371 = vmatprep.subr.mxu0 0.0
  %372 = vmatpush2.msra.mxu0 0.0
  %373 = vmatprep.subr.mxu0 0.0
  %374 = vmatpush2.msra.mxu0 0.0
  %375 = vmatprep.subr.mxu0 0.0
  %376 = vmatpush2.msra.mxu0 0.0
  %377 = vmatprep.mubr.f32.mxu0 0.0
  %378 = vmatmul.mubr.f32.gmra.mxu0 %v299
  %v379 = vpop.f32.mrf.mxu0
  %v380 = vadd.f32 %v152, %v379
  %v381 = vpop.f32.mrf.mxu0
  %v382 = vadd.f32 %v154, %v381
  %383 = vdwg.mxu0
  %384 = vmatprep.subr.mxu0 0.0
  %385 = vmatpush1.msra.mxu0 0.0
  %386 = vmatprep.subr.mxu0 0.0
  %387 = vmatpush1.msra.mxu0 0.0
  %388 = vmatprep.subr.mxu0 0.0
  %389 = vmatpush1.msra.mxu0 0.0
  %390 = vmatprep.subr.mxu0 0.0
  %391 = vmatpush1.msra.mxu0 0.0
  %392 = vmatprep.subr.mxu0 0.0
  %393 = vmatpush1.msra.mxu0 0.0
  %394 = vmatprep.subr.mxu0 0.0
  %395 = vmatpush1.msra.mxu0 0.0
  %396 = vmatprep.subr.mxu0 0.0
  %397 = vmatpush1.msra.mxu0 0.0
  %398 = vmatprep.subr.mxu0 0.0
  %399 = vmatpush1.msra.mxu0 0.0
  %400 = vmatprep.subr.mxu0 0.0
  %401 = vmatpush1.msra.mxu0 0.0
  %402 = vmatprep.subr.mxu0 0.0
  %403 = vmatpush1.msra.mxu0 0.0
  %404 = vmatprep.subr.mxu0 0.0
  %405 = vmatpush1.msra.mxu0 0.0
  %406 = vmatprep.subr.mxu0 0.0
  %407 = vmatpush1.msra.mxu0 0.0
  %408 = vmatprep.subr.mxu0 0.0
  %409 = vmatpush1.msra.mxu0 0.0
  %410 = vmatprep.subr.mxu0 0.0
  %411 = vmatpush1.msra.mxu0 0.0
  %412 = vmatprep.subr.mxu0 0.0
  %413 = vmatpush1.msra.mxu0 0.0
  %414 = vmatprep.subr.mxu0 %v307
  %415 = vmatpush1.msra.mxu0 %v305
  %416 = vmatprep.subr.mxu0 0.0
  %417 = vmatpush2.msra.mxu0 0.0
  %418 = vmatprep.subr.mxu0 0.0
  %419 = vmatpush2.msra.mxu0 0.0
  %420 = vmatprep.subr.mxu0 0.0
  %421 = vmatpush2.msra.mxu0 0.0
  %422 = vmatprep.subr.mxu0 0.0
  %423 = vmatpush2.msra.mxu0 0.0
  %424 = vmatprep.subr.mxu0 0.0
  %425 = vmatpush2.msra.mxu0 0.0
  %426 = vmatprep.subr.mxu0 0.0
  %427 = vmatpush2.msra.mxu0 0.0
  %428 = vmatprep.subr.mxu0 0.0
  %429 = vmatpush2.msra.mxu0 0.0
  %430 = vmatprep.subr.mxu0 0.0
  %431 = vmatpush2.msra.mxu0 0.0
  %432 = vmatprep.subr.mxu0 0.0
  %433 = vmatpush2.msra.mxu0 0.0
  %434 = vmatprep.subr.mxu0 0.0
  %435 = vmatpush2.msra.mxu0 0.0
  %436 = vmatprep.subr.mxu0 0.0
  %437 = vmatpush2.msra.mxu0 0.0
  %438 = vmatprep.subr.mxu0 0.0
  %439 = vmatpush2.msra.mxu0 0.0
  %440 = vmatprep.subr.mxu0 0.0
  %441 = vmatpush2.msra.mxu0 0.0
  %442 = vmatprep.subr.mxu0 0.0
  %443 = vmatpush2.msra.mxu0 0.0
  %444 = vmatprep.subr.mxu0 0.0
  %445 = vmatpush2.msra.mxu0 0.0
  %446 = vmatprep.subr.mxu0 0.0
  %447 = vmatpush2.msra.mxu0 0.0
  %448 = vmatprep.mubr.f32.mxu0 0.0
  %449 = vmatmul.mubr.f32.gmra.mxu0 %v299
  %v450 = vpop.f32.mrf.mxu0
  %v451 = vadd.f32 %v223, %v450
  %v452 = vpop.f32.mrf.mxu0
  %v453 = vadd.f32 %v225, %v452
  %454 = vdwg.mxu0
  %455 = vmatprep.subr.mxu0 0.0
  %456 = vmatpush1.msra.mxu0 0.0
  %457 = vmatprep.subr.mxu0 0.0
  %458 = vmatpush1.msra.mxu0 0.0
  %459 = vmatprep.subr.mxu0 0.0
  %460 = vmatpush1.msra.mxu0 0.0
  %461 = vmatprep.subr.mxu0 0.0
  %462 = vmatpush1.msra.mxu0 0.0
  %463 = vmatprep.subr.mxu0 0.0
  %464 = vmatpush1.msra.mxu0 0.0
  %465 = vmatprep.subr.mxu0 0.0
  %466 = vmatpush1.msra.mxu0 0.0
  %467 = vmatprep.subr.mxu0 0.0
  %468 = vmatpush1.msra.mxu0 0.0
  %469 = vmatprep.subr.mxu0 0.0
  %470 = vmatpush1.msra.mxu0 0.0
  %471 = vmatprep.subr.mxu0 0.0
  %472 = vmatpush1.msra.mxu0 0.0
  %473 = vmatprep.subr.mxu0 0.0
  %474 = vmatpush1.msra.mxu0 0.0
  %475 = vmatprep.subr.mxu0 0.0
  %476 = vmatpush1.msra.mxu0 0.0
  %477 = vmatprep.subr.mxu0 0.0
  %478 = vmatpush1.msra.mxu0 0.0
  %479 = vmatprep.subr.mxu0 0.0
  %480 = vmatpush1.msra.mxu0 0.0
  %481 = vmatprep.subr.mxu0 0.0
  %482 = vmatpush1.msra.mxu0 0.0
  %483 = vmatprep.subr.mxu0 0.0
  %484 = vmatpush1.msra.mxu0 0.0
  %485 = vmatprep.subr.mxu0 %v311
  %486 = vmatpush1.msra.mxu0 %v309
  %487 = vmatprep.subr.mxu0 0.0
  %488 = vmatpush2.msra.mxu0 0.0
  %489 = vmatprep.subr.mxu0 0.0
  %490 = vmatpush2.msra.mxu0 0.0
  %491 = vmatprep.subr.mxu0 0.0
  %492 = vmatpush2.msra.mxu0 0.0
  %493 = vmatprep.subr.mxu0 0.0
  %494 = vmatpush2.msra.mxu0 0.0
  %495 = vmatprep.subr.mxu0 0.0
  %496 = vmatpush2.msra.mxu0 0.0
  %497 = vmatprep.subr.mxu0 0.0
  %498 = vmatpush2.msra.mxu0 0.0
  %499 = vmatprep.subr.mxu0 0.0
  %500 = vmatpush2.msra.mxu0 0.0
  %501 = vmatprep.subr.mxu0 0.0
  %502 = vmatpush2.msra.mxu0 0.0
  %503 = vmatprep.subr.mxu0 0.0
  %504 = vmatpush2.msra.mxu0 0.0
  %505 = vmatprep.subr.mxu0 0.0
  %506 = vmatpush2.msra.mxu0 0.0
  %507 = vmatprep.subr.mxu0 0.0
  %508 = vmatpush2.msra.mxu0 0.0
  %509 = vmatprep.subr.mxu0 0.0
  %510 = vmatpush2.msra.mxu0 0.0
  %511 = vmatprep.subr.mxu0 0.0
  %512 = vmatpush2.msra.mxu0 0.0
  %513 = vmatprep.subr.mxu0 0.0
  %514 = vmatpush2.msra.mxu0 0.0
  %515 = vmatprep.subr.mxu0 0.0
  %516 = vmatpush2.msra.mxu0 0.0
  %517 = vmatprep.subr.mxu0 0.0
  %518 = vmatpush2.msra.mxu0 0.0
  %519 = vmatprep.mubr.f32.mxu0 0.0
  %520 = vmatmul.mubr.f32.gmra.mxu0 %v299
  %v521 = vpop.f32.mrf.mxu0
  %v522 = vadd.f32 %v294, %v521
  %v523 = vpop.f32.mrf.mxu0
  %v524 = vadd.f32 %v296, %v523
  %525 = vdwg.mxu0
  %s526 = scalar_lea.vmem %s1, 8
  %v527 = vld [vmem:[%s526] sm:$0x7]
  %v528 = vld [vmem:[%s0] sm:$0xff]
  %v529 = vld [vmem:[%s0 + $0x8] sm:$0xff]
  %v530 = vld [vmem:[%s0 + $0x10] sm:$0xff]
  %v534 = vcombine.high %v528, %v528
  %v535 = vcombine.high %v529, %v529
  %v536 = vcombine.high %v530, %v530
  %537 = vrot.lane.b32.xlu0 %v528, 126
  %v538 = vpop.permute.xlu0 %537
  %539 = vrot.lane.b32.xlu0 %v534, 126
  %v540 = vpop.permute.xlu0 %539
  %541 = vrot.lane.b32.xlu0 %v529, 126
  %v542 = vpop.permute.xlu0 %541
  %543 = vrot.lane.b32.xlu0 %v535, 126
  %v544 = vpop.permute.xlu0 %543
  %545 = vrot.lane.b32.xlu0 %v530, 126
  %v546 = vpop.permute.xlu0 %545
  %547 = vrot.lane.b32.xlu0 %v536, 126
  %v548 = vpop.permute.xlu0 %547
  %vm549 = vcmask 1031168
  %v550 = vsel %vm549, %v538, %v540
  %v551 = vsel %vm549, %v540, %v542
  %v552 = vsel %vm549, %v542, %v544
  %v553 = vsel %vm549, %v544, %v546
  %v554 = vsel %vm549, %v546, %v548
  %v556 = vsel %vm68, %v527, 0
  %v558 = vsel %vm72, %v550, 0
  %v560 = vsel %vm72, %v551, 0
  %v562 = vsel %vm72, %v552, 0
  %v564 = vsel %vm72, %v553, 0
  %v566 = vsel %vm72, %v554, 0
  %v568 = vsel %vm72, %v548, 0
  %570 = vmatprep.subr.mxu0 0.0
  %571 = vmatpush1.msra.mxu0 0.0
  %572 = vmatprep.subr.mxu0 0.0
  %573 = vmatpush1.msra.mxu0 0.0
  %574 = vmatprep.subr.mxu0 0.0
  %575 = vmatpush1.msra.mxu0 0.0
  %576 = vmatprep.subr.mxu0 0.0
  %577 = vmatpush1.msra.mxu0 0.0
  %578 = vmatprep.subr.mxu0 0.0
  %579 = vmatpush1.msra.mxu0 0.0
  %580 = vmatprep.subr.mxu0 0.0
  %581 = vmatpush1.msra.mxu0 0.0
  %582 = vmatprep.subr.mxu0 0.0
  %583 = vmatpush1.msra.mxu0 0.0
  %584 = vmatprep.subr.mxu0 0.0
  %585 = vmatpush1.msra.mxu0 0.0
  %586 = vmatprep.subr.mxu0 0.0
  %587 = vmatpush1.msra.mxu0 0.0
  %588 = vmatprep.subr.mxu0 0.0
  %589 = vmatpush1.msra.mxu0 0.0
  %590 = vmatprep.subr.mxu0 0.0
  %591 = vmatpush1.msra.mxu0 0.0
  %592 = vmatprep.subr.mxu0 0.0
  %593 = vmatpush1.msra.mxu0 0.0
  %594 = vmatprep.subr.mxu0 0.0
  %595 = vmatpush1.msra.mxu0 0.0
  %596 = vmatprep.subr.mxu0 0.0
  %597 = vmatpush1.msra.mxu0 0.0
  %598 = vmatprep.subr.mxu0 0.0
  %599 = vmatpush1.msra.mxu0 0.0
  %600 = vmatprep.subr.mxu0 %v560
  %601 = vmatpush1.msra.mxu0 %v558
  %602 = vmatprep.subr.mxu0 0.0
  %603 = vmatpush2.msra.mxu0 0.0
  %604 = vmatprep.subr.mxu0 0.0
  %605 = vmatpush2.msra.mxu0 0.0
  %606 = vmatprep.subr.mxu0 0.0
  %607 = vmatpush2.msra.mxu0 0.0
  %608 = vmatprep.subr.mxu0 0.0
  %609 = vmatpush2.msra.mxu0 0.0
  %610 = vmatprep.subr.mxu0 0.0
  %611 = vmatpush2.msra.mxu0 0.0
  %612 = vmatprep.subr.mxu0 0.0
  %613 = vmatpush2.msra.mxu0 0.0
  %614 = vmatprep.subr.mxu0 0.0
  %615 = vmatpush2.msra.mxu0 0.0
  %616 = vmatprep.subr.mxu0 0.0
  %617 = vmatpush2.msra.mxu0 0.0
  %618 = vmatprep.subr.mxu0 0.0
  %619 = vmatpush2.msra.mxu0 0.0
  %620 = vmatprep.subr.mxu0 0.0
  %621 = vmatpush2.msra.mxu0 0.0
  %622 = vmatprep.subr.mxu0 0.0
  %623 = vmatpush2.msra.mxu0 0.0
  %624 = vmatprep.subr.mxu0 0.0
  %625 = vmatpush2.msra.mxu0 0.0
  %626 = vmatprep.subr.mxu0 0.0
  %627 = vmatpush2.msra.mxu0 0.0
  %628 = vmatprep.subr.mxu0 0.0
  %629 = vmatpush2.msra.mxu0 0.0
  %630 = vmatprep.subr.mxu0 0.0
  %631 = vmatpush2.msra.mxu0 0.0
  %632 = vmatprep.subr.mxu0 0.0
  %633 = vmatpush2.msra.mxu0 0.0
  %634 = vmatprep.mubr.f32.mxu0 0.0
  %635 = vmatmul.mubr.f32.gmra.mxu0 %v556
  %v636 = vpop.f32.mrf.mxu0
  %v637 = vadd.f32 0.0, %v636
  %v638 = vpop.f32.mrf.mxu0
  %v639 = vadd.f32 0.0, %v638
  %640 = vdwg.mxu0
  %641 = vmatprep.subr.mxu0 0.0
  %642 = vmatpush1.msra.mxu0 0.0
  %643 = vmatprep.subr.mxu0 0.0
  %644 = vmatpush1.msra.mxu0 0.0
  %645 = vmatprep.subr.mxu0 0.0
  %646 = vmatpush1.msra.mxu0 0.0
  %647 = vmatprep.subr.mxu0 0.0
  %648 = vmatpush1.msra.mxu0 0.0
  %649 = vmatprep.subr.mxu0 0.0
  %650 = vmatpush1.msra.mxu0 0.0
  %651 = vmatprep.subr.mxu0 0.0
  %652 = vmatpush1.msra.mxu0 0.0
  %653 = vmatprep.subr.mxu0 0.0
  %654 = vmatpush1.msra.mxu0 0.0
  %655 = vmatprep.subr.mxu0 0.0
  %656 = vmatpush1.msra.mxu0 0.0
  %657 = vmatprep.subr.mxu0 0.0
  %658 = vmatpush1.msra.mxu0 0.0
  %659 = vmatprep.subr.mxu0 0.0
  %660 = vmatpush1.msra.mxu0 0.0
  %661 = vmatprep.subr.mxu0 0.0
  %662 = vmatpush1.msra.mxu0 0.0
  %663 = vmatprep.subr.mxu0 0.0
  %664 = vmatpush1.msra.mxu0 0.0
  %665 = vmatprep.subr.mxu0 0.0
  %666 = vmatpush1.msra.mxu0 0.0
  %667 = vmatprep.subr.mxu0 0.0
  %668 = vmatpush1.msra.mxu0 0.0
  %669 = vmatprep.subr.mxu0 0.0
  %670 = vmatpush1.msra.mxu0 0.0
  %671 = vmatprep.subr.mxu0 %v564
  %672 = vmatpush1.msra.mxu0 %v562
  %673 = vmatprep.subr.mxu0 0.0
  %674 = vmatpush2.msra.mxu0 0.0
  %675 = vmatprep.subr.mxu0 0.0
  %676 = vmatpush2.msra.mxu0 0.0
  %677 = vmatprep.subr.mxu0 0.0
  %678 = vmatpush2.msra.mxu0 0.0
  %679 = vmatprep.subr.mxu0 0.0
  %680 = vmatpush2.msra.mxu0 0.0
  %681 = vmatprep.subr.mxu0 0.0
  %682 = vmatpush2.msra.mxu0 0.0
  %683 = vmatprep.subr.mxu0 0.0
  %684 = vmatpush2.msra.mxu0 0.0
  %685 = vmatprep.subr.mxu0 0.0
  %686 = vmatpush2.msra.mxu0 0.0
  %687 = vmatprep.subr.mxu0 0.0
  %688 = vmatpush2.msra.mxu0 0.0
  %689 = vmatprep.subr.mxu0 0.0
  %690 = vmatpush2.msra.mxu0 0.0
  %691 = vmatprep.subr.mxu0 0.0
  %692 = vmatpush2.msra.mxu0 0.0
  %693 = vmatprep.subr.mxu0 0.0
  %694 = vmatpush2.msra.mxu0 0.0
  %695 = vmatprep.subr.mxu0 0.0
  %696 = vmatpush2.msra.mxu0 0.0
  %697 = vmatprep.subr.mxu0 0.0
  %698 = vmatpush2.msra.mxu0 0.0
  %699 = vmatprep.subr.mxu0 0.0
  %700 = vmatpush2.msra.mxu0 0.0
  %701 = vmatprep.subr.mxu0 0.0
  %702 = vmatpush2.msra.mxu0 0.0
  %703 = vmatprep.subr.mxu0 0.0
  %704 = vmatpush2.msra.mxu0 0.0
  %705 = vmatprep.mubr.f32.mxu0 0.0
  %706 = vmatmul.mubr.f32.gmra.mxu0 %v556
  %v707 = vpop.f32.mrf.mxu0
  %v708 = vadd.f32 0.0, %v707
  %v709 = vpop.f32.mrf.mxu0
  %v710 = vadd.f32 0.0, %v709
  %711 = vdwg.mxu0
  %712 = vmatprep.subr.mxu0 0.0
  %713 = vmatpush1.msra.mxu0 0.0
  %714 = vmatprep.subr.mxu0 0.0
  %715 = vmatpush1.msra.mxu0 0.0
  %716 = vmatprep.subr.mxu0 0.0
  %717 = vmatpush1.msra.mxu0 0.0
  %718 = vmatprep.subr.mxu0 0.0
  %719 = vmatpush1.msra.mxu0 0.0
  %720 = vmatprep.subr.mxu0 0.0
  %721 = vmatpush1.msra.mxu0 0.0
  %722 = vmatprep.subr.mxu0 0.0
  %723 = vmatpush1.msra.mxu0 0.0
  %724 = vmatprep.subr.mxu0 0.0
  %725 = vmatpush1.msra.mxu0 0.0
  %726 = vmatprep.subr.mxu0 0.0
  %727 = vmatpush1.msra.mxu0 0.0
  %728 = vmatprep.subr.mxu0 0.0
  %729 = vmatpush1.msra.mxu0 0.0
  %730 = vmatprep.subr.mxu0 0.0
  %731 = vmatpush1.msra.mxu0 0.0
  %732 = vmatprep.subr.mxu0 0.0
  %733 = vmatpush1.msra.mxu0 0.0
  %734 = vmatprep.subr.mxu0 0.0
  %735 = vmatpush1.msra.mxu0 0.0
  %736 = vmatprep.subr.mxu0 0.0
  %737 = vmatpush1.msra.mxu0 0.0
  %738 = vmatprep.subr.mxu0 0.0
  %739 = vmatpush1.msra.mxu0 0.0
  %740 = vmatprep.subr.mxu0 0.0
  %741 = vmatpush1.msra.mxu0 0.0
  %742 = vmatprep.subr.mxu0 %v568
  %743 = vmatpush1.msra.mxu0 %v566
  %744 = vmatprep.subr.mxu0 0.0
  %745 = vmatpush2.msra.mxu0 0.0
  %746 = vmatprep.subr.mxu0 0.0
  %747 = vmatpush2.msra.mxu0 0.0
  %748 = vmatprep.subr.mxu0 0.0
  %749 = vmatpush2.msra.mxu0 0.0
  %750 = vmatprep.subr.mxu0 0.0
  %751 = vmatpush2.msra.mxu0 0.0
  %752 = vmatprep.subr.mxu0 0.0
  %753 = vmatpush2.msra.mxu0 0.0
  %754 = vmatprep.subr.mxu0 0.0
  %755 = vmatpush2.msra.mxu0 0.0
  %756 = vmatprep.subr.mxu0 0.0
  %757 = vmatpush2.msra.mxu0 0.0
  %758 = vmatprep.subr.mxu0 0.0
  %759 = vmatpush2.msra.mxu0 0.0
  %760 = vmatprep.subr.mxu0 0.0
  %761 = vmatpush2.msra.mxu0 0.0
  %762 = vmatprep.subr.mxu0 0.0
  %763 = vmatpush2.msra.mxu0 0.0
  %764 = vmatprep.subr.mxu0 0.0
  %765 = vmatpush2.msra.mxu0 0.0
  %766 = vmatprep.subr.mxu0 0.0
  %767 = vmatpush2.msra.mxu0 0.0
  %768 = vmatprep.subr.mxu0 0.0
  %769 = vmatpush2.msra.mxu0 0.0
  %770 = vmatprep.subr.mxu0 0.0
  %771 = vmatpush2.msra.mxu0 0.0
  %772 = vmatprep.subr.mxu0 0.0
  %773 = vmatpush2.msra.mxu0 0.0
  %774 = vmatprep.subr.mxu0 0.0
  %775 = vmatpush2.msra.mxu0 0.0
  %776 = vmatprep.mubr.f32.mxu0 0.0
  %777 = vmatmul.mubr.f32.gmra.mxu0 %v556
  %v778 = vpop.f32.mrf.mxu0
  %v779 = vadd.f32 0.0, %v778
  %v780 = vpop.f32.mrf.mxu0
  %v781 = vadd.f32 0.0, %v780
  %782 = vdwg.mxu0
  %v783 = vadd.f32 %v380, %v637
  %v784 = vadd.f32 %v382, %v639
  %v785 = vadd.f32 %v451, %v708
  %v786 = vadd.f32 %v453, %v710
  %v787 = vadd.f32 %v522, %v779
  %v788 = vadd.f32 %v524, %v781
  %s789 = scalar_lea.vmem %s1, 12
  %v790 = vld [vmem:[%s789] sm:$0x7]
  %v791 = vld [vmem:[%s0] sm:$0xff]
  %v792 = vld [vmem:[%s0 + $0x8] sm:$0xff]
  %v793 = vld [vmem:[%s0 + $0x10] sm:$0xff]
  %v797 = vcombine.high %v791, %v791
  %v798 = vcombine.high %v792, %v792
  %v799 = vcombine.high %v793, %v793
  %800 = vrot.lane.b32.xlu0 %v791, 125
  %v801 = vpop.permute.xlu0 %800
  %802 = vrot.lane.b32.xlu0 %v797, 125
  %v803 = vpop.permute.xlu0 %802
  %804 = vrot.lane.b32.xlu0 %v792, 125
  %v805 = vpop.permute.xlu0 %804
  %806 = vrot.lane.b32.xlu0 %v798, 125
  %v807 = vpop.permute.xlu0 %806
  %808 = vrot.lane.b32.xlu0 %v793, 125
  %v809 = vpop.permute.xlu0 %808
  %810 = vrot.lane.b32.xlu0 %v799, 125
  %v811 = vpop.permute.xlu0 %810
  %vm812 = vcmask 1022976
  %v813 = vsel %vm812, %v801, %v803
  %v814 = vsel %vm812, %v803, %v805
  %v815 = vsel %vm812, %v805, %v807
  %v816 = vsel %vm812, %v807, %v809
  %v817 = vsel %vm812, %v809, %v811
  %v819 = vsel %vm68, %v790, 0
  %v821 = vsel %vm72, %v813, 0
  %v823 = vsel %vm72, %v814, 0
  %v825 = vsel %vm72, %v815, 0
  %v827 = vsel %vm72, %v816, 0
  %v829 = vsel %vm72, %v817, 0
  %v831 = vsel %vm72, %v811, 0
  %833 = vmatprep.subr.mxu0 0.0
  %834 = vmatpush1.msra.mxu0 0.0
  %835 = vmatprep.subr.mxu0 0.0
  %836 = vmatpush1.msra.mxu0 0.0
  %837 = vmatprep.subr.mxu0 0.0
  %838 = vmatpush1.msra.mxu0 0.0
  %839 = vmatprep.subr.mxu0 0.0
  %840 = vmatpush1.msra.mxu0 0.0
  %841 = vmatprep.subr.mxu0 0.0
  %842 = vmatpush1.msra.mxu0 0.0
  %843 = vmatprep.subr.mxu0 0.0
  %844 = vmatpush1.msra.mxu0 0.0
  %845 = vmatprep.subr.mxu0 0.0
  %846 = vmatpush1.msra.mxu0 0.0
  %847 = vmatprep.subr.mxu0 0.0
  %848 = vmatpush1.msra.mxu0 0.0
  %849 = vmatprep.subr.mxu0 0.0
  %850 = vmatpush1.msra.mxu0 0.0
  %851 = vmatprep.subr.mxu0 0.0
  %852 = vmatpush1.msra.mxu0 0.0
  %853 = vmatprep.subr.mxu0 0.0
  %854 = vmatpush1.msra.mxu0 0.0
  %855 = vmatprep.subr.mxu0 0.0
  %856 = vmatpush1.msra.mxu0 0.0
  %857 = vmatprep.subr.mxu0 0.0
  %858 = vmatpush1.msra.mxu0 0.0
  %859 = vmatprep.subr.mxu0 0.0
  %860 = vmatpush1.msra.mxu0 0.0
  %861 = vmatprep.subr.mxu0 0.0
  %862 = vmatpush1.msra.mxu0 0.0
  %863 = vmatprep.subr.mxu0 %v823
  %864 = vmatpush1.msra.mxu0 %v821
  %865 = vmatprep.subr.mxu0 0.0
  %866 = vmatpush2.msra.mxu0 0.0
  %867 = vmatprep.subr.mxu0 0.0
  %868 = vmatpush2.msra.mxu0 0.0
  %869 = vmatprep.subr.mxu0 0.0
  %870 = vmatpush2.msra.mxu0 0.0
  %871 = vmatprep.subr.mxu0 0.0
  %872 = vmatpush2.msra.mxu0 0.0
  %873 = vmatprep.subr.mxu0 0.0
  %874 = vmatpush2.msra.mxu0 0.0
  %875 = vmatprep.subr.mxu0 0.0
  %876 = vmatpush2.msra.mxu0 0.0
  %877 = vmatprep.subr.mxu0 0.0
  %878 = vmatpush2.msra.mxu0 0.0
  %879 = vmatprep.subr.mxu0 0.0
  %880 = vmatpush2.msra.mxu0 0.0
  %881 = vmatprep.subr.mxu0 0.0
  %882 = vmatpush2.msra.mxu0 0.0
  %883 = vmatprep.subr.mxu0 0.0
  %884 = vmatpush2.msra.mxu0 0.0
  %885 = vmatprep.subr.mxu0 0.0
  %886 = vmatpush2.msra.mxu0 0.0
  %887 = vmatprep.subr.mxu0 0.0
  %888 = vmatpush2.msra.mxu0 0.0
  %889 = vmatprep.subr.mxu0 0.0
  %890 = vmatpush2.msra.mxu0 0.0
  %891 = vmatprep.subr.mxu0 0.0
  %892 = vmatpush2.msra.mxu0 0.0
  %893 = vmatprep.subr.mxu0 0.0
  %894 = vmatpush2.msra.mxu0 0.0
  %895 = vmatprep.subr.mxu0 0.0
  %896 = vmatpush2.msra.mxu0 0.0
  %897 = vmatprep.mubr.f32.mxu0 0.0
  %898 = vmatmul.mubr.f32.gmra.mxu0 %v819
  %v899 = vpop.f32.mrf.mxu0
  %v900 = vadd.f32 0.0, %v899
  %v901 = vpop.f32.mrf.mxu0
  %v902 = vadd.f32 0.0, %v901
  %903 = vdwg.mxu0
  %904 = vmatprep.subr.mxu0 0.0
  %905 = vmatpush1.msra.mxu0 0.0
  %906 = vmatprep.subr.mxu0 0.0
  %907 = vmatpush1.msra.mxu0 0.0
  %908 = vmatprep.subr.mxu0 0.0
  %909 = vmatpush1.msra.mxu0 0.0
  %910 = vmatprep.subr.mxu0 0.0
  %911 = vmatpush1.msra.mxu0 0.0
  %912 = vmatprep.subr.mxu0 0.0
  %913 = vmatpush1.msra.mxu0 0.0
  %914 = vmatprep.subr.mxu0 0.0
  %915 = vmatpush1.msra.mxu0 0.0
  %916 = vmatprep.subr.mxu0 0.0
  %917 = vmatpush1.msra.mxu0 0.0
  %918 = vmatprep.subr.mxu0 0.0
  %919 = vmatpush1.msra.mxu0 0.0
  %920 = vmatprep.subr.mxu0 0.0
  %921 = vmatpush1.msra.mxu0 0.0
  %922 = vmatprep.subr.mxu0 0.0
  %923 = vmatpush1.msra.mxu0 0.0
  %924 = vmatprep.subr.mxu0 0.0
  %925 = vmatpush1.msra.mxu0 0.0
  %926 = vmatprep.subr.mxu0 0.0
  %927 = vmatpush1.msra.mxu0 0.0
  %928 = vmatprep.subr.mxu0 0.0
  %929 = vmatpush1.msra.mxu0 0.0
  %930 = vmatprep.subr.mxu0 0.0
  %931 = vmatpush1.msra.mxu0 0.0
  %932 = vmatprep.subr.mxu0 0.0
  %933 = vmatpush1.msra.mxu0 0.0
  %934 = vmatprep.subr.mxu0 %v827
  %935 = vmatpush1.msra.mxu0 %v825
  %936 = vmatprep.subr.mxu0 0.0
  %937 = vmatpush2.msra.mxu0 0.0
  %938 = vmatprep.subr.mxu0 0.0
  %939 = vmatpush2.msra.mxu0 0.0
  %940 = vmatprep.subr.mxu0 0.0
  %941 = vmatpush2.msra.mxu0 0.0
  %942 = vmatprep.subr.mxu0 0.0
  %943 = vmatpush2.msra.mxu0 0.0
  %944 = vmatprep.subr.mxu0 0.0
  %945 = vmatpush2.msra.mxu0 0.0
  %946 = vmatprep.subr.mxu0 0.0
  %947 = vmatpush2.msra.mxu0 0.0
  %948 = vmatprep.subr.mxu0 0.0
  %949 = vmatpush2.msra.mxu0 0.0
  %950 = vmatprep.subr.mxu0 0.0
  %951 = vmatpush2.msra.mxu0 0.0
  %952 = vmatprep.subr.mxu0 0.0
  %953 = vmatpush2.msra.mxu0 0.0
  %954 = vmatprep.subr.mxu0 0.0
  %955 = vmatpush2.msra.mxu0 0.0
  %956 = vmatprep.subr.mxu0 0.0
  %957 = vmatpush2.msra.mxu0 0.0
  %958 = vmatprep.subr.mxu0 0.0
  %959 = vmatpush2.msra.mxu0 0.0
  %960 = vmatprep.subr.mxu0 0.0
  %961 = vmatpush2.msra.mxu0 0.0
  %962 = vmatprep.subr.mxu0 0.0
  %963 = vmatpush2.msra.mxu0 0.0
  %964 = vmatprep.subr.mxu0 0.0
  %965 = vmatpush2.msra.mxu0 0.0
  %966 = vmatprep.subr.mxu0 0.0
  %967 = vmatpush2.msra.mxu0 0.0
  %968 = vmatprep.mubr.f32.mxu0 0.0
  %969 = vmatmul.mubr.f32.gmra.mxu0 %v819
  %v970 = vpop.f32.mrf.mxu0
  %v971 = vadd.f32 0.0, %v970
  %v972 = vpop.f32.mrf.mxu0
  %v973 = vadd.f32 0.0, %v972
  %974 = vdwg.mxu0
  %975 = vmatprep.subr.mxu0 0.0
  %976 = vmatpush1.msra.mxu0 0.0
  %977 = vmatprep.subr.mxu0 0.0
  %978 = vmatpush1.msra.mxu0 0.0
  %979 = vmatprep.subr.mxu0 0.0
  %980 = vmatpush1.msra.mxu0 0.0
  %981 = vmatprep.subr.mxu0 0.0
  %982 = vmatpush1.msra.mxu0 0.0
  %983 = vmatprep.subr.mxu0 0.0
  %984 = vmatpush1.msra.mxu0 0.0
  %985 = vmatprep.subr.mxu0 0.0
  %986 = vmatpush1.msra.mxu0 0.0
  %987 = vmatprep.subr.mxu0 0.0
  %988 = vmatpush1.msra.mxu0 0.0
  %989 = vmatprep.subr.mxu0 0.0
  %990 = vmatpush1.msra.mxu0 0.0
  %991 = vmatprep.subr.mxu0 0.0
  %992 = vmatpush1.msra.mxu0 0.0
  %993 = vmatprep.subr.mxu0 0.0
  %994 = vmatpush1.msra.mxu0 0.0
  %995 = vmatprep.subr.mxu0 0.0
  %996 = vmatpush1.msra.mxu0 0.0
  %997 = vmatprep.subr.mxu0 0.0
  %998 = vmatpush1.msra.mxu0 0.0
  %999 = vmatprep.subr.mxu0 0.0
  %1000 = vmatpush1.msra.mxu0 0.0
  %1001 = vmatprep.subr.mxu0 0.0
  %1002 = vmatpush1.msra.mxu0 0.0
  %1003 = vmatprep.subr.mxu0 0.0
  %1004 = vmatpush1.msra.mxu0 0.0
  %1005 = vmatprep.subr.mxu0 %v831
  %1006 = vmatpush1.msra.mxu0 %v829
  %1007 = vmatprep.subr.mxu0 0.0
  %1008 = vmatpush2.msra.mxu0 0.0
  %1009 = vmatprep.subr.mxu0 0.0
  %1010 = vmatpush2.msra.mxu0 0.0
  %1011 = vmatprep.subr.mxu0 0.0
  %1012 = vmatpush2.msra.mxu0 0.0
  %1013 = vmatprep.subr.mxu0 0.0
  %1014 = vmatpush2.msra.mxu0 0.0
  %1015 = vmatprep.subr.mxu0 0.0
  %1016 = vmatpush2.msra.mxu0 0.0
  %1017 = vmatprep.subr.mxu0 0.0
  %1018 = vmatpush2.msra.mxu0 0.0
  %1019 = vmatprep.subr.mxu0 0.0
  %1020 = vmatpush2.msra.mxu0 0.0
  %1021 = vmatprep.subr.mxu0 0.0
  %1022 = vmatpush2.msra.mxu0 0.0
  %1023 = vmatprep.subr.mxu0 0.0
  %1024 = vmatpush2.msra.mxu0 0.0
  %1025 = vmatprep.subr.mxu0 0.0
  %1026 = vmatpush2.msra.mxu0 0.0
  %1027 = vmatprep.subr.mxu0 0.0
  %1028 = vmatpush2.msra.mxu0 0.0
  %1029 = vmatprep.subr.mxu0 0.0
  %1030 = vmatpush2.msra.mxu0 0.0
  %1031 = vmatprep.subr.mxu0 0.0
  %1032 = vmatpush2.msra.mxu0 0.0
  %1033 = vmatprep.subr.mxu0 0.0
  %1034 = vmatpush2.msra.mxu0 0.0
  %1035 = vmatprep.subr.mxu0 0.0
  %1036 = vmatpush2.msra.mxu0 0.0
  %1037 = vmatprep.subr.mxu0 0.0
  %1038 = vmatpush2.msra.mxu0 0.0
  %1039 = vmatprep.mubr.f32.mxu0 0.0
  %1040 = vmatmul.mubr.f32.gmra.mxu0 %v819
  %v1041 = vpop.f32.mrf.mxu0
  %v1042 = vadd.f32 0.0, %v1041
  %v1043 = vpop.f32.mrf.mxu0
  %v1044 = vadd.f32 0.0, %v1043
  %1045 = vdwg.mxu0
  %v1046 = vadd.f32 %v783, %v900
  %v1047 = vadd.f32 %v784, %v902
  %v1048 = vadd.f32 %v785, %v971
  %v1049 = vadd.f32 %v786, %v973
  %v1050 = vadd.f32 %v787, %v1042
  %v1051 = vadd.f32 %v788, %v1044
  %s1052 = scalar_lea.vmem %s1, 16
  %v1053 = vld [vmem:[%s1052] sm:$0x7]
  %v1054 = vld [vmem:[%s0] sm:$0xff]
  %v1055 = vld [vmem:[%s0 + $0x8] sm:$0xff]
  %v1056 = vld [vmem:[%s0 + $0x10] sm:$0xff]
  %v1060 = vcombine.high %v1054, %v1054
  %v1061 = vcombine.high %v1055, %v1055
  %v1062 = vcombine.high %v1056, %v1056
  %1063 = vrot.lane.b32.xlu0 %v1054, 124
  %v1064 = vpop.permute.xlu0 %1063
  %1065 = vrot.lane.b32.xlu0 %v1060, 124
  %v1066 = vpop.permute.xlu0 %1065
  %1067 = vrot.lane.b32.xlu0 %v1055, 124
  %v1068 = vpop.permute.xlu0 %1067
  %1069 = vrot.lane.b32.xlu0 %v1061, 124
  %v1070 = vpop.permute.xlu0 %1069
  %1071 = vrot.lane.b32.xlu0 %v1056, 124
  %v1072 = vpop.permute.xlu0 %1071
  %1073 = vrot.lane.b32.xlu0 %v1062, 124
  %v1074 = vpop.permute.xlu0 %1073
  %vm1075 = vcmask 1014784
  %v1076 = vsel %vm1075, %v1064, %v1066
  %v1077 = vsel %vm1075, %v1066, %v1068
  %v1078 = vsel %vm1075, %v1068, %v1070
  %v1079 = vsel %vm1075, %v1070, %v1072
  %v1080 = vsel %vm1075, %v1072, %v1074
  %v1082 = vsel %vm68, %v1053, 0
  %v1084 = vsel %vm72, %v1076, 0
  %v1086 = vsel %vm72, %v1077, 0
  %v1088 = vsel %vm72, %v1078, 0
  %v1090 = vsel %vm72, %v1079, 0
  %v1092 = vsel %vm72, %v1080, 0
  %v1094 = vsel %vm72, %v1074, 0
  %1096 = vmatprep.subr.mxu0 0.0
  %1097 = vmatpush1.msra.mxu0 0.0
  %1098 = vmatprep.subr.mxu0 0.0
  %1099 = vmatpush1.msra.mxu0 0.0
  %1100 = vmatprep.subr.mxu0 0.0
  %1101 = vmatpush1.msra.mxu0 0.0
  %1102 = vmatprep.subr.mxu0 0.0
  %1103 = vmatpush1.msra.mxu0 0.0
  %1104 = vmatprep.subr.mxu0 0.0
  %1105 = vmatpush1.msra.mxu0 0.0
  %1106 = vmatprep.subr.mxu0 0.0
  %1107 = vmatpush1.msra.mxu0 0.0
  %1108 = vmatprep.subr.mxu0 0.0
  %1109 = vmatpush1.msra.mxu0 0.0
  %1110 = vmatprep.subr.mxu0 0.0
  %1111 = vmatpush1.msra.mxu0 0.0
  %1112 = vmatprep.subr.mxu0 0.0
  %1113 = vmatpush1.msra.mxu0 0.0
  %1114 = vmatprep.subr.mxu0 0.0
  %1115 = vmatpush1.msra.mxu0 0.0
  %1116 = vmatprep.subr.mxu0 0.0
  %1117 = vmatpush1.msra.mxu0 0.0
  %1118 = vmatprep.subr.mxu0 0.0
  %1119 = vmatpush1.msra.mxu0 0.0
  %1120 = vmatprep.subr.mxu0 0.0
  %1121 = vmatpush1.msra.mxu0 0.0
  %1122 = vmatprep.subr.mxu0 0.0
  %1123 = vmatpush1.msra.mxu0 0.0
  %1124 = vmatprep.subr.mxu0 0.0
  %1125 = vmatpush1.msra.mxu0 0.0
  %1126 = vmatprep.subr.mxu0 %v1086
  %1127 = vmatpush1.msra.mxu0 %v1084
  %1128 = vmatprep.subr.mxu0 0.0
  %1129 = vmatpush2.msra.mxu0 0.0
  %1130 = vmatprep.subr.mxu0 0.0
  %1131 = vmatpush2.msra.mxu0 0.0
  %1132 = vmatprep.subr.mxu0 0.0
  %1133 = vmatpush2.msra.mxu0 0.0
  %1134 = vmatprep.subr.mxu0 0.0
  %1135 = vmatpush2.msra.mxu0 0.0
  %1136 = vmatprep.subr.mxu0 0.0
  %1137 = vmatpush2.msra.mxu0 0.0
  %1138 = vmatprep.subr.mxu0 0.0
  %1139 = vmatpush2.msra.mxu0 0.0
  %1140 = vmatprep.subr.mxu0 0.0
  %1141 = vmatpush2.msra.mxu0 0.0
  %1142 = vmatprep.subr.mxu0 0.0
  %1143 = vmatpush2.msra.mxu0 0.0
  %1144 = vmatprep.subr.mxu0 0.0
  %1145 = vmatpush2.msra.mxu0 0.0
  %1146 = vmatprep.subr.mxu0 0.0
  %1147 = vmatpush2.msra.mxu0 0.0
  %1148 = vmatprep.subr.mxu0 0.0
  %1149 = vmatpush2.msra.mxu0 0.0
  %1150 = vmatprep.subr.mxu0 0.0
  %1151 = vmatpush2.msra.mxu0 0.0
  %1152 = vmatprep.subr.mxu0 0.0
  %1153 = vmatpush2.msra.mxu0 0.0
  %1154 = vmatprep.subr.mxu0 0.0
  %1155 = vmatpush2.msra.mxu0 0.0
  %1156 = vmatprep.subr.mxu0 0.0
  %1157 = vmatpush2.msra.mxu0 0.0
  %1158 = vmatprep.subr.mxu0 0.0
  %1159 = vmatpush2.msra.mxu0 0.0
  %1160 = vmatprep.mubr.f32.mxu0 0.0
  %1161 = vmatmul.mubr.f32.gmra.mxu0 %v1082
  %v1162 = vpop.f32.mrf.mxu0
  %v1163 = vadd.f32 0.0, %v1162
  %v1164 = vpop.f32.mrf.mxu0
  %v1165 = vadd.f32 0.0, %v1164
  %1166 = vdwg.mxu0
  %1167 = vmatprep.subr.mxu0 0.0
  %1168 = vmatpush1.msra.mxu0 0.0
  %1169 = vmatprep.subr.mxu0 0.0
  %1170 = vmatpush1.msra.mxu0 0.0
  %1171 = vmatprep.subr.mxu0 0.0
  %1172 = vmatpush1.msra.mxu0 0.0
  %1173 = vmatprep.subr.mxu0 0.0
  %1174 = vmatpush1.msra.mxu0 0.0
  %1175 = vmatprep.subr.mxu0 0.0
  %1176 = vmatpush1.msra.mxu0 0.0
  %1177 = vmatprep.subr.mxu0 0.0
  %1178 = vmatpush1.msra.mxu0 0.0
  %1179 = vmatprep.subr.mxu0 0.0
  %1180 = vmatpush1.msra.mxu0 0.0
  %1181 = vmatprep.subr.mxu0 0.0
  %1182 = vmatpush1.msra.mxu0 0.0
  %1183 = vmatprep.subr.mxu0 0.0
  %1184 = vmatpush1.msra.mxu0 0.0
  %1185 = vmatprep.subr.mxu0 0.0
  %1186 = vmatpush1.msra.mxu0 0.0
  %1187 = vmatprep.subr.mxu0 0.0
  %1188 = vmatpush1.msra.mxu0 0.0
  %1189 = vmatprep.subr.mxu0 0.0
  %1190 = vmatpush1.msra.mxu0 0.0
  %1191 = vmatprep.subr.mxu0 0.0
  %1192 = vmatpush1.msra.mxu0 0.0
  %1193 = vmatprep.subr.mxu0 0.0
  %1194 = vmatpush1.msra.mxu0 0.0
  %1195 = vmatprep.subr.mxu0 0.0
  %1196 = vmatpush1.msra.mxu0 0.0
  %1197 = vmatprep.subr.mxu0 %v1090
  %1198 = vmatpush1.msra.mxu0 %v1088
  %1199 = vmatprep.subr.mxu0 0.0
  %1200 = vmatpush2.msra.mxu0 0.0
  %1201 = vmatprep.subr.mxu0 0.0
  %1202 = vmatpush2.msra.mxu0 0.0
  %1203 = vmatprep.subr.mxu0 0.0
  %1204 = vmatpush2.msra.mxu0 0.0
  %1205 = vmatprep.subr.mxu0 0.0
  %1206 = vmatpush2.msra.mxu0 0.0
  %1207 = vmatprep.subr.mxu0 0.0
  %1208 = vmatpush2.msra.mxu0 0.0
  %1209 = vmatprep.subr.mxu0 0.0
  %1210 = vmatpush2.msra.mxu0 0.0
  %1211 = vmatprep.subr.mxu0 0.0
  %1212 = vmatpush2.msra.mxu0 0.0
  %1213 = vmatprep.subr.mxu0 0.0
  %1214 = vmatpush2.msra.mxu0 0.0
  %1215 = vmatprep.subr.mxu0 0.0
  %1216 = vmatpush2.msra.mxu0 0.0
  %1217 = vmatprep.subr.mxu0 0.0
  %1218 = vmatpush2.msra.mxu0 0.0
  %1219 = vmatprep.subr.mxu0 0.0
  %1220 = vmatpush2.msra.mxu0 0.0
  %1221 = vmatprep.subr.mxu0 0.0
  %1222 = vmatpush2.msra.mxu0 0.0
  %1223 = vmatprep.subr.mxu0 0.0
  %1224 = vmatpush2.msra.mxu0 0.0
  %1225 = vmatprep.subr.mxu0 0.0
  %1226 = vmatpush2.msra.mxu0 0.0
  %1227 = vmatprep.subr.mxu0 0.0
  %1228 = vmatpush2.msra.mxu0 0.0
  %1229 = vmatprep.subr.mxu0 0.0
  %1230 = vmatpush2.msra.mxu0 0.0
  %1231 = vmatprep.mubr.f32.mxu0 0.0
  %1232 = vmatmul.mubr.f32.gmra.mxu0 %v1082
  %v1233 = vpop.f32.mrf.mxu0
  %v1234 = vadd.f32 0.0, %v1233
  %v1235 = vpop.f32.mrf.mxu0
  %v1236 = vadd.f32 0.0, %v1235
  %1237 = vdwg.mxu0
  %1238 = vmatprep.subr.mxu0 0.0
  %1239 = vmatpush1.msra.mxu0 0.0
  %1240 = vmatprep.subr.mxu0 0.0
  %1241 = vmatpush1.msra.mxu0 0.0
  %1242 = vmatprep.subr.mxu0 0.0
  %1243 = vmatpush1.msra.mxu0 0.0
  %1244 = vmatprep.subr.mxu0 0.0
  %1245 = vmatpush1.msra.mxu0 0.0
  %1246 = vmatprep.subr.mxu0 0.0
  %1247 = vmatpush1.msra.mxu0 0.0
  %1248 = vmatprep.subr.mxu0 0.0
  %1249 = vmatpush1.msra.mxu0 0.0
  %1250 = vmatprep.subr.mxu0 0.0
  %1251 = vmatpush1.msra.mxu0 0.0
  %1252 = vmatprep.subr.mxu0 0.0
  %1253 = vmatpush1.msra.mxu0 0.0
  %1254 = vmatprep.subr.mxu0 0.0
  %1255 = vmatpush1.msra.mxu0 0.0
  %1256 = vmatprep.subr.mxu0 0.0
  %1257 = vmatpush1.msra.mxu0 0.0
  %1258 = vmatprep.subr.mxu0 0.0
  %1259 = vmatpush1.msra.mxu0 0.0
  %1260 = vmatprep.subr.mxu0 0.0
  %1261 = vmatpush1.msra.mxu0 0.0
  %1262 = vmatprep.subr.mxu0 0.0
  %1263 = vmatpush1.msra.mxu0 0.0
  %1264 = vmatprep.subr.mxu0 0.0
  %1265 = vmatpush1.msra.mxu0 0.0
  %1266 = vmatprep.subr.mxu0 0.0
  %1267 = vmatpush1.msra.mxu0 0.0
  %1268 = vmatprep.subr.mxu0 %v1094
  %1269 = vmatpush1.msra.mxu0 %v1092
  %1270 = vmatprep.subr.mxu0 0.0
  %1271 = vmatpush2.msra.mxu0 0.0
  %1272 = vmatprep.subr.mxu0 0.0
  %1273 = vmatpush2.msra.mxu0 0.0
  %1274 = vmatprep.subr.mxu0 0.0
  %1275 = vmatpush2.msra.mxu0 0.0
  %1276 = vmatprep.subr.mxu0 0.0
  %1277 = vmatpush2.msra.mxu0 0.0
  %1278 = vmatprep.subr.mxu0 0.0
  %1279 = vmatpush2.msra.mxu0 0.0
  %1280 = vmatprep.subr.mxu0 0.0
  %1281 = vmatpush2.msra.mxu0 0.0
  %1282 = vmatprep.subr.mxu0 0.0
  %1283 = vmatpush2.msra.mxu0 0.0
  %1284 = vmatprep.subr.mxu0 0.0
  %1285 = vmatpush2.msra.mxu0 0.0
  %1286 = vmatprep.subr.mxu0 0.0
  %1287 = vmatpush2.msra.mxu0 0.0
  %1288 = vmatprep.subr.mxu0 0.0
  %1289 = vmatpush2.msra.mxu0 0.0
  %1290 = vmatprep.subr.mxu0 0.0
  %1291 = vmatpush2.msra.mxu0 0.0
  %1292 = vmatprep.subr.mxu0 0.0
  %1293 = vmatpush2.msra.mxu0 0.0
  %1294 = vmatprep.subr.mxu0 0.0
  %1295 = vmatpush2.msra.mxu0 0.0
  %1296 = vmatprep.subr.mxu0 0.0
  %1297 = vmatpush2.msra.mxu0 0.0
  %1298 = vmatprep.subr.mxu0 0.0
  %1299 = vmatpush2.msra.mxu0 0.0
  %1300 = vmatprep.subr.mxu0 0.0
  %1301 = vmatpush2.msra.mxu0 0.0
  %1302 = vmatprep.mubr.f32.mxu0 0.0
  %1303 = vmatmul.mubr.f32.gmra.mxu0 %v1082
  %v1304 = vpop.f32.mrf.mxu0
  %v1305 = vadd.f32 0.0, %v1304
  %v1306 = vpop.f32.mrf.mxu0
  %v1307 = vadd.f32 0.0, %v1306
  %1308 = vdwg.mxu0
  %v1309 = vadd.f32 %v1046, %v1163
  %v1310 = vadd.f32 %v1047, %v1165
  %v1311 = vadd.f32 %v1048, %v1234
  %v1312 = vadd.f32 %v1049, %v1236
  %v1313 = vadd.f32 %v1050, %v1305
  %v1314 = vadd.f32 %v1051, %v1307
  %s1315 = scalar_lea.vmem %s1, 20
  %v1316 = vld [vmem:[%s1315] sm:$0x7]
  %v1317 = vld [vmem:[%s0] sm:$0xff]
  %v1318 = vld [vmem:[%s0 + $0x8] sm:$0xff]
  %v1319 = vld [vmem:[%s0 + $0x10] sm:$0xff]
  %v1323 = vcombine.high %v1317, %v1317
  %v1324 = vcombine.high %v1318, %v1318
  %v1325 = vcombine.high %v1319, %v1319
  %1326 = vrot.lane.b32.xlu0 %v1317, 110
  %v1327 = vpop.permute.xlu0 %1326
  %1328 = vrot.lane.b32.xlu0 %v1323, 110
  %v1329 = vpop.permute.xlu0 %1328
  %1330 = vrot.lane.b32.xlu0 %v1318, 110
  %v1331 = vpop.permute.xlu0 %1330
  %1332 = vrot.lane.b32.xlu0 %v1324, 110
  %v1333 = vpop.permute.xlu0 %1332
  %1334 = vrot.lane.b32.xlu0 %v1319, 110
  %v1335 = vpop.permute.xlu0 %1334
  %1336 = vrot.lane.b32.xlu0 %v1325, 110
  %v1337 = vpop.permute.xlu0 %1336
  %vm1338 = vcmask 900096
  %v1339 = vsel %vm1338, %v1327, %v1329
  %v1340 = vsel %vm1338, %v1329, %v1331
  %v1341 = vsel %vm1338, %v1331, %v1333
  %v1342 = vsel %vm1338, %v1333, %v1335
  %v1343 = vsel %vm1338, %v1335, %v1337
  %v1345 = vsel %vm68, %v1316, 0
  %v1347 = vsel %vm72, %v1339, 0
  %v1349 = vsel %vm72, %v1340, 0
  %v1351 = vsel %vm72, %v1341, 0
  %v1353 = vsel %vm72, %v1342, 0
  %v1355 = vsel %vm72, %v1343, 0
  %v1357 = vsel %vm72, %v1337, 0
  %1359 = vmatprep.subr.mxu0 0.0
  %1360 = vmatpush1.msra.mxu0 0.0
  %1361 = vmatprep.subr.mxu0 0.0
  %1362 = vmatpush1.msra.mxu0 0.0
  %1363 = vmatprep.subr.mxu0 0.0
  %1364 = vmatpush1.msra.mxu0 0.0
  %1365 = vmatprep.subr.mxu0 0.0
  %1366 = vmatpush1.msra.mxu0 0.0
  %1367 = vmatprep.subr.mxu0 0.0
  %1368 = vmatpush1.msra.mxu0 0.0
  %1369 = vmatprep.subr.mxu0 0.0
  %1370 = vmatpush1.msra.mxu0 0.0
  %1371 = vmatprep.subr.mxu0 0.0
  %1372 = vmatpush1.msra.mxu0 0.0
  %1373 = vmatprep.subr.mxu0 0.0
  %1374 = vmatpush1.msra.mxu0 0.0
  %1375 = vmatprep.subr.mxu0 0.0
  %1376 = vmatpush1.msra.mxu0 0.0
  %1377 = vmatprep.subr.mxu0 0.0
  %1378 = vmatpush1.msra.mxu0 0.0
  %1379 = vmatprep.subr.mxu0 0.0
  %1380 = vmatpush1.msra.mxu0 0.0
  %1381 = vmatprep.subr.mxu0 0.0
  %1382 = vmatpush1.msra.mxu0 0.0
  %1383 = vmatprep.subr.mxu0 0.0
  %1384 = vmatpush1.msra.mxu0 0.0
  %1385 = vmatprep.subr.mxu0 0.0
  %1386 = vmatpush1.msra.mxu0 0.0
  %1387 = vmatprep.subr.mxu0 0.0
  %1388 = vmatpush1.msra.mxu0 0.0
  %1389 = vmatprep.subr.mxu0 %v1349
  %1390 = vmatpush1.msra.mxu0 %v1347
  %1391 = vmatprep.subr.mxu0 0.0
  %1392 = vmatpush2.msra.mxu0 0.0
  %1393 = vmatprep.subr.mxu0 0.0
  %1394 = vmatpush2.msra.mxu0 0.0
  %1395 = vmatprep.subr.mxu0 0.0
  %1396 = vmatpush2.msra.mxu0 0.0
  %1397 = vmatprep.subr.mxu0 0.0
  %1398 = vmatpush2.msra.mxu0 0.0
  %1399 = vmatprep.subr.mxu0 0.0
  %1400 = vmatpush2.msra.mxu0 0.0
  %1401 = vmatprep.subr.mxu0 0.0
  %1402 = vmatpush2.msra.mxu0 0.0
  %1403 = vmatprep.subr.mxu0 0.0
  %1404 = vmatpush2.msra.mxu0 0.0
  %1405 = vmatprep.subr.mxu0 0.0
  %1406 = vmatpush2.msra.mxu0 0.0
  %1407 = vmatprep.subr.mxu0 0.0
  %1408 = vmatpush2.msra.mxu0 0.0
  %1409 = vmatprep.subr.mxu0 0.0
  %1410 = vmatpush2.msra.mxu0 0.0
  %1411 = vmatprep.subr.mxu0 0.0
  %1412 = vmatpush2.msra.mxu0 0.0
  %1413 = vmatprep.subr.mxu0 0.0
  %1414 = vmatpush2.msra.mxu0 0.0
  %1415 = vmatprep.subr.mxu0 0.0
  %1416 = vmatpush2.msra.mxu0 0.0
  %1417 = vmatprep.subr.mxu0 0.0
  %1418 = vmatpush2.msra.mxu0 0.0
  %1419 = vmatprep.subr.mxu0 0.0
  %1420 = vmatpush2.msra.mxu0 0.0
  %1421 = vmatprep.subr.mxu0 0.0
  %1422 = vmatpush2.msra.mxu0 0.0
  %1423 = vmatprep.mubr.f32.mxu0 0.0
  %1424 = vmatmul.mubr.f32.gmra.mxu0 %v1345
  %v1425 = vpop.f32.mrf.mxu0
  %v1426 = vadd.f32 0.0, %v1425
  %v1427 = vpop.f32.mrf.mxu0
  %v1428 = vadd.f32 0.0, %v1427
  %1429 = vdwg.mxu0
  %1430 = vmatprep.subr.mxu0 0.0
  %1431 = vmatpush1.msra.mxu0 0.0
  %1432 = vmatprep.subr.mxu0 0.0
  %1433 = vmatpush1.msra.mxu0 0.0
  %1434 = vmatprep.subr.mxu0 0.0
  %1435 = vmatpush1.msra.mxu0 0.0
  %1436 = vmatprep.subr.mxu0 0.0
  %1437 = vmatpush1.msra.mxu0 0.0
  %1438 = vmatprep.subr.mxu0 0.0
  %1439 = vmatpush1.msra.mxu0 0.0
  %1440 = vmatprep.subr.mxu0 0.0
  %1441 = vmatpush1.msra.mxu0 0.0
  %1442 = vmatprep.subr.mxu0 0.0
  %1443 = vmatpush1.msra.mxu0 0.0
  %1444 = vmatprep.subr.mxu0 0.0
  %1445 = vmatpush1.msra.mxu0 0.0
  %1446 = vmatprep.subr.mxu0 0.0
  %1447 = vmatpush1.msra.mxu0 0.0
  %1448 = vmatprep.subr.mxu0 0.0
  %1449 = vmatpush1.msra.mxu0 0.0
  %1450 = vmatprep.subr.mxu0 0.0
  %1451 = vmatpush1.msra.mxu0 0.0
  %1452 = vmatprep.subr.mxu0 0.0
  %1453 = vmatpush1.msra.mxu0 0.0
  %1454 = vmatprep.subr.mxu0 0.0
  %1455 = vmatpush1.msra.mxu0 0.0
  %1456 = vmatprep.subr.mxu0 0.0
  %1457 = vmatpush1.msra.mxu0 0.0
  %1458 = vmatprep.subr.mxu0 0.0
  %1459 = vmatpush1.msra.mxu0 0.0
  %1460 = vmatprep.subr.mxu0 %v1353
  %1461 = vmatpush1.msra.mxu0 %v1351
  %1462 = vmatprep.subr.mxu0 0.0
  %1463 = vmatpush2.msra.mxu0 0.0
  %1464 = vmatprep.subr.mxu0 0.0
  %1465 = vmatpush2.msra.mxu0 0.0
  %1466 = vmatprep.subr.mxu0 0.0
  %1467 = vmatpush2.msra.mxu0 0.0
  %1468 = vmatprep.subr.mxu0 0.0
  %1469 = vmatpush2.msra.mxu0 0.0
  %1470 = vmatprep.subr.mxu0 0.0
  %1471 = vmatpush2.msra.mxu0 0.0
  %1472 = vmatprep.subr.mxu0 0.0
  %1473 = vmatpush2.msra.mxu0 0.0
  %1474 = vmatprep.subr.mxu0 0.0
  %1475 = vmatpush2.msra.mxu0 0.0
  %1476 = vmatprep.subr.mxu0 0.0
  %1477 = vmatpush2.msra.mxu0 0.0
  %1478 = vmatprep.subr.mxu0 0.0
  %1479 = vmatpush2.msra.mxu0 0.0
  %1480 = vmatprep.subr.mxu0 0.0
  %1481 = vmatpush2.msra.mxu0 0.0
  %1482 = vmatprep.subr.mxu0 0.0
  %1483 = vmatpush2.msra.mxu0 0.0
  %1484 = vmatprep.subr.mxu0 0.0
  %1485 = vmatpush2.msra.mxu0 0.0
  %1486 = vmatprep.subr.mxu0 0.0
  %1487 = vmatpush2.msra.mxu0 0.0
  %1488 = vmatprep.subr.mxu0 0.0
  %1489 = vmatpush2.msra.mxu0 0.0
  %1490 = vmatprep.subr.mxu0 0.0
  %1491 = vmatpush2.msra.mxu0 0.0
  %1492 = vmatprep.subr.mxu0 0.0
  %1493 = vmatpush2.msra.mxu0 0.0
  %1494 = vmatprep.mubr.f32.mxu0 0.0
  %1495 = vmatmul.mubr.f32.gmra.mxu0 %v1345
  %v1496 = vpop.f32.mrf.mxu0
  %v1497 = vadd.f32 0.0, %v1496
  %v1498 = vpop.f32.mrf.mxu0
  %v1499 = vadd.f32 0.0, %v1498
  %1500 = vdwg.mxu0
  %1501 = vmatprep.subr.mxu0 0.0
  %1502 = vmatpush1.msra.mxu0 0.0
  %1503 = vmatprep.subr.mxu0 0.0
  %1504 = vmatpush1.msra.mxu0 0.0
  %1505 = vmatprep.subr.mxu0 0.0
  %1506 = vmatpush1.msra.mxu0 0.0
  %1507 = vmatprep.subr.mxu0 0.0
  %1508 = vmatpush1.msra.mxu0 0.0
  %1509 = vmatprep.subr.mxu0 0.0
  %1510 = vmatpush1.msra.mxu0 0.0
  %1511 = vmatprep.subr.mxu0 0.0
  %1512 = vmatpush1.msra.mxu0 0.0
  %1513 = vmatprep.subr.mxu0 0.0
  %1514 = vmatpush1.msra.mxu0 0.0
  %1515 = vmatprep.subr.mxu0 0.0
  %1516 = vmatpush1.msra.mxu0 0.0
  %1517 = vmatprep.subr.mxu0 0.0
  %1518 = vmatpush1.msra.mxu0 0.0
  %1519 = vmatprep.subr.mxu0 0.0
  %1520 = vmatpush1.msra.mxu0 0.0
  %1521 = vmatprep.subr.mxu0 0.0
  %1522 = vmatpush1.msra.mxu0 0.0
  %1523 = vmatprep.subr.mxu0 0.0
  %1524 = vmatpush1.msra.mxu0 0.0
  %1525 = vmatprep.subr.mxu0 0.0
  %1526 = vmatpush1.msra.mxu0 0.0
  %1527 = vmatprep.subr.mxu0 0.0
  %1528 = vmatpush1.msra.mxu0 0.0
  %1529 = vmatprep.subr.mxu0 0.0
  %1530 = vmatpush1.msra.mxu0 0.0
  %1531 = vmatprep.subr.mxu0 %v1357
  %1532 = vmatpush1.msra.mxu0 %v1355
  %1533 = vmatprep.subr.mxu0 0.0
  %1534 = vmatpush2.msra.mxu0 0.0
  %1535 = vmatprep.subr.mxu0 0.0
  %1536 = vmatpush2.msra.mxu0 0.0
  %1537 = vmatprep.subr.mxu0 0.0
  %1538 = vmatpush2.msra.mxu0 0.0
  %1539 = vmatprep.subr.mxu0 0.0
  %1540 = vmatpush2.msra.mxu0 0.0
  %1541 = vmatprep.subr.mxu0 0.0
  %1542 = vmatpush2.msra.mxu0 0.0
  %1543 = vmatprep.subr.mxu0 0.0
  %1544 = vmatpush2.msra.mxu0 0.0
  %1545 = vmatprep.subr.mxu0 0.0
  %1546 = vmatpush2.msra.mxu0 0.0
  %1547 = vmatprep.subr.mxu0 0.0
  %1548 = vmatpush2.msra.mxu0 0.0
  %1549 = vmatprep.subr.mxu0 0.0
  %1550 = vmatpush2.msra.mxu0 0.0
  %1551 = vmatprep.subr.mxu0 0.0
  %1552 = vmatpush2.msra.mxu0 0.0
  %1553 = vmatprep.subr.mxu0 0.0
  %1554 = vmatpush2.msra.mxu0 0.0
  %1555 = vmatprep.subr.mxu0 0.0
  %1556 = vmatpush2.msra.mxu0 0.0
  %1557 = vmatprep.subr.mxu0 0.0
  %1558 = vmatpush2.msra.mxu0 0.0
  %1559 = vmatprep.subr.mxu0 0.0
  %1560 = vmatpush2.msra.mxu0 0.0
  %1561 = vmatprep.subr.mxu0 0.0
  %1562 = vmatpush2.msra.mxu0 0.0
  %1563 = vmatprep.subr.mxu0 0.0
  %1564 = vmatpush2.msra.mxu0 0.0
  %1565 = vmatprep.mubr.f32.mxu0 0.0
  %1566 = vmatmul.mubr.f32.gmra.mxu0 %v1345
  %v1567 = vpop.f32.mrf.mxu0
  %v1568 = vadd.f32 0.0, %v1567
  %v1569 = vpop.f32.mrf.mxu0
  %v1570 = vadd.f32 0.0, %v1569
  %1571 = vdwg.mxu0
  %v1572 = vadd.f32 %v1309, %v1426
  %v1573 = vadd.f32 %v1310, %v1428
  %v1574 = vadd.f32 %v1311, %v1497
  %v1575 = vadd.f32 %v1312, %v1499
  %v1576 = vadd.f32 %v1313, %v1568
  %v1577 = vadd.f32 %v1314, %v1570
  %s1578 = scalar_lea.vmem %s1, 24
  %v1579 = vld [vmem:[%s1578] sm:$0x7]
  %v1580 = vld [vmem:[%s0] sm:$0xff]
  %v1581 = vld [vmem:[%s0 + $0x8] sm:$0xff]
  %v1582 = vld [vmem:[%s0 + $0x10] sm:$0xff]
  %v1586 = vcombine.high %v1580, %v1580
  %v1587 = vcombine.high %v1581, %v1581
  %v1588 = vcombine.high %v1582, %v1582
  %1589 = vrot.lane.b32.xlu0 %v1580, 109
  %v1590 = vpop.permute.xlu0 %1589
  %1591 = vrot.lane.b32.xlu0 %v1586, 109
  %v1592 = vpop.permute.xlu0 %1591
  %1593 = vrot.lane.b32.xlu0 %v1581, 109
  %v1594 = vpop.permute.xlu0 %1593
  %1595 = vrot.lane.b32.xlu0 %v1587, 109
  %v1596 = vpop.permute.xlu0 %1595
  %1597 = vrot.lane.b32.xlu0 %v1582, 109
  %v1598 = vpop.permute.xlu0 %1597
  %1599 = vrot.lane.b32.xlu0 %v1588, 109
  %v1600 = vpop.permute.xlu0 %1599
  %vm1601 = vcmask 891904
  %v1602 = vsel %vm1601, %v1590, %v1592
  %v1603 = vsel %vm1601, %v1592, %v1594
  %v1604 = vsel %vm1601, %v1594, %v1596
  %v1605 = vsel %vm1601, %v1596, %v1598
  %v1606 = vsel %vm1601, %v1598, %v1600
  %v1608 = vsel %vm68, %v1579, 0
  %v1610 = vsel %vm72, %v1602, 0
  %v1612 = vsel %vm72, %v1603, 0
  %v1614 = vsel %vm72, %v1604, 0
  %v1616 = vsel %vm72, %v1605, 0
  %v1618 = vsel %vm72, %v1606, 0
  %v1620 = vsel %vm72, %v1600, 0
  %1622 = vmatprep.subr.mxu0 0.0
  %1623 = vmatpush1.msra.mxu0 0.0
  %1624 = vmatprep.subr.mxu0 0.0
  %1625 = vmatpush1.msra.mxu0 0.0
  %1626 = vmatprep.subr.mxu0 0.0
  %1627 = vmatpush1.msra.mxu0 0.0
  %1628 = vmatprep.subr.mxu0 0.0
  %1629 = vmatpush1.msra.mxu0 0.0
  %1630 = vmatprep.subr.mxu0 0.0
  %1631 = vmatpush1.msra.mxu0 0.0
  %1632 = vmatprep.subr.mxu0 0.0
  %1633 = vmatpush1.msra.mxu0 0.0
  %1634 = vmatprep.subr.mxu0 0.0
  %1635 = vmatpush1.msra.mxu0 0.0
  %1636 = vmatprep.subr.mxu0 0.0
  %1637 = vmatpush1.msra.mxu0 0.0
  %1638 = vmatprep.subr.mxu0 0.0
  %1639 = vmatpush1.msra.mxu0 0.0
  %1640 = vmatprep.subr.mxu0 0.0
  %1641 = vmatpush1.msra.mxu0 0.0
  %1642 = vmatprep.subr.mxu0 0.0
  %1643 = vmatpush1.msra.mxu0 0.0
  %1644 = vmatprep.subr.mxu0 0.0
  %1645 = vmatpush1.msra.mxu0 0.0
  %1646 = vmatprep.subr.mxu0 0.0
  %1647 = vmatpush1.msra.mxu0 0.0
  %1648 = vmatprep.subr.mxu0 0.0
  %1649 = vmatpush1.msra.mxu0 0.0
  %1650 = vmatprep.subr.mxu0 0.0
  %1651 = vmatpush1.msra.mxu0 0.0
  %1652 = vmatprep.subr.mxu0 %v1612
  %1653 = vmatpush1.msra.mxu0 %v1610
  %1654 = vmatprep.subr.mxu0 0.0
  %1655 = vmatpush2.msra.mxu0 0.0
  %1656 = vmatprep.subr.mxu0 0.0
  %1657 = vmatpush2.msra.mxu0 0.0
  %1658 = vmatprep.subr.mxu0 0.0
  %1659 = vmatpush2.msra.mxu0 0.0
  %1660 = vmatprep.subr.mxu0 0.0
  %1661 = vmatpush2.msra.mxu0 0.0
  %1662 = vmatprep.subr.mxu0 0.0
  %1663 = vmatpush2.msra.mxu0 0.0
  %1664 = vmatprep.subr.mxu0 0.0
  %1665 = vmatpush2.msra.mxu0 0.0
  %1666 = vmatprep.subr.mxu0 0.0
  %1667 = vmatpush2.msra.mxu0 0.0
  %1668 = vmatprep.subr.mxu0 0.0
  %1669 = vmatpush2.msra.mxu0 0.0
  %1670 = vmatprep.subr.mxu0 0.0
  %1671 = vmatpush2.msra.mxu0 0.0
  %1672 = vmatprep.subr.mxu0 0.0
  %1673 = vmatpush2.msra.mxu0 0.0
  %1674 = vmatprep.subr.mxu0 0.0
  %1675 = vmatpush2.msra.mxu0 0.0
  %1676 = vmatprep.subr.mxu0 0.0
  %1677 = vmatpush2.msra.mxu0 0.0
  %1678 = vmatprep.subr.mxu0 0.0
  %1679 = vmatpush2.msra.mxu0 0.0
  %1680 = vmatprep.subr.mxu0 0.0
  %1681 = vmatpush2.msra.mxu0 0.0
  %1682 = vmatprep.subr.mxu0 0.0
  %1683 = vmatpush2.msra.mxu0 0.0
  %1684 = vmatprep.subr.mxu0 0.0
  %1685 = vmatpush2.msra.mxu0 0.0
  %1686 = vmatprep.mubr.f32.mxu0 0.0
  %1687 = vmatmul.mubr.f32.gmra.mxu0 %v1608
  %v1688 = vpop.f32.mrf.mxu0
  %v1689 = vadd.f32 0.0, %v1688
  %v1690 = vpop.f32.mrf.mxu0
  %v1691 = vadd.f32 0.0, %v1690
  %1692 = vdwg.mxu0
  %1693 = vmatprep.subr.mxu0 0.0
  %1694 = vmatpush1.msra.mxu0 0.0
  %1695 = vmatprep.subr.mxu0 0.0
  %1696 = vmatpush1.msra.mxu0 0.0
  %1697 = vmatprep.subr.mxu0 0.0
  %1698 = vmatpush1.msra.mxu0 0.0
  %1699 = vmatprep.subr.mxu0 0.0
  %1700 = vmatpush1.msra.mxu0 0.0
  %1701 = vmatprep.subr.mxu0 0.0
  %1702 = vmatpush1.msra.mxu0 0.0
  %1703 = vmatprep.subr.mxu0 0.0
  %1704 = vmatpush1.msra.mxu0 0.0
  %1705 = vmatprep.subr.mxu0 0.0
  %1706 = vmatpush1.msra.mxu0 0.0
  %1707 = vmatprep.subr.mxu0 0.0
  %1708 = vmatpush1.msra.mxu0 0.0
  %1709 = vmatprep.subr.mxu0 0.0
  %1710 = vmatpush1.msra.mxu0 0.0
  %1711 = vmatprep.subr.mxu0 0.0
  %1712 = vmatpush1.msra.mxu0 0.0
  %1713 = vmatprep.subr.mxu0 0.0
  %1714 = vmatpush1.msra.mxu0 0.0
  %1715 = vmatprep.subr.mxu0 0.0
  %1716 = vmatpush1.msra.mxu0 0.0
  %1717 = vmatprep.subr.mxu0 0.0
  %1718 = vmatpush1.msra.mxu0 0.0
  %1719 = vmatprep.subr.mxu0 0.0
  %1720 = vmatpush1.msra.mxu0 0.0
  %1721 = vmatprep.subr.mxu0 0.0
  %1722 = vmatpush1.msra.mxu0 0.0
  %1723 = vmatprep.subr.mxu0 %v1616
  %1724 = vmatpush1.msra.mxu0 %v1614
  %1725 = vmatprep.subr.mxu0 0.0
  %1726 = vmatpush2.msra.mxu0 0.0
  %1727 = vmatprep.subr.mxu0 0.0
  %1728 = vmatpush2.msra.mxu0 0.0
  %1729 = vmatprep.subr.mxu0 0.0
  %1730 = vmatpush2.msra.mxu0 0.0
  %1731 = vmatprep.subr.mxu0 0.0
  %1732 = vmatpush2.msra.mxu0 0.0
  %1733 = vmatprep.subr.mxu0 0.0
  %1734 = vmatpush2.msra.mxu0 0.0
  %1735 = vmatprep.subr.mxu0 0.0
  %1736 = vmatpush2.msra.mxu0 0.0
  %1737 = vmatprep.subr.mxu0 0.0
  %1738 = vmatpush2.msra.mxu0 0.0
  %1739 = vmatprep.subr.mxu0 0.0
  %1740 = vmatpush2.msra.mxu0 0.0
  %1741 = vmatprep.subr.mxu0 0.0
  %1742 = vmatpush2.msra.mxu0 0.0
  %1743 = vmatprep.subr.mxu0 0.0
  %1744 = vmatpush2.msra.mxu0 0.0
  %1745 = vmatprep.subr.mxu0 0.0
  %1746 = vmatpush2.msra.mxu0 0.0
  %1747 = vmatprep.subr.mxu0 0.0
  %1748 = vmatpush2.msra.mxu0 0.0
  %1749 = vmatprep.subr.mxu0 0.0
  %1750 = vmatpush2.msra.mxu0 0.0
  %1751 = vmatprep.subr.mxu0 0.0
  %1752 = vmatpush2.msra.mxu0 0.0
  %1753 = vmatprep.subr.mxu0 0.0
  %1754 = vmatpush2.msra.mxu0 0.0
  %1755 = vmatprep.subr.mxu0 0.0
  %1756 = vmatpush2.msra.mxu0 0.0
  %1757 = vmatprep.mubr.f32.mxu0 0.0
  %1758 = vmatmul.mubr.f32.gmra.mxu0 %v1608
  %v1759 = vpop.f32.mrf.mxu0
  %v1760 = vadd.f32 0.0, %v1759
  %v1761 = vpop.f32.mrf.mxu0
  %v1762 = vadd.f32 0.0, %v1761
  %1763 = vdwg.mxu0
  %1764 = vmatprep.subr.mxu0 0.0
  %1765 = vmatpush1.msra.mxu0 0.0
  %1766 = vmatprep.subr.mxu0 0.0
  %1767 = vmatpush1.msra.mxu0 0.0
  %1768 = vmatprep.subr.mxu0 0.0
  %1769 = vmatpush1.msra.mxu0 0.0
  %1770 = vmatprep.subr.mxu0 0.0
  %1771 = vmatpush1.msra.mxu0 0.0
  %1772 = vmatprep.subr.mxu0 0.0
  %1773 = vmatpush1.msra.mxu0 0.0
  %1774 = vmatprep.subr.mxu0 0.0
  %1775 = vmatpush1.msra.mxu0 0.0
  %1776 = vmatprep.subr.mxu0 0.0
  %1777 = vmatpush1.msra.mxu0 0.0
  %1778 = vmatprep.subr.mxu0 0.0
  %1779 = vmatpush1.msra.mxu0 0.0
  %1780 = vmatprep.subr.mxu0 0.0
  %1781 = vmatpush1.msra.mxu0 0.0
  %1782 = vmatprep.subr.mxu0 0.0
  %1783 = vmatpush1.msra.mxu0 0.0
  %1784 = vmatprep.subr.mxu0 0.0
  %1785 = vmatpush1.msra.mxu0 0.0
  %1786 = vmatprep.subr.mxu0 0.0
  %1787 = vmatpush1.msra.mxu0 0.0
  %1788 = vmatprep.subr.mxu0 0.0
  %1789 = vmatpush1.msra.mxu0 0.0
  %1790 = vmatprep.subr.mxu0 0.0
  %1791 = vmatpush1.msra.mxu0 0.0
  %1792 = vmatprep.subr.mxu0 0.0
  %1793 = vmatpush1.msra.mxu0 0.0
  %1794 = vmatprep.subr.mxu0 %v1620
  %1795 = vmatpush1.msra.mxu0 %v1618
  %1796 = vmatprep.subr.mxu0 0.0
  %1797 = vmatpush2.msra.mxu0 0.0
  %1798 = vmatprep.subr.mxu0 0.0
  %1799 = vmatpush2.msra.mxu0 0.0
  %1800 = vmatprep.subr.mxu0 0.0
  %1801 = vmatpush2.msra.mxu0 0.0
  %1802 = vmatprep.subr.mxu0 0.0
  %1803 = vmatpush2.msra.mxu0 0.0
  %1804 = vmatprep.subr.mxu0 0.0
  %1805 = vmatpush2.msra.mxu0 0.0
  %1806 = vmatprep.subr.mxu0 0.0
  %1807 = vmatpush2.msra.mxu0 0.0
  %1808 = vmatprep.subr.mxu0 0.0
  %1809 = vmatpush2.msra.mxu0 0.0
  %1810 = vmatprep.subr.mxu0 0.0
  %1811 = vmatpush2.msra.mxu0 0.0
  %1812 = vmatprep.subr.mxu0 0.0
  %1813 = vmatpush2.msra.mxu0 0.0
  %1814 = vmatprep.subr.mxu0 0.0
  %1815 = vmatpush2.msra.mxu0 0.0
  %1816 = vmatprep.subr.mxu0 0.0
  %1817 = vmatpush2.msra.mxu0 0.0
  %1818 = vmatprep.subr.mxu0 0.0
  %1819 = vmatpush2.msra.mxu0 0.0
  %1820 = vmatprep.subr.mxu0 0.0
  %1821 = vmatpush2.msra.mxu0 0.0
  %1822 = vmatprep.subr.mxu0 0.0
  %1823 = vmatpush2.msra.mxu0 0.0
  %1824 = vmatprep.subr.mxu0 0.0
  %1825 = vmatpush2.msra.mxu0 0.0
  %1826 = vmatprep.subr.mxu0 0.0
  %1827 = vmatpush2.msra.mxu0 0.0
  %1828 = vmatprep.mubr.f32.mxu0 0.0
  %1829 = vmatmul.mubr.f32.gmra.mxu0 %v1608
  %v1830 = vpop.f32.mrf.mxu0
  %v1831 = vadd.f32 0.0, %v1830
  %v1832 = vpop.f32.mrf.mxu0
  %v1833 = vadd.f32 0.0, %v1832
  %1834 = vdwg.mxu0
  %v1835 = vadd.f32 %v1572, %v1689
  %v1836 = vadd.f32 %v1573, %v1691
  %v1837 = vadd.f32 %v1574, %v1760
  %v1838 = vadd.f32 %v1575, %v1762
  %v1839 = vadd.f32 %v1576, %v1831
  %v1840 = vadd.f32 %v1577, %v1833
  %s1841 = scalar_lea.vmem %s1, 28
  %v1842 = vld [vmem:[%s1841] sm:$0x7]
  %v1843 = vld [vmem:[%s0] sm:$0xff]
  %v1844 = vld [vmem:[%s0 + $0x8] sm:$0xff]
  %v1845 = vld [vmem:[%s0 + $0x10] sm:$0xff]
  %v1849 = vcombine.high %v1843, %v1843
  %v1850 = vcombine.high %v1844, %v1844
  %v1851 = vcombine.high %v1845, %v1845
  %1852 = vrot.lane.b32.xlu0 %v1843, 108
  %v1853 = vpop.permute.xlu0 %1852
  %1854 = vrot.lane.b32.xlu0 %v1849, 108
  %v1855 = vpop.permute.xlu0 %1854
  %1856 = vrot.lane.b32.xlu0 %v1844, 108
  %v1857 = vpop.permute.xlu0 %1856
  %1858 = vrot.lane.b32.xlu0 %v1850, 108
  %v1859 = vpop.permute.xlu0 %1858
  %1860 = vrot.lane.b32.xlu0 %v1845, 108
  %v1861 = vpop.permute.xlu0 %1860
  %1862 = vrot.lane.b32.xlu0 %v1851, 108
  %v1863 = vpop.permute.xlu0 %1862
  %vm1864 = vcmask 883712
  %v1865 = vsel %vm1864, %v1853, %v1855
  %v1866 = vsel %vm1864, %v1855, %v1857
  %v1867 = vsel %vm1864, %v1857, %v1859
  %v1868 = vsel %vm1864, %v1859, %v1861
  %v1869 = vsel %vm1864, %v1861, %v1863
  %v1871 = vsel %vm68, %v1842, 0
  %v1873 = vsel %vm72, %v1865, 0
  %v1875 = vsel %vm72, %v1866, 0
  %v1877 = vsel %vm72, %v1867, 0
  %v1879 = vsel %vm72, %v1868, 0
  %v1881 = vsel %vm72, %v1869, 0
  %v1883 = vsel %vm72, %v1863, 0
  %1885 = vmatprep.subr.mxu0 0.0
  %1886 = vmatpush1.msra.mxu0 0.0
  %1887 = vmatprep.subr.mxu0 0.0
  %1888 = vmatpush1.msra.mxu0 0.0
  %1889 = vmatprep.subr.mxu0 0.0
  %1890 = vmatpush1.msra.mxu0 0.0
  %1891 = vmatprep.subr.mxu0 0.0
  %1892 = vmatpush1.msra.mxu0 0.0
  %1893 = vmatprep.subr.mxu0 0.0
  %1894 = vmatpush1.msra.mxu0 0.0
  %1895 = vmatprep.subr.mxu0 0.0
  %1896 = vmatpush1.msra.mxu0 0.0
  %1897 = vmatprep.subr.mxu0 0.0
  %1898 = vmatpush1.msra.mxu0 0.0
  %1899 = vmatprep.subr.mxu0 0.0
  %1900 = vmatpush1.msra.mxu0 0.0
  %1901 = vmatprep.subr.mxu0 0.0
  %1902 = vmatpush1.msra.mxu0 0.0
  %1903 = vmatprep.subr.mxu0 0.0
  %1904 = vmatpush1.msra.mxu0 0.0
  %1905 = vmatprep.subr.mxu0 0.0
  %1906 = vmatpush1.msra.mxu0 0.0
  %1907 = vmatprep.subr.mxu0 0.0
  %1908 = vmatpush1.msra.mxu0 0.0
  %1909 = vmatprep.subr.mxu0 0.0
  %1910 = vmatpush1.msra.mxu0 0.0
  %1911 = vmatprep.subr.mxu0 0.0
  %1912 = vmatpush1.msra.mxu0 0.0
  %1913 = vmatprep.subr.mxu0 0.0
  %1914 = vmatpush1.msra.mxu0 0.0
  %1915 = vmatprep.subr.mxu0 %v1875
  %1916 = vmatpush1.msra.mxu0 %v1873
  %1917 = vmatprep.subr.mxu0 0.0
  %1918 = vmatpush2.msra.mxu0 0.0
  %1919 = vmatprep.subr.mxu0 0.0
  %1920 = vmatpush2.msra.mxu0 0.0
  %1921 = vmatprep.subr.mxu0 0.0
  %1922 = vmatpush2.msra.mxu0 0.0
  %1923 = vmatprep.subr.mxu0 0.0
  %1924 = vmatpush2.msra.mxu0 0.0
  %1925 = vmatprep.subr.mxu0 0.0
  %1926 = vmatpush2.msra.mxu0 0.0
  %1927 = vmatprep.subr.mxu0 0.0
  %1928 = vmatpush2.msra.mxu0 0.0
  %1929 = vmatprep.subr.mxu0 0.0
  %1930 = vmatpush2.msra.mxu0 0.0
  %1931 = vmatprep.subr.mxu0 0.0
  %1932 = vmatpush2.msra.mxu0 0.0
  %1933 = vmatprep.subr.mxu0 0.0
  %1934 = vmatpush2.msra.mxu0 0.0
  %1935 = vmatprep.subr.mxu0 0.0
  %1936 = vmatpush2.msra.mxu0 0.0
  %1937 = vmatprep.subr.mxu0 0.0
  %1938 = vmatpush2.msra.mxu0 0.0
  %1939 = vmatprep.subr.mxu0 0.0
  %1940 = vmatpush2.msra.mxu0 0.0
  %1941 = vmatprep.subr.mxu0 0.0
  %1942 = vmatpush2.msra.mxu0 0.0
  %1943 = vmatprep.subr.mxu0 0.0
  %1944 = vmatpush2.msra.mxu0 0.0
  %1945 = vmatprep.subr.mxu0 0.0
  %1946 = vmatpush2.msra.mxu0 0.0
  %1947 = vmatprep.subr.mxu0 0.0
  %1948 = vmatpush2.msra.mxu0 0.0
  %1949 = vmatprep.mubr.f32.mxu0 0.0
  %1950 = vmatmul.mubr.f32.gmra.mxu0 %v1871
  %v1951 = vpop.f32.mrf.mxu0
  %v1952 = vadd.f32 0.0, %v1951
  %v1953 = vpop.f32.mrf.mxu0
  %v1954 = vadd.f32 0.0, %v1953
  %1955 = vdwg.mxu0
  %1956 = vmatprep.subr.mxu0 0.0
  %1957 = vmatpush1.msra.mxu0 0.0
  %1958 = vmatprep.subr.mxu0 0.0
  %1959 = vmatpush1.msra.mxu0 0.0
  %1960 = vmatprep.subr.mxu0 0.0
  %1961 = vmatpush1.msra.mxu0 0.0
  %1962 = vmatprep.subr.mxu0 0.0
  %1963 = vmatpush1.msra.mxu0 0.0
  %1964 = vmatprep.subr.mxu0 0.0
  %1965 = vmatpush1.msra.mxu0 0.0
  %1966 = vmatprep.subr.mxu0 0.0
  %1967 = vmatpush1.msra.mxu0 0.0
  %1968 = vmatprep.subr.mxu0 0.0
  %1969 = vmatpush1.msra.mxu0 0.0
  %1970 = vmatprep.subr.mxu0 0.0
  %1971 = vmatpush1.msra.mxu0 0.0
  %1972 = vmatprep.subr.mxu0 0.0
  %1973 = vmatpush1.msra.mxu0 0.0
  %1974 = vmatprep.subr.mxu0 0.0
  %1975 = vmatpush1.msra.mxu0 0.0
  %1976 = vmatprep.subr.mxu0 0.0
  %1977 = vmatpush1.msra.mxu0 0.0
  %1978 = vmatprep.subr.mxu0 0.0
  %1979 = vmatpush1.msra.mxu0 0.0
  %1980 = vmatprep.subr.mxu0 0.0
  %1981 = vmatpush1.msra.mxu0 0.0
  %1982 = vmatprep.subr.mxu0 0.0
  %1983 = vmatpush1.msra.mxu0 0.0
  %1984 = vmatprep.subr.mxu0 0.0
  %1985 = vmatpush1.msra.mxu0 0.0
  %1986 = vmatprep.subr.mxu0 %v1879
  %1987 = vmatpush1.msra.mxu0 %v1877
  %1988 = vmatprep.subr.mxu0 0.0
  %1989 = vmatpush2.msra.mxu0 0.0
  %1990 = vmatprep.subr.mxu0 0.0
  %1991 = vmatpush2.msra.mxu0 0.0
  %1992 = vmatprep.subr.mxu0 0.0
  %1993 = vmatpush2.msra.mxu0 0.0
  %1994 = vmatprep.subr.mxu0 0.0
  %1995 = vmatpush2.msra.mxu0 0.0
  %1996 = vmatprep.subr.mxu0 0.0
  %1997 = vmatpush2.msra.mxu0 0.0
  %1998 = vmatprep.subr.mxu0 0.0
  %1999 = vmatpush2.msra.mxu0 0.0
  %2000 = vmatprep.subr.mxu0 0.0
  %2001 = vmatpush2.msra.mxu0 0.0
  %2002 = vmatprep.subr.mxu0 0.0
  %2003 = vmatpush2.msra.mxu0 0.0
  %2004 = vmatprep.subr.mxu0 0.0
  %2005 = vmatpush2.msra.mxu0 0.0
  %2006 = vmatprep.subr.mxu0 0.0
  %2007 = vmatpush2.msra.mxu0 0.0
  %2008 = vmatprep.subr.mxu0 0.0
  %2009 = vmatpush2.msra.mxu0 0.0
  %2010 = vmatprep.subr.mxu0 0.0
  %2011 = vmatpush2.msra.mxu0 0.0
  %2012 = vmatprep.subr.mxu0 0.0
  %2013 = vmatpush2.msra.mxu0 0.0
  %2014 = vmatprep.subr.mxu0 0.0
  %2015 = vmatpush2.msra.mxu0 0.0
  %2016 = vmatprep.subr.mxu0 0.0
  %2017 = vmatpush2.msra.mxu0 0.0
  %2018 = vmatprep.subr.mxu0 0.0
  %2019 = vmatpush2.msra.mxu0 0.0
  %2020 = vmatprep.mubr.f32.mxu0 0.0
  %2021 = vmatmul.mubr.f32.gmra.mxu0 %v1871
  %v2022 = vpop.f32.mrf.mxu0
  %v2023 = vadd.f32 0.0, %v2022
  %v2024 = vpop.f32.mrf.mxu0
  %v2025 = vadd.f32 0.0, %v2024
  %2026 = vdwg.mxu0
  %2027 = vmatprep.subr.mxu0 0.0
  %2028 = vmatpush1.msra.mxu0 0.0
  %2029 = vmatprep.subr.mxu0 0.0
  %2030 = vmatpush1.msra.mxu0 0.0
  %2031 = vmatprep.subr.mxu0 0.0
  %2032 = vmatpush1.msra.mxu0 0.0
  %2033 = vmatprep.subr.mxu0 0.0
  %2034 = vmatpush1.msra.mxu0 0.0
  %2035 = vmatprep.subr.mxu0 0.0
  %2036 = vmatpush1.msra.mxu0 0.0
  %2037 = vmatprep.subr.mxu0 0.0
  %2038 = vmatpush1.msra.mxu0 0.0
  %2039 = vmatprep.subr.mxu0 0.0
  %2040 = vmatpush1.msra.mxu0 0.0
  %2041 = vmatprep.subr.mxu0 0.0
  %2042 = vmatpush1.msra.mxu0 0.0
  %2043 = vmatprep.subr.mxu0 0.0
  %2044 = vmatpush1.msra.mxu0 0.0
  %2045 = vmatprep.subr.mxu0 0.0
  %2046 = vmatpush1.msra.mxu0 0.0
  %2047 = vmatprep.subr.mxu0 0.0
  %2048 = vmatpush1.msra.mxu0 0.0
  %2049 = vmatprep.subr.mxu0 0.0
  %2050 = vmatpush1.msra.mxu0 0.0
  %2051 = vmatprep.subr.mxu0 0.0
  %2052 = vmatpush1.msra.mxu0 0.0
  %2053 = vmatprep.subr.mxu0 0.0
  %2054 = vmatpush1.msra.mxu0 0.0
  %2055 = vmatprep.subr.mxu0 0.0
  %2056 = vmatpush1.msra.mxu0 0.0
  %2057 = vmatprep.subr.mxu0 %v1883
  %2058 = vmatpush1.msra.mxu0 %v1881
  %2059 = vmatprep.subr.mxu0 0.0
  %2060 = vmatpush2.msra.mxu0 0.0
  %2061 = vmatprep.subr.mxu0 0.0
  %2062 = vmatpush2.msra.mxu0 0.0
  %2063 = vmatprep.subr.mxu0 0.0
  %2064 = vmatpush2.msra.mxu0 0.0
  %2065 = vmatprep.subr.mxu0 0.0
  %2066 = vmatpush2.msra.mxu0 0.0
  %2067 = vmatprep.subr.mxu0 0.0
  %2068 = vmatpush2.msra.mxu0 0.0
  %2069 = vmatprep.subr.mxu0 0.0
  %2070 = vmatpush2.msra.mxu0 0.0
  %2071 = vmatprep.subr.mxu0 0.0
  %2072 = vmatpush2.msra.mxu0 0.0
  %2073 = vmatprep.subr.mxu0 0.0
  %2074 = vmatpush2.msra.mxu0 0.0
  %2075 = vmatprep.subr.mxu0 0.0
  %2076 = vmatpush2.msra.mxu0 0.0
  %2077 = vmatprep.subr.mxu0 0.0
  %2078 = vmatpush2.msra.mxu0 0.0
  %2079 = vmatprep.subr.mxu0 0.0
  %2080 = vmatpush2.msra.mxu0 0.0
  %2081 = vmatprep.subr.mxu0 0.0
  %2082 = vmatpush2.msra.mxu0 0.0
  %2083 = vmatprep.subr.mxu0 0.0
  %2084 = vmatpush2.msra.mxu0 0.0
  %2085 = vmatprep.subr.mxu0 0.0
  %2086 = vmatpush2.msra.mxu0 0.0
  %2087 = vmatprep.subr.mxu0 0.0
  %2088 = vmatpush2.msra.mxu0 0.0
  %2089 = vmatprep.subr.mxu0 0.0
  %2090 = vmatpush2.msra.mxu0 0.0
  %2091 = vmatprep.mubr.f32.mxu0 0.0
  %2092 = vmatmul.mubr.f32.gmra.mxu0 %v1871
  %v2093 = vpop.f32.mrf.mxu0
  %v2094 = vadd.f32 0.0, %v2093
  %v2095 = vpop.f32.mrf.mxu0
  %v2096 = vadd.f32 0.0, %v2095
  %2097 = vdwg.mxu0
  %v2098 = vadd.f32 %v1835, %v1952
  %v2099 = vadd.f32 %v1836, %v1954
  %v2100 = vadd.f32 %v1837, %v2023
  %v2101 = vadd.f32 %v1838, %v2025
  %v2102 = vadd.f32 %v1839, %v2094
  %v2103 = vadd.f32 %v1840, %v2096
  %s2104 = scalar_lea.vmem %s1, 32
  %v2105 = vld [vmem:[%s2104] sm:$0x7]
  %v2106 = vld [vmem:[%s0] sm:$0xff]
  %v2107 = vld [vmem:[%s0 + $0x8] sm:$0xff]
  %v2108 = vld [vmem:[%s0 + $0x10] sm:$0xff]
  %v2112 = vcombine.high %v2106, %v2106
  %v2113 = vcombine.high %v2107, %v2107
  %v2114 = vcombine.high %v2108, %v2108
  %2115 = vrot.lane.b32.xlu0 %v2106, 107
  %v2116 = vpop.permute.xlu0 %2115
  %2117 = vrot.lane.b32.xlu0 %v2112, 107
  %v2118 = vpop.permute.xlu0 %2117
  %2119 = vrot.lane.b32.xlu0 %v2107, 107
  %v2120 = vpop.permute.xlu0 %2119
  %2121 = vrot.lane.b32.xlu0 %v2113, 107
  %v2122 = vpop.permute.xlu0 %2121
  %2123 = vrot.lane.b32.xlu0 %v2108, 107
  %v2124 = vpop.permute.xlu0 %2123
  %2125 = vrot.lane.b32.xlu0 %v2114, 107
  %v2126 = vpop.permute.xlu0 %2125
  %vm2127 = vcmask 875520
  %v2128 = vsel %vm2127, %v2116, %v2118
  %v2129 = vsel %vm2127, %v2118, %v2120
  %v2130 = vsel %vm2127, %v2120, %v2122
  %v2131 = vsel %vm2127, %v2122, %v2124
  %v2132 = vsel %vm2127, %v2124, %v2126
  %v2134 = vsel %vm68, %v2105, 0
  %v2136 = vsel %vm72, %v2128, 0
  %v2138 = vsel %vm72, %v2129, 0
  %v2140 = vsel %vm72, %v2130, 0
  %v2142 = vsel %vm72, %v2131, 0
  %v2144 = vsel %vm72, %v2132, 0
  %v2146 = vsel %vm72, %v2126, 0
  %2148 = vmatprep.subr.mxu0 0.0
  %2149 = vmatpush1.msra.mxu0 0.0
  %2150 = vmatprep.subr.mxu0 0.0
  %2151 = vmatpush1.msra.mxu0 0.0
  %2152 = vmatprep.subr.mxu0 0.0
  %2153 = vmatpush1.msra.mxu0 0.0
  %2154 = vmatprep.subr.mxu0 0.0
  %2155 = vmatpush1.msra.mxu0 0.0
  %2156 = vmatprep.subr.mxu0 0.0
  %2157 = vmatpush1.msra.mxu0 0.0
  %2158 = vmatprep.subr.mxu0 0.0
  %2159 = vmatpush1.msra.mxu0 0.0
  %2160 = vmatprep.subr.mxu0 0.0
  %2161 = vmatpush1.msra.mxu0 0.0
  %2162 = vmatprep.subr.mxu0 0.0
  %2163 = vmatpush1.msra.mxu0 0.0
  %2164 = vmatprep.subr.mxu0 0.0
  %2165 = vmatpush1.msra.mxu0 0.0
  %2166 = vmatprep.subr.mxu0 0.0
  %2167 = vmatpush1.msra.mxu0 0.0
  %2168 = vmatprep.subr.mxu0 0.0
  %2169 = vmatpush1.msra.mxu0 0.0
  %2170 = vmatprep.subr.mxu0 0.0
  %2171 = vmatpush1.msra.mxu0 0.0
  %2172 = vmatprep.subr.mxu0 0.0
  %2173 = vmatpush1.msra.mxu0 0.0
  %2174 = vmatprep.subr.mxu0 0.0
  %2175 = vmatpush1.msra.mxu0 0.0
  %2176 = vmatprep.subr.mxu0 0.0
  %2177 = vmatpush1.msra.mxu0 0.0
  %2178 = vmatprep.subr.mxu0 %v2138
  %2179 = vmatpush1.msra.mxu0 %v2136
  %2180 = vmatprep.subr.mxu0 0.0
  %2181 = vmatpush2.msra.mxu0 0.0
  %2182 = vmatprep.subr.mxu0 0.0
  %2183 = vmatpush2.msra.mxu0 0.0
  %2184 = vmatprep.subr.mxu0 0.0
  %2185 = vmatpush2.msra.mxu0 0.0
  %2186 = vmatprep.subr.mxu0 0.0
  %2187 = vmatpush2.msra.mxu0 0.0
  %2188 = vmatprep.subr.mxu0 0.0
  %2189 = vmatpush2.msra.mxu0 0.0
  %2190 = vmatprep.subr.mxu0 0.0
  %2191 = vmatpush2.msra.mxu0 0.0
  %2192 = vmatprep.subr.mxu0 0.0
  %2193 = vmatpush2.msra.mxu0 0.0
  %2194 = vmatprep.subr.mxu0 0.0
  %2195 = vmatpush2.msra.mxu0 0.0
  %2196 = vmatprep.subr.mxu0 0.0
  %2197 = vmatpush2.msra.mxu0 0.0
  %2198 = vmatprep.subr.mxu0 0.0
  %2199 = vmatpush2.msra.mxu0 0.0
  %2200 = vmatprep.subr.mxu0 0.0
  %2201 = vmatpush2.msra.mxu0 0.0
  %2202 = vmatprep.subr.mxu0 0.0
  %2203 = vmatpush2.msra.mxu0 0.0
  %2204 = vmatprep.subr.mxu0 0.0
  %2205 = vmatpush2.msra.mxu0 0.0
  %2206 = vmatprep.subr.mxu0 0.0
  %2207 = vmatpush2.msra.mxu0 0.0
  %2208 = vmatprep.subr.mxu0 0.0
  %2209 = vmatpush2.msra.mxu0 0.0
  %2210 = vmatprep.subr.mxu0 0.0
  %2211 = vmatpush2.msra.mxu0 0.0
  %2212 = vmatprep.mubr.f32.mxu0 0.0
  %2213 = vmatmul.mubr.f32.gmra.mxu0 %v2134
  %v2214 = vpop.f32.mrf.mxu0
  %v2215 = vadd.f32 0.0, %v2214
  %v2216 = vpop.f32.mrf.mxu0
  %v2217 = vadd.f32 0.0, %v2216
  %2218 = vdwg.mxu0
  %2219 = vmatprep.subr.mxu0 0.0
  %2220 = vmatpush1.msra.mxu0 0.0
  %2221 = vmatprep.subr.mxu0 0.0
  %2222 = vmatpush1.msra.mxu0 0.0
  %2223 = vmatprep.subr.mxu0 0.0
  %2224 = vmatpush1.msra.mxu0 0.0
  %2225 = vmatprep.subr.mxu0 0.0
  %2226 = vmatpush1.msra.mxu0 0.0
  %2227 = vmatprep.subr.mxu0 0.0
  %2228 = vmatpush1.msra.mxu0 0.0
  %2229 = vmatprep.subr.mxu0 0.0
  %2230 = vmatpush1.msra.mxu0 0.0
  %2231 = vmatprep.subr.mxu0 0.0
  %2232 = vmatpush1.msra.mxu0 0.0
  %2233 = vmatprep.subr.mxu0 0.0
  %2234 = vmatpush1.msra.mxu0 0.0
  %2235 = vmatprep.subr.mxu0 0.0
  %2236 = vmatpush1.msra.mxu0 0.0
  %2237 = vmatprep.subr.mxu0 0.0
  %2238 = vmatpush1.msra.mxu0 0.0
  %2239 = vmatprep.subr.mxu0 0.0
  %2240 = vmatpush1.msra.mxu0 0.0
  %2241 = vmatprep.subr.mxu0 0.0
  %2242 = vmatpush1.msra.mxu0 0.0
  %2243 = vmatprep.subr.mxu0 0.0
  %2244 = vmatpush1.msra.mxu0 0.0
  %2245 = vmatprep.subr.mxu0 0.0
  %2246 = vmatpush1.msra.mxu0 0.0
  %2247 = vmatprep.subr.mxu0 0.0
  %2248 = vmatpush1.msra.mxu0 0.0
  %2249 = vmatprep.subr.mxu0 %v2142
  %2250 = vmatpush1.msra.mxu0 %v2140
  %2251 = vmatprep.subr.mxu0 0.0
  %2252 = vmatpush2.msra.mxu0 0.0
  %2253 = vmatprep.subr.mxu0 0.0
  %2254 = vmatpush2.msra.mxu0 0.0
  %2255 = vmatprep.subr.mxu0 0.0
  %2256 = vmatpush2.msra.mxu0 0.0
  %2257 = vmatprep.subr.mxu0 0.0
  %2258 = vmatpush2.msra.mxu0 0.0
  %2259 = vmatprep.subr.mxu0 0.0
  %2260 = vmatpush2.msra.mxu0 0.0
  %2261 = vmatprep.subr.mxu0 0.0
  %2262 = vmatpush2.msra.mxu0 0.0
  %2263 = vmatprep.subr.mxu0 0.0
  %2264 = vmatpush2.msra.mxu0 0.0
  %2265 = vmatprep.subr.mxu0 0.0
  %2266 = vmatpush2.msra.mxu0 0.0
  %2267 = vmatprep.subr.mxu0 0.0
  %2268 = vmatpush2.msra.mxu0 0.0
  %2269 = vmatprep.subr.mxu0 0.0
  %2270 = vmatpush2.msra.mxu0 0.0
  %2271 = vmatprep.subr.mxu0 0.0
  %2272 = vmatpush2.msra.mxu0 0.0
  %2273 = vmatprep.subr.mxu0 0.0
  %2274 = vmatpush2.msra.mxu0 0.0
  %2275 = vmatprep.subr.mxu0 0.0
  %2276 = vmatpush2.msra.mxu0 0.0
  %2277 = vmatprep.subr.mxu0 0.0
  %2278 = vmatpush2.msra.mxu0 0.0
  %2279 = vmatprep.subr.mxu0 0.0
  %2280 = vmatpush2.msra.mxu0 0.0
  %2281 = vmatprep.subr.mxu0 0.0
  %2282 = vmatpush2.msra.mxu0 0.0
  %2283 = vmatprep.mubr.f32.mxu0 0.0
  %2284 = vmatmul.mubr.f32.gmra.mxu0 %v2134
  %v2285 = vpop.f32.mrf.mxu0
  %v2286 = vadd.f32 0.0, %v2285
  %v2287 = vpop.f32.mrf.mxu0
  %v2288 = vadd.f32 0.0, %v2287
  %2289 = vdwg.mxu0
  %2290 = vmatprep.subr.mxu0 0.0
  %2291 = vmatpush1.msra.mxu0 0.0
  %2292 = vmatprep.subr.mxu0 0.0
  %2293 = vmatpush1.msra.mxu0 0.0
  %2294 = vmatprep.subr.mxu0 0.0
  %2295 = vmatpush1.msra.mxu0 0.0
  %2296 = vmatprep.subr.mxu0 0.0
  %2297 = vmatpush1.msra.mxu0 0.0
  %2298 = vmatprep.subr.mxu0 0.0
  %2299 = vmatpush1.msra.mxu0 0.0
  %2300 = vmatprep.subr.mxu0 0.0
  %2301 = vmatpush1.msra.mxu0 0.0
  %2302 = vmatprep.subr.mxu0 0.0
  %2303 = vmatpush1.msra.mxu0 0.0
  %2304 = vmatprep.subr.mxu0 0.0
  %2305 = vmatpush1.msra.mxu0 0.0
  %2306 = vmatprep.subr.mxu0 0.0
  %2307 = vmatpush1.msra.mxu0 0.0
  %2308 = vmatprep.subr.mxu0 0.0
  %2309 = vmatpush1.msra.mxu0 0.0
  %2310 = vmatprep.subr.mxu0 0.0
  %2311 = vmatpush1.msra.mxu0 0.0
  %2312 = vmatprep.subr.mxu0 0.0
  %2313 = vmatpush1.msra.mxu0 0.0
  %2314 = vmatprep.subr.mxu0 0.0
  %2315 = vmatpush1.msra.mxu0 0.0
  %2316 = vmatprep.subr.mxu0 0.0
  %2317 = vmatpush1.msra.mxu0 0.0
  %2318 = vmatprep.subr.mxu0 0.0
  %2319 = vmatpush1.msra.mxu0 0.0
  %2320 = vmatprep.subr.mxu0 %v2146
  %2321 = vmatpush1.msra.mxu0 %v2144
  %2322 = vmatprep.subr.mxu0 0.0
  %2323 = vmatpush2.msra.mxu0 0.0
  %2324 = vmatprep.subr.mxu0 0.0
  %2325 = vmatpush2.msra.mxu0 0.0
  %2326 = vmatprep.subr.mxu0 0.0
  %2327 = vmatpush2.msra.mxu0 0.0
  %2328 = vmatprep.subr.mxu0 0.0
  %2329 = vmatpush2.msra.mxu0 0.0
  %2330 = vmatprep.subr.mxu0 0.0
  %2331 = vmatpush2.msra.mxu0 0.0
  %2332 = vmatprep.subr.mxu0 0.0
  %2333 = vmatpush2.msra.mxu0 0.0
  %2334 = vmatprep.subr.mxu0 0.0
  %2335 = vmatpush2.msra.mxu0 0.0
  %2336 = vmatprep.subr.mxu0 0.0
  %2337 = vmatpush2.msra.mxu0 0.0
  %2338 = vmatprep.subr.mxu0 0.0
  %2339 = vmatpush2.msra.mxu0 0.0
  %2340 = vmatprep.subr.mxu0 0.0
  %2341 = vmatpush2.msra.mxu0 0.0
  %2342 = vmatprep.subr.mxu0 0.0
  %2343 = vmatpush2.msra.mxu0 0.0
  %2344 = vmatprep.subr.mxu0 0.0
  %2345 = vmatpush2.msra.mxu0 0.0
  %2346 = vmatprep.subr.mxu0 0.0
  %2347 = vmatpush2.msra.mxu0 0.0
  %2348 = vmatprep.subr.mxu0 0.0
  %2349 = vmatpush2.msra.mxu0 0.0
  %2350 = vmatprep.subr.mxu0 0.0
  %2351 = vmatpush2.msra.mxu0 0.0
  %2352 = vmatprep.subr.mxu0 0.0
  %2353 = vmatpush2.msra.mxu0 0.0
  %2354 = vmatprep.mubr.f32.mxu0 0.0
  %2355 = vmatmul.mubr.f32.gmra.mxu0 %v2134
  %v2356 = vpop.f32.mrf.mxu0
  %v2357 = vadd.f32 0.0, %v2356
  %v2358 = vpop.f32.mrf.mxu0
  %v2359 = vadd.f32 0.0, %v2358
  %2360 = vdwg.mxu0
  %v2361 = vadd.f32 %v2098, %v2215
  %v2362 = vadd.f32 %v2099, %v2217
  %v2363 = vadd.f32 %v2100, %v2286
  %v2364 = vadd.f32 %v2101, %v2288
  %v2365 = vadd.f32 %v2102, %v2357
  %v2366 = vadd.f32 %v2103, %v2359
  %s2367 = scalar_lea.vmem %s1, 36
  %v2368 = vld [vmem:[%s2367] sm:$0x7]
  %v2369 = vld [vmem:[%s0] sm:$0xff]
  %v2370 = vld [vmem:[%s0 + $0x8] sm:$0xff]
  %v2371 = vld [vmem:[%s0 + $0x10] sm:$0xff]
  %v2375 = vcombine.high %v2369, %v2369
  %v2376 = vcombine.high %v2370, %v2370
  %v2377 = vcombine.high %v2371, %v2371
  %2378 = vrot.lane.b32.xlu0 %v2369, 106
  %v2379 = vpop.permute.xlu0 %2378
  %2380 = vrot.lane.b32.xlu0 %v2375, 106
  %v2381 = vpop.permute.xlu0 %2380
  %2382 = vrot.lane.b32.xlu0 %v2370, 106
  %v2383 = vpop.permute.xlu0 %2382
  %2384 = vrot.lane.b32.xlu0 %v2376, 106
  %v2385 = vpop.permute.xlu0 %2384
  %2386 = vrot.lane.b32.xlu0 %v2371, 106
  %v2387 = vpop.permute.xlu0 %2386
  %2388 = vrot.lane.b32.xlu0 %v2377, 106
  %v2389 = vpop.permute.xlu0 %2388
  %vm2390 = vcmask 867328
  %v2391 = vsel %vm2390, %v2379, %v2381
  %v2392 = vsel %vm2390, %v2381, %v2383
  %v2393 = vsel %vm2390, %v2383, %v2385
  %v2394 = vsel %vm2390, %v2385, %v2387
  %v2395 = vsel %vm2390, %v2387, %v2389
  %v2397 = vsel %vm68, %v2368, 0
  %v2399 = vsel %vm72, %v2391, 0
  %v2401 = vsel %vm72, %v2392, 0
  %v2403 = vsel %vm72, %v2393, 0
  %v2405 = vsel %vm72, %v2394, 0
  %v2407 = vsel %vm72, %v2395, 0
  %v2409 = vsel %vm72, %v2389, 0
  %2411 = vmatprep.subr.mxu0 0.0
  %2412 = vmatpush1.msra.mxu0 0.0
  %2413 = vmatprep.subr.mxu0 0.0
  %2414 = vmatpush1.msra.mxu0 0.0
  %2415 = vmatprep.subr.mxu0 0.0
  %2416 = vmatpush1.msra.mxu0 0.0
  %2417 = vmatprep.subr.mxu0 0.0
  %2418 = vmatpush1.msra.mxu0 0.0
  %2419 = vmatprep.subr.mxu0 0.0
  %2420 = vmatpush1.msra.mxu0 0.0
  %2421 = vmatprep.subr.mxu0 0.0
  %2422 = vmatpush1.msra.mxu0 0.0
  %2423 = vmatprep.subr.mxu0 0.0
  %2424 = vmatpush1.msra.mxu0 0.0
  %2425 = vmatprep.subr.mxu0 0.0
  %2426 = vmatpush1.msra.mxu0 0.0
  %2427 = vmatprep.subr.mxu0 0.0
  %2428 = vmatpush1.msra.mxu0 0.0
  %2429 = vmatprep.subr.mxu0 0.0
  %2430 = vmatpush1.msra.mxu0 0.0
  %2431 = vmatprep.subr.mxu0 0.0
  %2432 = vmatpush1.msra.mxu0 0.0
  %2433 = vmatprep.subr.mxu0 0.0
  %2434 = vmatpush1.msra.mxu0 0.0
  %2435 = vmatprep.subr.mxu0 0.0
  %2436 = vmatpush1.msra.mxu0 0.0
  %2437 = vmatprep.subr.mxu0 0.0
  %2438 = vmatpush1.msra.mxu0 0.0
  %2439 = vmatprep.subr.mxu0 0.0
  %2440 = vmatpush1.msra.mxu0 0.0
  %2441 = vmatprep.subr.mxu0 %v2401
  %2442 = vmatpush1.msra.mxu0 %v2399
  %2443 = vmatprep.subr.mxu0 0.0
  %2444 = vmatpush2.msra.mxu0 0.0
  %2445 = vmatprep.subr.mxu0 0.0
  %2446 = vmatpush2.msra.mxu0 0.0
  %2447 = vmatprep.subr.mxu0 0.0
  %2448 = vmatpush2.msra.mxu0 0.0
  %2449 = vmatprep.subr.mxu0 0.0
  %2450 = vmatpush2.msra.mxu0 0.0
  %2451 = vmatprep.subr.mxu0 0.0
  %2452 = vmatpush2.msra.mxu0 0.0
  %2453 = vmatprep.subr.mxu0 0.0
  %2454 = vmatpush2.msra.mxu0 0.0
  %2455 = vmatprep.subr.mxu0 0.0
  %2456 = vmatpush2.msra.mxu0 0.0
  %2457 = vmatprep.subr.mxu0 0.0
  %2458 = vmatpush2.msra.mxu0 0.0
  %2459 = vmatprep.subr.mxu0 0.0
  %2460 = vmatpush2.msra.mxu0 0.0
  %2461 = vmatprep.subr.mxu0 0.0
  %2462 = vmatpush2.msra.mxu0 0.0
  %2463 = vmatprep.subr.mxu0 0.0
  %2464 = vmatpush2.msra.mxu0 0.0
  %2465 = vmatprep.subr.mxu0 0.0
  %2466 = vmatpush2.msra.mxu0 0.0
  %2467 = vmatprep.subr.mxu0 0.0
  %2468 = vmatpush2.msra.mxu0 0.0
  %2469 = vmatprep.subr.mxu0 0.0
  %2470 = vmatpush2.msra.mxu0 0.0
  %2471 = vmatprep.subr.mxu0 0.0
  %2472 = vmatpush2.msra.mxu0 0.0
  %2473 = vmatprep.subr.mxu0 0.0
  %2474 = vmatpush2.msra.mxu0 0.0
  %2475 = vmatprep.mubr.f32.mxu0 0.0
  %2476 = vmatmul.mubr.f32.gmra.mxu0 %v2397
  %v2477 = vpop.f32.mrf.mxu0
  %v2478 = vadd.f32 0.0, %v2477
  %v2479 = vpop.f32.mrf.mxu0
  %v2480 = vadd.f32 0.0, %v2479
  %2481 = vdwg.mxu0
  %2482 = vmatprep.subr.mxu0 0.0
  %2483 = vmatpush1.msra.mxu0 0.0
  %2484 = vmatprep.subr.mxu0 0.0
  %2485 = vmatpush1.msra.mxu0 0.0
  %2486 = vmatprep.subr.mxu0 0.0
  %2487 = vmatpush1.msra.mxu0 0.0
  %2488 = vmatprep.subr.mxu0 0.0
  %2489 = vmatpush1.msra.mxu0 0.0
  %2490 = vmatprep.subr.mxu0 0.0
  %2491 = vmatpush1.msra.mxu0 0.0
  %2492 = vmatprep.subr.mxu0 0.0
  %2493 = vmatpush1.msra.mxu0 0.0
  %2494 = vmatprep.subr.mxu0 0.0
  %2495 = vmatpush1.msra.mxu0 0.0
  %2496 = vmatprep.subr.mxu0 0.0
  %2497 = vmatpush1.msra.mxu0 0.0
  %2498 = vmatprep.subr.mxu0 0.0
  %2499 = vmatpush1.msra.mxu0 0.0
  %2500 = vmatprep.subr.mxu0 0.0
  %2501 = vmatpush1.msra.mxu0 0.0
  %2502 = vmatprep.subr.mxu0 0.0
  %2503 = vmatpush1.msra.mxu0 0.0
  %2504 = vmatprep.subr.mxu0 0.0
  %2505 = vmatpush1.msra.mxu0 0.0
  %2506 = vmatprep.subr.mxu0 0.0
  %2507 = vmatpush1.msra.mxu0 0.0
  %2508 = vmatprep.subr.mxu0 0.0
  %2509 = vmatpush1.msra.mxu0 0.0
  %2510 = vmatprep.subr.mxu0 0.0
  %2511 = vmatpush1.msra.mxu0 0.0
  %2512 = vmatprep.subr.mxu0 %v2405
  %2513 = vmatpush1.msra.mxu0 %v2403
  %2514 = vmatprep.subr.mxu0 0.0
  %2515 = vmatpush2.msra.mxu0 0.0
  %2516 = vmatprep.subr.mxu0 0.0
  %2517 = vmatpush2.msra.mxu0 0.0
  %2518 = vmatprep.subr.mxu0 0.0
  %2519 = vmatpush2.msra.mxu0 0.0
  %2520 = vmatprep.subr.mxu0 0.0
  %2521 = vmatpush2.msra.mxu0 0.0
  %2522 = vmatprep.subr.mxu0 0.0
  %2523 = vmatpush2.msra.mxu0 0.0
  %2524 = vmatprep.subr.mxu0 0.0
  %2525 = vmatpush2.msra.mxu0 0.0
  %2526 = vmatprep.subr.mxu0 0.0
  %2527 = vmatpush2.msra.mxu0 0.0
  %2528 = vmatprep.subr.mxu0 0.0
  %2529 = vmatpush2.msra.mxu0 0.0
  %2530 = vmatprep.subr.mxu0 0.0
  %2531 = vmatpush2.msra.mxu0 0.0
  %2532 = vmatprep.subr.mxu0 0.0
  %2533 = vmatpush2.msra.mxu0 0.0
  %2534 = vmatprep.subr.mxu0 0.0
  %2535 = vmatpush2.msra.mxu0 0.0
  %2536 = vmatprep.subr.mxu0 0.0
  %2537 = vmatpush2.msra.mxu0 0.0
  %2538 = vmatprep.subr.mxu0 0.0
  %2539 = vmatpush2.msra.mxu0 0.0
  %2540 = vmatprep.subr.mxu0 0.0
  %2541 = vmatpush2.msra.mxu0 0.0
  %2542 = vmatprep.subr.mxu0 0.0
  %2543 = vmatpush2.msra.mxu0 0.0
  %2544 = vmatprep.subr.mxu0 0.0
  %2545 = vmatpush2.msra.mxu0 0.0
  %2546 = vmatprep.mubr.f32.mxu0 0.0
  %2547 = vmatmul.mubr.f32.gmra.mxu0 %v2397
  %v2548 = vpop.f32.mrf.mxu0
  %v2549 = vadd.f32 0.0, %v2548
  %v2550 = vpop.f32.mrf.mxu0
  %v2551 = vadd.f32 0.0, %v2550
  %2552 = vdwg.mxu0
  %2553 = vmatprep.subr.mxu0 0.0
  %2554 = vmatpush1.msra.mxu0 0.0
  %2555 = vmatprep.subr.mxu0 0.0
  %2556 = vmatpush1.msra.mxu0 0.0
  %2557 = vmatprep.subr.mxu0 0.0
  %2558 = vmatpush1.msra.mxu0 0.0
  %2559 = vmatprep.subr.mxu0 0.0
  %2560 = vmatpush1.msra.mxu0 0.0
  %2561 = vmatprep.subr.mxu0 0.0
  %2562 = vmatpush1.msra.mxu0 0.0
  %2563 = vmatprep.subr.mxu0 0.0
  %2564 = vmatpush1.msra.mxu0 0.0
  %2565 = vmatprep.subr.mxu0 0.0
  %2566 = vmatpush1.msra.mxu0 0.0
  %2567 = vmatprep.subr.mxu0 0.0
  %2568 = vmatpush1.msra.mxu0 0.0
  %2569 = vmatprep.subr.mxu0 0.0
  %2570 = vmatpush1.msra.mxu0 0.0
  %2571 = vmatprep.subr.mxu0 0.0
  %2572 = vmatpush1.msra.mxu0 0.0
  %2573 = vmatprep.subr.mxu0 0.0
  %2574 = vmatpush1.msra.mxu0 0.0
  %2575 = vmatprep.subr.mxu0 0.0
  %2576 = vmatpush1.msra.mxu0 0.0
  %2577 = vmatprep.subr.mxu0 0.0
  %2578 = vmatpush1.msra.mxu0 0.0
  %2579 = vmatprep.subr.mxu0 0.0
  %2580 = vmatpush1.msra.mxu0 0.0
  %2581 = vmatprep.subr.mxu0 0.0
  %2582 = vmatpush1.msra.mxu0 0.0
  %2583 = vmatprep.subr.mxu0 %v2409
  %2584 = vmatpush1.msra.mxu0 %v2407
  %2585 = vmatprep.subr.mxu0 0.0
  %2586 = vmatpush2.msra.mxu0 0.0
  %2587 = vmatprep.subr.mxu0 0.0
  %2588 = vmatpush2.msra.mxu0 0.0
  %2589 = vmatprep.subr.mxu0 0.0
  %2590 = vmatpush2.msra.mxu0 0.0
  %2591 = vmatprep.subr.mxu0 0.0
  %2592 = vmatpush2.msra.mxu0 0.0
  %2593 = vmatprep.subr.mxu0 0.0
  %2594 = vmatpush2.msra.mxu0 0.0
  %2595 = vmatprep.subr.mxu0 0.0
  %2596 = vmatpush2.msra.mxu0 0.0
  %2597 = vmatprep.subr.mxu0 0.0
  %2598 = vmatpush2.msra.mxu0 0.0
  %2599 = vmatprep.subr.mxu0 0.0
  %2600 = vmatpush2.msra.mxu0 0.0
  %2601 = vmatprep.subr.mxu0 0.0
  %2602 = vmatpush2.msra.mxu0 0.0
  %2603 = vmatprep.subr.mxu0 0.0
  %2604 = vmatpush2.msra.mxu0 0.0
  %2605 = vmatprep.subr.mxu0 0.0
  %2606 = vmatpush2.msra.mxu0 0.0
  %2607 = vmatprep.subr.mxu0 0.0
  %2608 = vmatpush2.msra.mxu0 0.0
  %2609 = vmatprep.subr.mxu0 0.0
  %2610 = vmatpush2.msra.mxu0 0.0
  %2611 = vmatprep.subr.mxu0 0.0
  %2612 = vmatpush2.msra.mxu0 0.0
  %2613 = vmatprep.subr.mxu0 0.0
  %2614 = vmatpush2.msra.mxu0 0.0
  %2615 = vmatprep.subr.mxu0 0.0
  %2616 = vmatpush2.msra.mxu0 0.0
  %2617 = vmatprep.mubr.f32.mxu0 0.0
  %2618 = vmatmul.mubr.f32.gmra.mxu0 %v2397
  %v2619 = vpop.f32.mrf.mxu0
  %v2620 = vadd.f32 0.0, %v2619
  %v2621 = vpop.f32.mrf.mxu0
  %v2622 = vadd.f32 0.0, %v2621
  %2623 = vdwg.mxu0
  %v2624 = vadd.f32 %v2361, %v2478
  %v2625 = vadd.f32 %v2362, %v2480
  %v2626 = vadd.f32 %v2363, %v2549
  %v2627 = vadd.f32 %v2364, %v2551
  %v2628 = vadd.f32 %v2365, %v2620
  %v2629 = vadd.f32 %v2366, %v2622
  %s2630 = scalar_lea.vmem %s1, 40
  %v2631 = vld [vmem:[%s2630] sm:$0x7]
  %v2632 = vld [vmem:[%s0] sm:$0xff]
  %v2633 = vld [vmem:[%s0 + $0x8] sm:$0xff]
  %v2634 = vld [vmem:[%s0 + $0x10] sm:$0xff]
  %v2638 = vcombine.high %v2632, %v2632
  %v2639 = vcombine.high %v2633, %v2633
  %v2640 = vcombine.high %v2634, %v2634
  %2641 = vrot.lane.b32.xlu0 %v2632, 92
  %v2642 = vpop.permute.xlu0 %2641
  %2643 = vrot.lane.b32.xlu0 %v2638, 92
  %v2644 = vpop.permute.xlu0 %2643
  %2645 = vrot.lane.b32.xlu0 %v2633, 92
  %v2646 = vpop.permute.xlu0 %2645
  %2647 = vrot.lane.b32.xlu0 %v2639, 92
  %v2648 = vpop.permute.xlu0 %2647
  %2649 = vrot.lane.b32.xlu0 %v2634, 92
  %v2650 = vpop.permute.xlu0 %2649
  %2651 = vrot.lane.b32.xlu0 %v2640, 92
  %v2652 = vpop.permute.xlu0 %2651
  %vm2653 = vcmask 752640
  %v2654 = vsel %vm2653, %v2642, %v2644
  %v2655 = vsel %vm2653, %v2644, %v2646
  %v2656 = vsel %vm2653, %v2646, %v2648
  %v2657 = vsel %vm2653, %v2648, %v2650
  %v2658 = vsel %vm2653, %v2650, %v2652
  %v2660 = vsel %vm68, %v2631, 0
  %v2662 = vsel %vm72, %v2654, 0
  %v2664 = vsel %vm72, %v2655, 0
  %v2666 = vsel %vm72, %v2656, 0
  %v2668 = vsel %vm72, %v2657, 0
  %v2670 = vsel %vm72, %v2658, 0
  %v2672 = vsel %vm72, %v2652, 0
  %2674 = vmatprep.subr.mxu0 0.0
  %2675 = vmatpush1.msra.mxu0 0.0
  %2676 = vmatprep.subr.mxu0 0.0
  %2677 = vmatpush1.msra.mxu0 0.0
  %2678 = vmatprep.subr.mxu0 0.0
  %2679 = vmatpush1.msra.mxu0 0.0
  %2680 = vmatprep.subr.mxu0 0.0
  %2681 = vmatpush1.msra.mxu0 0.0
  %2682 = vmatprep.subr.mxu0 0.0
  %2683 = vmatpush1.msra.mxu0 0.0
  %2684 = vmatprep.subr.mxu0 0.0
  %2685 = vmatpush1.msra.mxu0 0.0
  %2686 = vmatprep.subr.mxu0 0.0
  %2687 = vmatpush1.msra.mxu0 0.0
  %2688 = vmatprep.subr.mxu0 0.0
  %2689 = vmatpush1.msra.mxu0 0.0
  %2690 = vmatprep.subr.mxu0 0.0
  %2691 = vmatpush1.msra.mxu0 0.0
  %2692 = vmatprep.subr.mxu0 0.0
  %2693 = vmatpush1.msra.mxu0 0.0
  %2694 = vmatprep.subr.mxu0 0.0
  %2695 = vmatpush1.msra.mxu0 0.0
  %2696 = vmatprep.subr.mxu0 0.0
  %2697 = vmatpush1.msra.mxu0 0.0
  %2698 = vmatprep.subr.mxu0 0.0
  %2699 = vmatpush1.msra.mxu0 0.0
  %2700 = vmatprep.subr.mxu0 0.0
  %2701 = vmatpush1.msra.mxu0 0.0
  %2702 = vmatprep.subr.mxu0 0.0
  %2703 = vmatpush1.msra.mxu0 0.0
  %2704 = vmatprep.subr.mxu0 %v2664
  %2705 = vmatpush1.msra.mxu0 %v2662
  %2706 = vmatprep.subr.mxu0 0.0
  %2707 = vmatpush2.msra.mxu0 0.0
  %2708 = vmatprep.subr.mxu0 0.0
  %2709 = vmatpush2.msra.mxu0 0.0
  %2710 = vmatprep.subr.mxu0 0.0
  %2711 = vmatpush2.msra.mxu0 0.0
  %2712 = vmatprep.subr.mxu0 0.0
  %2713 = vmatpush2.msra.mxu0 0.0
  %2714 = vmatprep.subr.mxu0 0.0
  %2715 = vmatpush2.msra.mxu0 0.0
  %2716 = vmatprep.subr.mxu0 0.0
  %2717 = vmatpush2.msra.mxu0 0.0
  %2718 = vmatprep.subr.mxu0 0.0
  %2719 = vmatpush2.msra.mxu0 0.0
  %2720 = vmatprep.subr.mxu0 0.0
  %2721 = vmatpush2.msra.mxu0 0.0
  %2722 = vmatprep.subr.mxu0 0.0
  %2723 = vmatpush2.msra.mxu0 0.0
  %2724 = vmatprep.subr.mxu0 0.0
  %2725 = vmatpush2.msra.mxu0 0.0
  %2726 = vmatprep.subr.mxu0 0.0
  %2727 = vmatpush2.msra.mxu0 0.0
  %2728 = vmatprep.subr.mxu0 0.0
  %2729 = vmatpush2.msra.mxu0 0.0
  %2730 = vmatprep.subr.mxu0 0.0
  %2731 = vmatpush2.msra.mxu0 0.0
  %2732 = vmatprep.subr.mxu0 0.0
  %2733 = vmatpush2.msra.mxu0 0.0
  %2734 = vmatprep.subr.mxu0 0.0
  %2735 = vmatpush2.msra.mxu0 0.0
  %2736 = vmatprep.subr.mxu0 0.0
  %2737 = vmatpush2.msra.mxu0 0.0
  %2738 = vmatprep.mubr.f32.mxu0 0.0
  %2739 = vmatmul.mubr.f32.gmra.mxu0 %v2660
  %v2740 = vpop.f32.mrf.mxu0
  %v2741 = vadd.f32 0.0, %v2740
  %v2742 = vpop.f32.mrf.mxu0
  %v2743 = vadd.f32 0.0, %v2742
  %2744 = vdwg.mxu0
  %2745 = vmatprep.subr.mxu0 0.0
  %2746 = vmatpush1.msra.mxu0 0.0
  %2747 = vmatprep.subr.mxu0 0.0
  %2748 = vmatpush1.msra.mxu0 0.0
  %2749 = vmatprep.subr.mxu0 0.0
  %2750 = vmatpush1.msra.mxu0 0.0
  %2751 = vmatprep.subr.mxu0 0.0
  %2752 = vmatpush1.msra.mxu0 0.0
  %2753 = vmatprep.subr.mxu0 0.0
  %2754 = vmatpush1.msra.mxu0 0.0
  %2755 = vmatprep.subr.mxu0 0.0
  %2756 = vmatpush1.msra.mxu0 0.0
  %2757 = vmatprep.subr.mxu0 0.0
  %2758 = vmatpush1.msra.mxu0 0.0
  %2759 = vmatprep.subr.mxu0 0.0
  %2760 = vmatpush1.msra.mxu0 0.0
  %2761 = vmatprep.subr.mxu0 0.0
  %2762 = vmatpush1.msra.mxu0 0.0
  %2763 = vmatprep.subr.mxu0 0.0
  %2764 = vmatpush1.msra.mxu0 0.0
  %2765 = vmatprep.subr.mxu0 0.0
  %2766 = vmatpush1.msra.mxu0 0.0
  %2767 = vmatprep.subr.mxu0 0.0
  %2768 = vmatpush1.msra.mxu0 0.0
  %2769 = vmatprep.subr.mxu0 0.0
  %2770 = vmatpush1.msra.mxu0 0.0
  %2771 = vmatprep.subr.mxu0 0.0
  %2772 = vmatpush1.msra.mxu0 0.0
  %2773 = vmatprep.subr.mxu0 0.0
  %2774 = vmatpush1.msra.mxu0 0.0
  %2775 = vmatprep.subr.mxu0 %v2668
  %2776 = vmatpush1.msra.mxu0 %v2666
  %2777 = vmatprep.subr.mxu0 0.0
  %2778 = vmatpush2.msra.mxu0 0.0
  %2779 = vmatprep.subr.mxu0 0.0
  %2780 = vmatpush2.msra.mxu0 0.0
  %2781 = vmatprep.subr.mxu0 0.0
  %2782 = vmatpush2.msra.mxu0 0.0
  %2783 = vmatprep.subr.mxu0 0.0
  %2784 = vmatpush2.msra.mxu0 0.0
  %2785 = vmatprep.subr.mxu0 0.0
  %2786 = vmatpush2.msra.mxu0 0.0
  %2787 = vmatprep.subr.mxu0 0.0
  %2788 = vmatpush2.msra.mxu0 0.0
  %2789 = vmatprep.subr.mxu0 0.0
  %2790 = vmatpush2.msra.mxu0 0.0
  %2791 = vmatprep.subr.mxu0 0.0
  %2792 = vmatpush2.msra.mxu0 0.0
  %2793 = vmatprep.subr.mxu0 0.0
  %2794 = vmatpush2.msra.mxu0 0.0
  %2795 = vmatprep.subr.mxu0 0.0
  %2796 = vmatpush2.msra.mxu0 0.0
  %2797 = vmatprep.subr.mxu0 0.0
  %2798 = vmatpush2.msra.mxu0 0.0
  %2799 = vmatprep.subr.mxu0 0.0
  %2800 = vmatpush2.msra.mxu0 0.0
  %2801 = vmatprep.subr.mxu0 0.0
  %2802 = vmatpush2.msra.mxu0 0.0
  %2803 = vmatprep.subr.mxu0 0.0
  %2804 = vmatpush2.msra.mxu0 0.0
  %2805 = vmatprep.subr.mxu0 0.0
  %2806 = vmatpush2.msra.mxu0 0.0
  %2807 = vmatprep.subr.mxu0 0.0
  %2808 = vmatpush2.msra.mxu0 0.0
  %2809 = vmatprep.mubr.f32.mxu0 0.0
  %2810 = vmatmul.mubr.f32.gmra.mxu0 %v2660
  %v2811 = vpop.f32.mrf.mxu0
  %v2812 = vadd.f32 0.0, %v2811
  %v2813 = vpop.f32.mrf.mxu0
  %v2814 = vadd.f32 0.0, %v2813
  %2815 = vdwg.mxu0
  %2816 = vmatprep.subr.mxu0 0.0
  %2817 = vmatpush1.msra.mxu0 0.0
  %2818 = vmatprep.subr.mxu0 0.0
  %2819 = vmatpush1.msra.mxu0 0.0
  %2820 = vmatprep.subr.mxu0 0.0
  %2821 = vmatpush1.msra.mxu0 0.0
  %2822 = vmatprep.subr.mxu0 0.0
  %2823 = vmatpush1.msra.mxu0 0.0
  %2824 = vmatprep.subr.mxu0 0.0
  %2825 = vmatpush1.msra.mxu0 0.0
  %2826 = vmatprep.subr.mxu0 0.0
  %2827 = vmatpush1.msra.mxu0 0.0
  %2828 = vmatprep.subr.mxu0 0.0
  %2829 = vmatpush1.msra.mxu0 0.0
  %2830 = vmatprep.subr.mxu0 0.0
  %2831 = vmatpush1.msra.mxu0 0.0
  %2832 = vmatprep.subr.mxu0 0.0
  %2833 = vmatpush1.msra.mxu0 0.0
  %2834 = vmatprep.subr.mxu0 0.0
  %2835 = vmatpush1.msra.mxu0 0.0
  %2836 = vmatprep.subr.mxu0 0.0
  %2837 = vmatpush1.msra.mxu0 0.0
  %2838 = vmatprep.subr.mxu0 0.0
  %2839 = vmatpush1.msra.mxu0 0.0
  %2840 = vmatprep.subr.mxu0 0.0
  %2841 = vmatpush1.msra.mxu0 0.0
  %2842 = vmatprep.subr.mxu0 0.0
  %2843 = vmatpush1.msra.mxu0 0.0
  %2844 = vmatprep.subr.mxu0 0.0
  %2845 = vmatpush1.msra.mxu0 0.0
  %2846 = vmatprep.subr.mxu0 %v2672
  %2847 = vmatpush1.msra.mxu0 %v2670
  %2848 = vmatprep.subr.mxu0 0.0
  %2849 = vmatpush2.msra.mxu0 0.0
  %2850 = vmatprep.subr.mxu0 0.0
  %2851 = vmatpush2.msra.mxu0 0.0
  %2852 = vmatprep.subr.mxu0 0.0
  %2853 = vmatpush2.msra.mxu0 0.0
  %2854 = vmatprep.subr.mxu0 0.0
  %2855 = vmatpush2.msra.mxu0 0.0
  %2856 = vmatprep.subr.mxu0 0.0
  %2857 = vmatpush2.msra.mxu0 0.0
  %2858 = vmatprep.subr.mxu0 0.0
  %2859 = vmatpush2.msra.mxu0 0.0
  %2860 = vmatprep.subr.mxu0 0.0
  %2861 = vmatpush2.msra.mxu0 0.0
  %2862 = vmatprep.subr.mxu0 0.0
  %2863 = vmatpush2.msra.mxu0 0.0
  %2864 = vmatprep.subr.mxu0 0.0
  %2865 = vmatpush2.msra.mxu0 0.0
  %2866 = vmatprep.subr.mxu0 0.0
  %2867 = vmatpush2.msra.mxu0 0.0
  %2868 = vmatprep.subr.mxu0 0.0
  %2869 = vmatpush2.msra.mxu0 0.0
  %2870 = vmatprep.subr.mxu0 0.0
  %2871 = vmatpush2.msra.mxu0 0.0
  %2872 = vmatprep.subr.mxu0 0.0
  %2873 = vmatpush2.msra.mxu0 0.0
  %2874 = vmatprep.subr.mxu0 0.0
  %2875 = vmatpush2.msra.mxu0 0.0
  %2876 = vmatprep.subr.mxu0 0.0
  %2877 = vmatpush2.msra.mxu0 0.0
  %2878 = vmatprep.subr.mxu0 0.0
  %2879 = vmatpush2.msra.mxu0 0.0
  %2880 = vmatprep.mubr.f32.mxu0 0.0
  %2881 = vmatmul.mubr.f32.gmra.mxu0 %v2660
  %v2882 = vpop.f32.mrf.mxu0
  %v2883 = vadd.f32 0.0, %v2882
  %v2884 = vpop.f32.mrf.mxu0
  %v2885 = vadd.f32 0.0, %v2884
  %2886 = vdwg.mxu0
  %v2887 = vadd.f32 %v2624, %v2741
  %v2888 = vadd.f32 %v2625, %v2743
  %v2889 = vadd.f32 %v2626, %v2812
  %v2890 = vadd.f32 %v2627, %v2814
  %v2891 = vadd.f32 %v2628, %v2883
  %v2892 = vadd.f32 %v2629, %v2885
  %s2893 = scalar_lea.vmem %s1, 44
  %v2894 = vld [vmem:[%s2893] sm:$0x7]
  %v2895 = vld [vmem:[%s0] sm:$0xff]
  %v2896 = vld [vmem:[%s0 + $0x8] sm:$0xff]
  %v2897 = vld [vmem:[%s0 + $0x10] sm:$0xff]
  %v2901 = vcombine.high %v2895, %v2895
  %v2902 = vcombine.high %v2896, %v2896
  %v2903 = vcombine.high %v2897, %v2897
  %2904 = vrot.lane.b32.xlu0 %v2895, 91
  %v2905 = vpop.permute.xlu0 %2904
  %2906 = vrot.lane.b32.xlu0 %v2901, 91
  %v2907 = vpop.permute.xlu0 %2906
  %2908 = vrot.lane.b32.xlu0 %v2896, 91
  %v2909 = vpop.permute.xlu0 %2908
  %2910 = vrot.lane.b32.xlu0 %v2902, 91
  %v2911 = vpop.permute.xlu0 %2910
  %2912 = vrot.lane.b32.xlu0 %v2897, 91
  %v2913 = vpop.permute.xlu0 %2912
  %2914 = vrot.lane.b32.xlu0 %v2903, 91
  %v2915 = vpop.permute.xlu0 %2914
  %vm2916 = vcmask 744448
  %v2917 = vsel %vm2916, %v2905, %v2907
  %v2918 = vsel %vm2916, %v2907, %v2909
  %v2919 = vsel %vm2916, %v2909, %v2911
  %v2920 = vsel %vm2916, %v2911, %v2913
  %v2921 = vsel %vm2916, %v2913, %v2915
  %v2923 = vsel %vm68, %v2894, 0
  %v2925 = vsel %vm72, %v2917, 0
  %v2927 = vsel %vm72, %v2918, 0
  %v2929 = vsel %vm72, %v2919, 0
  %v2931 = vsel %vm72, %v2920, 0
  %v2933 = vsel %vm72, %v2921, 0
  %v2935 = vsel %vm72, %v2915, 0
  %2937 = vmatprep.subr.mxu0 0.0
  %2938 = vmatpush1.msra.mxu0 0.0
  %2939 = vmatprep.subr.mxu0 0.0
  %2940 = vmatpush1.msra.mxu0 0.0
  %2941 = vmatprep.subr.mxu0 0.0
  %2942 = vmatpush1.msra.mxu0 0.0
  %2943 = vmatprep.subr.mxu0 0.0
  %2944 = vmatpush1.msra.mxu0 0.0
  %2945 = vmatprep.subr.mxu0 0.0
  %2946 = vmatpush1.msra.mxu0 0.0
  %2947 = vmatprep.subr.mxu0 0.0
  %2948 = vmatpush1.msra.mxu0 0.0
  %2949 = vmatprep.subr.mxu0 0.0
  %2950 = vmatpush1.msra.mxu0 0.0
  %2951 = vmatprep.subr.mxu0 0.0
  %2952 = vmatpush1.msra.mxu0 0.0
  %2953 = vmatprep.subr.mxu0 0.0
  %2954 = vmatpush1.msra.mxu0 0.0
  %2955 = vmatprep.subr.mxu0 0.0
  %2956 = vmatpush1.msra.mxu0 0.0
  %2957 = vmatprep.subr.mxu0 0.0
  %2958 = vmatpush1.msra.mxu0 0.0
  %2959 = vmatprep.subr.mxu0 0.0
  %2960 = vmatpush1.msra.mxu0 0.0
  %2961 = vmatprep.subr.mxu0 0.0
  %2962 = vmatpush1.msra.mxu0 0.0
  %2963 = vmatprep.subr.mxu0 0.0
  %2964 = vmatpush1.msra.mxu0 0.0
  %2965 = vmatprep.subr.mxu0 0.0
  %2966 = vmatpush1.msra.mxu0 0.0
  %2967 = vmatprep.subr.mxu0 %v2927
  %2968 = vmatpush1.msra.mxu0 %v2925
  %2969 = vmatprep.subr.mxu0 0.0
  %2970 = vmatpush2.msra.mxu0 0.0
  %2971 = vmatprep.subr.mxu0 0.0
  %2972 = vmatpush2.msra.mxu0 0.0
  %2973 = vmatprep.subr.mxu0 0.0
  %2974 = vmatpush2.msra.mxu0 0.0
  %2975 = vmatprep.subr.mxu0 0.0
  %2976 = vmatpush2.msra.mxu0 0.0
  %2977 = vmatprep.subr.mxu0 0.0
  %2978 = vmatpush2.msra.mxu0 0.0
  %2979 = vmatprep.subr.mxu0 0.0
  %2980 = vmatpush2.msra.mxu0 0.0
  %2981 = vmatprep.subr.mxu0 0.0
  %2982 = vmatpush2.msra.mxu0 0.0
  %2983 = vmatprep.subr.mxu0 0.0
  %2984 = vmatpush2.msra.mxu0 0.0
  %2985 = vmatprep.subr.mxu0 0.0
  %2986 = vmatpush2.msra.mxu0 0.0
  %2987 = vmatprep.subr.mxu0 0.0
  %2988 = vmatpush2.msra.mxu0 0.0
  %2989 = vmatprep.subr.mxu0 0.0
  %2990 = vmatpush2.msra.mxu0 0.0
  %2991 = vmatprep.subr.mxu0 0.0
  %2992 = vmatpush2.msra.mxu0 0.0
  %2993 = vmatprep.subr.mxu0 0.0
  %2994 = vmatpush2.msra.mxu0 0.0
  %2995 = vmatprep.subr.mxu0 0.0
  %2996 = vmatpush2.msra.mxu0 0.0
  %2997 = vmatprep.subr.mxu0 0.0
  %2998 = vmatpush2.msra.mxu0 0.0
  %2999 = vmatprep.subr.mxu0 0.0
  %3000 = vmatpush2.msra.mxu0 0.0
  %3001 = vmatprep.mubr.f32.mxu0 0.0
  %3002 = vmatmul.mubr.f32.gmra.mxu0 %v2923
  %v3003 = vpop.f32.mrf.mxu0
  %v3004 = vadd.f32 0.0, %v3003
  %v3005 = vpop.f32.mrf.mxu0
  %v3006 = vadd.f32 0.0, %v3005
  %3007 = vdwg.mxu0
  %3008 = vmatprep.subr.mxu0 0.0
  %3009 = vmatpush1.msra.mxu0 0.0
  %3010 = vmatprep.subr.mxu0 0.0
  %3011 = vmatpush1.msra.mxu0 0.0
  %3012 = vmatprep.subr.mxu0 0.0
  %3013 = vmatpush1.msra.mxu0 0.0
  %3014 = vmatprep.subr.mxu0 0.0
  %3015 = vmatpush1.msra.mxu0 0.0
  %3016 = vmatprep.subr.mxu0 0.0
  %3017 = vmatpush1.msra.mxu0 0.0
  %3018 = vmatprep.subr.mxu0 0.0
  %3019 = vmatpush1.msra.mxu0 0.0
  %3020 = vmatprep.subr.mxu0 0.0
  %3021 = vmatpush1.msra.mxu0 0.0
  %3022 = vmatprep.subr.mxu0 0.0
  %3023 = vmatpush1.msra.mxu0 0.0
  %3024 = vmatprep.subr.mxu0 0.0
  %3025 = vmatpush1.msra.mxu0 0.0
  %3026 = vmatprep.subr.mxu0 0.0
  %3027 = vmatpush1.msra.mxu0 0.0
  %3028 = vmatprep.subr.mxu0 0.0
  %3029 = vmatpush1.msra.mxu0 0.0
  %3030 = vmatprep.subr.mxu0 0.0
  %3031 = vmatpush1.msra.mxu0 0.0
  %3032 = vmatprep.subr.mxu0 0.0
  %3033 = vmatpush1.msra.mxu0 0.0
  %3034 = vmatprep.subr.mxu0 0.0
  %3035 = vmatpush1.msra.mxu0 0.0
  %3036 = vmatprep.subr.mxu0 0.0
  %3037 = vmatpush1.msra.mxu0 0.0
  %3038 = vmatprep.subr.mxu0 %v2931
  %3039 = vmatpush1.msra.mxu0 %v2929
  %3040 = vmatprep.subr.mxu0 0.0
  %3041 = vmatpush2.msra.mxu0 0.0
  %3042 = vmatprep.subr.mxu0 0.0
  %3043 = vmatpush2.msra.mxu0 0.0
  %3044 = vmatprep.subr.mxu0 0.0
  %3045 = vmatpush2.msra.mxu0 0.0
  %3046 = vmatprep.subr.mxu0 0.0
  %3047 = vmatpush2.msra.mxu0 0.0
  %3048 = vmatprep.subr.mxu0 0.0
  %3049 = vmatpush2.msra.mxu0 0.0
  %3050 = vmatprep.subr.mxu0 0.0
  %3051 = vmatpush2.msra.mxu0 0.0
  %3052 = vmatprep.subr.mxu0 0.0
  %3053 = vmatpush2.msra.mxu0 0.0
  %3054 = vmatprep.subr.mxu0 0.0
  %3055 = vmatpush2.msra.mxu0 0.0
  %3056 = vmatprep.subr.mxu0 0.0
  %3057 = vmatpush2.msra.mxu0 0.0
  %3058 = vmatprep.subr.mxu0 0.0
  %3059 = vmatpush2.msra.mxu0 0.0
  %3060 = vmatprep.subr.mxu0 0.0
  %3061 = vmatpush2.msra.mxu0 0.0
  %3062 = vmatprep.subr.mxu0 0.0
  %3063 = vmatpush2.msra.mxu0 0.0
  %3064 = vmatprep.subr.mxu0 0.0
  %3065 = vmatpush2.msra.mxu0 0.0
  %3066 = vmatprep.subr.mxu0 0.0
  %3067 = vmatpush2.msra.mxu0 0.0
  %3068 = vmatprep.subr.mxu0 0.0
  %3069 = vmatpush2.msra.mxu0 0.0
  %3070 = vmatprep.subr.mxu0 0.0
  %3071 = vmatpush2.msra.mxu0 0.0
  %3072 = vmatprep.mubr.f32.mxu0 0.0
  %3073 = vmatmul.mubr.f32.gmra.mxu0 %v2923
  %v3074 = vpop.f32.mrf.mxu0
  %v3075 = vadd.f32 0.0, %v3074
  %v3076 = vpop.f32.mrf.mxu0
  %v3077 = vadd.f32 0.0, %v3076
  %3078 = vdwg.mxu0
  %3079 = vmatprep.subr.mxu0 0.0
  %3080 = vmatpush1.msra.mxu0 0.0
  %3081 = vmatprep.subr.mxu0 0.0
  %3082 = vmatpush1.msra.mxu0 0.0
  %3083 = vmatprep.subr.mxu0 0.0
  %3084 = vmatpush1.msra.mxu0 0.0
  %3085 = vmatprep.subr.mxu0 0.0
  %3086 = vmatpush1.msra.mxu0 0.0
  %3087 = vmatprep.subr.mxu0 0.0
  %3088 = vmatpush1.msra.mxu0 0.0
  %3089 = vmatprep.subr.mxu0 0.0
  %3090 = vmatpush1.msra.mxu0 0.0
  %3091 = vmatprep.subr.mxu0 0.0
  %3092 = vmatpush1.msra.mxu0 0.0
  %3093 = vmatprep.subr.mxu0 0.0
  %3094 = vmatpush1.msra.mxu0 0.0
  %3095 = vmatprep.subr.mxu0 0.0
  %3096 = vmatpush1.msra.mxu0 0.0
  %3097 = vmatprep.subr.mxu0 0.0
  %3098 = vmatpush1.msra.mxu0 0.0
  %3099 = vmatprep.subr.mxu0 0.0
  %3100 = vmatpush1.msra.mxu0 0.0
  %3101 = vmatprep.subr.mxu0 0.0
  %3102 = vmatpush1.msra.mxu0 0.0
  %3103 = vmatprep.subr.mxu0 0.0
  %3104 = vmatpush1.msra.mxu0 0.0
  %3105 = vmatprep.subr.mxu0 0.0
  %3106 = vmatpush1.msra.mxu0 0.0
  %3107 = vmatprep.subr.mxu0 0.0
  %3108 = vmatpush1.msra.mxu0 0.0
  %3109 = vmatprep.subr.mxu0 %v2935
  %3110 = vmatpush1.msra.mxu0 %v2933
  %3111 = vmatprep.subr.mxu0 0.0
  %3112 = vmatpush2.msra.mxu0 0.0
  %3113 = vmatprep.subr.mxu0 0.0
  %3114 = vmatpush2.msra.mxu0 0.0
  %3115 = vmatprep.subr.mxu0 0.0
  %3116 = vmatpush2.msra.mxu0 0.0
  %3117 = vmatprep.subr.mxu0 0.0
  %3118 = vmatpush2.msra.mxu0 0.0
  %3119 = vmatprep.subr.mxu0 0.0
  %3120 = vmatpush2.msra.mxu0 0.0
  %3121 = vmatprep.subr.mxu0 0.0
  %3122 = vmatpush2.msra.mxu0 0.0
  %3123 = vmatprep.subr.mxu0 0.0
  %3124 = vmatpush2.msra.mxu0 0.0
  %3125 = vmatprep.subr.mxu0 0.0
  %3126 = vmatpush2.msra.mxu0 0.0
  %3127 = vmatprep.subr.mxu0 0.0
  %3128 = vmatpush2.msra.mxu0 0.0
  %3129 = vmatprep.subr.mxu0 0.0
  %3130 = vmatpush2.msra.mxu0 0.0
  %3131 = vmatprep.subr.mxu0 0.0
  %3132 = vmatpush2.msra.mxu0 0.0
  %3133 = vmatprep.subr.mxu0 0.0
  %3134 = vmatpush2.msra.mxu0 0.0
  %3135 = vmatprep.subr.mxu0 0.0
  %3136 = vmatpush2.msra.mxu0 0.0
  %3137 = vmatprep.subr.mxu0 0.0
  %3138 = vmatpush2.msra.mxu0 0.0
  %3139 = vmatprep.subr.mxu0 0.0
  %3140 = vmatpush2.msra.mxu0 0.0
  %3141 = vmatprep.subr.mxu0 0.0
  %3142 = vmatpush2.msra.mxu0 0.0
  %3143 = vmatprep.mubr.f32.mxu0 0.0
  %3144 = vmatmul.mubr.f32.gmra.mxu0 %v2923
  %v3145 = vpop.f32.mrf.mxu0
  %v3146 = vadd.f32 0.0, %v3145
  %v3147 = vpop.f32.mrf.mxu0
  %v3148 = vadd.f32 0.0, %v3147
  %3149 = vdwg.mxu0
  %v3150 = vadd.f32 %v2887, %v3004
  %v3151 = vadd.f32 %v2888, %v3006
  %v3152 = vadd.f32 %v2889, %v3075
  %v3153 = vadd.f32 %v2890, %v3077
  %v3154 = vadd.f32 %v2891, %v3146
  %v3155 = vadd.f32 %v2892, %v3148
  %s3156 = scalar_lea.vmem %s1, 48
  %v3157 = vld [vmem:[%s3156] sm:$0x7]
  %v3158 = vld [vmem:[%s0] sm:$0xff]
  %v3159 = vld [vmem:[%s0 + $0x8] sm:$0xff]
  %v3160 = vld [vmem:[%s0 + $0x10] sm:$0xff]
  %v3164 = vcombine.high %v3158, %v3158
  %v3165 = vcombine.high %v3159, %v3159
  %v3166 = vcombine.high %v3160, %v3160
  %3167 = vrot.lane.b32.xlu0 %v3158, 90
  %v3168 = vpop.permute.xlu0 %3167
  %3169 = vrot.lane.b32.xlu0 %v3164, 90
  %v3170 = vpop.permute.xlu0 %3169
  %3171 = vrot.lane.b32.xlu0 %v3159, 90
  %v3172 = vpop.permute.xlu0 %3171
  %3173 = vrot.lane.b32.xlu0 %v3165, 90
  %v3174 = vpop.permute.xlu0 %3173
  %3175 = vrot.lane.b32.xlu0 %v3160, 90
  %v3176 = vpop.permute.xlu0 %3175
  %3177 = vrot.lane.b32.xlu0 %v3166, 90
  %v3178 = vpop.permute.xlu0 %3177
  %vm3179 = vcmask 736256
  %v3180 = vsel %vm3179, %v3168, %v3170
  %v3181 = vsel %vm3179, %v3170, %v3172
  %v3182 = vsel %vm3179, %v3172, %v3174
  %v3183 = vsel %vm3179, %v3174, %v3176
  %v3184 = vsel %vm3179, %v3176, %v3178
  %v3186 = vsel %vm68, %v3157, 0
  %v3188 = vsel %vm72, %v3180, 0
  %v3190 = vsel %vm72, %v3181, 0
  %v3192 = vsel %vm72, %v3182, 0
  %v3194 = vsel %vm72, %v3183, 0
  %v3196 = vsel %vm72, %v3184, 0
  %v3198 = vsel %vm72, %v3178, 0
  %3200 = vmatprep.subr.mxu0 0.0
  %3201 = vmatpush1.msra.mxu0 0.0
  %3202 = vmatprep.subr.mxu0 0.0
  %3203 = vmatpush1.msra.mxu0 0.0
  %3204 = vmatprep.subr.mxu0 0.0
  %3205 = vmatpush1.msra.mxu0 0.0
  %3206 = vmatprep.subr.mxu0 0.0
  %3207 = vmatpush1.msra.mxu0 0.0
  %3208 = vmatprep.subr.mxu0 0.0
  %3209 = vmatpush1.msra.mxu0 0.0
  %3210 = vmatprep.subr.mxu0 0.0
  %3211 = vmatpush1.msra.mxu0 0.0
  %3212 = vmatprep.subr.mxu0 0.0
  %3213 = vmatpush1.msra.mxu0 0.0
  %3214 = vmatprep.subr.mxu0 0.0
  %3215 = vmatpush1.msra.mxu0 0.0
  %3216 = vmatprep.subr.mxu0 0.0
  %3217 = vmatpush1.msra.mxu0 0.0
  %3218 = vmatprep.subr.mxu0 0.0
  %3219 = vmatpush1.msra.mxu0 0.0
  %3220 = vmatprep.subr.mxu0 0.0
  %3221 = vmatpush1.msra.mxu0 0.0
  %3222 = vmatprep.subr.mxu0 0.0
  %3223 = vmatpush1.msra.mxu0 0.0
  %3224 = vmatprep.subr.mxu0 0.0
  %3225 = vmatpush1.msra.mxu0 0.0
  %3226 = vmatprep.subr.mxu0 0.0
  %3227 = vmatpush1.msra.mxu0 0.0
  %3228 = vmatprep.subr.mxu0 0.0
  %3229 = vmatpush1.msra.mxu0 0.0
  %3230 = vmatprep.subr.mxu0 %v3190
  %3231 = vmatpush1.msra.mxu0 %v3188
  %3232 = vmatprep.subr.mxu0 0.0
  %3233 = vmatpush2.msra.mxu0 0.0
  %3234 = vmatprep.subr.mxu0 0.0
  %3235 = vmatpush2.msra.mxu0 0.0
  %3236 = vmatprep.subr.mxu0 0.0
  %3237 = vmatpush2.msra.mxu0 0.0
  %3238 = vmatprep.subr.mxu0 0.0
  %3239 = vmatpush2.msra.mxu0 0.0
  %3240 = vmatprep.subr.mxu0 0.0
  %3241 = vmatpush2.msra.mxu0 0.0
  %3242 = vmatprep.subr.mxu0 0.0
  %3243 = vmatpush2.msra.mxu0 0.0
  %3244 = vmatprep.subr.mxu0 0.0
  %3245 = vmatpush2.msra.mxu0 0.0
  %3246 = vmatprep.subr.mxu0 0.0
  %3247 = vmatpush2.msra.mxu0 0.0
  %3248 = vmatprep.subr.mxu0 0.0
  %3249 = vmatpush2.msra.mxu0 0.0
  %3250 = vmatprep.subr.mxu0 0.0
  %3251 = vmatpush2.msra.mxu0 0.0
  %3252 = vmatprep.subr.mxu0 0.0
  %3253 = vmatpush2.msra.mxu0 0.0
  %3254 = vmatprep.subr.mxu0 0.0
  %3255 = vmatpush2.msra.mxu0 0.0
  %3256 = vmatprep.subr.mxu0 0.0
  %3257 = vmatpush2.msra.mxu0 0.0
  %3258 = vmatprep.subr.mxu0 0.0
  %3259 = vmatpush2.msra.mxu0 0.0
  %3260 = vmatprep.subr.mxu0 0.0
  %3261 = vmatpush2.msra.mxu0 0.0
  %3262 = vmatprep.subr.mxu0 0.0
  %3263 = vmatpush2.msra.mxu0 0.0
  %3264 = vmatprep.mubr.f32.mxu0 0.0
  %3265 = vmatmul.mubr.f32.gmra.mxu0 %v3186
  %v3266 = vpop.f32.mrf.mxu0
  %v3267 = vadd.f32 0.0, %v3266
  %v3268 = vpop.f32.mrf.mxu0
  %v3269 = vadd.f32 0.0, %v3268
  %3270 = vdwg.mxu0
  %3271 = vmatprep.subr.mxu0 0.0
  %3272 = vmatpush1.msra.mxu0 0.0
  %3273 = vmatprep.subr.mxu0 0.0
  %3274 = vmatpush1.msra.mxu0 0.0
  %3275 = vmatprep.subr.mxu0 0.0
  %3276 = vmatpush1.msra.mxu0 0.0
  %3277 = vmatprep.subr.mxu0 0.0
  %3278 = vmatpush1.msra.mxu0 0.0
  %3279 = vmatprep.subr.mxu0 0.0
  %3280 = vmatpush1.msra.mxu0 0.0
  %3281 = vmatprep.subr.mxu0 0.0
  %3282 = vmatpush1.msra.mxu0 0.0
  %3283 = vmatprep.subr.mxu0 0.0
  %3284 = vmatpush1.msra.mxu0 0.0
  %3285 = vmatprep.subr.mxu0 0.0
  %3286 = vmatpush1.msra.mxu0 0.0
  %3287 = vmatprep.subr.mxu0 0.0
  %3288 = vmatpush1.msra.mxu0 0.0
  %3289 = vmatprep.subr.mxu0 0.0
  %3290 = vmatpush1.msra.mxu0 0.0
  %3291 = vmatprep.subr.mxu0 0.0
  %3292 = vmatpush1.msra.mxu0 0.0
  %3293 = vmatprep.subr.mxu0 0.0
  %3294 = vmatpush1.msra.mxu0 0.0
  %3295 = vmatprep.subr.mxu0 0.0
  %3296 = vmatpush1.msra.mxu0 0.0
  %3297 = vmatprep.subr.mxu0 0.0
  %3298 = vmatpush1.msra.mxu0 0.0
  %3299 = vmatprep.subr.mxu0 0.0
  %3300 = vmatpush1.msra.mxu0 0.0
  %3301 = vmatprep.subr.mxu0 %v3194
  %3302 = vmatpush1.msra.mxu0 %v3192
  %3303 = vmatprep.subr.mxu0 0.0
  %3304 = vmatpush2.msra.mxu0 0.0
  %3305 = vmatprep.subr.mxu0 0.0
  %3306 = vmatpush2.msra.mxu0 0.0
  %3307 = vmatprep.subr.mxu0 0.0
  %3308 = vmatpush2.msra.mxu0 0.0
  %3309 = vmatprep.subr.mxu0 0.0
  %3310 = vmatpush2.msra.mxu0 0.0
  %3311 = vmatprep.subr.mxu0 0.0
  %3312 = vmatpush2.msra.mxu0 0.0
  %3313 = vmatprep.subr.mxu0 0.0
  %3314 = vmatpush2.msra.mxu0 0.0
  %3315 = vmatprep.subr.mxu0 0.0
  %3316 = vmatpush2.msra.mxu0 0.0
  %3317 = vmatprep.subr.mxu0 0.0
  %3318 = vmatpush2.msra.mxu0 0.0
  %3319 = vmatprep.subr.mxu0 0.0
  %3320 = vmatpush2.msra.mxu0 0.0
  %3321 = vmatprep.subr.mxu0 0.0
  %3322 = vmatpush2.msra.mxu0 0.0
  %3323 = vmatprep.subr.mxu0 0.0
  %3324 = vmatpush2.msra.mxu0 0.0
  %3325 = vmatprep.subr.mxu0 0.0
  %3326 = vmatpush2.msra.mxu0 0.0
  %3327 = vmatprep.subr.mxu0 0.0
  %3328 = vmatpush2.msra.mxu0 0.0
  %3329 = vmatprep.subr.mxu0 0.0
  %3330 = vmatpush2.msra.mxu0 0.0
  %3331 = vmatprep.subr.mxu0 0.0
  %3332 = vmatpush2.msra.mxu0 0.0
  %3333 = vmatprep.subr.mxu0 0.0
  %3334 = vmatpush2.msra.mxu0 0.0
  %3335 = vmatprep.mubr.f32.mxu0 0.0
  %3336 = vmatmul.mubr.f32.gmra.mxu0 %v3186
  %v3337 = vpop.f32.mrf.mxu0
  %v3338 = vadd.f32 0.0, %v3337
  %v3339 = vpop.f32.mrf.mxu0
  %v3340 = vadd.f32 0.0, %v3339
  %3341 = vdwg.mxu0
  %3342 = vmatprep.subr.mxu0 0.0
  %3343 = vmatpush1.msra.mxu0 0.0
  %3344 = vmatprep.subr.mxu0 0.0
  %3345 = vmatpush1.msra.mxu0 0.0
  %3346 = vmatprep.subr.mxu0 0.0
  %3347 = vmatpush1.msra.mxu0 0.0
  %3348 = vmatprep.subr.mxu0 0.0
  %3349 = vmatpush1.msra.mxu0 0.0
  %3350 = vmatprep.subr.mxu0 0.0
  %3351 = vmatpush1.msra.mxu0 0.0
  %3352 = vmatprep.subr.mxu0 0.0
  %3353 = vmatpush1.msra.mxu0 0.0
  %3354 = vmatprep.subr.mxu0 0.0
  %3355 = vmatpush1.msra.mxu0 0.0
  %3356 = vmatprep.subr.mxu0 0.0
  %3357 = vmatpush1.msra.mxu0 0.0
  %3358 = vmatprep.subr.mxu0 0.0
  %3359 = vmatpush1.msra.mxu0 0.0
  %3360 = vmatprep.subr.mxu0 0.0
  %3361 = vmatpush1.msra.mxu0 0.0
  %3362 = vmatprep.subr.mxu0 0.0
  %3363 = vmatpush1.msra.mxu0 0.0
  %3364 = vmatprep.subr.mxu0 0.0
  %3365 = vmatpush1.msra.mxu0 0.0
  %3366 = vmatprep.subr.mxu0 0.0
  %3367 = vmatpush1.msra.mxu0 0.0
  %3368 = vmatprep.subr.mxu0 0.0
  %3369 = vmatpush1.msra.mxu0 0.0
  %3370 = vmatprep.subr.mxu0 0.0
  %3371 = vmatpush1.msra.mxu0 0.0
  %3372 = vmatprep.subr.mxu0 %v3198
  %3373 = vmatpush1.msra.mxu0 %v3196
  %3374 = vmatprep.subr.mxu0 0.0
  %3375 = vmatpush2.msra.mxu0 0.0
  %3376 = vmatprep.subr.mxu0 0.0
  %3377 = vmatpush2.msra.mxu0 0.0
  %3378 = vmatprep.subr.mxu0 0.0
  %3379 = vmatpush2.msra.mxu0 0.0
  %3380 = vmatprep.subr.mxu0 0.0
  %3381 = vmatpush2.msra.mxu0 0.0
  %3382 = vmatprep.subr.mxu0 0.0
  %3383 = vmatpush2.msra.mxu0 0.0
  %3384 = vmatprep.subr.mxu0 0.0
  %3385 = vmatpush2.msra.mxu0 0.0
  %3386 = vmatprep.subr.mxu0 0.0
  %3387 = vmatpush2.msra.mxu0 0.0
  %3388 = vmatprep.subr.mxu0 0.0
  %3389 = vmatpush2.msra.mxu0 0.0
  %3390 = vmatprep.subr.mxu0 0.0
  %3391 = vmatpush2.msra.mxu0 0.0
  %3392 = vmatprep.subr.mxu0 0.0
  %3393 = vmatpush2.msra.mxu0 0.0
  %3394 = vmatprep.subr.mxu0 0.0
  %3395 = vmatpush2.msra.mxu0 0.0
  %3396 = vmatprep.subr.mxu0 0.0
  %3397 = vmatpush2.msra.mxu0 0.0
  %3398 = vmatprep.subr.mxu0 0.0
  %3399 = vmatpush2.msra.mxu0 0.0
  %3400 = vmatprep.subr.mxu0 0.0
  %3401 = vmatpush2.msra.mxu0 0.0
  %3402 = vmatprep.subr.mxu0 0.0
  %3403 = vmatpush2.msra.mxu0 0.0
  %3404 = vmatprep.subr.mxu0 0.0
  %3405 = vmatpush2.msra.mxu0 0.0
  %3406 = vmatprep.mubr.f32.mxu0 0.0
  %3407 = vmatmul.mubr.f32.gmra.mxu0 %v3186
  %v3408 = vpop.f32.mrf.mxu0
  %v3409 = vadd.f32 0.0, %v3408
  %v3410 = vpop.f32.mrf.mxu0
  %v3411 = vadd.f32 0.0, %v3410
  %3412 = vdwg.mxu0
  %v3413 = vadd.f32 %v3150, %v3267
  %v3414 = vadd.f32 %v3151, %v3269
  %v3415 = vadd.f32 %v3152, %v3338
  %v3416 = vadd.f32 %v3153, %v3340
  %v3417 = vadd.f32 %v3154, %v3409
  %v3418 = vadd.f32 %v3155, %v3411
  %s3419 = scalar_lea.vmem %s1, 52
  %v3420 = vld [vmem:[%s3419] sm:$0x7]
  %v3421 = vld [vmem:[%s0] sm:$0xff]
  %v3422 = vld [vmem:[%s0 + $0x8] sm:$0xff]
  %v3423 = vld [vmem:[%s0 + $0x10] sm:$0xff]
  %v3427 = vcombine.high %v3421, %v3421
  %v3428 = vcombine.high %v3422, %v3422
  %v3429 = vcombine.high %v3423, %v3423
  %3430 = vrot.lane.b32.xlu0 %v3421, 89
  %v3431 = vpop.permute.xlu0 %3430
  %3432 = vrot.lane.b32.xlu0 %v3427, 89
  %v3433 = vpop.permute.xlu0 %3432
  %3434 = vrot.lane.b32.xlu0 %v3422, 89
  %v3435 = vpop.permute.xlu0 %3434
  %3436 = vrot.lane.b32.xlu0 %v3428, 89
  %v3437 = vpop.permute.xlu0 %3436
  %3438 = vrot.lane.b32.xlu0 %v3423, 89
  %v3439 = vpop.permute.xlu0 %3438
  %3440 = vrot.lane.b32.xlu0 %v3429, 89
  %v3441 = vpop.permute.xlu0 %3440
  %vm3442 = vcmask 728064
  %v3443 = vsel %vm3442, %v3431, %v3433
  %v3444 = vsel %vm3442, %v3433, %v3435
  %v3445 = vsel %vm3442, %v3435, %v3437
  %v3446 = vsel %vm3442, %v3437, %v3439
  %v3447 = vsel %vm3442, %v3439, %v3441
  %v3449 = vsel %vm68, %v3420, 0
  %v3451 = vsel %vm72, %v3443, 0
  %v3453 = vsel %vm72, %v3444, 0
  %v3455 = vsel %vm72, %v3445, 0
  %v3457 = vsel %vm72, %v3446, 0
  %v3459 = vsel %vm72, %v3447, 0
  %v3461 = vsel %vm72, %v3441, 0
  %3463 = vmatprep.subr.mxu0 0.0
  %3464 = vmatpush1.msra.mxu0 0.0
  %3465 = vmatprep.subr.mxu0 0.0
  %3466 = vmatpush1.msra.mxu0 0.0
  %3467 = vmatprep.subr.mxu0 0.0
  %3468 = vmatpush1.msra.mxu0 0.0
  %3469 = vmatprep.subr.mxu0 0.0
  %3470 = vmatpush1.msra.mxu0 0.0
  %3471 = vmatprep.subr.mxu0 0.0
  %3472 = vmatpush1.msra.mxu0 0.0
  %3473 = vmatprep.subr.mxu0 0.0
  %3474 = vmatpush1.msra.mxu0 0.0
  %3475 = vmatprep.subr.mxu0 0.0
  %3476 = vmatpush1.msra.mxu0 0.0
  %3477 = vmatprep.subr.mxu0 0.0
  %3478 = vmatpush1.msra.mxu0 0.0
  %3479 = vmatprep.subr.mxu0 0.0
  %3480 = vmatpush1.msra.mxu0 0.0
  %3481 = vmatprep.subr.mxu0 0.0
  %3482 = vmatpush1.msra.mxu0 0.0
  %3483 = vmatprep.subr.mxu0 0.0
  %3484 = vmatpush1.msra.mxu0 0.0
  %3485 = vmatprep.subr.mxu0 0.0
  %3486 = vmatpush1.msra.mxu0 0.0
  %3487 = vmatprep.subr.mxu0 0.0
  %3488 = vmatpush1.msra.mxu0 0.0
  %3489 = vmatprep.subr.mxu0 0.0
  %3490 = vmatpush1.msra.mxu0 0.0
  %3491 = vmatprep.subr.mxu0 0.0
  %3492 = vmatpush1.msra.mxu0 0.0
  %3493 = vmatprep.subr.mxu0 %v3453
  %3494 = vmatpush1.msra.mxu0 %v3451
  %3495 = vmatprep.subr.mxu0 0.0
  %3496 = vmatpush2.msra.mxu0 0.0
  %3497 = vmatprep.subr.mxu0 0.0
  %3498 = vmatpush2.msra.mxu0 0.0
  %3499 = vmatprep.subr.mxu0 0.0
  %3500 = vmatpush2.msra.mxu0 0.0
  %3501 = vmatprep.subr.mxu0 0.0
  %3502 = vmatpush2.msra.mxu0 0.0
  %3503 = vmatprep.subr.mxu0 0.0
  %3504 = vmatpush2.msra.mxu0 0.0
  %3505 = vmatprep.subr.mxu0 0.0
  %3506 = vmatpush2.msra.mxu0 0.0
  %3507 = vmatprep.subr.mxu0 0.0
  %3508 = vmatpush2.msra.mxu0 0.0
  %3509 = vmatprep.subr.mxu0 0.0
  %3510 = vmatpush2.msra.mxu0 0.0
  %3511 = vmatprep.subr.mxu0 0.0
  %3512 = vmatpush2.msra.mxu0 0.0
  %3513 = vmatprep.subr.mxu0 0.0
  %3514 = vmatpush2.msra.mxu0 0.0
  %3515 = vmatprep.subr.mxu0 0.0
  %3516 = vmatpush2.msra.mxu0 0.0
  %3517 = vmatprep.subr.mxu0 0.0
  %3518 = vmatpush2.msra.mxu0 0.0
  %3519 = vmatprep.subr.mxu0 0.0
  %3520 = vmatpush2.msra.mxu0 0.0
  %3521 = vmatprep.subr.mxu0 0.0
  %3522 = vmatpush2.msra.mxu0 0.0
  %3523 = vmatprep.subr.mxu0 0.0
  %3524 = vmatpush2.msra.mxu0 0.0
  %3525 = vmatprep.subr.mxu0 0.0
  %3526 = vmatpush2.msra.mxu0 0.0
  %3527 = vmatprep.mubr.f32.mxu0 0.0
  %3528 = vmatmul.mubr.f32.gmra.mxu0 %v3449
  %v3529 = vpop.f32.mrf.mxu0
  %v3530 = vadd.f32 0.0, %v3529
  %v3531 = vpop.f32.mrf.mxu0
  %v3532 = vadd.f32 0.0, %v3531
  %3533 = vdwg.mxu0
  %3534 = vmatprep.subr.mxu0 0.0
  %3535 = vmatpush1.msra.mxu0 0.0
  %3536 = vmatprep.subr.mxu0 0.0
  %3537 = vmatpush1.msra.mxu0 0.0
  %3538 = vmatprep.subr.mxu0 0.0
  %3539 = vmatpush1.msra.mxu0 0.0
  %3540 = vmatprep.subr.mxu0 0.0
  %3541 = vmatpush1.msra.mxu0 0.0
  %3542 = vmatprep.subr.mxu0 0.0
  %3543 = vmatpush1.msra.mxu0 0.0
  %3544 = vmatprep.subr.mxu0 0.0
  %3545 = vmatpush1.msra.mxu0 0.0
  %3546 = vmatprep.subr.mxu0 0.0
  %3547 = vmatpush1.msra.mxu0 0.0
  %3548 = vmatprep.subr.mxu0 0.0
  %3549 = vmatpush1.msra.mxu0 0.0
  %3550 = vmatprep.subr.mxu0 0.0
  %3551 = vmatpush1.msra.mxu0 0.0
  %3552 = vmatprep.subr.mxu0 0.0
  %3553 = vmatpush1.msra.mxu0 0.0
  %3554 = vmatprep.subr.mxu0 0.0
  %3555 = vmatpush1.msra.mxu0 0.0
  %3556 = vmatprep.subr.mxu0 0.0
  %3557 = vmatpush1.msra.mxu0 0.0
  %3558 = vmatprep.subr.mxu0 0.0
  %3559 = vmatpush1.msra.mxu0 0.0
  %3560 = vmatprep.subr.mxu0 0.0
  %3561 = vmatpush1.msra.mxu0 0.0
  %3562 = vmatprep.subr.mxu0 0.0
  %3563 = vmatpush1.msra.mxu0 0.0
  %3564 = vmatprep.subr.mxu0 %v3457
  %3565 = vmatpush1.msra.mxu0 %v3455
  %3566 = vmatprep.subr.mxu0 0.0
  %3567 = vmatpush2.msra.mxu0 0.0
  %3568 = vmatprep.subr.mxu0 0.0
  %3569 = vmatpush2.msra.mxu0 0.0
  %3570 = vmatprep.subr.mxu0 0.0
  %3571 = vmatpush2.msra.mxu0 0.0
  %3572 = vmatprep.subr.mxu0 0.0
  %3573 = vmatpush2.msra.mxu0 0.0
  %3574 = vmatprep.subr.mxu0 0.0
  %3575 = vmatpush2.msra.mxu0 0.0
  %3576 = vmatprep.subr.mxu0 0.0
  %3577 = vmatpush2.msra.mxu0 0.0
  %3578 = vmatprep.subr.mxu0 0.0
  %3579 = vmatpush2.msra.mxu0 0.0
  %3580 = vmatprep.subr.mxu0 0.0
  %3581 = vmatpush2.msra.mxu0 0.0
  %3582 = vmatprep.subr.mxu0 0.0
  %3583 = vmatpush2.msra.mxu0 0.0
  %3584 = vmatprep.subr.mxu0 0.0
  %3585 = vmatpush2.msra.mxu0 0.0
  %3586 = vmatprep.subr.mxu0 0.0
  %3587 = vmatpush2.msra.mxu0 0.0
  %3588 = vmatprep.subr.mxu0 0.0
  %3589 = vmatpush2.msra.mxu0 0.0
  %3590 = vmatprep.subr.mxu0 0.0
  %3591 = vmatpush2.msra.mxu0 0.0
  %3592 = vmatprep.subr.mxu0 0.0
  %3593 = vmatpush2.msra.mxu0 0.0
  %3594 = vmatprep.subr.mxu0 0.0
  %3595 = vmatpush2.msra.mxu0 0.0
  %3596 = vmatprep.subr.mxu0 0.0
  %3597 = vmatpush2.msra.mxu0 0.0
  %3598 = vmatprep.mubr.f32.mxu0 0.0
  %3599 = vmatmul.mubr.f32.gmra.mxu0 %v3449
  %v3600 = vpop.f32.mrf.mxu0
  %v3601 = vadd.f32 0.0, %v3600
  %v3602 = vpop.f32.mrf.mxu0
  %v3603 = vadd.f32 0.0, %v3602
  %3604 = vdwg.mxu0
  %3605 = vmatprep.subr.mxu0 0.0
  %3606 = vmatpush1.msra.mxu0 0.0
  %3607 = vmatprep.subr.mxu0 0.0
  %3608 = vmatpush1.msra.mxu0 0.0
  %3609 = vmatprep.subr.mxu0 0.0
  %3610 = vmatpush1.msra.mxu0 0.0
  %3611 = vmatprep.subr.mxu0 0.0
  %3612 = vmatpush1.msra.mxu0 0.0
  %3613 = vmatprep.subr.mxu0 0.0
  %3614 = vmatpush1.msra.mxu0 0.0
  %3615 = vmatprep.subr.mxu0 0.0
  %3616 = vmatpush1.msra.mxu0 0.0
  %3617 = vmatprep.subr.mxu0 0.0
  %3618 = vmatpush1.msra.mxu0 0.0
  %3619 = vmatprep.subr.mxu0 0.0
  %3620 = vmatpush1.msra.mxu0 0.0
  %3621 = vmatprep.subr.mxu0 0.0
  %3622 = vmatpush1.msra.mxu0 0.0
  %3623 = vmatprep.subr.mxu0 0.0
  %3624 = vmatpush1.msra.mxu0 0.0
  %3625 = vmatprep.subr.mxu0 0.0
  %3626 = vmatpush1.msra.mxu0 0.0
  %3627 = vmatprep.subr.mxu0 0.0
  %3628 = vmatpush1.msra.mxu0 0.0
  %3629 = vmatprep.subr.mxu0 0.0
  %3630 = vmatpush1.msra.mxu0 0.0
  %3631 = vmatprep.subr.mxu0 0.0
  %3632 = vmatpush1.msra.mxu0 0.0
  %3633 = vmatprep.subr.mxu0 0.0
  %3634 = vmatpush1.msra.mxu0 0.0
  %3635 = vmatprep.subr.mxu0 %v3461
  %3636 = vmatpush1.msra.mxu0 %v3459
  %3637 = vmatprep.subr.mxu0 0.0
  %3638 = vmatpush2.msra.mxu0 0.0
  %3639 = vmatprep.subr.mxu0 0.0
  %3640 = vmatpush2.msra.mxu0 0.0
  %3641 = vmatprep.subr.mxu0 0.0
  %3642 = vmatpush2.msra.mxu0 0.0
  %3643 = vmatprep.subr.mxu0 0.0
  %3644 = vmatpush2.msra.mxu0 0.0
  %3645 = vmatprep.subr.mxu0 0.0
  %3646 = vmatpush2.msra.mxu0 0.0
  %3647 = vmatprep.subr.mxu0 0.0
  %3648 = vmatpush2.msra.mxu0 0.0
  %3649 = vmatprep.subr.mxu0 0.0
  %3650 = vmatpush2.msra.mxu0 0.0
  %3651 = vmatprep.subr.mxu0 0.0
  %3652 = vmatpush2.msra.mxu0 0.0
  %3653 = vmatprep.subr.mxu0 0.0
  %3654 = vmatpush2.msra.mxu0 0.0
  %3655 = vmatprep.subr.mxu0 0.0
  %3656 = vmatpush2.msra.mxu0 0.0
  %3657 = vmatprep.subr.mxu0 0.0
  %3658 = vmatpush2.msra.mxu0 0.0
  %3659 = vmatprep.subr.mxu0 0.0
  %3660 = vmatpush2.msra.mxu0 0.0
  %3661 = vmatprep.subr.mxu0 0.0
  %3662 = vmatpush2.msra.mxu0 0.0
  %3663 = vmatprep.subr.mxu0 0.0
  %3664 = vmatpush2.msra.mxu0 0.0
  %3665 = vmatprep.subr.mxu0 0.0
  %3666 = vmatpush2.msra.mxu0 0.0
  %3667 = vmatprep.subr.mxu0 0.0
  %3668 = vmatpush2.msra.mxu0 0.0
  %3669 = vmatprep.mubr.f32.mxu0 0.0
  %3670 = vmatmul.mubr.f32.gmra.mxu0 %v3449
  %v3671 = vpop.f32.mrf.mxu0
  %v3672 = vadd.f32 0.0, %v3671
  %v3673 = vpop.f32.mrf.mxu0
  %v3674 = vadd.f32 0.0, %v3673
  %3675 = vdwg.mxu0
  %v3676 = vadd.f32 %v3413, %v3530
  %v3677 = vadd.f32 %v3414, %v3532
  %v3678 = vadd.f32 %v3415, %v3601
  %v3679 = vadd.f32 %v3416, %v3603
  %v3680 = vadd.f32 %v3417, %v3672
  %v3681 = vadd.f32 %v3418, %v3674
  %s3682 = scalar_lea.vmem %s1, 56
  %v3683 = vld [vmem:[%s3682] sm:$0x7]
  %v3684 = vld [vmem:[%s0] sm:$0xff]
  %v3685 = vld [vmem:[%s0 + $0x8] sm:$0xff]
  %v3686 = vld [vmem:[%s0 + $0x10] sm:$0xff]
  %v3690 = vcombine.high %v3684, %v3684
  %v3691 = vcombine.high %v3685, %v3685
  %v3692 = vcombine.high %v3686, %v3686
  %3693 = vrot.lane.b32.xlu0 %v3684, 88
  %v3694 = vpop.permute.xlu0 %3693
  %3695 = vrot.lane.b32.xlu0 %v3690, 88
  %v3696 = vpop.permute.xlu0 %3695
  %3697 = vrot.lane.b32.xlu0 %v3685, 88
  %v3698 = vpop.permute.xlu0 %3697
  %3699 = vrot.lane.b32.xlu0 %v3691, 88
  %v3700 = vpop.permute.xlu0 %3699
  %3701 = vrot.lane.b32.xlu0 %v3686, 88
  %v3702 = vpop.permute.xlu0 %3701
  %3703 = vrot.lane.b32.xlu0 %v3692, 88
  %v3704 = vpop.permute.xlu0 %3703
  %vm3705 = vcmask 719872
  %v3706 = vsel %vm3705, %v3694, %v3696
  %v3707 = vsel %vm3705, %v3696, %v3698
  %v3708 = vsel %vm3705, %v3698, %v3700
  %v3709 = vsel %vm3705, %v3700, %v3702
  %v3710 = vsel %vm3705, %v3702, %v3704
  %v3712 = vsel %vm68, %v3683, 0
  %v3714 = vsel %vm72, %v3706, 0
  %v3716 = vsel %vm72, %v3707, 0
  %v3718 = vsel %vm72, %v3708, 0
  %v3720 = vsel %vm72, %v3709, 0
  %v3722 = vsel %vm72, %v3710, 0
  %v3724 = vsel %vm72, %v3704, 0
  %3726 = vmatprep.subr.mxu0 0.0
  %3727 = vmatpush1.msra.mxu0 0.0
  %3728 = vmatprep.subr.mxu0 0.0
  %3729 = vmatpush1.msra.mxu0 0.0
  %3730 = vmatprep.subr.mxu0 0.0
  %3731 = vmatpush1.msra.mxu0 0.0
  %3732 = vmatprep.subr.mxu0 0.0
  %3733 = vmatpush1.msra.mxu0 0.0
  %3734 = vmatprep.subr.mxu0 0.0
  %3735 = vmatpush1.msra.mxu0 0.0
  %3736 = vmatprep.subr.mxu0 0.0
  %3737 = vmatpush1.msra.mxu0 0.0
  %3738 = vmatprep.subr.mxu0 0.0
  %3739 = vmatpush1.msra.mxu0 0.0
  %3740 = vmatprep.subr.mxu0 0.0
  %3741 = vmatpush1.msra.mxu0 0.0
  %3742 = vmatprep.subr.mxu0 0.0
  %3743 = vmatpush1.msra.mxu0 0.0
  %3744 = vmatprep.subr.mxu0 0.0
  %3745 = vmatpush1.msra.mxu0 0.0
  %3746 = vmatprep.subr.mxu0 0.0
  %3747 = vmatpush1.msra.mxu0 0.0
  %3748 = vmatprep.subr.mxu0 0.0
  %3749 = vmatpush1.msra.mxu0 0.0
  %3750 = vmatprep.subr.mxu0 0.0
  %3751 = vmatpush1.msra.mxu0 0.0
  %3752 = vmatprep.subr.mxu0 0.0
  %3753 = vmatpush1.msra.mxu0 0.0
  %3754 = vmatprep.subr.mxu0 0.0
  %3755 = vmatpush1.msra.mxu0 0.0
  %3756 = vmatprep.subr.mxu0 %v3716
  %3757 = vmatpush1.msra.mxu0 %v3714
  %3758 = vmatprep.subr.mxu0 0.0
  %3759 = vmatpush2.msra.mxu0 0.0
  %3760 = vmatprep.subr.mxu0 0.0
  %3761 = vmatpush2.msra.mxu0 0.0
  %3762 = vmatprep.subr.mxu0 0.0
  %3763 = vmatpush2.msra.mxu0 0.0
  %3764 = vmatprep.subr.mxu0 0.0
  %3765 = vmatpush2.msra.mxu0 0.0
  %3766 = vmatprep.subr.mxu0 0.0
  %3767 = vmatpush2.msra.mxu0 0.0
  %3768 = vmatprep.subr.mxu0 0.0
  %3769 = vmatpush2.msra.mxu0 0.0
  %3770 = vmatprep.subr.mxu0 0.0
  %3771 = vmatpush2.msra.mxu0 0.0
  %3772 = vmatprep.subr.mxu0 0.0
  %3773 = vmatpush2.msra.mxu0 0.0
  %3774 = vmatprep.subr.mxu0 0.0
  %3775 = vmatpush2.msra.mxu0 0.0
  %3776 = vmatprep.subr.mxu0 0.0
  %3777 = vmatpush2.msra.mxu0 0.0
  %3778 = vmatprep.subr.mxu0 0.0
  %3779 = vmatpush2.msra.mxu0 0.0
  %3780 = vmatprep.subr.mxu0 0.0
  %3781 = vmatpush2.msra.mxu0 0.0
  %3782 = vmatprep.subr.mxu0 0.0
  %3783 = vmatpush2.msra.mxu0 0.0
  %3784 = vmatprep.subr.mxu0 0.0
  %3785 = vmatpush2.msra.mxu0 0.0
  %3786 = vmatprep.subr.mxu0 0.0
  %3787 = vmatpush2.msra.mxu0 0.0
  %3788 = vmatprep.subr.mxu0 0.0
  %3789 = vmatpush2.msra.mxu0 0.0
  %3790 = vmatprep.mubr.f32.mxu0 0.0
  %3791 = vmatmul.mubr.f32.gmra.mxu0 %v3712
  %v3792 = vpop.f32.mrf.mxu0
  %v3793 = vadd.f32 0.0, %v3792
  %v3794 = vpop.f32.mrf.mxu0
  %v3795 = vadd.f32 0.0, %v3794
  %3796 = vdwg.mxu0
  %3797 = vmatprep.subr.mxu0 0.0
  %3798 = vmatpush1.msra.mxu0 0.0
  %3799 = vmatprep.subr.mxu0 0.0
  %3800 = vmatpush1.msra.mxu0 0.0
  %3801 = vmatprep.subr.mxu0 0.0
  %3802 = vmatpush1.msra.mxu0 0.0
  %3803 = vmatprep.subr.mxu0 0.0
  %3804 = vmatpush1.msra.mxu0 0.0
  %3805 = vmatprep.subr.mxu0 0.0
  %3806 = vmatpush1.msra.mxu0 0.0
  %3807 = vmatprep.subr.mxu0 0.0
  %3808 = vmatpush1.msra.mxu0 0.0
  %3809 = vmatprep.subr.mxu0 0.0
  %3810 = vmatpush1.msra.mxu0 0.0
  %3811 = vmatprep.subr.mxu0 0.0
  %3812 = vmatpush1.msra.mxu0 0.0
  %3813 = vmatprep.subr.mxu0 0.0
  %3814 = vmatpush1.msra.mxu0 0.0
  %3815 = vmatprep.subr.mxu0 0.0
  %3816 = vmatpush1.msra.mxu0 0.0
  %3817 = vmatprep.subr.mxu0 0.0
  %3818 = vmatpush1.msra.mxu0 0.0
  %3819 = vmatprep.subr.mxu0 0.0
  %3820 = vmatpush1.msra.mxu0 0.0
  %3821 = vmatprep.subr.mxu0 0.0
  %3822 = vmatpush1.msra.mxu0 0.0
  %3823 = vmatprep.subr.mxu0 0.0
  %3824 = vmatpush1.msra.mxu0 0.0
  %3825 = vmatprep.subr.mxu0 0.0
  %3826 = vmatpush1.msra.mxu0 0.0
  %3827 = vmatprep.subr.mxu0 %v3720
  %3828 = vmatpush1.msra.mxu0 %v3718
  %3829 = vmatprep.subr.mxu0 0.0
  %3830 = vmatpush2.msra.mxu0 0.0
  %3831 = vmatprep.subr.mxu0 0.0
  %3832 = vmatpush2.msra.mxu0 0.0
  %3833 = vmatprep.subr.mxu0 0.0
  %3834 = vmatpush2.msra.mxu0 0.0
  %3835 = vmatprep.subr.mxu0 0.0
  %3836 = vmatpush2.msra.mxu0 0.0
  %3837 = vmatprep.subr.mxu0 0.0
  %3838 = vmatpush2.msra.mxu0 0.0
  %3839 = vmatprep.subr.mxu0 0.0
  %3840 = vmatpush2.msra.mxu0 0.0
  %3841 = vmatprep.subr.mxu0 0.0
  %3842 = vmatpush2.msra.mxu0 0.0
  %3843 = vmatprep.subr.mxu0 0.0
  %3844 = vmatpush2.msra.mxu0 0.0
  %3845 = vmatprep.subr.mxu0 0.0
  %3846 = vmatpush2.msra.mxu0 0.0
  %3847 = vmatprep.subr.mxu0 0.0
  %3848 = vmatpush2.msra.mxu0 0.0
  %3849 = vmatprep.subr.mxu0 0.0
  %3850 = vmatpush2.msra.mxu0 0.0
  %3851 = vmatprep.subr.mxu0 0.0
  %3852 = vmatpush2.msra.mxu0 0.0
  %3853 = vmatprep.subr.mxu0 0.0
  %3854 = vmatpush2.msra.mxu0 0.0
  %3855 = vmatprep.subr.mxu0 0.0
  %3856 = vmatpush2.msra.mxu0 0.0
  %3857 = vmatprep.subr.mxu0 0.0
  %3858 = vmatpush2.msra.mxu0 0.0
  %3859 = vmatprep.subr.mxu0 0.0
  %3860 = vmatpush2.msra.mxu0 0.0
  %3861 = vmatprep.mubr.f32.mxu0 0.0
  %3862 = vmatmul.mubr.f32.gmra.mxu0 %v3712
  %v3863 = vpop.f32.mrf.mxu0
  %v3864 = vadd.f32 0.0, %v3863
  %v3865 = vpop.f32.mrf.mxu0
  %v3866 = vadd.f32 0.0, %v3865
  %3867 = vdwg.mxu0
  %3868 = vmatprep.subr.mxu0 0.0
  %3869 = vmatpush1.msra.mxu0 0.0
  %3870 = vmatprep.subr.mxu0 0.0
  %3871 = vmatpush1.msra.mxu0 0.0
  %3872 = vmatprep.subr.mxu0 0.0
  %3873 = vmatpush1.msra.mxu0 0.0
  %3874 = vmatprep.subr.mxu0 0.0
  %3875 = vmatpush1.msra.mxu0 0.0
  %3876 = vmatprep.subr.mxu0 0.0
  %3877 = vmatpush1.msra.mxu0 0.0
  %3878 = vmatprep.subr.mxu0 0.0
  %3879 = vmatpush1.msra.mxu0 0.0
  %3880 = vmatprep.subr.mxu0 0.0
  %3881 = vmatpush1.msra.mxu0 0.0
  %3882 = vmatprep.subr.mxu0 0.0
  %3883 = vmatpush1.msra.mxu0 0.0
  %3884 = vmatprep.subr.mxu0 0.0
  %3885 = vmatpush1.msra.mxu0 0.0
  %3886 = vmatprep.subr.mxu0 0.0
  %3887 = vmatpush1.msra.mxu0 0.0
  %3888 = vmatprep.subr.mxu0 0.0
  %3889 = vmatpush1.msra.mxu0 0.0
  %3890 = vmatprep.subr.mxu0 0.0
  %3891 = vmatpush1.msra.mxu0 0.0
  %3892 = vmatprep.subr.mxu0 0.0
  %3893 = vmatpush1.msra.mxu0 0.0
  %3894 = vmatprep.subr.mxu0 0.0
  %3895 = vmatpush1.msra.mxu0 0.0
  %3896 = vmatprep.subr.mxu0 0.0
  %3897 = vmatpush1.msra.mxu0 0.0
  %3898 = vmatprep.subr.mxu0 %v3724
  %3899 = vmatpush1.msra.mxu0 %v3722
  %3900 = vmatprep.subr.mxu0 0.0
  %3901 = vmatpush2.msra.mxu0 0.0
  %3902 = vmatprep.subr.mxu0 0.0
  %3903 = vmatpush2.msra.mxu0 0.0
  %3904 = vmatprep.subr.mxu0 0.0
  %3905 = vmatpush2.msra.mxu0 0.0
  %3906 = vmatprep.subr.mxu0 0.0
  %3907 = vmatpush2.msra.mxu0 0.0
  %3908 = vmatprep.subr.mxu0 0.0
  %3909 = vmatpush2.msra.mxu0 0.0
  %3910 = vmatprep.subr.mxu0 0.0
  %3911 = vmatpush2.msra.mxu0 0.0
  %3912 = vmatprep.subr.mxu0 0.0
  %3913 = vmatpush2.msra.mxu0 0.0
  %3914 = vmatprep.subr.mxu0 0.0
  %3915 = vmatpush2.msra.mxu0 0.0
  %3916 = vmatprep.subr.mxu0 0.0
  %3917 = vmatpush2.msra.mxu0 0.0
  %3918 = vmatprep.subr.mxu0 0.0
  %3919 = vmatpush2.msra.mxu0 0.0
  %3920 = vmatprep.subr.mxu0 0.0
  %3921 = vmatpush2.msra.mxu0 0.0
  %3922 = vmatprep.subr.mxu0 0.0
  %3923 = vmatpush2.msra.mxu0 0.0
  %3924 = vmatprep.subr.mxu0 0.0
  %3925 = vmatpush2.msra.mxu0 0.0
  %3926 = vmatprep.subr.mxu0 0.0
  %3927 = vmatpush2.msra.mxu0 0.0
  %3928 = vmatprep.subr.mxu0 0.0
  %3929 = vmatpush2.msra.mxu0 0.0
  %3930 = vmatprep.subr.mxu0 0.0
  %3931 = vmatpush2.msra.mxu0 0.0
  %3932 = vmatprep.mubr.f32.mxu0 0.0
  %3933 = vmatmul.mubr.f32.gmra.mxu0 %v3712
  %v3934 = vpop.f32.mrf.mxu0
  %v3935 = vadd.f32 0.0, %v3934
  %v3936 = vpop.f32.mrf.mxu0
  %v3937 = vadd.f32 0.0, %v3936
  %3938 = vdwg.mxu0
  %v3939 = vadd.f32 %v3676, %v3793
  %v3940 = vadd.f32 %v3677, %v3795
  %v3941 = vadd.f32 %v3678, %v3864
  %v3942 = vadd.f32 %v3679, %v3866
  %v3943 = vadd.f32 %v3680, %v3935
  %v3944 = vadd.f32 %v3681, %v3937
  %s3945 = scalar_lea.vmem %s1, 60
  %v3946 = vld [vmem:[%s3945] sm:$0x7]
  %v3947 = vld [vmem:[%s0] sm:$0xff]
  %v3948 = vld [vmem:[%s0 + $0x8] sm:$0xff]
  %v3949 = vld [vmem:[%s0 + $0x10] sm:$0xff]
  %v3953 = vcombine.high %v3947, %v3947
  %v3954 = vcombine.high %v3948, %v3948
  %v3955 = vcombine.high %v3949, %v3949
  %3956 = vrot.lane.b32.xlu0 %v3947, 74
  %v3957 = vpop.permute.xlu0 %3956
  %3958 = vrot.lane.b32.xlu0 %v3953, 74
  %v3959 = vpop.permute.xlu0 %3958
  %3960 = vrot.lane.b32.xlu0 %v3948, 74
  %v3961 = vpop.permute.xlu0 %3960
  %3962 = vrot.lane.b32.xlu0 %v3954, 74
  %v3963 = vpop.permute.xlu0 %3962
  %3964 = vrot.lane.b32.xlu0 %v3949, 74
  %v3965 = vpop.permute.xlu0 %3964
  %3966 = vrot.lane.b32.xlu0 %v3955, 74
  %v3967 = vpop.permute.xlu0 %3966
  %vm3968 = vcmask 605184
  %v3969 = vsel %vm3968, %v3957, %v3959
  %v3970 = vsel %vm3968, %v3959, %v3961
  %v3971 = vsel %vm3968, %v3961, %v3963
  %v3972 = vsel %vm3968, %v3963, %v3965
  %v3973 = vsel %vm3968, %v3965, %v3967
  %v3975 = vsel %vm68, %v3946, 0
  %v3977 = vsel %vm72, %v3969, 0
  %v3979 = vsel %vm72, %v3970, 0
  %v3981 = vsel %vm72, %v3971, 0
  %v3983 = vsel %vm72, %v3972, 0
  %v3985 = vsel %vm72, %v3973, 0
  %v3987 = vsel %vm72, %v3967, 0
  %3989 = vmatprep.subr.mxu0 0.0
  %3990 = vmatpush1.msra.mxu0 0.0
  %3991 = vmatprep.subr.mxu0 0.0
  %3992 = vmatpush1.msra.mxu0 0.0
  %3993 = vmatprep.subr.mxu0 0.0
  %3994 = vmatpush1.msra.mxu0 0.0
  %3995 = vmatprep.subr.mxu0 0.0
  %3996 = vmatpush1.msra.mxu0 0.0
  %3997 = vmatprep.subr.mxu0 0.0
  %3998 = vmatpush1.msra.mxu0 0.0
  %3999 = vmatprep.subr.mxu0 0.0
  %4000 = vmatpush1.msra.mxu0 0.0
  %4001 = vmatprep.subr.mxu0 0.0
  %4002 = vmatpush1.msra.mxu0 0.0
  %4003 = vmatprep.subr.mxu0 0.0
  %4004 = vmatpush1.msra.mxu0 0.0
  %4005 = vmatprep.subr.mxu0 0.0
  %4006 = vmatpush1.msra.mxu0 0.0
  %4007 = vmatprep.subr.mxu0 0.0
  %4008 = vmatpush1.msra.mxu0 0.0
  %4009 = vmatprep.subr.mxu0 0.0
  %4010 = vmatpush1.msra.mxu0 0.0
  %4011 = vmatprep.subr.mxu0 0.0
  %4012 = vmatpush1.msra.mxu0 0.0
  %4013 = vmatprep.subr.mxu0 0.0
  %4014 = vmatpush1.msra.mxu0 0.0
  %4015 = vmatprep.subr.mxu0 0.0
  %4016 = vmatpush1.msra.mxu0 0.0
  %4017 = vmatprep.subr.mxu0 0.0
  %4018 = vmatpush1.msra.mxu0 0.0
  %4019 = vmatprep.subr.mxu0 %v3979
  %4020 = vmatpush1.msra.mxu0 %v3977
  %4021 = vmatprep.subr.mxu0 0.0
  %4022 = vmatpush2.msra.mxu0 0.0
  %4023 = vmatprep.subr.mxu0 0.0
  %4024 = vmatpush2.msra.mxu0 0.0
  %4025 = vmatprep.subr.mxu0 0.0
  %4026 = vmatpush2.msra.mxu0 0.0
  %4027 = vmatprep.subr.mxu0 0.0
  %4028 = vmatpush2.msra.mxu0 0.0
  %4029 = vmatprep.subr.mxu0 0.0
  %4030 = vmatpush2.msra.mxu0 0.0
  %4031 = vmatprep.subr.mxu0 0.0
  %4032 = vmatpush2.msra.mxu0 0.0
  %4033 = vmatprep.subr.mxu0 0.0
  %4034 = vmatpush2.msra.mxu0 0.0
  %4035 = vmatprep.subr.mxu0 0.0
  %4036 = vmatpush2.msra.mxu0 0.0
  %4037 = vmatprep.subr.mxu0 0.0
  %4038 = vmatpush2.msra.mxu0 0.0
  %4039 = vmatprep.subr.mxu0 0.0
  %4040 = vmatpush2.msra.mxu0 0.0
  %4041 = vmatprep.subr.mxu0 0.0
  %4042 = vmatpush2.msra.mxu0 0.0
  %4043 = vmatprep.subr.mxu0 0.0
  %4044 = vmatpush2.msra.mxu0 0.0
  %4045 = vmatprep.subr.mxu0 0.0
  %4046 = vmatpush2.msra.mxu0 0.0
  %4047 = vmatprep.subr.mxu0 0.0
  %4048 = vmatpush2.msra.mxu0 0.0
  %4049 = vmatprep.subr.mxu0 0.0
  %4050 = vmatpush2.msra.mxu0 0.0
  %4051 = vmatprep.subr.mxu0 0.0
  %4052 = vmatpush2.msra.mxu0 0.0
  %4053 = vmatprep.mubr.f32.mxu0 0.0
  %4054 = vmatmul.mubr.f32.gmra.mxu0 %v3975
  %v4055 = vpop.f32.mrf.mxu0
  %v4056 = vadd.f32 0.0, %v4055
  %v4057 = vpop.f32.mrf.mxu0
  %v4058 = vadd.f32 0.0, %v4057
  %4059 = vdwg.mxu0
  %4060 = vmatprep.subr.mxu0 0.0
  %4061 = vmatpush1.msra.mxu0 0.0
  %4062 = vmatprep.subr.mxu0 0.0
  %4063 = vmatpush1.msra.mxu0 0.0
  %4064 = vmatprep.subr.mxu0 0.0
  %4065 = vmatpush1.msra.mxu0 0.0
  %4066 = vmatprep.subr.mxu0 0.0
  %4067 = vmatpush1.msra.mxu0 0.0
  %4068 = vmatprep.subr.mxu0 0.0
  %4069 = vmatpush1.msra.mxu0 0.0
  %4070 = vmatprep.subr.mxu0 0.0
  %4071 = vmatpush1.msra.mxu0 0.0
  %4072 = vmatprep.subr.mxu0 0.0
  %4073 = vmatpush1.msra.mxu0 0.0
  %4074 = vmatprep.subr.mxu0 0.0
  %4075 = vmatpush1.msra.mxu0 0.0
  %4076 = vmatprep.subr.mxu0 0.0
  %4077 = vmatpush1.msra.mxu0 0.0
  %4078 = vmatprep.subr.mxu0 0.0
  %4079 = vmatpush1.msra.mxu0 0.0
  %4080 = vmatprep.subr.mxu0 0.0
  %4081 = vmatpush1.msra.mxu0 0.0
  %4082 = vmatprep.subr.mxu0 0.0
  %4083 = vmatpush1.msra.mxu0 0.0
  %4084 = vmatprep.subr.mxu0 0.0
  %4085 = vmatpush1.msra.mxu0 0.0
  %4086 = vmatprep.subr.mxu0 0.0
  %4087 = vmatpush1.msra.mxu0 0.0
  %4088 = vmatprep.subr.mxu0 0.0
  %4089 = vmatpush1.msra.mxu0 0.0
  %4090 = vmatprep.subr.mxu0 %v3983
  %4091 = vmatpush1.msra.mxu0 %v3981
  %4092 = vmatprep.subr.mxu0 0.0
  %4093 = vmatpush2.msra.mxu0 0.0
  %4094 = vmatprep.subr.mxu0 0.0
  %4095 = vmatpush2.msra.mxu0 0.0
  %4096 = vmatprep.subr.mxu0 0.0
  %4097 = vmatpush2.msra.mxu0 0.0
  %4098 = vmatprep.subr.mxu0 0.0
  %4099 = vmatpush2.msra.mxu0 0.0
  %4100 = vmatprep.subr.mxu0 0.0
  %4101 = vmatpush2.msra.mxu0 0.0
  %4102 = vmatprep.subr.mxu0 0.0
  %4103 = vmatpush2.msra.mxu0 0.0
  %4104 = vmatprep.subr.mxu0 0.0
  %4105 = vmatpush2.msra.mxu0 0.0
  %4106 = vmatprep.subr.mxu0 0.0
  %4107 = vmatpush2.msra.mxu0 0.0
  %4108 = vmatprep.subr.mxu0 0.0
  %4109 = vmatpush2.msra.mxu0 0.0
  %4110 = vmatprep.subr.mxu0 0.0
  %4111 = vmatpush2.msra.mxu0 0.0
  %4112 = vmatprep.subr.mxu0 0.0
  %4113 = vmatpush2.msra.mxu0 0.0
  %4114 = vmatprep.subr.mxu0 0.0
  %4115 = vmatpush2.msra.mxu0 0.0
  %4116 = vmatprep.subr.mxu0 0.0
  %4117 = vmatpush2.msra.mxu0 0.0
  %4118 = vmatprep.subr.mxu0 0.0
  %4119 = vmatpush2.msra.mxu0 0.0
  %4120 = vmatprep.subr.mxu0 0.0
  %4121 = vmatpush2.msra.mxu0 0.0
  %4122 = vmatprep.subr.mxu0 0.0
  %4123 = vmatpush2.msra.mxu0 0.0
  %4124 = vmatprep.mubr.f32.mxu0 0.0
  %4125 = vmatmul.mubr.f32.gmra.mxu0 %v3975
  %v4126 = vpop.f32.mrf.mxu0
  %v4127 = vadd.f32 0.0, %v4126
  %v4128 = vpop.f32.mrf.mxu0
  %v4129 = vadd.f32 0.0, %v4128
  %4130 = vdwg.mxu0
  %4131 = vmatprep.subr.mxu0 0.0
  %4132 = vmatpush1.msra.mxu0 0.0
  %4133 = vmatprep.subr.mxu0 0.0
  %4134 = vmatpush1.msra.mxu0 0.0
  %4135 = vmatprep.subr.mxu0 0.0
  %4136 = vmatpush1.msra.mxu0 0.0
  %4137 = vmatprep.subr.mxu0 0.0
  %4138 = vmatpush1.msra.mxu0 0.0
  %4139 = vmatprep.subr.mxu0 0.0
  %4140 = vmatpush1.msra.mxu0 0.0
  %4141 = vmatprep.subr.mxu0 0.0
  %4142 = vmatpush1.msra.mxu0 0.0
  %4143 = vmatprep.subr.mxu0 0.0
  %4144 = vmatpush1.msra.mxu0 0.0
  %4145 = vmatprep.subr.mxu0 0.0
  %4146 = vmatpush1.msra.mxu0 0.0
  %4147 = vmatprep.subr.mxu0 0.0
  %4148 = vmatpush1.msra.mxu0 0.0
  %4149 = vmatprep.subr.mxu0 0.0
  %4150 = vmatpush1.msra.mxu0 0.0
  %4151 = vmatprep.subr.mxu0 0.0
  %4152 = vmatpush1.msra.mxu0 0.0
  %4153 = vmatprep.subr.mxu0 0.0
  %4154 = vmatpush1.msra.mxu0 0.0
  %4155 = vmatprep.subr.mxu0 0.0
  %4156 = vmatpush1.msra.mxu0 0.0
  %4157 = vmatprep.subr.mxu0 0.0
  %4158 = vmatpush1.msra.mxu0 0.0
  %4159 = vmatprep.subr.mxu0 0.0
  %4160 = vmatpush1.msra.mxu0 0.0
  %4161 = vmatprep.subr.mxu0 %v3987
  %4162 = vmatpush1.msra.mxu0 %v3985
  %4163 = vmatprep.subr.mxu0 0.0
  %4164 = vmatpush2.msra.mxu0 0.0
  %4165 = vmatprep.subr.mxu0 0.0
  %4166 = vmatpush2.msra.mxu0 0.0
  %4167 = vmatprep.subr.mxu0 0.0
  %4168 = vmatpush2.msra.mxu0 0.0
  %4169 = vmatprep.subr.mxu0 0.0
  %4170 = vmatpush2.msra.mxu0 0.0
  %4171 = vmatprep.subr.mxu0 0.0
  %4172 = vmatpush2.msra.mxu0 0.0
  %4173 = vmatprep.subr.mxu0 0.0
  %4174 = vmatpush2.msra.mxu0 0.0
  %4175 = vmatprep.subr.mxu0 0.0
  %4176 = vmatpush2.msra.mxu0 0.0
  %4177 = vmatprep.subr.mxu0 0.0
  %4178 = vmatpush2.msra.mxu0 0.0
  %4179 = vmatprep.subr.mxu0 0.0
  %4180 = vmatpush2.msra.mxu0 0.0
  %4181 = vmatprep.subr.mxu0 0.0
  %4182 = vmatpush2.msra.mxu0 0.0
  %4183 = vmatprep.subr.mxu0 0.0
  %4184 = vmatpush2.msra.mxu0 0.0
  %4185 = vmatprep.subr.mxu0 0.0
  %4186 = vmatpush2.msra.mxu0 0.0
  %4187 = vmatprep.subr.mxu0 0.0
  %4188 = vmatpush2.msra.mxu0 0.0
  %4189 = vmatprep.subr.mxu0 0.0
  %4190 = vmatpush2.msra.mxu0 0.0
  %4191 = vmatprep.subr.mxu0 0.0
  %4192 = vmatpush2.msra.mxu0 0.0
  %4193 = vmatprep.subr.mxu0 0.0
  %4194 = vmatpush2.msra.mxu0 0.0
  %4195 = vmatprep.mubr.f32.mxu0 0.0
  %4196 = vmatmul.mubr.f32.gmra.mxu0 %v3975
  %v4197 = vpop.f32.mrf.mxu0
  %v4198 = vadd.f32 0.0, %v4197
  %v4199 = vpop.f32.mrf.mxu0
  %v4200 = vadd.f32 0.0, %v4199
  %4201 = vdwg.mxu0
  %v4202 = vadd.f32 %v3939, %v4056
  %v4203 = vadd.f32 %v3940, %v4058
  %v4204 = vadd.f32 %v3941, %v4127
  %v4205 = vadd.f32 %v3942, %v4129
  %v4206 = vadd.f32 %v3943, %v4198
  %v4207 = vadd.f32 %v3944, %v4200
  %s4208 = scalar_lea.vmem %s1, 64
  %v4209 = vld [vmem:[%s4208] sm:$0x7]
  %v4210 = vld [vmem:[%s0] sm:$0xff]
  %v4211 = vld [vmem:[%s0 + $0x8] sm:$0xff]
  %v4212 = vld [vmem:[%s0 + $0x10] sm:$0xff]
  %v4216 = vcombine.high %v4210, %v4210
  %v4217 = vcombine.high %v4211, %v4211
  %v4218 = vcombine.high %v4212, %v4212
  %4219 = vrot.lane.b32.xlu0 %v4210, 73
  %v4220 = vpop.permute.xlu0 %4219
  %4221 = vrot.lane.b32.xlu0 %v4216, 73
  %v4222 = vpop.permute.xlu0 %4221
  %4223 = vrot.lane.b32.xlu0 %v4211, 73
  %v4224 = vpop.permute.xlu0 %4223
  %4225 = vrot.lane.b32.xlu0 %v4217, 73
  %v4226 = vpop.permute.xlu0 %4225
  %4227 = vrot.lane.b32.xlu0 %v4212, 73
  %v4228 = vpop.permute.xlu0 %4227
  %4229 = vrot.lane.b32.xlu0 %v4218, 73
  %v4230 = vpop.permute.xlu0 %4229
  %vm4231 = vcmask 596992
  %v4232 = vsel %vm4231, %v4220, %v4222
  %v4233 = vsel %vm4231, %v4222, %v4224
  %v4234 = vsel %vm4231, %v4224, %v4226
  %v4235 = vsel %vm4231, %v4226, %v4228
  %v4236 = vsel %vm4231, %v4228, %v4230
  %v4238 = vsel %vm68, %v4209, 0
  %v4240 = vsel %vm72, %v4232, 0
  %v4242 = vsel %vm72, %v4233, 0
  %v4244 = vsel %vm72, %v4234, 0
  %v4246 = vsel %vm72, %v4235, 0
  %v4248 = vsel %vm72, %v4236, 0
  %v4250 = vsel %vm72, %v4230, 0
  %4252 = vmatprep.subr.mxu0 0.0
  %4253 = vmatpush1.msra.mxu0 0.0
  %4254 = vmatprep.subr.mxu0 0.0
  %4255 = vmatpush1.msra.mxu0 0.0
  %4256 = vmatprep.subr.mxu0 0.0
  %4257 = vmatpush1.msra.mxu0 0.0
  %4258 = vmatprep.subr.mxu0 0.0
  %4259 = vmatpush1.msra.mxu0 0.0
  %4260 = vmatprep.subr.mxu0 0.0
  %4261 = vmatpush1.msra.mxu0 0.0
  %4262 = vmatprep.subr.mxu0 0.0
  %4263 = vmatpush1.msra.mxu0 0.0
  %4264 = vmatprep.subr.mxu0 0.0
  %4265 = vmatpush1.msra.mxu0 0.0
  %4266 = vmatprep.subr.mxu0 0.0
  %4267 = vmatpush1.msra.mxu0 0.0
  %4268 = vmatprep.subr.mxu0 0.0
  %4269 = vmatpush1.msra.mxu0 0.0
  %4270 = vmatprep.subr.mxu0 0.0
  %4271 = vmatpush1.msra.mxu0 0.0
  %4272 = vmatprep.subr.mxu0 0.0
  %4273 = vmatpush1.msra.mxu0 0.0
  %4274 = vmatprep.subr.mxu0 0.0
  %4275 = vmatpush1.msra.mxu0 0.0
  %4276 = vmatprep.subr.mxu0 0.0
  %4277 = vmatpush1.msra.mxu0 0.0
  %4278 = vmatprep.subr.mxu0 0.0
  %4279 = vmatpush1.msra.mxu0 0.0
  %4280 = vmatprep.subr.mxu0 0.0
  %4281 = vmatpush1.msra.mxu0 0.0
  %4282 = vmatprep.subr.mxu0 %v4242
  %4283 = vmatpush1.msra.mxu0 %v4240
  %4284 = vmatprep.subr.mxu0 0.0
  %4285 = vmatpush2.msra.mxu0 0.0
  %4286 = vmatprep.subr.mxu0 0.0
  %4287 = vmatpush2.msra.mxu0 0.0
  %4288 = vmatprep.subr.mxu0 0.0
  %4289 = vmatpush2.msra.mxu0 0.0
  %4290 = vmatprep.subr.mxu0 0.0
  %4291 = vmatpush2.msra.mxu0 0.0
  %4292 = vmatprep.subr.mxu0 0.0
  %4293 = vmatpush2.msra.mxu0 0.0
  %4294 = vmatprep.subr.mxu0 0.0
  %4295 = vmatpush2.msra.mxu0 0.0
  %4296 = vmatprep.subr.mxu0 0.0
  %4297 = vmatpush2.msra.mxu0 0.0
  %4298 = vmatprep.subr.mxu0 0.0
  %4299 = vmatpush2.msra.mxu0 0.0
  %4300 = vmatprep.subr.mxu0 0.0
  %4301 = vmatpush2.msra.mxu0 0.0
  %4302 = vmatprep.subr.mxu0 0.0
  %4303 = vmatpush2.msra.mxu0 0.0
  %4304 = vmatprep.subr.mxu0 0.0
  %4305 = vmatpush2.msra.mxu0 0.0
  %4306 = vmatprep.subr.mxu0 0.0
  %4307 = vmatpush2.msra.mxu0 0.0
  %4308 = vmatprep.subr.mxu0 0.0
  %4309 = vmatpush2.msra.mxu0 0.0
  %4310 = vmatprep.subr.mxu0 0.0
  %4311 = vmatpush2.msra.mxu0 0.0
  %4312 = vmatprep.subr.mxu0 0.0
  %4313 = vmatpush2.msra.mxu0 0.0
  %4314 = vmatprep.subr.mxu0 0.0
  %4315 = vmatpush2.msra.mxu0 0.0
  %4316 = vmatprep.mubr.f32.mxu0 0.0
  %4317 = vmatmul.mubr.f32.gmra.mxu0 %v4238
  %v4318 = vpop.f32.mrf.mxu0
  %v4319 = vadd.f32 0.0, %v4318
  %v4320 = vpop.f32.mrf.mxu0
  %v4321 = vadd.f32 0.0, %v4320
  %4322 = vdwg.mxu0
  %4323 = vmatprep.subr.mxu0 0.0
  %4324 = vmatpush1.msra.mxu0 0.0
  %4325 = vmatprep.subr.mxu0 0.0
  %4326 = vmatpush1.msra.mxu0 0.0
  %4327 = vmatprep.subr.mxu0 0.0
  %4328 = vmatpush1.msra.mxu0 0.0
  %4329 = vmatprep.subr.mxu0 0.0
  %4330 = vmatpush1.msra.mxu0 0.0
  %4331 = vmatprep.subr.mxu0 0.0
  %4332 = vmatpush1.msra.mxu0 0.0
  %4333 = vmatprep.subr.mxu0 0.0
  %4334 = vmatpush1.msra.mxu0 0.0
  %4335 = vmatprep.subr.mxu0 0.0
  %4336 = vmatpush1.msra.mxu0 0.0
  %4337 = vmatprep.subr.mxu0 0.0
  %4338 = vmatpush1.msra.mxu0 0.0
  %4339 = vmatprep.subr.mxu0 0.0
  %4340 = vmatpush1.msra.mxu0 0.0
  %4341 = vmatprep.subr.mxu0 0.0
  %4342 = vmatpush1.msra.mxu0 0.0
  %4343 = vmatprep.subr.mxu0 0.0
  %4344 = vmatpush1.msra.mxu0 0.0
  %4345 = vmatprep.subr.mxu0 0.0
  %4346 = vmatpush1.msra.mxu0 0.0
  %4347 = vmatprep.subr.mxu0 0.0
  %4348 = vmatpush1.msra.mxu0 0.0
  %4349 = vmatprep.subr.mxu0 0.0
  %4350 = vmatpush1.msra.mxu0 0.0
  %4351 = vmatprep.subr.mxu0 0.0
  %4352 = vmatpush1.msra.mxu0 0.0
  %4353 = vmatprep.subr.mxu0 %v4246
  %4354 = vmatpush1.msra.mxu0 %v4244
  %4355 = vmatprep.subr.mxu0 0.0
  %4356 = vmatpush2.msra.mxu0 0.0
  %4357 = vmatprep.subr.mxu0 0.0
  %4358 = vmatpush2.msra.mxu0 0.0
  %4359 = vmatprep.subr.mxu0 0.0
  %4360 = vmatpush2.msra.mxu0 0.0
  %4361 = vmatprep.subr.mxu0 0.0
  %4362 = vmatpush2.msra.mxu0 0.0
  %4363 = vmatprep.subr.mxu0 0.0
  %4364 = vmatpush2.msra.mxu0 0.0
  %4365 = vmatprep.subr.mxu0 0.0
  %4366 = vmatpush2.msra.mxu0 0.0
  %4367 = vmatprep.subr.mxu0 0.0
  %4368 = vmatpush2.msra.mxu0 0.0
  %4369 = vmatprep.subr.mxu0 0.0
  %4370 = vmatpush2.msra.mxu0 0.0
  %4371 = vmatprep.subr.mxu0 0.0
  %4372 = vmatpush2.msra.mxu0 0.0
  %4373 = vmatprep.subr.mxu0 0.0
  %4374 = vmatpush2.msra.mxu0 0.0
  %4375 = vmatprep.subr.mxu0 0.0
  %4376 = vmatpush2.msra.mxu0 0.0
  %4377 = vmatprep.subr.mxu0 0.0
  %4378 = vmatpush2.msra.mxu0 0.0
  %4379 = vmatprep.subr.mxu0 0.0
  %4380 = vmatpush2.msra.mxu0 0.0
  %4381 = vmatprep.subr.mxu0 0.0
  %4382 = vmatpush2.msra.mxu0 0.0
  %4383 = vmatprep.subr.mxu0 0.0
  %4384 = vmatpush2.msra.mxu0 0.0
  %4385 = vmatprep.subr.mxu0 0.0
  %4386 = vmatpush2.msra.mxu0 0.0
  %4387 = vmatprep.mubr.f32.mxu0 0.0
  %4388 = vmatmul.mubr.f32.gmra.mxu0 %v4238
  %v4389 = vpop.f32.mrf.mxu0
  %v4390 = vadd.f32 0.0, %v4389
  %v4391 = vpop.f32.mrf.mxu0
  %v4392 = vadd.f32 0.0, %v4391
  %4393 = vdwg.mxu0
  %4394 = vmatprep.subr.mxu0 0.0
  %4395 = vmatpush1.msra.mxu0 0.0
  %4396 = vmatprep.subr.mxu0 0.0
  %4397 = vmatpush1.msra.mxu0 0.0
  %4398 = vmatprep.subr.mxu0 0.0
  %4399 = vmatpush1.msra.mxu0 0.0
  %4400 = vmatprep.subr.mxu0 0.0
  %4401 = vmatpush1.msra.mxu0 0.0
  %4402 = vmatprep.subr.mxu0 0.0
  %4403 = vmatpush1.msra.mxu0 0.0
  %4404 = vmatprep.subr.mxu0 0.0
  %4405 = vmatpush1.msra.mxu0 0.0
  %4406 = vmatprep.subr.mxu0 0.0
  %4407 = vmatpush1.msra.mxu0 0.0
  %4408 = vmatprep.subr.mxu0 0.0
  %4409 = vmatpush1.msra.mxu0 0.0
  %4410 = vmatprep.subr.mxu0 0.0
  %4411 = vmatpush1.msra.mxu0 0.0
  %4412 = vmatprep.subr.mxu0 0.0
  %4413 = vmatpush1.msra.mxu0 0.0
  %4414 = vmatprep.subr.mxu0 0.0
  %4415 = vmatpush1.msra.mxu0 0.0
  %4416 = vmatprep.subr.mxu0 0.0
  %4417 = vmatpush1.msra.mxu0 0.0
  %4418 = vmatprep.subr.mxu0 0.0
  %4419 = vmatpush1.msra.mxu0 0.0
  %4420 = vmatprep.subr.mxu0 0.0
  %4421 = vmatpush1.msra.mxu0 0.0
  %4422 = vmatprep.subr.mxu0 0.0
  %4423 = vmatpush1.msra.mxu0 0.0
  %4424 = vmatprep.subr.mxu0 %v4250
  %4425 = vmatpush1.msra.mxu0 %v4248
  %4426 = vmatprep.subr.mxu0 0.0
  %4427 = vmatpush2.msra.mxu0 0.0
  %4428 = vmatprep.subr.mxu0 0.0
  %4429 = vmatpush2.msra.mxu0 0.0
  %4430 = vmatprep.subr.mxu0 0.0
  %4431 = vmatpush2.msra.mxu0 0.0
  %4432 = vmatprep.subr.mxu0 0.0
  %4433 = vmatpush2.msra.mxu0 0.0
  %4434 = vmatprep.subr.mxu0 0.0
  %4435 = vmatpush2.msra.mxu0 0.0
  %4436 = vmatprep.subr.mxu0 0.0
  %4437 = vmatpush2.msra.mxu0 0.0
  %4438 = vmatprep.subr.mxu0 0.0
  %4439 = vmatpush2.msra.mxu0 0.0
  %4440 = vmatprep.subr.mxu0 0.0
  %4441 = vmatpush2.msra.mxu0 0.0
  %4442 = vmatprep.subr.mxu0 0.0
  %4443 = vmatpush2.msra.mxu0 0.0
  %4444 = vmatprep.subr.mxu0 0.0
  %4445 = vmatpush2.msra.mxu0 0.0
  %4446 = vmatprep.subr.mxu0 0.0
  %4447 = vmatpush2.msra.mxu0 0.0
  %4448 = vmatprep.subr.mxu0 0.0
  %4449 = vmatpush2.msra.mxu0 0.0
  %4450 = vmatprep.subr.mxu0 0.0
  %4451 = vmatpush2.msra.mxu0 0.0
  %4452 = vmatprep.subr.mxu0 0.0
  %4453 = vmatpush2.msra.mxu0 0.0
  %4454 = vmatprep.subr.mxu0 0.0
  %4455 = vmatpush2.msra.mxu0 0.0
  %4456 = vmatprep.subr.mxu0 0.0
  %4457 = vmatpush2.msra.mxu0 0.0
  %4458 = vmatprep.mubr.f32.mxu0 0.0
  %4459 = vmatmul.mubr.f32.gmra.mxu0 %v4238
  %v4460 = vpop.f32.mrf.mxu0
  %v4461 = vadd.f32 0.0, %v4460
  %v4462 = vpop.f32.mrf.mxu0
  %v4463 = vadd.f32 0.0, %v4462
  %4464 = vdwg.mxu0
  %v4465 = vadd.f32 %v4202, %v4319
  %v4466 = vadd.f32 %v4203, %v4321
  %v4467 = vadd.f32 %v4204, %v4390
  %v4468 = vadd.f32 %v4205, %v4392
  %v4469 = vadd.f32 %v4206, %v4461
  %v4470 = vadd.f32 %v4207, %v4463
  %s4471 = scalar_lea.vmem %s1, 68
  %v4472 = vld [vmem:[%s4471] sm:$0x7]
  %v4473 = vld [vmem:[%s0] sm:$0xff]
  %v4474 = vld [vmem:[%s0 + $0x8] sm:$0xff]
  %v4475 = vld [vmem:[%s0 + $0x10] sm:$0xff]
  %v4479 = vcombine.high %v4473, %v4473
  %v4480 = vcombine.high %v4474, %v4474
  %v4481 = vcombine.high %v4475, %v4475
  %4482 = vrot.lane.b32.xlu0 %v4473, 72
  %v4483 = vpop.permute.xlu0 %4482
  %4484 = vrot.lane.b32.xlu0 %v4479, 72
  %v4485 = vpop.permute.xlu0 %4484
  %4486 = vrot.lane.b32.xlu0 %v4474, 72
  %v4487 = vpop.permute.xlu0 %4486
  %4488 = vrot.lane.b32.xlu0 %v4480, 72
  %v4489 = vpop.permute.xlu0 %4488
  %4490 = vrot.lane.b32.xlu0 %v4475, 72
  %v4491 = vpop.permute.xlu0 %4490
  %4492 = vrot.lane.b32.xlu0 %v4481, 72
  %v4493 = vpop.permute.xlu0 %4492
  %vm4494 = vcmask 588800
  %v4495 = vsel %vm4494, %v4483, %v4485
  %v4496 = vsel %vm4494, %v4485, %v4487
  %v4497 = vsel %vm4494, %v4487, %v4489
  %v4498 = vsel %vm4494, %v4489, %v4491
  %v4499 = vsel %vm4494, %v4491, %v4493
  %v4501 = vsel %vm68, %v4472, 0
  %v4503 = vsel %vm72, %v4495, 0
  %v4505 = vsel %vm72, %v4496, 0
  %v4507 = vsel %vm72, %v4497, 0
  %v4509 = vsel %vm72, %v4498, 0
  %v4511 = vsel %vm72, %v4499, 0
  %v4513 = vsel %vm72, %v4493, 0
  %4515 = vmatprep.subr.mxu0 0.0
  %4516 = vmatpush1.msra.mxu0 0.0
  %4517 = vmatprep.subr.mxu0 0.0
  %4518 = vmatpush1.msra.mxu0 0.0
  %4519 = vmatprep.subr.mxu0 0.0
  %4520 = vmatpush1.msra.mxu0 0.0
  %4521 = vmatprep.subr.mxu0 0.0
  %4522 = vmatpush1.msra.mxu0 0.0
  %4523 = vmatprep.subr.mxu0 0.0
  %4524 = vmatpush1.msra.mxu0 0.0
  %4525 = vmatprep.subr.mxu0 0.0
  %4526 = vmatpush1.msra.mxu0 0.0
  %4527 = vmatprep.subr.mxu0 0.0
  %4528 = vmatpush1.msra.mxu0 0.0
  %4529 = vmatprep.subr.mxu0 0.0
  %4530 = vmatpush1.msra.mxu0 0.0
  %4531 = vmatprep.subr.mxu0 0.0
  %4532 = vmatpush1.msra.mxu0 0.0
  %4533 = vmatprep.subr.mxu0 0.0
  %4534 = vmatpush1.msra.mxu0 0.0
  %4535 = vmatprep.subr.mxu0 0.0
  %4536 = vmatpush1.msra.mxu0 0.0
  %4537 = vmatprep.subr.mxu0 0.0
  %4538 = vmatpush1.msra.mxu0 0.0
  %4539 = vmatprep.subr.mxu0 0.0
  %4540 = vmatpush1.msra.mxu0 0.0
  %4541 = vmatprep.subr.mxu0 0.0
  %4542 = vmatpush1.msra.mxu0 0.0
  %4543 = vmatprep.subr.mxu0 0.0
  %4544 = vmatpush1.msra.mxu0 0.0
  %4545 = vmatprep.subr.mxu0 %v4505
  %4546 = vmatpush1.msra.mxu0 %v4503
  %4547 = vmatprep.subr.mxu0 0.0
  %4548 = vmatpush2.msra.mxu0 0.0
  %4549 = vmatprep.subr.mxu0 0.0
  %4550 = vmatpush2.msra.mxu0 0.0
  %4551 = vmatprep.subr.mxu0 0.0
  %4552 = vmatpush2.msra.mxu0 0.0
  %4553 = vmatprep.subr.mxu0 0.0
  %4554 = vmatpush2.msra.mxu0 0.0
  %4555 = vmatprep.subr.mxu0 0.0
  %4556 = vmatpush2.msra.mxu0 0.0
  %4557 = vmatprep.subr.mxu0 0.0
  %4558 = vmatpush2.msra.mxu0 0.0
  %4559 = vmatprep.subr.mxu0 0.0
  %4560 = vmatpush2.msra.mxu0 0.0
  %4561 = vmatprep.subr.mxu0 0.0
  %4562 = vmatpush2.msra.mxu0 0.0
  %4563 = vmatprep.subr.mxu0 0.0
  %4564 = vmatpush2.msra.mxu0 0.0
  %4565 = vmatprep.subr.mxu0 0.0
  %4566 = vmatpush2.msra.mxu0 0.0
  %4567 = vmatprep.subr.mxu0 0.0
  %4568 = vmatpush2.msra.mxu0 0.0
  %4569 = vmatprep.subr.mxu0 0.0
  %4570 = vmatpush2.msra.mxu0 0.0
  %4571 = vmatprep.subr.mxu0 0.0
  %4572 = vmatpush2.msra.mxu0 0.0
  %4573 = vmatprep.subr.mxu0 0.0
  %4574 = vmatpush2.msra.mxu0 0.0
  %4575 = vmatprep.subr.mxu0 0.0
  %4576 = vmatpush2.msra.mxu0 0.0
  %4577 = vmatprep.subr.mxu0 0.0
  %4578 = vmatpush2.msra.mxu0 0.0
  %4579 = vmatprep.mubr.f32.mxu0 0.0
  %4580 = vmatmul.mubr.f32.gmra.mxu0 %v4501
  %v4581 = vpop.f32.mrf.mxu0
  %v4582 = vadd.f32 0.0, %v4581
  %v4583 = vpop.f32.mrf.mxu0
  %v4584 = vadd.f32 0.0, %v4583
  %4585 = vdwg.mxu0
  %4586 = vmatprep.subr.mxu0 0.0
  %4587 = vmatpush1.msra.mxu0 0.0
  %4588 = vmatprep.subr.mxu0 0.0
  %4589 = vmatpush1.msra.mxu0 0.0
  %4590 = vmatprep.subr.mxu0 0.0
  %4591 = vmatpush1.msra.mxu0 0.0
  %4592 = vmatprep.subr.mxu0 0.0
  %4593 = vmatpush1.msra.mxu0 0.0
  %4594 = vmatprep.subr.mxu0 0.0
  %4595 = vmatpush1.msra.mxu0 0.0
  %4596 = vmatprep.subr.mxu0 0.0
  %4597 = vmatpush1.msra.mxu0 0.0
  %4598 = vmatprep.subr.mxu0 0.0
  %4599 = vmatpush1.msra.mxu0 0.0
  %4600 = vmatprep.subr.mxu0 0.0
  %4601 = vmatpush1.msra.mxu0 0.0
  %4602 = vmatprep.subr.mxu0 0.0
  %4603 = vmatpush1.msra.mxu0 0.0
  %4604 = vmatprep.subr.mxu0 0.0
  %4605 = vmatpush1.msra.mxu0 0.0
  %4606 = vmatprep.subr.mxu0 0.0
  %4607 = vmatpush1.msra.mxu0 0.0
  %4608 = vmatprep.subr.mxu0 0.0
  %4609 = vmatpush1.msra.mxu0 0.0
  %4610 = vmatprep.subr.mxu0 0.0
  %4611 = vmatpush1.msra.mxu0 0.0
  %4612 = vmatprep.subr.mxu0 0.0
  %4613 = vmatpush1.msra.mxu0 0.0
  %4614 = vmatprep.subr.mxu0 0.0
  %4615 = vmatpush1.msra.mxu0 0.0
  %4616 = vmatprep.subr.mxu0 %v4509
  %4617 = vmatpush1.msra.mxu0 %v4507
  %4618 = vmatprep.subr.mxu0 0.0
  %4619 = vmatpush2.msra.mxu0 0.0
  %4620 = vmatprep.subr.mxu0 0.0
  %4621 = vmatpush2.msra.mxu0 0.0
  %4622 = vmatprep.subr.mxu0 0.0
  %4623 = vmatpush2.msra.mxu0 0.0
  %4624 = vmatprep.subr.mxu0 0.0
  %4625 = vmatpush2.msra.mxu0 0.0
  %4626 = vmatprep.subr.mxu0 0.0
  %4627 = vmatpush2.msra.mxu0 0.0
  %4628 = vmatprep.subr.mxu0 0.0
  %4629 = vmatpush2.msra.mxu0 0.0
  %4630 = vmatprep.subr.mxu0 0.0
  %4631 = vmatpush2.msra.mxu0 0.0
  %4632 = vmatprep.subr.mxu0 0.0
  %4633 = vmatpush2.msra.mxu0 0.0
  %4634 = vmatprep.subr.mxu0 0.0
  %4635 = vmatpush2.msra.mxu0 0.0
  %4636 = vmatprep.subr.mxu0 0.0
  %4637 = vmatpush2.msra.mxu0 0.0
  %4638 = vmatprep.subr.mxu0 0.0
  %4639 = vmatpush2.msra.mxu0 0.0
  %4640 = vmatprep.subr.mxu0 0.0
  %4641 = vmatpush2.msra.mxu0 0.0
  %4642 = vmatprep.subr.mxu0 0.0
  %4643 = vmatpush2.msra.mxu0 0.0
  %4644 = vmatprep.subr.mxu0 0.0
  %4645 = vmatpush2.msra.mxu0 0.0
  %4646 = vmatprep.subr.mxu0 0.0
  %4647 = vmatpush2.msra.mxu0 0.0
  %4648 = vmatprep.subr.mxu0 0.0
  %4649 = vmatpush2.msra.mxu0 0.0
  %4650 = vmatprep.mubr.f32.mxu0 0.0
  %4651 = vmatmul.mubr.f32.gmra.mxu0 %v4501
  %v4652 = vpop.f32.mrf.mxu0
  %v4653 = vadd.f32 0.0, %v4652
  %v4654 = vpop.f32.mrf.mxu0
  %v4655 = vadd.f32 0.0, %v4654
  %4656 = vdwg.mxu0
  %4657 = vmatprep.subr.mxu0 0.0
  %4658 = vmatpush1.msra.mxu0 0.0
  %4659 = vmatprep.subr.mxu0 0.0
  %4660 = vmatpush1.msra.mxu0 0.0
  %4661 = vmatprep.subr.mxu0 0.0
  %4662 = vmatpush1.msra.mxu0 0.0
  %4663 = vmatprep.subr.mxu0 0.0
  %4664 = vmatpush1.msra.mxu0 0.0
  %4665 = vmatprep.subr.mxu0 0.0
  %4666 = vmatpush1.msra.mxu0 0.0
  %4667 = vmatprep.subr.mxu0 0.0
  %4668 = vmatpush1.msra.mxu0 0.0
  %4669 = vmatprep.subr.mxu0 0.0
  %4670 = vmatpush1.msra.mxu0 0.0
  %4671 = vmatprep.subr.mxu0 0.0
  %4672 = vmatpush1.msra.mxu0 0.0
  %4673 = vmatprep.subr.mxu0 0.0
  %4674 = vmatpush1.msra.mxu0 0.0
  %4675 = vmatprep.subr.mxu0 0.0
  %4676 = vmatpush1.msra.mxu0 0.0
  %4677 = vmatprep.subr.mxu0 0.0
  %4678 = vmatpush1.msra.mxu0 0.0
  %4679 = vmatprep.subr.mxu0 0.0
  %4680 = vmatpush1.msra.mxu0 0.0
  %4681 = vmatprep.subr.mxu0 0.0
  %4682 = vmatpush1.msra.mxu0 0.0
  %4683 = vmatprep.subr.mxu0 0.0
  %4684 = vmatpush1.msra.mxu0 0.0
  %4685 = vmatprep.subr.mxu0 0.0
  %4686 = vmatpush1.msra.mxu0 0.0
  %4687 = vmatprep.subr.mxu0 %v4513
  %4688 = vmatpush1.msra.mxu0 %v4511
  %4689 = vmatprep.subr.mxu0 0.0
  %4690 = vmatpush2.msra.mxu0 0.0
  %4691 = vmatprep.subr.mxu0 0.0
  %4692 = vmatpush2.msra.mxu0 0.0
  %4693 = vmatprep.subr.mxu0 0.0
  %4694 = vmatpush2.msra.mxu0 0.0
  %4695 = vmatprep.subr.mxu0 0.0
  %4696 = vmatpush2.msra.mxu0 0.0
  %4697 = vmatprep.subr.mxu0 0.0
  %4698 = vmatpush2.msra.mxu0 0.0
  %4699 = vmatprep.subr.mxu0 0.0
  %4700 = vmatpush2.msra.mxu0 0.0
  %4701 = vmatprep.subr.mxu0 0.0
  %4702 = vmatpush2.msra.mxu0 0.0
  %4703 = vmatprep.subr.mxu0 0.0
  %4704 = vmatpush2.msra.mxu0 0.0
  %4705 = vmatprep.subr.mxu0 0.0
  %4706 = vmatpush2.msra.mxu0 0.0
  %4707 = vmatprep.subr.mxu0 0.0
  %4708 = vmatpush2.msra.mxu0 0.0
  %4709 = vmatprep.subr.mxu0 0.0
  %4710 = vmatpush2.msra.mxu0 0.0
  %4711 = vmatprep.subr.mxu0 0.0
  %4712 = vmatpush2.msra.mxu0 0.0
  %4713 = vmatprep.subr.mxu0 0.0
  %4714 = vmatpush2.msra.mxu0 0.0
  %4715 = vmatprep.subr.mxu0 0.0
  %4716 = vmatpush2.msra.mxu0 0.0
  %4717 = vmatprep.subr.mxu0 0.0
  %4718 = vmatpush2.msra.mxu0 0.0
  %4719 = vmatprep.subr.mxu0 0.0
  %4720 = vmatpush2.msra.mxu0 0.0
  %4721 = vmatprep.mubr.f32.mxu0 0.0
  %4722 = vmatmul.mubr.f32.gmra.mxu0 %v4501
  %v4723 = vpop.f32.mrf.mxu0
  %v4724 = vadd.f32 0.0, %v4723
  %v4725 = vpop.f32.mrf.mxu0
  %v4726 = vadd.f32 0.0, %v4725
  %4727 = vdwg.mxu0
  %v4728 = vadd.f32 %v4465, %v4582
  %v4729 = vadd.f32 %v4466, %v4584
  %v4730 = vadd.f32 %v4467, %v4653
  %v4731 = vadd.f32 %v4468, %v4655
  %v4732 = vadd.f32 %v4469, %v4724
  %v4733 = vadd.f32 %v4470, %v4726
  %s4734 = scalar_lea.vmem %s1, 72
  %v4735 = vld [vmem:[%s4734] sm:$0x7]
  %v4736 = vld [vmem:[%s0] sm:$0xff]
  %v4737 = vld [vmem:[%s0 + $0x8] sm:$0xff]
  %v4738 = vld [vmem:[%s0 + $0x10] sm:$0xff]
  %v4742 = vcombine.high %v4736, %v4736
  %v4743 = vcombine.high %v4737, %v4737
  %v4744 = vcombine.high %v4738, %v4738
  %4745 = vrot.lane.b32.xlu0 %v4736, 71
  %v4746 = vpop.permute.xlu0 %4745
  %4747 = vrot.lane.b32.xlu0 %v4742, 71
  %v4748 = vpop.permute.xlu0 %4747
  %4749 = vrot.lane.b32.xlu0 %v4737, 71
  %v4750 = vpop.permute.xlu0 %4749
  %4751 = vrot.lane.b32.xlu0 %v4743, 71
  %v4752 = vpop.permute.xlu0 %4751
  %4753 = vrot.lane.b32.xlu0 %v4738, 71
  %v4754 = vpop.permute.xlu0 %4753
  %4755 = vrot.lane.b32.xlu0 %v4744, 71
  %v4756 = vpop.permute.xlu0 %4755
  %vm4757 = vcmask 580608
  %v4758 = vsel %vm4757, %v4746, %v4748
  %v4759 = vsel %vm4757, %v4748, %v4750
  %v4760 = vsel %vm4757, %v4750, %v4752
  %v4761 = vsel %vm4757, %v4752, %v4754
  %v4762 = vsel %vm4757, %v4754, %v4756
  %v4764 = vsel %vm68, %v4735, 0
  %v4766 = vsel %vm72, %v4758, 0
  %v4768 = vsel %vm72, %v4759, 0
  %v4770 = vsel %vm72, %v4760, 0
  %v4772 = vsel %vm72, %v4761, 0
  %v4774 = vsel %vm72, %v4762, 0
  %v4776 = vsel %vm72, %v4756, 0
  %4778 = vmatprep.subr.mxu0 0.0
  %4779 = vmatpush1.msra.mxu0 0.0
  %4780 = vmatprep.subr.mxu0 0.0
  %4781 = vmatpush1.msra.mxu0 0.0
  %4782 = vmatprep.subr.mxu0 0.0
  %4783 = vmatpush1.msra.mxu0 0.0
  %4784 = vmatprep.subr.mxu0 0.0
  %4785 = vmatpush1.msra.mxu0 0.0
  %4786 = vmatprep.subr.mxu0 0.0
  %4787 = vmatpush1.msra.mxu0 0.0
  %4788 = vmatprep.subr.mxu0 0.0
  %4789 = vmatpush1.msra.mxu0 0.0
  %4790 = vmatprep.subr.mxu0 0.0
  %4791 = vmatpush1.msra.mxu0 0.0
  %4792 = vmatprep.subr.mxu0 0.0
  %4793 = vmatpush1.msra.mxu0 0.0
  %4794 = vmatprep.subr.mxu0 0.0
  %4795 = vmatpush1.msra.mxu0 0.0
  %4796 = vmatprep.subr.mxu0 0.0
  %4797 = vmatpush1.msra.mxu0 0.0
  %4798 = vmatprep.subr.mxu0 0.0
  %4799 = vmatpush1.msra.mxu0 0.0
  %4800 = vmatprep.subr.mxu0 0.0
  %4801 = vmatpush1.msra.mxu0 0.0
  %4802 = vmatprep.subr.mxu0 0.0
  %4803 = vmatpush1.msra.mxu0 0.0
  %4804 = vmatprep.subr.mxu0 0.0
  %4805 = vmatpush1.msra.mxu0 0.0
  %4806 = vmatprep.subr.mxu0 0.0
  %4807 = vmatpush1.msra.mxu0 0.0
  %4808 = vmatprep.subr.mxu0 %v4768
  %4809 = vmatpush1.msra.mxu0 %v4766
  %4810 = vmatprep.subr.mxu0 0.0
  %4811 = vmatpush2.msra.mxu0 0.0
  %4812 = vmatprep.subr.mxu0 0.0
  %4813 = vmatpush2.msra.mxu0 0.0
  %4814 = vmatprep.subr.mxu0 0.0
  %4815 = vmatpush2.msra.mxu0 0.0
  %4816 = vmatprep.subr.mxu0 0.0
  %4817 = vmatpush2.msra.mxu0 0.0
  %4818 = vmatprep.subr.mxu0 0.0
  %4819 = vmatpush2.msra.mxu0 0.0
  %4820 = vmatprep.subr.mxu0 0.0
  %4821 = vmatpush2.msra.mxu0 0.0
  %4822 = vmatprep.subr.mxu0 0.0
  %4823 = vmatpush2.msra.mxu0 0.0
  %4824 = vmatprep.subr.mxu0 0.0
  %4825 = vmatpush2.msra.mxu0 0.0
  %4826 = vmatprep.subr.mxu0 0.0
  %4827 = vmatpush2.msra.mxu0 0.0
  %4828 = vmatprep.subr.mxu0 0.0
  %4829 = vmatpush2.msra.mxu0 0.0
  %4830 = vmatprep.subr.mxu0 0.0
  %4831 = vmatpush2.msra.mxu0 0.0
  %4832 = vmatprep.subr.mxu0 0.0
  %4833 = vmatpush2.msra.mxu0 0.0
  %4834 = vmatprep.subr.mxu0 0.0
  %4835 = vmatpush2.msra.mxu0 0.0
  %4836 = vmatprep.subr.mxu0 0.0
  %4837 = vmatpush2.msra.mxu0 0.0
  %4838 = vmatprep.subr.mxu0 0.0
  %4839 = vmatpush2.msra.mxu0 0.0
  %4840 = vmatprep.subr.mxu0 0.0
  %4841 = vmatpush2.msra.mxu0 0.0
  %4842 = vmatprep.mubr.f32.mxu0 0.0
  %4843 = vmatmul.mubr.f32.gmra.mxu0 %v4764
  %v4844 = vpop.f32.mrf.mxu0
  %v4845 = vadd.f32 0.0, %v4844
  %v4846 = vpop.f32.mrf.mxu0
  %v4847 = vadd.f32 0.0, %v4846
  %4848 = vdwg.mxu0
  %4849 = vmatprep.subr.mxu0 0.0
  %4850 = vmatpush1.msra.mxu0 0.0
  %4851 = vmatprep.subr.mxu0 0.0
  %4852 = vmatpush1.msra.mxu0 0.0
  %4853 = vmatprep.subr.mxu0 0.0
  %4854 = vmatpush1.msra.mxu0 0.0
  %4855 = vmatprep.subr.mxu0 0.0
  %4856 = vmatpush1.msra.mxu0 0.0
  %4857 = vmatprep.subr.mxu0 0.0
  %4858 = vmatpush1.msra.mxu0 0.0
  %4859 = vmatprep.subr.mxu0 0.0
  %4860 = vmatpush1.msra.mxu0 0.0
  %4861 = vmatprep.subr.mxu0 0.0
  %4862 = vmatpush1.msra.mxu0 0.0
  %4863 = vmatprep.subr.mxu0 0.0
  %4864 = vmatpush1.msra.mxu0 0.0
  %4865 = vmatprep.subr.mxu0 0.0
  %4866 = vmatpush1.msra.mxu0 0.0
  %4867 = vmatprep.subr.mxu0 0.0
  %4868 = vmatpush1.msra.mxu0 0.0
  %4869 = vmatprep.subr.mxu0 0.0
  %4870 = vmatpush1.msra.mxu0 0.0
  %4871 = vmatprep.subr.mxu0 0.0
  %4872 = vmatpush1.msra.mxu0 0.0
  %4873 = vmatprep.subr.mxu0 0.0
  %4874 = vmatpush1.msra.mxu0 0.0
  %4875 = vmatprep.subr.mxu0 0.0
  %4876 = vmatpush1.msra.mxu0 0.0
  %4877 = vmatprep.subr.mxu0 0.0
  %4878 = vmatpush1.msra.mxu0 0.0
  %4879 = vmatprep.subr.mxu0 %v4772
  %4880 = vmatpush1.msra.mxu0 %v4770
  %4881 = vmatprep.subr.mxu0 0.0
  %4882 = vmatpush2.msra.mxu0 0.0
  %4883 = vmatprep.subr.mxu0 0.0
  %4884 = vmatpush2.msra.mxu0 0.0
  %4885 = vmatprep.subr.mxu0 0.0
  %4886 = vmatpush2.msra.mxu0 0.0
  %4887 = vmatprep.subr.mxu0 0.0
  %4888 = vmatpush2.msra.mxu0 0.0
  %4889 = vmatprep.subr.mxu0 0.0
  %4890 = vmatpush2.msra.mxu0 0.0
  %4891 = vmatprep.subr.mxu0 0.0
  %4892 = vmatpush2.msra.mxu0 0.0
  %4893 = vmatprep.subr.mxu0 0.0
  %4894 = vmatpush2.msra.mxu0 0.0
  %4895 = vmatprep.subr.mxu0 0.0
  %4896 = vmatpush2.msra.mxu0 0.0
  %4897 = vmatprep.subr.mxu0 0.0
  %4898 = vmatpush2.msra.mxu0 0.0
  %4899 = vmatprep.subr.mxu0 0.0
  %4900 = vmatpush2.msra.mxu0 0.0
  %4901 = vmatprep.subr.mxu0 0.0
  %4902 = vmatpush2.msra.mxu0 0.0
  %4903 = vmatprep.subr.mxu0 0.0
  %4904 = vmatpush2.msra.mxu0 0.0
  %4905 = vmatprep.subr.mxu0 0.0
  %4906 = vmatpush2.msra.mxu0 0.0
  %4907 = vmatprep.subr.mxu0 0.0
  %4908 = vmatpush2.msra.mxu0 0.0
  %4909 = vmatprep.subr.mxu0 0.0
  %4910 = vmatpush2.msra.mxu0 0.0
  %4911 = vmatprep.subr.mxu0 0.0
  %4912 = vmatpush2.msra.mxu0 0.0
  %4913 = vmatprep.mubr.f32.mxu0 0.0
  %4914 = vmatmul.mubr.f32.gmra.mxu0 %v4764
  %v4915 = vpop.f32.mrf.mxu0
  %v4916 = vadd.f32 0.0, %v4915
  %v4917 = vpop.f32.mrf.mxu0
  %v4918 = vadd.f32 0.0, %v4917
  %4919 = vdwg.mxu0
  %4920 = vmatprep.subr.mxu0 0.0
  %4921 = vmatpush1.msra.mxu0 0.0
  %4922 = vmatprep.subr.mxu0 0.0
  %4923 = vmatpush1.msra.mxu0 0.0
  %4924 = vmatprep.subr.mxu0 0.0
  %4925 = vmatpush1.msra.mxu0 0.0
  %4926 = vmatprep.subr.mxu0 0.0
  %4927 = vmatpush1.msra.mxu0 0.0
  %4928 = vmatprep.subr.mxu0 0.0
  %4929 = vmatpush1.msra.mxu0 0.0
  %4930 = vmatprep.subr.mxu0 0.0
  %4931 = vmatpush1.msra.mxu0 0.0
  %4932 = vmatprep.subr.mxu0 0.0
  %4933 = vmatpush1.msra.mxu0 0.0
  %4934 = vmatprep.subr.mxu0 0.0
  %4935 = vmatpush1.msra.mxu0 0.0
  %4936 = vmatprep.subr.mxu0 0.0
  %4937 = vmatpush1.msra.mxu0 0.0
  %4938 = vmatprep.subr.mxu0 0.0
  %4939 = vmatpush1.msra.mxu0 0.0
  %4940 = vmatprep.subr.mxu0 0.0
  %4941 = vmatpush1.msra.mxu0 0.0
  %4942 = vmatprep.subr.mxu0 0.0
  %4943 = vmatpush1.msra.mxu0 0.0
  %4944 = vmatprep.subr.mxu0 0.0
  %4945 = vmatpush1.msra.mxu0 0.0
  %4946 = vmatprep.subr.mxu0 0.0
  %4947 = vmatpush1.msra.mxu0 0.0
  %4948 = vmatprep.subr.mxu0 0.0
  %4949 = vmatpush1.msra.mxu0 0.0
  %4950 = vmatprep.subr.mxu0 %v4776
  %4951 = vmatpush1.msra.mxu0 %v4774
  %4952 = vmatprep.subr.mxu0 0.0
  %4953 = vmatpush2.msra.mxu0 0.0
  %4954 = vmatprep.subr.mxu0 0.0
  %4955 = vmatpush2.msra.mxu0 0.0
  %4956 = vmatprep.subr.mxu0 0.0
  %4957 = vmatpush2.msra.mxu0 0.0
  %4958 = vmatprep.subr.mxu0 0.0
  %4959 = vmatpush2.msra.mxu0 0.0
  %4960 = vmatprep.subr.mxu0 0.0
  %4961 = vmatpush2.msra.mxu0 0.0
  %4962 = vmatprep.subr.mxu0 0.0
  %4963 = vmatpush2.msra.mxu0 0.0
  %4964 = vmatprep.subr.mxu0 0.0
  %4965 = vmatpush2.msra.mxu0 0.0
  %4966 = vmatprep.subr.mxu0 0.0
  %4967 = vmatpush2.msra.mxu0 0.0
  %4968 = vmatprep.subr.mxu0 0.0
  %4969 = vmatpush2.msra.mxu0 0.0
  %4970 = vmatprep.subr.mxu0 0.0
  %4971 = vmatpush2.msra.mxu0 0.0
  %4972 = vmatprep.subr.mxu0 0.0
  %4973 = vmatpush2.msra.mxu0 0.0
  %4974 = vmatprep.subr.mxu0 0.0
  %4975 = vmatpush2.msra.mxu0 0.0
  %4976 = vmatprep.subr.mxu0 0.0
  %4977 = vmatpush2.msra.mxu0 0.0
  %4978 = vmatprep.subr.mxu0 0.0
  %4979 = vmatpush2.msra.mxu0 0.0
  %4980 = vmatprep.subr.mxu0 0.0
  %4981 = vmatpush2.msra.mxu0 0.0
  %4982 = vmatprep.subr.mxu0 0.0
  %4983 = vmatpush2.msra.mxu0 0.0
  %4984 = vmatprep.mubr.f32.mxu0 0.0
  %4985 = vmatmul.mubr.f32.gmra.mxu0 %v4764
  %v4986 = vpop.f32.mrf.mxu0
  %v4987 = vadd.f32 0.0, %v4986
  %v4988 = vpop.f32.mrf.mxu0
  %v4989 = vadd.f32 0.0, %v4988
  %4990 = vdwg.mxu0
  %v4991 = vadd.f32 %v4728, %v4845
  %v4992 = vadd.f32 %v4729, %v4847
  %v4993 = vadd.f32 %v4730, %v4916
  %v4994 = vadd.f32 %v4731, %v4918
  %v4995 = vadd.f32 %v4732, %v4987
  %v4996 = vadd.f32 %v4733, %v4989
  %s4997 = scalar_lea.vmem %s1, 76
  %v4998 = vld [vmem:[%s4997] sm:$0x7]
  %v4999 = vld [vmem:[%s0] sm:$0xff]
  %v5000 = vld [vmem:[%s0 + $0x8] sm:$0xff]
  %v5001 = vld [vmem:[%s0 + $0x10] sm:$0xff]
  %v5005 = vcombine.high %v4999, %v4999
  %v5006 = vcombine.high %v5000, %v5000
  %v5007 = vcombine.high %v5001, %v5001
  %5008 = vrot.lane.b32.xlu0 %v4999, 70
  %v5009 = vpop.permute.xlu0 %5008
  %5010 = vrot.lane.b32.xlu0 %v5005, 70
  %v5011 = vpop.permute.xlu0 %5010
  %5012 = vrot.lane.b32.xlu0 %v5000, 70
  %v5013 = vpop.permute.xlu0 %5012
  %5014 = vrot.lane.b32.xlu0 %v5006, 70
  %v5015 = vpop.permute.xlu0 %5014
  %5016 = vrot.lane.b32.xlu0 %v5001, 70
  %v5017 = vpop.permute.xlu0 %5016
  %5018 = vrot.lane.b32.xlu0 %v5007, 70
  %v5019 = vpop.permute.xlu0 %5018
  %vm5020 = vcmask 572416
  %v5021 = vsel %vm5020, %v5009, %v5011
  %v5022 = vsel %vm5020, %v5011, %v5013
  %v5023 = vsel %vm5020, %v5013, %v5015
  %v5024 = vsel %vm5020, %v5015, %v5017
  %v5025 = vsel %vm5020, %v5017, %v5019
  %v5027 = vsel %vm68, %v4998, 0
  %v5029 = vsel %vm72, %v5021, 0
  %v5031 = vsel %vm72, %v5022, 0
  %v5033 = vsel %vm72, %v5023, 0
  %v5035 = vsel %vm72, %v5024, 0
  %v5037 = vsel %vm72, %v5025, 0
  %v5039 = vsel %vm72, %v5019, 0
  %5041 = vmatprep.subr.mxu0 0.0
  %5042 = vmatpush1.msra.mxu0 0.0
  %5043 = vmatprep.subr.mxu0 0.0
  %5044 = vmatpush1.msra.mxu0 0.0
  %5045 = vmatprep.subr.mxu0 0.0
  %5046 = vmatpush1.msra.mxu0 0.0
  %5047 = vmatprep.subr.mxu0 0.0
  %5048 = vmatpush1.msra.mxu0 0.0
  %5049 = vmatprep.subr.mxu0 0.0
  %5050 = vmatpush1.msra.mxu0 0.0
  %5051 = vmatprep.subr.mxu0 0.0
  %5052 = vmatpush1.msra.mxu0 0.0
  %5053 = vmatprep.subr.mxu0 0.0
  %5054 = vmatpush1.msra.mxu0 0.0
  %5055 = vmatprep.subr.mxu0 0.0
  %5056 = vmatpush1.msra.mxu0 0.0
  %5057 = vmatprep.subr.mxu0 0.0
  %5058 = vmatpush1.msra.mxu0 0.0
  %5059 = vmatprep.subr.mxu0 0.0
  %5060 = vmatpush1.msra.mxu0 0.0
  %5061 = vmatprep.subr.mxu0 0.0
  %5062 = vmatpush1.msra.mxu0 0.0
  %5063 = vmatprep.subr.mxu0 0.0
  %5064 = vmatpush1.msra.mxu0 0.0
  %5065 = vmatprep.subr.mxu0 0.0
  %5066 = vmatpush1.msra.mxu0 0.0
  %5067 = vmatprep.subr.mxu0 0.0
  %5068 = vmatpush1.msra.mxu0 0.0
  %5069 = vmatprep.subr.mxu0 0.0
  %5070 = vmatpush1.msra.mxu0 0.0
  %5071 = vmatprep.subr.mxu0 %v5031
  %5072 = vmatpush1.msra.mxu0 %v5029
  %5073 = vmatprep.subr.mxu0 0.0
  %5074 = vmatpush2.msra.mxu0 0.0
  %5075 = vmatprep.subr.mxu0 0.0
  %5076 = vmatpush2.msra.mxu0 0.0
  %5077 = vmatprep.subr.mxu0 0.0
  %5078 = vmatpush2.msra.mxu0 0.0
  %5079 = vmatprep.subr.mxu0 0.0
  %5080 = vmatpush2.msra.mxu0 0.0
  %5081 = vmatprep.subr.mxu0 0.0
  %5082 = vmatpush2.msra.mxu0 0.0
  %5083 = vmatprep.subr.mxu0 0.0
  %5084 = vmatpush2.msra.mxu0 0.0
  %5085 = vmatprep.subr.mxu0 0.0
  %5086 = vmatpush2.msra.mxu0 0.0
  %5087 = vmatprep.subr.mxu0 0.0
  %5088 = vmatpush2.msra.mxu0 0.0
  %5089 = vmatprep.subr.mxu0 0.0
  %5090 = vmatpush2.msra.mxu0 0.0
  %5091 = vmatprep.subr.mxu0 0.0
  %5092 = vmatpush2.msra.mxu0 0.0
  %5093 = vmatprep.subr.mxu0 0.0
  %5094 = vmatpush2.msra.mxu0 0.0
  %5095 = vmatprep.subr.mxu0 0.0
  %5096 = vmatpush2.msra.mxu0 0.0
  %5097 = vmatprep.subr.mxu0 0.0
  %5098 = vmatpush2.msra.mxu0 0.0
  %5099 = vmatprep.subr.mxu0 0.0
  %5100 = vmatpush2.msra.mxu0 0.0
  %5101 = vmatprep.subr.mxu0 0.0
  %5102 = vmatpush2.msra.mxu0 0.0
  %5103 = vmatprep.subr.mxu0 0.0
  %5104 = vmatpush2.msra.mxu0 0.0
  %5105 = vmatprep.mubr.f32.mxu0 0.0
  %5106 = vmatmul.mubr.f32.gmra.mxu0 %v5027
  %v5107 = vpop.f32.mrf.mxu0
  %v5108 = vadd.f32 0.0, %v5107
  %v5109 = vpop.f32.mrf.mxu0
  %v5110 = vadd.f32 0.0, %v5109
  %5111 = vdwg.mxu0
  %5112 = vmatprep.subr.mxu0 0.0
  %5113 = vmatpush1.msra.mxu0 0.0
  %5114 = vmatprep.subr.mxu0 0.0
  %5115 = vmatpush1.msra.mxu0 0.0
  %5116 = vmatprep.subr.mxu0 0.0
  %5117 = vmatpush1.msra.mxu0 0.0
  %5118 = vmatprep.subr.mxu0 0.0
  %5119 = vmatpush1.msra.mxu0 0.0
  %5120 = vmatprep.subr.mxu0 0.0
  %5121 = vmatpush1.msra.mxu0 0.0
  %5122 = vmatprep.subr.mxu0 0.0
  %5123 = vmatpush1.msra.mxu0 0.0
  %5124 = vmatprep.subr.mxu0 0.0
  %5125 = vmatpush1.msra.mxu0 0.0
  %5126 = vmatprep.subr.mxu0 0.0
  %5127 = vmatpush1.msra.mxu0 0.0
  %5128 = vmatprep.subr.mxu0 0.0
  %5129 = vmatpush1.msra.mxu0 0.0
  %5130 = vmatprep.subr.mxu0 0.0
  %5131 = vmatpush1.msra.mxu0 0.0
  %5132 = vmatprep.subr.mxu0 0.0
  %5133 = vmatpush1.msra.mxu0 0.0
  %5134 = vmatprep.subr.mxu0 0.0
  %5135 = vmatpush1.msra.mxu0 0.0
  %5136 = vmatprep.subr.mxu0 0.0
  %5137 = vmatpush1.msra.mxu0 0.0
  %5138 = vmatprep.subr.mxu0 0.0
  %5139 = vmatpush1.msra.mxu0 0.0
  %5140 = vmatprep.subr.mxu0 0.0
  %5141 = vmatpush1.msra.mxu0 0.0
  %5142 = vmatprep.subr.mxu0 %v5035
  %5143 = vmatpush1.msra.mxu0 %v5033
  %5144 = vmatprep.subr.mxu0 0.0
  %5145 = vmatpush2.msra.mxu0 0.0
  %5146 = vmatprep.subr.mxu0 0.0
  %5147 = vmatpush2.msra.mxu0 0.0
  %5148 = vmatprep.subr.mxu0 0.0
  %5149 = vmatpush2.msra.mxu0 0.0
  %5150 = vmatprep.subr.mxu0 0.0
  %5151 = vmatpush2.msra.mxu0 0.0
  %5152 = vmatprep.subr.mxu0 0.0
  %5153 = vmatpush2.msra.mxu0 0.0
  %5154 = vmatprep.subr.mxu0 0.0
  %5155 = vmatpush2.msra.mxu0 0.0
  %5156 = vmatprep.subr.mxu0 0.0
  %5157 = vmatpush2.msra.mxu0 0.0
  %5158 = vmatprep.subr.mxu0 0.0
  %5159 = vmatpush2.msra.mxu0 0.0
  %5160 = vmatprep.subr.mxu0 0.0
  %5161 = vmatpush2.msra.mxu0 0.0
  %5162 = vmatprep.subr.mxu0 0.0
  %5163 = vmatpush2.msra.mxu0 0.0
  %5164 = vmatprep.subr.mxu0 0.0
  %5165 = vmatpush2.msra.mxu0 0.0
  %5166 = vmatprep.subr.mxu0 0.0
  %5167 = vmatpush2.msra.mxu0 0.0
  %5168 = vmatprep.subr.mxu0 0.0
  %5169 = vmatpush2.msra.mxu0 0.0
  %5170 = vmatprep.subr.mxu0 0.0
  %5171 = vmatpush2.msra.mxu0 0.0
  %5172 = vmatprep.subr.mxu0 0.0
  %5173 = vmatpush2.msra.mxu0 0.0
  %5174 = vmatprep.subr.mxu0 0.0
  %5175 = vmatpush2.msra.mxu0 0.0
  %5176 = vmatprep.mubr.f32.mxu0 0.0
  %5177 = vmatmul.mubr.f32.gmra.mxu0 %v5027
  %v5178 = vpop.f32.mrf.mxu0
  %v5179 = vadd.f32 0.0, %v5178
  %v5180 = vpop.f32.mrf.mxu0
  %v5181 = vadd.f32 0.0, %v5180
  %5182 = vdwg.mxu0
  %5183 = vmatprep.subr.mxu0 0.0
  %5184 = vmatpush1.msra.mxu0 0.0
  %5185 = vmatprep.subr.mxu0 0.0
  %5186 = vmatpush1.msra.mxu0 0.0
  %5187 = vmatprep.subr.mxu0 0.0
  %5188 = vmatpush1.msra.mxu0 0.0
  %5189 = vmatprep.subr.mxu0 0.0
  %5190 = vmatpush1.msra.mxu0 0.0
  %5191 = vmatprep.subr.mxu0 0.0
  %5192 = vmatpush1.msra.mxu0 0.0
  %5193 = vmatprep.subr.mxu0 0.0
  %5194 = vmatpush1.msra.mxu0 0.0
  %5195 = vmatprep.subr.mxu0 0.0
  %5196 = vmatpush1.msra.mxu0 0.0
  %5197 = vmatprep.subr.mxu0 0.0
  %5198 = vmatpush1.msra.mxu0 0.0
  %5199 = vmatprep.subr.mxu0 0.0
  %5200 = vmatpush1.msra.mxu0 0.0
  %5201 = vmatprep.subr.mxu0 0.0
  %5202 = vmatpush1.msra.mxu0 0.0
  %5203 = vmatprep.subr.mxu0 0.0
  %5204 = vmatpush1.msra.mxu0 0.0
  %5205 = vmatprep.subr.mxu0 0.0
  %5206 = vmatpush1.msra.mxu0 0.0
  %5207 = vmatprep.subr.mxu0 0.0
  %5208 = vmatpush1.msra.mxu0 0.0
  %5209 = vmatprep.subr.mxu0 0.0
  %5210 = vmatpush1.msra.mxu0 0.0
  %5211 = vmatprep.subr.mxu0 0.0
  %5212 = vmatpush1.msra.mxu0 0.0
  %5213 = vmatprep.subr.mxu0 %v5039
  %5214 = vmatpush1.msra.mxu0 %v5037
  %5215 = vmatprep.subr.mxu0 0.0
  %5216 = vmatpush2.msra.mxu0 0.0
  %5217 = vmatprep.subr.mxu0 0.0
  %5218 = vmatpush2.msra.mxu0 0.0
  %5219 = vmatprep.subr.mxu0 0.0
  %5220 = vmatpush2.msra.mxu0 0.0
  %5221 = vmatprep.subr.mxu0 0.0
  %5222 = vmatpush2.msra.mxu0 0.0
  %5223 = vmatprep.subr.mxu0 0.0
  %5224 = vmatpush2.msra.mxu0 0.0
  %5225 = vmatprep.subr.mxu0 0.0
  %5226 = vmatpush2.msra.mxu0 0.0
  %5227 = vmatprep.subr.mxu0 0.0
  %5228 = vmatpush2.msra.mxu0 0.0
  %5229 = vmatprep.subr.mxu0 0.0
  %5230 = vmatpush2.msra.mxu0 0.0
  %5231 = vmatprep.subr.mxu0 0.0
  %5232 = vmatpush2.msra.mxu0 0.0
  %5233 = vmatprep.subr.mxu0 0.0
  %5234 = vmatpush2.msra.mxu0 0.0
  %5235 = vmatprep.subr.mxu0 0.0
  %5236 = vmatpush2.msra.mxu0 0.0
  %5237 = vmatprep.subr.mxu0 0.0
  %5238 = vmatpush2.msra.mxu0 0.0
  %5239 = vmatprep.subr.mxu0 0.0
  %5240 = vmatpush2.msra.mxu0 0.0
  %5241 = vmatprep.subr.mxu0 0.0
  %5242 = vmatpush2.msra.mxu0 0.0
  %5243 = vmatprep.subr.mxu0 0.0
  %5244 = vmatpush2.msra.mxu0 0.0
  %5245 = vmatprep.subr.mxu0 0.0
  %5246 = vmatpush2.msra.mxu0 0.0
  %5247 = vmatprep.mubr.f32.mxu0 0.0
  %5248 = vmatmul.mubr.f32.gmra.mxu0 %v5027
  %v5249 = vpop.f32.mrf.mxu0
  %v5250 = vadd.f32 0.0, %v5249
  %v5251 = vpop.f32.mrf.mxu0
  %v5252 = vadd.f32 0.0, %v5251
  %5253 = vdwg.mxu0
  %v5254 = vadd.f32 %v4991, %v5108
  %v5255 = vadd.f32 %v4992, %v5110
  %v5256 = vadd.f32 %v4993, %v5179
  %v5257 = vadd.f32 %v4994, %v5181
  %v5258 = vadd.f32 %v4995, %v5250
  %v5259 = vadd.f32 %v4996, %v5252
  %s5260 = scalar_lea.vmem %s1, 80
  %v5261 = vld [vmem:[%s5260] sm:$0x7]
  %v5262 = vld [vmem:[%s0] sm:$0xff]
  %v5263 = vld [vmem:[%s0 + $0x8] sm:$0xff]
  %v5264 = vld [vmem:[%s0 + $0x10] sm:$0xff]
  %v5268 = vcombine.high %v5262, %v5262
  %v5269 = vcombine.high %v5263, %v5263
  %v5270 = vcombine.high %v5264, %v5264
  %5271 = vrot.lane.b32.xlu0 %v5262, 56
  %v5272 = vpop.permute.xlu0 %5271
  %5273 = vrot.lane.b32.xlu0 %v5268, 56
  %v5274 = vpop.permute.xlu0 %5273
  %5275 = vrot.lane.b32.xlu0 %v5263, 56
  %v5276 = vpop.permute.xlu0 %5275
  %5277 = vrot.lane.b32.xlu0 %v5269, 56
  %v5278 = vpop.permute.xlu0 %5277
  %5279 = vrot.lane.b32.xlu0 %v5264, 56
  %v5280 = vpop.permute.xlu0 %5279
  %5281 = vrot.lane.b32.xlu0 %v5270, 56
  %v5282 = vpop.permute.xlu0 %5281
  %vm5283 = vcmask 457728
  %v5284 = vsel %vm5283, %v5272, %v5274
  %v5285 = vsel %vm5283, %v5274, %v5276
  %v5286 = vsel %vm5283, %v5276, %v5278
  %v5287 = vsel %vm5283, %v5278, %v5280
  %v5288 = vsel %vm5283, %v5280, %v5282
  %v5290 = vsel %vm68, %v5261, 0
  %v5292 = vsel %vm72, %v5284, 0
  %v5294 = vsel %vm72, %v5285, 0
  %v5296 = vsel %vm72, %v5286, 0
  %v5298 = vsel %vm72, %v5287, 0
  %v5300 = vsel %vm72, %v5288, 0
  %v5302 = vsel %vm72, %v5282, 0
  %5304 = vmatprep.subr.mxu0 0.0
  %5305 = vmatpush1.msra.mxu0 0.0
  %5306 = vmatprep.subr.mxu0 0.0
  %5307 = vmatpush1.msra.mxu0 0.0
  %5308 = vmatprep.subr.mxu0 0.0
  %5309 = vmatpush1.msra.mxu0 0.0
  %5310 = vmatprep.subr.mxu0 0.0
  %5311 = vmatpush1.msra.mxu0 0.0
  %5312 = vmatprep.subr.mxu0 0.0
  %5313 = vmatpush1.msra.mxu0 0.0
  %5314 = vmatprep.subr.mxu0 0.0
  %5315 = vmatpush1.msra.mxu0 0.0
  %5316 = vmatprep.subr.mxu0 0.0
  %5317 = vmatpush1.msra.mxu0 0.0
  %5318 = vmatprep.subr.mxu0 0.0
  %5319 = vmatpush1.msra.mxu0 0.0
  %5320 = vmatprep.subr.mxu0 0.0
  %5321 = vmatpush1.msra.mxu0 0.0
  %5322 = vmatprep.subr.mxu0 0.0
  %5323 = vmatpush1.msra.mxu0 0.0
  %5324 = vmatprep.subr.mxu0 0.0
  %5325 = vmatpush1.msra.mxu0 0.0
  %5326 = vmatprep.subr.mxu0 0.0
  %5327 = vmatpush1.msra.mxu0 0.0
  %5328 = vmatprep.subr.mxu0 0.0
  %5329 = vmatpush1.msra.mxu0 0.0
  %5330 = vmatprep.subr.mxu0 0.0
  %5331 = vmatpush1.msra.mxu0 0.0
  %5332 = vmatprep.subr.mxu0 0.0
  %5333 = vmatpush1.msra.mxu0 0.0
  %5334 = vmatprep.subr.mxu0 %v5294
  %5335 = vmatpush1.msra.mxu0 %v5292
  %5336 = vmatprep.subr.mxu0 0.0
  %5337 = vmatpush2.msra.mxu0 0.0
  %5338 = vmatprep.subr.mxu0 0.0
  %5339 = vmatpush2.msra.mxu0 0.0
  %5340 = vmatprep.subr.mxu0 0.0
  %5341 = vmatpush2.msra.mxu0 0.0
  %5342 = vmatprep.subr.mxu0 0.0
  %5343 = vmatpush2.msra.mxu0 0.0
  %5344 = vmatprep.subr.mxu0 0.0
  %5345 = vmatpush2.msra.mxu0 0.0
  %5346 = vmatprep.subr.mxu0 0.0
  %5347 = vmatpush2.msra.mxu0 0.0
  %5348 = vmatprep.subr.mxu0 0.0
  %5349 = vmatpush2.msra.mxu0 0.0
  %5350 = vmatprep.subr.mxu0 0.0
  %5351 = vmatpush2.msra.mxu0 0.0
  %5352 = vmatprep.subr.mxu0 0.0
  %5353 = vmatpush2.msra.mxu0 0.0
  %5354 = vmatprep.subr.mxu0 0.0
  %5355 = vmatpush2.msra.mxu0 0.0
  %5356 = vmatprep.subr.mxu0 0.0
  %5357 = vmatpush2.msra.mxu0 0.0
  %5358 = vmatprep.subr.mxu0 0.0
  %5359 = vmatpush2.msra.mxu0 0.0
  %5360 = vmatprep.subr.mxu0 0.0
  %5361 = vmatpush2.msra.mxu0 0.0
  %5362 = vmatprep.subr.mxu0 0.0
  %5363 = vmatpush2.msra.mxu0 0.0
  %5364 = vmatprep.subr.mxu0 0.0
  %5365 = vmatpush2.msra.mxu0 0.0
  %5366 = vmatprep.subr.mxu0 0.0
  %5367 = vmatpush2.msra.mxu0 0.0
  %5368 = vmatprep.mubr.f32.mxu0 0.0
  %5369 = vmatmul.mubr.f32.gmra.mxu0 %v5290
  %v5370 = vpop.f32.mrf.mxu0
  %v5371 = vadd.f32 0.0, %v5370
  %v5372 = vpop.f32.mrf.mxu0
  %v5373 = vadd.f32 0.0, %v5372
  %5374 = vdwg.mxu0
  %5375 = vmatprep.subr.mxu0 0.0
  %5376 = vmatpush1.msra.mxu0 0.0
  %5377 = vmatprep.subr.mxu0 0.0
  %5378 = vmatpush1.msra.mxu0 0.0
  %5379 = vmatprep.subr.mxu0 0.0
  %5380 = vmatpush1.msra.mxu0 0.0
  %5381 = vmatprep.subr.mxu0 0.0
  %5382 = vmatpush1.msra.mxu0 0.0
  %5383 = vmatprep.subr.mxu0 0.0
  %5384 = vmatpush1.msra.mxu0 0.0
  %5385 = vmatprep.subr.mxu0 0.0
  %5386 = vmatpush1.msra.mxu0 0.0
  %5387 = vmatprep.subr.mxu0 0.0
  %5388 = vmatpush1.msra.mxu0 0.0
  %5389 = vmatprep.subr.mxu0 0.0
  %5390 = vmatpush1.msra.mxu0 0.0
  %5391 = vmatprep.subr.mxu0 0.0
  %5392 = vmatpush1.msra.mxu0 0.0
  %5393 = vmatprep.subr.mxu0 0.0
  %5394 = vmatpush1.msra.mxu0 0.0
  %5395 = vmatprep.subr.mxu0 0.0
  %5396 = vmatpush1.msra.mxu0 0.0
  %5397 = vmatprep.subr.mxu0 0.0
  %5398 = vmatpush1.msra.mxu0 0.0
  %5399 = vmatprep.subr.mxu0 0.0
  %5400 = vmatpush1.msra.mxu0 0.0
  %5401 = vmatprep.subr.mxu0 0.0
  %5402 = vmatpush1.msra.mxu0 0.0
  %5403 = vmatprep.subr.mxu0 0.0
  %5404 = vmatpush1.msra.mxu0 0.0
  %5405 = vmatprep.subr.mxu0 %v5298
  %5406 = vmatpush1.msra.mxu0 %v5296
  %5407 = vmatprep.subr.mxu0 0.0
  %5408 = vmatpush2.msra.mxu0 0.0
  %5409 = vmatprep.subr.mxu0 0.0
  %5410 = vmatpush2.msra.mxu0 0.0
  %5411 = vmatprep.subr.mxu0 0.0
  %5412 = vmatpush2.msra.mxu0 0.0
  %5413 = vmatprep.subr.mxu0 0.0
  %5414 = vmatpush2.msra.mxu0 0.0
  %5415 = vmatprep.subr.mxu0 0.0
  %5416 = vmatpush2.msra.mxu0 0.0
  %5417 = vmatprep.subr.mxu0 0.0
  %5418 = vmatpush2.msra.mxu0 0.0
  %5419 = vmatprep.subr.mxu0 0.0
  %5420 = vmatpush2.msra.mxu0 0.0
  %5421 = vmatprep.subr.mxu0 0.0
  %5422 = vmatpush2.msra.mxu0 0.0
  %5423 = vmatprep.subr.mxu0 0.0
  %5424 = vmatpush2.msra.mxu0 0.0
  %5425 = vmatprep.subr.mxu0 0.0
  %5426 = vmatpush2.msra.mxu0 0.0
  %5427 = vmatprep.subr.mxu0 0.0
  %5428 = vmatpush2.msra.mxu0 0.0
  %5429 = vmatprep.subr.mxu0 0.0
  %5430 = vmatpush2.msra.mxu0 0.0
  %5431 = vmatprep.subr.mxu0 0.0
  %5432 = vmatpush2.msra.mxu0 0.0
  %5433 = vmatprep.subr.mxu0 0.0
  %5434 = vmatpush2.msra.mxu0 0.0
  %5435 = vmatprep.subr.mxu0 0.0
  %5436 = vmatpush2.msra.mxu0 0.0
  %5437 = vmatprep.subr.mxu0 0.0
  %5438 = vmatpush2.msra.mxu0 0.0
  %5439 = vmatprep.mubr.f32.mxu0 0.0
  %5440 = vmatmul.mubr.f32.gmra.mxu0 %v5290
  %v5441 = vpop.f32.mrf.mxu0
  %v5442 = vadd.f32 0.0, %v5441
  %v5443 = vpop.f32.mrf.mxu0
  %v5444 = vadd.f32 0.0, %v5443
  %5445 = vdwg.mxu0
  %5446 = vmatprep.subr.mxu0 0.0
  %5447 = vmatpush1.msra.mxu0 0.0
  %5448 = vmatprep.subr.mxu0 0.0
  %5449 = vmatpush1.msra.mxu0 0.0
  %5450 = vmatprep.subr.mxu0 0.0
  %5451 = vmatpush1.msra.mxu0 0.0
  %5452 = vmatprep.subr.mxu0 0.0
  %5453 = vmatpush1.msra.mxu0 0.0
  %5454 = vmatprep.subr.mxu0 0.0
  %5455 = vmatpush1.msra.mxu0 0.0
  %5456 = vmatprep.subr.mxu0 0.0
  %5457 = vmatpush1.msra.mxu0 0.0
  %5458 = vmatprep.subr.mxu0 0.0
  %5459 = vmatpush1.msra.mxu0 0.0
  %5460 = vmatprep.subr.mxu0 0.0
  %5461 = vmatpush1.msra.mxu0 0.0
  %5462 = vmatprep.subr.mxu0 0.0
  %5463 = vmatpush1.msra.mxu0 0.0
  %5464 = vmatprep.subr.mxu0 0.0
  %5465 = vmatpush1.msra.mxu0 0.0
  %5466 = vmatprep.subr.mxu0 0.0
  %5467 = vmatpush1.msra.mxu0 0.0
  %5468 = vmatprep.subr.mxu0 0.0
  %5469 = vmatpush1.msra.mxu0 0.0
  %5470 = vmatprep.subr.mxu0 0.0
  %5471 = vmatpush1.msra.mxu0 0.0
  %5472 = vmatprep.subr.mxu0 0.0
  %5473 = vmatpush1.msra.mxu0 0.0
  %5474 = vmatprep.subr.mxu0 0.0
  %5475 = vmatpush1.msra.mxu0 0.0
  %5476 = vmatprep.subr.mxu0 %v5302
  %5477 = vmatpush1.msra.mxu0 %v5300
  %5478 = vmatprep.subr.mxu0 0.0
  %5479 = vmatpush2.msra.mxu0 0.0
  %5480 = vmatprep.subr.mxu0 0.0
  %5481 = vmatpush2.msra.mxu0 0.0
  %5482 = vmatprep.subr.mxu0 0.0
  %5483 = vmatpush2.msra.mxu0 0.0
  %5484 = vmatprep.subr.mxu0 0.0
  %5485 = vmatpush2.msra.mxu0 0.0
  %5486 = vmatprep.subr.mxu0 0.0
  %5487 = vmatpush2.msra.mxu0 0.0
  %5488 = vmatprep.subr.mxu0 0.0
  %5489 = vmatpush2.msra.mxu0 0.0
  %5490 = vmatprep.subr.mxu0 0.0
  %5491 = vmatpush2.msra.mxu0 0.0
  %5492 = vmatprep.subr.mxu0 0.0
  %5493 = vmatpush2.msra.mxu0 0.0
  %5494 = vmatprep.subr.mxu0 0.0
  %5495 = vmatpush2.msra.mxu0 0.0
  %5496 = vmatprep.subr.mxu0 0.0
  %5497 = vmatpush2.msra.mxu0 0.0
  %5498 = vmatprep.subr.mxu0 0.0
  %5499 = vmatpush2.msra.mxu0 0.0
  %5500 = vmatprep.subr.mxu0 0.0
  %5501 = vmatpush2.msra.mxu0 0.0
  %5502 = vmatprep.subr.mxu0 0.0
  %5503 = vmatpush2.msra.mxu0 0.0
  %5504 = vmatprep.subr.mxu0 0.0
  %5505 = vmatpush2.msra.mxu0 0.0
  %5506 = vmatprep.subr.mxu0 0.0
  %5507 = vmatpush2.msra.mxu0 0.0
  %5508 = vmatprep.subr.mxu0 0.0
  %5509 = vmatpush2.msra.mxu0 0.0
  %5510 = vmatprep.mubr.f32.mxu0 0.0
  %5511 = vmatmul.mubr.f32.gmra.mxu0 %v5290
  %v5512 = vpop.f32.mrf.mxu0
  %v5513 = vadd.f32 0.0, %v5512
  %v5514 = vpop.f32.mrf.mxu0
  %v5515 = vadd.f32 0.0, %v5514
  %5516 = vdwg.mxu0
  %v5517 = vadd.f32 %v5254, %v5371
  %v5518 = vadd.f32 %v5255, %v5373
  %v5519 = vadd.f32 %v5256, %v5442
  %v5520 = vadd.f32 %v5257, %v5444
  %v5521 = vadd.f32 %v5258, %v5513
  %v5522 = vadd.f32 %v5259, %v5515
  %s5523 = scalar_lea.vmem %s1, 84
  %v5524 = vld [vmem:[%s5523] sm:$0x7]
  %v5525 = vld [vmem:[%s0] sm:$0xff]
  %v5526 = vld [vmem:[%s0 + $0x8] sm:$0xff]
  %v5527 = vld [vmem:[%s0 + $0x10] sm:$0xff]
  %v5531 = vcombine.high %v5525, %v5525
  %v5532 = vcombine.high %v5526, %v5526
  %v5533 = vcombine.high %v5527, %v5527
  %5534 = vrot.lane.b32.xlu0 %v5525, 55
  %v5535 = vpop.permute.xlu0 %5534
  %5536 = vrot.lane.b32.xlu0 %v5531, 55
  %v5537 = vpop.permute.xlu0 %5536
  %5538 = vrot.lane.b32.xlu0 %v5526, 55
  %v5539 = vpop.permute.xlu0 %5538
  %5540 = vrot.lane.b32.xlu0 %v5532, 55
  %v5541 = vpop.permute.xlu0 %5540
  %5542 = vrot.lane.b32.xlu0 %v5527, 55
  %v5543 = vpop.permute.xlu0 %5542
  %5544 = vrot.lane.b32.xlu0 %v5533, 55
  %v5545 = vpop.permute.xlu0 %5544
  %vm5546 = vcmask 449536
  %v5547 = vsel %vm5546, %v5535, %v5537
  %v5548 = vsel %vm5546, %v5537, %v5539
  %v5549 = vsel %vm5546, %v5539, %v5541
  %v5550 = vsel %vm5546, %v5541, %v5543
  %v5551 = vsel %vm5546, %v5543, %v5545
  %v5553 = vsel %vm68, %v5524, 0
  %v5555 = vsel %vm72, %v5547, 0
  %v5557 = vsel %vm72, %v5548, 0
  %v5559 = vsel %vm72, %v5549, 0
  %v5561 = vsel %vm72, %v5550, 0
  %v5563 = vsel %vm72, %v5551, 0
  %v5565 = vsel %vm72, %v5545, 0
  %5567 = vmatprep.subr.mxu0 0.0
  %5568 = vmatpush1.msra.mxu0 0.0
  %5569 = vmatprep.subr.mxu0 0.0
  %5570 = vmatpush1.msra.mxu0 0.0
  %5571 = vmatprep.subr.mxu0 0.0
  %5572 = vmatpush1.msra.mxu0 0.0
  %5573 = vmatprep.subr.mxu0 0.0
  %5574 = vmatpush1.msra.mxu0 0.0
  %5575 = vmatprep.subr.mxu0 0.0
  %5576 = vmatpush1.msra.mxu0 0.0
  %5577 = vmatprep.subr.mxu0 0.0
  %5578 = vmatpush1.msra.mxu0 0.0
  %5579 = vmatprep.subr.mxu0 0.0
  %5580 = vmatpush1.msra.mxu0 0.0
  %5581 = vmatprep.subr.mxu0 0.0
  %5582 = vmatpush1.msra.mxu0 0.0
  %5583 = vmatprep.subr.mxu0 0.0
  %5584 = vmatpush1.msra.mxu0 0.0
  %5585 = vmatprep.subr.mxu0 0.0
  %5586 = vmatpush1.msra.mxu0 0.0
  %5587 = vmatprep.subr.mxu0 0.0
  %5588 = vmatpush1.msra.mxu0 0.0
  %5589 = vmatprep.subr.mxu0 0.0
  %5590 = vmatpush1.msra.mxu0 0.0
  %5591 = vmatprep.subr.mxu0 0.0
  %5592 = vmatpush1.msra.mxu0 0.0
  %5593 = vmatprep.subr.mxu0 0.0
  %5594 = vmatpush1.msra.mxu0 0.0
  %5595 = vmatprep.subr.mxu0 0.0
  %5596 = vmatpush1.msra.mxu0 0.0
  %5597 = vmatprep.subr.mxu0 %v5557
  %5598 = vmatpush1.msra.mxu0 %v5555
  %5599 = vmatprep.subr.mxu0 0.0
  %5600 = vmatpush2.msra.mxu0 0.0
  %5601 = vmatprep.subr.mxu0 0.0
  %5602 = vmatpush2.msra.mxu0 0.0
  %5603 = vmatprep.subr.mxu0 0.0
  %5604 = vmatpush2.msra.mxu0 0.0
  %5605 = vmatprep.subr.mxu0 0.0
  %5606 = vmatpush2.msra.mxu0 0.0
  %5607 = vmatprep.subr.mxu0 0.0
  %5608 = vmatpush2.msra.mxu0 0.0
  %5609 = vmatprep.subr.mxu0 0.0
  %5610 = vmatpush2.msra.mxu0 0.0
  %5611 = vmatprep.subr.mxu0 0.0
  %5612 = vmatpush2.msra.mxu0 0.0
  %5613 = vmatprep.subr.mxu0 0.0
  %5614 = vmatpush2.msra.mxu0 0.0
  %5615 = vmatprep.subr.mxu0 0.0
  %5616 = vmatpush2.msra.mxu0 0.0
  %5617 = vmatprep.subr.mxu0 0.0
  %5618 = vmatpush2.msra.mxu0 0.0
  %5619 = vmatprep.subr.mxu0 0.0
  %5620 = vmatpush2.msra.mxu0 0.0
  %5621 = vmatprep.subr.mxu0 0.0
  %5622 = vmatpush2.msra.mxu0 0.0
  %5623 = vmatprep.subr.mxu0 0.0
  %5624 = vmatpush2.msra.mxu0 0.0
  %5625 = vmatprep.subr.mxu0 0.0
  %5626 = vmatpush2.msra.mxu0 0.0
  %5627 = vmatprep.subr.mxu0 0.0
  %5628 = vmatpush2.msra.mxu0 0.0
  %5629 = vmatprep.subr.mxu0 0.0
  %5630 = vmatpush2.msra.mxu0 0.0
  %5631 = vmatprep.mubr.f32.mxu0 0.0
  %5632 = vmatmul.mubr.f32.gmra.mxu0 %v5553
  %v5633 = vpop.f32.mrf.mxu0
  %v5634 = vadd.f32 0.0, %v5633
  %v5635 = vpop.f32.mrf.mxu0
  %v5636 = vadd.f32 0.0, %v5635
  %5637 = vdwg.mxu0
  %5638 = vmatprep.subr.mxu0 0.0
  %5639 = vmatpush1.msra.mxu0 0.0
  %5640 = vmatprep.subr.mxu0 0.0
  %5641 = vmatpush1.msra.mxu0 0.0
  %5642 = vmatprep.subr.mxu0 0.0
  %5643 = vmatpush1.msra.mxu0 0.0
  %5644 = vmatprep.subr.mxu0 0.0
  %5645 = vmatpush1.msra.mxu0 0.0
  %5646 = vmatprep.subr.mxu0 0.0
  %5647 = vmatpush1.msra.mxu0 0.0
  %5648 = vmatprep.subr.mxu0 0.0
  %5649 = vmatpush1.msra.mxu0 0.0
  %5650 = vmatprep.subr.mxu0 0.0
  %5651 = vmatpush1.msra.mxu0 0.0
  %5652 = vmatprep.subr.mxu0 0.0
  %5653 = vmatpush1.msra.mxu0 0.0
  %5654 = vmatprep.subr.mxu0 0.0
  %5655 = vmatpush1.msra.mxu0 0.0
  %5656 = vmatprep.subr.mxu0 0.0
  %5657 = vmatpush1.msra.mxu0 0.0
  %5658 = vmatprep.subr.mxu0 0.0
  %5659 = vmatpush1.msra.mxu0 0.0
  %5660 = vmatprep.subr.mxu0 0.0
  %5661 = vmatpush1.msra.mxu0 0.0
  %5662 = vmatprep.subr.mxu0 0.0
  %5663 = vmatpush1.msra.mxu0 0.0
  %5664 = vmatprep.subr.mxu0 0.0
  %5665 = vmatpush1.msra.mxu0 0.0
  %5666 = vmatprep.subr.mxu0 0.0
  %5667 = vmatpush1.msra.mxu0 0.0
  %5668 = vmatprep.subr.mxu0 %v5561
  %5669 = vmatpush1.msra.mxu0 %v5559
  %5670 = vmatprep.subr.mxu0 0.0
  %5671 = vmatpush2.msra.mxu0 0.0
  %5672 = vmatprep.subr.mxu0 0.0
  %5673 = vmatpush2.msra.mxu0 0.0
  %5674 = vmatprep.subr.mxu0 0.0
  %5675 = vmatpush2.msra.mxu0 0.0
  %5676 = vmatprep.subr.mxu0 0.0
  %5677 = vmatpush2.msra.mxu0 0.0
  %5678 = vmatprep.subr.mxu0 0.0
  %5679 = vmatpush2.msra.mxu0 0.0
  %5680 = vmatprep.subr.mxu0 0.0
  %5681 = vmatpush2.msra.mxu0 0.0
  %5682 = vmatprep.subr.mxu0 0.0
  %5683 = vmatpush2.msra.mxu0 0.0
  %5684 = vmatprep.subr.mxu0 0.0
  %5685 = vmatpush2.msra.mxu0 0.0
  %5686 = vmatprep.subr.mxu0 0.0
  %5687 = vmatpush2.msra.mxu0 0.0
  %5688 = vmatprep.subr.mxu0 0.0
  %5689 = vmatpush2.msra.mxu0 0.0
  %5690 = vmatprep.subr.mxu0 0.0
  %5691 = vmatpush2.msra.mxu0 0.0
  %5692 = vmatprep.subr.mxu0 0.0
  %5693 = vmatpush2.msra.mxu0 0.0
  %5694 = vmatprep.subr.mxu0 0.0
  %5695 = vmatpush2.msra.mxu0 0.0
  %5696 = vmatprep.subr.mxu0 0.0
  %5697 = vmatpush2.msra.mxu0 0.0
  %5698 = vmatprep.subr.mxu0 0.0
  %5699 = vmatpush2.msra.mxu0 0.0
  %5700 = vmatprep.subr.mxu0 0.0
  %5701 = vmatpush2.msra.mxu0 0.0
  %5702 = vmatprep.mubr.f32.mxu0 0.0
  %5703 = vmatmul.mubr.f32.gmra.mxu0 %v5553
  %v5704 = vpop.f32.mrf.mxu0
  %v5705 = vadd.f32 0.0, %v5704
  %v5706 = vpop.f32.mrf.mxu0
  %v5707 = vadd.f32 0.0, %v5706
  %5708 = vdwg.mxu0
  %5709 = vmatprep.subr.mxu0 0.0
  %5710 = vmatpush1.msra.mxu0 0.0
  %5711 = vmatprep.subr.mxu0 0.0
  %5712 = vmatpush1.msra.mxu0 0.0
  %5713 = vmatprep.subr.mxu0 0.0
  %5714 = vmatpush1.msra.mxu0 0.0
  %5715 = vmatprep.subr.mxu0 0.0
  %5716 = vmatpush1.msra.mxu0 0.0
  %5717 = vmatprep.subr.mxu0 0.0
  %5718 = vmatpush1.msra.mxu0 0.0
  %5719 = vmatprep.subr.mxu0 0.0
  %5720 = vmatpush1.msra.mxu0 0.0
  %5721 = vmatprep.subr.mxu0 0.0
  %5722 = vmatpush1.msra.mxu0 0.0
  %5723 = vmatprep.subr.mxu0 0.0
  %5724 = vmatpush1.msra.mxu0 0.0
  %5725 = vmatprep.subr.mxu0 0.0
  %5726 = vmatpush1.msra.mxu0 0.0
  %5727 = vmatprep.subr.mxu0 0.0
  %5728 = vmatpush1.msra.mxu0 0.0
  %5729 = vmatprep.subr.mxu0 0.0
  %5730 = vmatpush1.msra.mxu0 0.0
  %5731 = vmatprep.subr.mxu0 0.0
  %5732 = vmatpush1.msra.mxu0 0.0
  %5733 = vmatprep.subr.mxu0 0.0
  %5734 = vmatpush1.msra.mxu0 0.0
  %5735 = vmatprep.subr.mxu0 0.0
  %5736 = vmatpush1.msra.mxu0 0.0
  %5737 = vmatprep.subr.mxu0 0.0
  %5738 = vmatpush1.msra.mxu0 0.0
  %5739 = vmatprep.subr.mxu0 %v5565
  %5740 = vmatpush1.msra.mxu0 %v5563
  %5741 = vmatprep.subr.mxu0 0.0
  %5742 = vmatpush2.msra.mxu0 0.0
  %5743 = vmatprep.subr.mxu0 0.0
  %5744 = vmatpush2.msra.mxu0 0.0
  %5745 = vmatprep.subr.mxu0 0.0
  %5746 = vmatpush2.msra.mxu0 0.0
  %5747 = vmatprep.subr.mxu0 0.0
  %5748 = vmatpush2.msra.mxu0 0.0
  %5749 = vmatprep.subr.mxu0 0.0
  %5750 = vmatpush2.msra.mxu0 0.0
  %5751 = vmatprep.subr.mxu0 0.0
  %5752 = vmatpush2.msra.mxu0 0.0
  %5753 = vmatprep.subr.mxu0 0.0
  %5754 = vmatpush2.msra.mxu0 0.0
  %5755 = vmatprep.subr.mxu0 0.0
  %5756 = vmatpush2.msra.mxu0 0.0
  %5757 = vmatprep.subr.mxu0 0.0
  %5758 = vmatpush2.msra.mxu0 0.0
  %5759 = vmatprep.subr.mxu0 0.0
  %5760 = vmatpush2.msra.mxu0 0.0
  %5761 = vmatprep.subr.mxu0 0.0
  %5762 = vmatpush2.msra.mxu0 0.0
  %5763 = vmatprep.subr.mxu0 0.0
  %5764 = vmatpush2.msra.mxu0 0.0
  %5765 = vmatprep.subr.mxu0 0.0
  %5766 = vmatpush2.msra.mxu0 0.0
  %5767 = vmatprep.subr.mxu0 0.0
  %5768 = vmatpush2.msra.mxu0 0.0
  %5769 = vmatprep.subr.mxu0 0.0
  %5770 = vmatpush2.msra.mxu0 0.0
  %5771 = vmatprep.subr.mxu0 0.0
  %5772 = vmatpush2.msra.mxu0 0.0
  %5773 = vmatprep.mubr.f32.mxu0 0.0
  %5774 = vmatmul.mubr.f32.gmra.mxu0 %v5553
  %v5775 = vpop.f32.mrf.mxu0
  %v5776 = vadd.f32 0.0, %v5775
  %v5777 = vpop.f32.mrf.mxu0
  %v5778 = vadd.f32 0.0, %v5777
  %5779 = vdwg.mxu0
  %v5780 = vadd.f32 %v5517, %v5634
  %v5781 = vadd.f32 %v5518, %v5636
  %v5782 = vadd.f32 %v5519, %v5705
  %v5783 = vadd.f32 %v5520, %v5707
  %v5784 = vadd.f32 %v5521, %v5776
  %v5785 = vadd.f32 %v5522, %v5778
  %s5786 = scalar_lea.vmem %s1, 88
  %v5787 = vld [vmem:[%s5786] sm:$0x7]
  %v5788 = vld [vmem:[%s0] sm:$0xff]
  %v5789 = vld [vmem:[%s0 + $0x8] sm:$0xff]
  %v5790 = vld [vmem:[%s0 + $0x10] sm:$0xff]
  %v5794 = vcombine.high %v5788, %v5788
  %v5795 = vcombine.high %v5789, %v5789
  %v5796 = vcombine.high %v5790, %v5790
  %5797 = vrot.lane.b32.xlu0 %v5788, 54
  %v5798 = vpop.permute.xlu0 %5797
  %5799 = vrot.lane.b32.xlu0 %v5794, 54
  %v5800 = vpop.permute.xlu0 %5799
  %5801 = vrot.lane.b32.xlu0 %v5789, 54
  %v5802 = vpop.permute.xlu0 %5801
  %5803 = vrot.lane.b32.xlu0 %v5795, 54
  %v5804 = vpop.permute.xlu0 %5803
  %5805 = vrot.lane.b32.xlu0 %v5790, 54
  %v5806 = vpop.permute.xlu0 %5805
  %5807 = vrot.lane.b32.xlu0 %v5796, 54
  %v5808 = vpop.permute.xlu0 %5807
  %vm5809 = vcmask 441344
  %v5810 = vsel %vm5809, %v5798, %v5800
  %v5811 = vsel %vm5809, %v5800, %v5802
  %v5812 = vsel %vm5809, %v5802, %v5804
  %v5813 = vsel %vm5809, %v5804, %v5806
  %v5814 = vsel %vm5809, %v5806, %v5808
  %v5816 = vsel %vm68, %v5787, 0
  %v5818 = vsel %vm72, %v5810, 0
  %v5820 = vsel %vm72, %v5811, 0
  %v5822 = vsel %vm72, %v5812, 0
  %v5824 = vsel %vm72, %v5813, 0
  %v5826 = vsel %vm72, %v5814, 0
  %v5828 = vsel %vm72, %v5808, 0
  %5830 = vmatprep.subr.mxu0 0.0
  %5831 = vmatpush1.msra.mxu0 0.0
  %5832 = vmatprep.subr.mxu0 0.0
  %5833 = vmatpush1.msra.mxu0 0.0
  %5834 = vmatprep.subr.mxu0 0.0
  %5835 = vmatpush1.msra.mxu0 0.0
  %5836 = vmatprep.subr.mxu0 0.0
  %5837 = vmatpush1.msra.mxu0 0.0
  %5838 = vmatprep.subr.mxu0 0.0
  %5839 = vmatpush1.msra.mxu0 0.0
  %5840 = vmatprep.subr.mxu0 0.0
  %5841 = vmatpush1.msra.mxu0 0.0
  %5842 = vmatprep.subr.mxu0 0.0
  %5843 = vmatpush1.msra.mxu0 0.0
  %5844 = vmatprep.subr.mxu0 0.0
  %5845 = vmatpush1.msra.mxu0 0.0
  %5846 = vmatprep.subr.mxu0 0.0
  %5847 = vmatpush1.msra.mxu0 0.0
  %5848 = vmatprep.subr.mxu0 0.0
  %5849 = vmatpush1.msra.mxu0 0.0
  %5850 = vmatprep.subr.mxu0 0.0
  %5851 = vmatpush1.msra.mxu0 0.0
  %5852 = vmatprep.subr.mxu0 0.0
  %5853 = vmatpush1.msra.mxu0 0.0
  %5854 = vmatprep.subr.mxu0 0.0
  %5855 = vmatpush1.msra.mxu0 0.0
  %5856 = vmatprep.subr.mxu0 0.0
  %5857 = vmatpush1.msra.mxu0 0.0
  %5858 = vmatprep.subr.mxu0 0.0
  %5859 = vmatpush1.msra.mxu0 0.0
  %5860 = vmatprep.subr.mxu0 %v5820
  %5861 = vmatpush1.msra.mxu0 %v5818
  %5862 = vmatprep.subr.mxu0 0.0
  %5863 = vmatpush2.msra.mxu0 0.0
  %5864 = vmatprep.subr.mxu0 0.0
  %5865 = vmatpush2.msra.mxu0 0.0
  %5866 = vmatprep.subr.mxu0 0.0
  %5867 = vmatpush2.msra.mxu0 0.0
  %5868 = vmatprep.subr.mxu0 0.0
  %5869 = vmatpush2.msra.mxu0 0.0
  %5870 = vmatprep.subr.mxu0 0.0
  %5871 = vmatpush2.msra.mxu0 0.0
  %5872 = vmatprep.subr.mxu0 0.0
  %5873 = vmatpush2.msra.mxu0 0.0
  %5874 = vmatprep.subr.mxu0 0.0
  %5875 = vmatpush2.msra.mxu0 0.0
  %5876 = vmatprep.subr.mxu0 0.0
  %5877 = vmatpush2.msra.mxu0 0.0
  %5878 = vmatprep.subr.mxu0 0.0
  %5879 = vmatpush2.msra.mxu0 0.0
  %5880 = vmatprep.subr.mxu0 0.0
  %5881 = vmatpush2.msra.mxu0 0.0
  %5882 = vmatprep.subr.mxu0 0.0
  %5883 = vmatpush2.msra.mxu0 0.0
  %5884 = vmatprep.subr.mxu0 0.0
  %5885 = vmatpush2.msra.mxu0 0.0
  %5886 = vmatprep.subr.mxu0 0.0
  %5887 = vmatpush2.msra.mxu0 0.0
  %5888 = vmatprep.subr.mxu0 0.0
  %5889 = vmatpush2.msra.mxu0 0.0
  %5890 = vmatprep.subr.mxu0 0.0
  %5891 = vmatpush2.msra.mxu0 0.0
  %5892 = vmatprep.subr.mxu0 0.0
  %5893 = vmatpush2.msra.mxu0 0.0
  %5894 = vmatprep.mubr.f32.mxu0 0.0
  %5895 = vmatmul.mubr.f32.gmra.mxu0 %v5816
  %v5896 = vpop.f32.mrf.mxu0
  %v5897 = vadd.f32 0.0, %v5896
  %v5898 = vpop.f32.mrf.mxu0
  %v5899 = vadd.f32 0.0, %v5898
  %5900 = vdwg.mxu0
  %5901 = vmatprep.subr.mxu0 0.0
  %5902 = vmatpush1.msra.mxu0 0.0
  %5903 = vmatprep.subr.mxu0 0.0
  %5904 = vmatpush1.msra.mxu0 0.0
  %5905 = vmatprep.subr.mxu0 0.0
  %5906 = vmatpush1.msra.mxu0 0.0
  %5907 = vmatprep.subr.mxu0 0.0
  %5908 = vmatpush1.msra.mxu0 0.0
  %5909 = vmatprep.subr.mxu0 0.0
  %5910 = vmatpush1.msra.mxu0 0.0
  %5911 = vmatprep.subr.mxu0 0.0
  %5912 = vmatpush1.msra.mxu0 0.0
  %5913 = vmatprep.subr.mxu0 0.0
  %5914 = vmatpush1.msra.mxu0 0.0
  %5915 = vmatprep.subr.mxu0 0.0
  %5916 = vmatpush1.msra.mxu0 0.0
  %5917 = vmatprep.subr.mxu0 0.0
  %5918 = vmatpush1.msra.mxu0 0.0
  %5919 = vmatprep.subr.mxu0 0.0
  %5920 = vmatpush1.msra.mxu0 0.0
  %5921 = vmatprep.subr.mxu0 0.0
  %5922 = vmatpush1.msra.mxu0 0.0
  %5923 = vmatprep.subr.mxu0 0.0
  %5924 = vmatpush1.msra.mxu0 0.0
  %5925 = vmatprep.subr.mxu0 0.0
  %5926 = vmatpush1.msra.mxu0 0.0
  %5927 = vmatprep.subr.mxu0 0.0
  %5928 = vmatpush1.msra.mxu0 0.0
  %5929 = vmatprep.subr.mxu0 0.0
  %5930 = vmatpush1.msra.mxu0 0.0
  %5931 = vmatprep.subr.mxu0 %v5824
  %5932 = vmatpush1.msra.mxu0 %v5822
  %5933 = vmatprep.subr.mxu0 0.0
  %5934 = vmatpush2.msra.mxu0 0.0
  %5935 = vmatprep.subr.mxu0 0.0
  %5936 = vmatpush2.msra.mxu0 0.0
  %5937 = vmatprep.subr.mxu0 0.0
  %5938 = vmatpush2.msra.mxu0 0.0
  %5939 = vmatprep.subr.mxu0 0.0
  %5940 = vmatpush2.msra.mxu0 0.0
  %5941 = vmatprep.subr.mxu0 0.0
  %5942 = vmatpush2.msra.mxu0 0.0
  %5943 = vmatprep.subr.mxu0 0.0
  %5944 = vmatpush2.msra.mxu0 0.0
  %5945 = vmatprep.subr.mxu0 0.0
  %5946 = vmatpush2.msra.mxu0 0.0
  %5947 = vmatprep.subr.mxu0 0.0
  %5948 = vmatpush2.msra.mxu0 0.0
  %5949 = vmatprep.subr.mxu0 0.0
  %5950 = vmatpush2.msra.mxu0 0.0
  %5951 = vmatprep.subr.mxu0 0.0
  %5952 = vmatpush2.msra.mxu0 0.0
  %5953 = vmatprep.subr.mxu0 0.0
  %5954 = vmatpush2.msra.mxu0 0.0
  %5955 = vmatprep.subr.mxu0 0.0
  %5956 = vmatpush2.msra.mxu0 0.0
  %5957 = vmatprep.subr.mxu0 0.0
  %5958 = vmatpush2.msra.mxu0 0.0
  %5959 = vmatprep.subr.mxu0 0.0
  %5960 = vmatpush2.msra.mxu0 0.0
  %5961 = vmatprep.subr.mxu0 0.0
  %5962 = vmatpush2.msra.mxu0 0.0
  %5963 = vmatprep.subr.mxu0 0.0
  %5964 = vmatpush2.msra.mxu0 0.0
  %5965 = vmatprep.mubr.f32.mxu0 0.0
  %5966 = vmatmul.mubr.f32.gmra.mxu0 %v5816
  %v5967 = vpop.f32.mrf.mxu0
  %v5968 = vadd.f32 0.0, %v5967
  %v5969 = vpop.f32.mrf.mxu0
  %v5970 = vadd.f32 0.0, %v5969
  %5971 = vdwg.mxu0
  %5972 = vmatprep.subr.mxu0 0.0
  %5973 = vmatpush1.msra.mxu0 0.0
  %5974 = vmatprep.subr.mxu0 0.0
  %5975 = vmatpush1.msra.mxu0 0.0
  %5976 = vmatprep.subr.mxu0 0.0
  %5977 = vmatpush1.msra.mxu0 0.0
  %5978 = vmatprep.subr.mxu0 0.0
  %5979 = vmatpush1.msra.mxu0 0.0
  %5980 = vmatprep.subr.mxu0 0.0
  %5981 = vmatpush1.msra.mxu0 0.0
  %5982 = vmatprep.subr.mxu0 0.0
  %5983 = vmatpush1.msra.mxu0 0.0
  %5984 = vmatprep.subr.mxu0 0.0
  %5985 = vmatpush1.msra.mxu0 0.0
  %5986 = vmatprep.subr.mxu0 0.0
  %5987 = vmatpush1.msra.mxu0 0.0
  %5988 = vmatprep.subr.mxu0 0.0
  %5989 = vmatpush1.msra.mxu0 0.0
  %5990 = vmatprep.subr.mxu0 0.0
  %5991 = vmatpush1.msra.mxu0 0.0
  %5992 = vmatprep.subr.mxu0 0.0
  %5993 = vmatpush1.msra.mxu0 0.0
  %5994 = vmatprep.subr.mxu0 0.0
  %5995 = vmatpush1.msra.mxu0 0.0
  %5996 = vmatprep.subr.mxu0 0.0
  %5997 = vmatpush1.msra.mxu0 0.0
  %5998 = vmatprep.subr.mxu0 0.0
  %5999 = vmatpush1.msra.mxu0 0.0
  %6000 = vmatprep.subr.mxu0 0.0
  %6001 = vmatpush1.msra.mxu0 0.0
  %6002 = vmatprep.subr.mxu0 %v5828
  %6003 = vmatpush1.msra.mxu0 %v5826
  %6004 = vmatprep.subr.mxu0 0.0
  %6005 = vmatpush2.msra.mxu0 0.0
  %6006 = vmatprep.subr.mxu0 0.0
  %6007 = vmatpush2.msra.mxu0 0.0
  %6008 = vmatprep.subr.mxu0 0.0
  %6009 = vmatpush2.msra.mxu0 0.0
  %6010 = vmatprep.subr.mxu0 0.0
  %6011 = vmatpush2.msra.mxu0 0.0
  %6012 = vmatprep.subr.mxu0 0.0
  %6013 = vmatpush2.msra.mxu0 0.0
  %6014 = vmatprep.subr.mxu0 0.0
  %6015 = vmatpush2.msra.mxu0 0.0
  %6016 = vmatprep.subr.mxu0 0.0
  %6017 = vmatpush2.msra.mxu0 0.0
  %6018 = vmatprep.subr.mxu0 0.0
  %6019 = vmatpush2.msra.mxu0 0.0
  %6020 = vmatprep.subr.mxu0 0.0
  %6021 = vmatpush2.msra.mxu0 0.0
  %6022 = vmatprep.subr.mxu0 0.0
  %6023 = vmatpush2.msra.mxu0 0.0
  %6024 = vmatprep.subr.mxu0 0.0
  %6025 = vmatpush2.msra.mxu0 0.0
  %6026 = vmatprep.subr.mxu0 0.0
  %6027 = vmatpush2.msra.mxu0 0.0
  %6028 = vmatprep.subr.mxu0 0.0
  %6029 = vmatpush2.msra.mxu0 0.0
  %6030 = vmatprep.subr.mxu0 0.0
  %6031 = vmatpush2.msra.mxu0 0.0
  %6032 = vmatprep.subr.mxu0 0.0
  %6033 = vmatpush2.msra.mxu0 0.0
  %6034 = vmatprep.subr.mxu0 0.0
  %6035 = vmatpush2.msra.mxu0 0.0
  %6036 = vmatprep.mubr.f32.mxu0 0.0
  %6037 = vmatmul.mubr.f32.gmra.mxu0 %v5816
  %v6038 = vpop.f32.mrf.mxu0
  %v6039 = vadd.f32 0.0, %v6038
  %v6040 = vpop.f32.mrf.mxu0
  %v6041 = vadd.f32 0.0, %v6040
  %6042 = vdwg.mxu0
  %v6043 = vadd.f32 %v5780, %v5897
  %v6044 = vadd.f32 %v5781, %v5899
  %v6045 = vadd.f32 %v5782, %v5968
  %v6046 = vadd.f32 %v5783, %v5970
  %v6047 = vadd.f32 %v5784, %v6039
  %v6048 = vadd.f32 %v5785, %v6041
  %s6049 = scalar_lea.vmem %s1, 92
  %v6050 = vld [vmem:[%s6049] sm:$0x7]
  %v6051 = vld [vmem:[%s0] sm:$0xff]
  %v6052 = vld [vmem:[%s0 + $0x8] sm:$0xff]
  %v6053 = vld [vmem:[%s0 + $0x10] sm:$0xff]
  %v6057 = vcombine.high %v6051, %v6051
  %v6058 = vcombine.high %v6052, %v6052
  %v6059 = vcombine.high %v6053, %v6053
  %6060 = vrot.lane.b32.xlu0 %v6051, 53
  %v6061 = vpop.permute.xlu0 %6060
  %6062 = vrot.lane.b32.xlu0 %v6057, 53
  %v6063 = vpop.permute.xlu0 %6062
  %6064 = vrot.lane.b32.xlu0 %v6052, 53
  %v6065 = vpop.permute.xlu0 %6064
  %6066 = vrot.lane.b32.xlu0 %v6058, 53
  %v6067 = vpop.permute.xlu0 %6066
  %6068 = vrot.lane.b32.xlu0 %v6053, 53
  %v6069 = vpop.permute.xlu0 %6068
  %6070 = vrot.lane.b32.xlu0 %v6059, 53
  %v6071 = vpop.permute.xlu0 %6070
  %vm6072 = vcmask 433152
  %v6073 = vsel %vm6072, %v6061, %v6063
  %v6074 = vsel %vm6072, %v6063, %v6065
  %v6075 = vsel %vm6072, %v6065, %v6067
  %v6076 = vsel %vm6072, %v6067, %v6069
  %v6077 = vsel %vm6072, %v6069, %v6071
  %v6079 = vsel %vm68, %v6050, 0
  %v6081 = vsel %vm72, %v6073, 0
  %v6083 = vsel %vm72, %v6074, 0
  %v6085 = vsel %vm72, %v6075, 0
  %v6087 = vsel %vm72, %v6076, 0
  %v6089 = vsel %vm72, %v6077, 0
  %v6091 = vsel %vm72, %v6071, 0
  %6093 = vmatprep.subr.mxu0 0.0
  %6094 = vmatpush1.msra.mxu0 0.0
  %6095 = vmatprep.subr.mxu0 0.0
  %6096 = vmatpush1.msra.mxu0 0.0
  %6097 = vmatprep.subr.mxu0 0.0
  %6098 = vmatpush1.msra.mxu0 0.0
  %6099 = vmatprep.subr.mxu0 0.0
  %6100 = vmatpush1.msra.mxu0 0.0
  %6101 = vmatprep.subr.mxu0 0.0
  %6102 = vmatpush1.msra.mxu0 0.0
  %6103 = vmatprep.subr.mxu0 0.0
  %6104 = vmatpush1.msra.mxu0 0.0
  %6105 = vmatprep.subr.mxu0 0.0
  %6106 = vmatpush1.msra.mxu0 0.0
  %6107 = vmatprep.subr.mxu0 0.0
  %6108 = vmatpush1.msra.mxu0 0.0
  %6109 = vmatprep.subr.mxu0 0.0
  %6110 = vmatpush1.msra.mxu0 0.0
  %6111 = vmatprep.subr.mxu0 0.0
  %6112 = vmatpush1.msra.mxu0 0.0
  %6113 = vmatprep.subr.mxu0 0.0
  %6114 = vmatpush1.msra.mxu0 0.0
  %6115 = vmatprep.subr.mxu0 0.0
  %6116 = vmatpush1.msra.mxu0 0.0
  %6117 = vmatprep.subr.mxu0 0.0
  %6118 = vmatpush1.msra.mxu0 0.0
  %6119 = vmatprep.subr.mxu0 0.0
  %6120 = vmatpush1.msra.mxu0 0.0
  %6121 = vmatprep.subr.mxu0 0.0
  %6122 = vmatpush1.msra.mxu0 0.0
  %6123 = vmatprep.subr.mxu0 %v6083
  %6124 = vmatpush1.msra.mxu0 %v6081
  %6125 = vmatprep.subr.mxu0 0.0
  %6126 = vmatpush2.msra.mxu0 0.0
  %6127 = vmatprep.subr.mxu0 0.0
  %6128 = vmatpush2.msra.mxu0 0.0
  %6129 = vmatprep.subr.mxu0 0.0
  %6130 = vmatpush2.msra.mxu0 0.0
  %6131 = vmatprep.subr.mxu0 0.0
  %6132 = vmatpush2.msra.mxu0 0.0
  %6133 = vmatprep.subr.mxu0 0.0
  %6134 = vmatpush2.msra.mxu0 0.0
  %6135 = vmatprep.subr.mxu0 0.0
  %6136 = vmatpush2.msra.mxu0 0.0
  %6137 = vmatprep.subr.mxu0 0.0
  %6138 = vmatpush2.msra.mxu0 0.0
  %6139 = vmatprep.subr.mxu0 0.0
  %6140 = vmatpush2.msra.mxu0 0.0
  %6141 = vmatprep.subr.mxu0 0.0
  %6142 = vmatpush2.msra.mxu0 0.0
  %6143 = vmatprep.subr.mxu0 0.0
  %6144 = vmatpush2.msra.mxu0 0.0
  %6145 = vmatprep.subr.mxu0 0.0
  %6146 = vmatpush2.msra.mxu0 0.0
  %6147 = vmatprep.subr.mxu0 0.0
  %6148 = vmatpush2.msra.mxu0 0.0
  %6149 = vmatprep.subr.mxu0 0.0
  %6150 = vmatpush2.msra.mxu0 0.0
  %6151 = vmatprep.subr.mxu0 0.0
  %6152 = vmatpush2.msra.mxu0 0.0
  %6153 = vmatprep.subr.mxu0 0.0
  %6154 = vmatpush2.msra.mxu0 0.0
  %6155 = vmatprep.subr.mxu0 0.0
  %6156 = vmatpush2.msra.mxu0 0.0
  %6157 = vmatprep.mubr.f32.mxu0 0.0
  %6158 = vmatmul.mubr.f32.gmra.mxu0 %v6079
  %v6159 = vpop.f32.mrf.mxu0
  %v6160 = vadd.f32 0.0, %v6159
  %v6161 = vpop.f32.mrf.mxu0
  %v6162 = vadd.f32 0.0, %v6161
  %6163 = vdwg.mxu0
  %6164 = vmatprep.subr.mxu0 0.0
  %6165 = vmatpush1.msra.mxu0 0.0
  %6166 = vmatprep.subr.mxu0 0.0
  %6167 = vmatpush1.msra.mxu0 0.0
  %6168 = vmatprep.subr.mxu0 0.0
  %6169 = vmatpush1.msra.mxu0 0.0
  %6170 = vmatprep.subr.mxu0 0.0
  %6171 = vmatpush1.msra.mxu0 0.0
  %6172 = vmatprep.subr.mxu0 0.0
  %6173 = vmatpush1.msra.mxu0 0.0
  %6174 = vmatprep.subr.mxu0 0.0
  %6175 = vmatpush1.msra.mxu0 0.0
  %6176 = vmatprep.subr.mxu0 0.0
  %6177 = vmatpush1.msra.mxu0 0.0
  %6178 = vmatprep.subr.mxu0 0.0
  %6179 = vmatpush1.msra.mxu0 0.0
  %6180 = vmatprep.subr.mxu0 0.0
  %6181 = vmatpush1.msra.mxu0 0.0
  %6182 = vmatprep.subr.mxu0 0.0
  %6183 = vmatpush1.msra.mxu0 0.0
  %6184 = vmatprep.subr.mxu0 0.0
  %6185 = vmatpush1.msra.mxu0 0.0
  %6186 = vmatprep.subr.mxu0 0.0
  %6187 = vmatpush1.msra.mxu0 0.0
  %6188 = vmatprep.subr.mxu0 0.0
  %6189 = vmatpush1.msra.mxu0 0.0
  %6190 = vmatprep.subr.mxu0 0.0
  %6191 = vmatpush1.msra.mxu0 0.0
  %6192 = vmatprep.subr.mxu0 0.0
  %6193 = vmatpush1.msra.mxu0 0.0
  %6194 = vmatprep.subr.mxu0 %v6087
  %6195 = vmatpush1.msra.mxu0 %v6085
  %6196 = vmatprep.subr.mxu0 0.0
  %6197 = vmatpush2.msra.mxu0 0.0
  %6198 = vmatprep.subr.mxu0 0.0
  %6199 = vmatpush2.msra.mxu0 0.0
  %6200 = vmatprep.subr.mxu0 0.0
  %6201 = vmatpush2.msra.mxu0 0.0
  %6202 = vmatprep.subr.mxu0 0.0
  %6203 = vmatpush2.msra.mxu0 0.0
  %6204 = vmatprep.subr.mxu0 0.0
  %6205 = vmatpush2.msra.mxu0 0.0
  %6206 = vmatprep.subr.mxu0 0.0
  %6207 = vmatpush2.msra.mxu0 0.0
  %6208 = vmatprep.subr.mxu0 0.0
  %6209 = vmatpush2.msra.mxu0 0.0
  %6210 = vmatprep.subr.mxu0 0.0
  %6211 = vmatpush2.msra.mxu0 0.0
  %6212 = vmatprep.subr.mxu0 0.0
  %6213 = vmatpush2.msra.mxu0 0.0
  %6214 = vmatprep.subr.mxu0 0.0
  %6215 = vmatpush2.msra.mxu0 0.0
  %6216 = vmatprep.subr.mxu0 0.0
  %6217 = vmatpush2.msra.mxu0 0.0
  %6218 = vmatprep.subr.mxu0 0.0
  %6219 = vmatpush2.msra.mxu0 0.0
  %6220 = vmatprep.subr.mxu0 0.0
  %6221 = vmatpush2.msra.mxu0 0.0
  %6222 = vmatprep.subr.mxu0 0.0
  %6223 = vmatpush2.msra.mxu0 0.0
  %6224 = vmatprep.subr.mxu0 0.0
  %6225 = vmatpush2.msra.mxu0 0.0
  %6226 = vmatprep.subr.mxu0 0.0
  %6227 = vmatpush2.msra.mxu0 0.0
  %6228 = vmatprep.mubr.f32.mxu0 0.0
  %6229 = vmatmul.mubr.f32.gmra.mxu0 %v6079
  %v6230 = vpop.f32.mrf.mxu0
  %v6231 = vadd.f32 0.0, %v6230
  %v6232 = vpop.f32.mrf.mxu0
  %v6233 = vadd.f32 0.0, %v6232
  %6234 = vdwg.mxu0
  %6235 = vmatprep.subr.mxu0 0.0
  %6236 = vmatpush1.msra.mxu0 0.0
  %6237 = vmatprep.subr.mxu0 0.0
  %6238 = vmatpush1.msra.mxu0 0.0
  %6239 = vmatprep.subr.mxu0 0.0
  %6240 = vmatpush1.msra.mxu0 0.0
  %6241 = vmatprep.subr.mxu0 0.0
  %6242 = vmatpush1.msra.mxu0 0.0
  %6243 = vmatprep.subr.mxu0 0.0
  %6244 = vmatpush1.msra.mxu0 0.0
  %6245 = vmatprep.subr.mxu0 0.0
  %6246 = vmatpush1.msra.mxu0 0.0
  %6247 = vmatprep.subr.mxu0 0.0
  %6248 = vmatpush1.msra.mxu0 0.0
  %6249 = vmatprep.subr.mxu0 0.0
  %6250 = vmatpush1.msra.mxu0 0.0
  %6251 = vmatprep.subr.mxu0 0.0
  %6252 = vmatpush1.msra.mxu0 0.0
  %6253 = vmatprep.subr.mxu0 0.0
  %6254 = vmatpush1.msra.mxu0 0.0
  %6255 = vmatprep.subr.mxu0 0.0
  %6256 = vmatpush1.msra.mxu0 0.0
  %6257 = vmatprep.subr.mxu0 0.0
  %6258 = vmatpush1.msra.mxu0 0.0
  %6259 = vmatprep.subr.mxu0 0.0
  %6260 = vmatpush1.msra.mxu0 0.0
  %6261 = vmatprep.subr.mxu0 0.0
  %6262 = vmatpush1.msra.mxu0 0.0
  %6263 = vmatprep.subr.mxu0 0.0
  %6264 = vmatpush1.msra.mxu0 0.0
  %6265 = vmatprep.subr.mxu0 %v6091
  %6266 = vmatpush1.msra.mxu0 %v6089
  %6267 = vmatprep.subr.mxu0 0.0
  %6268 = vmatpush2.msra.mxu0 0.0
  %6269 = vmatprep.subr.mxu0 0.0
  %6270 = vmatpush2.msra.mxu0 0.0
  %6271 = vmatprep.subr.mxu0 0.0
  %6272 = vmatpush2.msra.mxu0 0.0
  %6273 = vmatprep.subr.mxu0 0.0
  %6274 = vmatpush2.msra.mxu0 0.0
  %6275 = vmatprep.subr.mxu0 0.0
  %6276 = vmatpush2.msra.mxu0 0.0
  %6277 = vmatprep.subr.mxu0 0.0
  %6278 = vmatpush2.msra.mxu0 0.0
  %6279 = vmatprep.subr.mxu0 0.0
  %6280 = vmatpush2.msra.mxu0 0.0
  %6281 = vmatprep.subr.mxu0 0.0
  %6282 = vmatpush2.msra.mxu0 0.0
  %6283 = vmatprep.subr.mxu0 0.0
  %6284 = vmatpush2.msra.mxu0 0.0
  %6285 = vmatprep.subr.mxu0 0.0
  %6286 = vmatpush2.msra.mxu0 0.0
  %6287 = vmatprep.subr.mxu0 0.0
  %6288 = vmatpush2.msra.mxu0 0.0
  %6289 = vmatprep.subr.mxu0 0.0
  %6290 = vmatpush2.msra.mxu0 0.0
  %6291 = vmatprep.subr.mxu0 0.0
  %6292 = vmatpush2.msra.mxu0 0.0
  %6293 = vmatprep.subr.mxu0 0.0
  %6294 = vmatpush2.msra.mxu0 0.0
  %6295 = vmatprep.subr.mxu0 0.0
  %6296 = vmatpush2.msra.mxu0 0.0
  %6297 = vmatprep.subr.mxu0 0.0
  %6298 = vmatpush2.msra.mxu0 0.0
  %6299 = vmatprep.mubr.f32.mxu0 0.0
  %6300 = vmatmul.mubr.f32.gmra.mxu0 %v6079
  %v6301 = vpop.f32.mrf.mxu0
  %v6302 = vadd.f32 0.0, %v6301
  %v6303 = vpop.f32.mrf.mxu0
  %v6304 = vadd.f32 0.0, %v6303
  %6305 = vdwg.mxu0
  %v6306 = vadd.f32 %v6043, %v6160
  %v6307 = vadd.f32 %v6044, %v6162
  %v6308 = vadd.f32 %v6045, %v6231
  %v6309 = vadd.f32 %v6046, %v6233
  %v6310 = vadd.f32 %v6047, %v6302
  %v6311 = vadd.f32 %v6048, %v6304
  %s6312 = scalar_lea.vmem %s1, 96
  %v6313 = vld [vmem:[%s6312] sm:$0x7]
  %v6314 = vld [vmem:[%s0] sm:$0xff]
  %v6315 = vld [vmem:[%s0 + $0x8] sm:$0xff]
  %v6316 = vld [vmem:[%s0 + $0x10] sm:$0xff]
  %v6320 = vcombine.high %v6314, %v6314
  %v6321 = vcombine.high %v6315, %v6315
  %v6322 = vcombine.high %v6316, %v6316
  %6323 = vrot.lane.b32.xlu0 %v6314, 52
  %v6324 = vpop.permute.xlu0 %6323
  %6325 = vrot.lane.b32.xlu0 %v6320, 52
  %v6326 = vpop.permute.xlu0 %6325
  %6327 = vrot.lane.b32.xlu0 %v6315, 52
  %v6328 = vpop.permute.xlu0 %6327
  %6329 = vrot.lane.b32.xlu0 %v6321, 52
  %v6330 = vpop.permute.xlu0 %6329
  %6331 = vrot.lane.b32.xlu0 %v6316, 52
  %v6332 = vpop.permute.xlu0 %6331
  %6333 = vrot.lane.b32.xlu0 %v6322, 52
  %v6334 = vpop.permute.xlu0 %6333
  %vm6335 = vcmask 424960
  %v6336 = vsel %vm6335, %v6324, %v6326
  %v6337 = vsel %vm6335, %v6326, %v6328
  %v6338 = vsel %vm6335, %v6328, %v6330
  %v6339 = vsel %vm6335, %v6330, %v6332
  %v6340 = vsel %vm6335, %v6332, %v6334
  %v6342 = vsel %vm68, %v6313, 0
  %v6344 = vsel %vm72, %v6336, 0
  %v6346 = vsel %vm72, %v6337, 0
  %v6348 = vsel %vm72, %v6338, 0
  %v6350 = vsel %vm72, %v6339, 0
  %v6352 = vsel %vm72, %v6340, 0
  %v6354 = vsel %vm72, %v6334, 0
  %6356 = vmatprep.subr.mxu0 0.0
  %6357 = vmatpush1.msra.mxu0 0.0
  %6358 = vmatprep.subr.mxu0 0.0
  %6359 = vmatpush1.msra.mxu0 0.0
  %6360 = vmatprep.subr.mxu0 0.0
  %6361 = vmatpush1.msra.mxu0 0.0
  %6362 = vmatprep.subr.mxu0 0.0
  %6363 = vmatpush1.msra.mxu0 0.0
  %6364 = vmatprep.subr.mxu0 0.0
  %6365 = vmatpush1.msra.mxu0 0.0
  %6366 = vmatprep.subr.mxu0 0.0
  %6367 = vmatpush1.msra.mxu0 0.0
  %6368 = vmatprep.subr.mxu0 0.0
  %6369 = vmatpush1.msra.mxu0 0.0
  %6370 = vmatprep.subr.mxu0 0.0
  %6371 = vmatpush1.msra.mxu0 0.0
  %6372 = vmatprep.subr.mxu0 0.0
  %6373 = vmatpush1.msra.mxu0 0.0
  %6374 = vmatprep.subr.mxu0 0.0
  %6375 = vmatpush1.msra.mxu0 0.0
  %6376 = vmatprep.subr.mxu0 0.0
  %6377 = vmatpush1.msra.mxu0 0.0
  %6378 = vmatprep.subr.mxu0 0.0
  %6379 = vmatpush1.msra.mxu0 0.0
  %6380 = vmatprep.subr.mxu0 0.0
  %6381 = vmatpush1.msra.mxu0 0.0
  %6382 = vmatprep.subr.mxu0 0.0
  %6383 = vmatpush1.msra.mxu0 0.0
  %6384 = vmatprep.subr.mxu0 0.0
  %6385 = vmatpush1.msra.mxu0 0.0
  %6386 = vmatprep.subr.mxu0 %v6346
  %6387 = vmatpush1.msra.mxu0 %v6344
  %6388 = vmatprep.subr.mxu0 0.0
  %6389 = vmatpush2.msra.mxu0 0.0
  %6390 = vmatprep.subr.mxu0 0.0
  %6391 = vmatpush2.msra.mxu0 0.0
  %6392 = vmatprep.subr.mxu0 0.0
  %6393 = vmatpush2.msra.mxu0 0.0
  %6394 = vmatprep.subr.mxu0 0.0
  %6395 = vmatpush2.msra.mxu0 0.0
  %6396 = vmatprep.subr.mxu0 0.0
  %6397 = vmatpush2.msra.mxu0 0.0
  %6398 = vmatprep.subr.mxu0 0.0
  %6399 = vmatpush2.msra.mxu0 0.0
  %6400 = vmatprep.subr.mxu0 0.0
  %6401 = vmatpush2.msra.mxu0 0.0
  %6402 = vmatprep.subr.mxu0 0.0
  %6403 = vmatpush2.msra.mxu0 0.0
  %6404 = vmatprep.subr.mxu0 0.0
  %6405 = vmatpush2.msra.mxu0 0.0
  %6406 = vmatprep.subr.mxu0 0.0
  %6407 = vmatpush2.msra.mxu0 0.0
  %6408 = vmatprep.subr.mxu0 0.0
  %6409 = vmatpush2.msra.mxu0 0.0
  %6410 = vmatprep.subr.mxu0 0.0
  %6411 = vmatpush2.msra.mxu0 0.0
  %6412 = vmatprep.subr.mxu0 0.0
  %6413 = vmatpush2.msra.mxu0 0.0
  %6414 = vmatprep.subr.mxu0 0.0
  %6415 = vmatpush2.msra.mxu0 0.0
  %6416 = vmatprep.subr.mxu0 0.0
  %6417 = vmatpush2.msra.mxu0 0.0
  %6418 = vmatprep.subr.mxu0 0.0
  %6419 = vmatpush2.msra.mxu0 0.0
  %6420 = vmatprep.mubr.f32.mxu0 0.0
  %6421 = vmatmul.mubr.f32.gmra.mxu0 %v6342
  %v6422 = vpop.f32.mrf.mxu0
  %v6423 = vadd.f32 0.0, %v6422
  %v6424 = vpop.f32.mrf.mxu0
  %v6425 = vadd.f32 0.0, %v6424
  %6426 = vdwg.mxu0
  %6427 = vmatprep.subr.mxu0 0.0
  %6428 = vmatpush1.msra.mxu0 0.0
  %6429 = vmatprep.subr.mxu0 0.0
  %6430 = vmatpush1.msra.mxu0 0.0
  %6431 = vmatprep.subr.mxu0 0.0
  %6432 = vmatpush1.msra.mxu0 0.0
  %6433 = vmatprep.subr.mxu0 0.0
  %6434 = vmatpush1.msra.mxu0 0.0
  %6435 = vmatprep.subr.mxu0 0.0
  %6436 = vmatpush1.msra.mxu0 0.0
  %6437 = vmatprep.subr.mxu0 0.0
  %6438 = vmatpush1.msra.mxu0 0.0
  %6439 = vmatprep.subr.mxu0 0.0
  %6440 = vmatpush1.msra.mxu0 0.0
  %6441 = vmatprep.subr.mxu0 0.0
  %6442 = vmatpush1.msra.mxu0 0.0
  %6443 = vmatprep.subr.mxu0 0.0
  %6444 = vmatpush1.msra.mxu0 0.0
  %6445 = vmatprep.subr.mxu0 0.0
  %6446 = vmatpush1.msra.mxu0 0.0
  %6447 = vmatprep.subr.mxu0 0.0
  %6448 = vmatpush1.msra.mxu0 0.0
  %6449 = vmatprep.subr.mxu0 0.0
  %6450 = vmatpush1.msra.mxu0 0.0
  %6451 = vmatprep.subr.mxu0 0.0
  %6452 = vmatpush1.msra.mxu0 0.0
  %6453 = vmatprep.subr.mxu0 0.0
  %6454 = vmatpush1.msra.mxu0 0.0
  %6455 = vmatprep.subr.mxu0 0.0
  %6456 = vmatpush1.msra.mxu0 0.0
  %6457 = vmatprep.subr.mxu0 %v6350
  %6458 = vmatpush1.msra.mxu0 %v6348
  %6459 = vmatprep.subr.mxu0 0.0
  %6460 = vmatpush2.msra.mxu0 0.0
  %6461 = vmatprep.subr.mxu0 0.0
  %6462 = vmatpush2.msra.mxu0 0.0
  %6463 = vmatprep.subr.mxu0 0.0
  %6464 = vmatpush2.msra.mxu0 0.0
  %6465 = vmatprep.subr.mxu0 0.0
  %6466 = vmatpush2.msra.mxu0 0.0
  %6467 = vmatprep.subr.mxu0 0.0
  %6468 = vmatpush2.msra.mxu0 0.0
  %6469 = vmatprep.subr.mxu0 0.0
  %6470 = vmatpush2.msra.mxu0 0.0
  %6471 = vmatprep.subr.mxu0 0.0
  %6472 = vmatpush2.msra.mxu0 0.0
  %6473 = vmatprep.subr.mxu0 0.0
  %6474 = vmatpush2.msra.mxu0 0.0
  %6475 = vmatprep.subr.mxu0 0.0
  %6476 = vmatpush2.msra.mxu0 0.0
  %6477 = vmatprep.subr.mxu0 0.0
  %6478 = vmatpush2.msra.mxu0 0.0
  %6479 = vmatprep.subr.mxu0 0.0
  %6480 = vmatpush2.msra.mxu0 0.0
  %6481 = vmatprep.subr.mxu0 0.0
  %6482 = vmatpush2.msra.mxu0 0.0
  %6483 = vmatprep.subr.mxu0 0.0
  %6484 = vmatpush2.msra.mxu0 0.0
  %6485 = vmatprep.subr.mxu0 0.0
  %6486 = vmatpush2.msra.mxu0 0.0
  %6487 = vmatprep.subr.mxu0 0.0
  %6488 = vmatpush2.msra.mxu0 0.0
  %6489 = vmatprep.subr.mxu0 0.0
  %6490 = vmatpush2.msra.mxu0 0.0
  %6491 = vmatprep.mubr.f32.mxu0 0.0
  %6492 = vmatmul.mubr.f32.gmra.mxu0 %v6342
  %v6493 = vpop.f32.mrf.mxu0
  %v6494 = vadd.f32 0.0, %v6493
  %v6495 = vpop.f32.mrf.mxu0
  %v6496 = vadd.f32 0.0, %v6495
  %6497 = vdwg.mxu0
  %6498 = vmatprep.subr.mxu0 0.0
  %6499 = vmatpush1.msra.mxu0 0.0
  %6500 = vmatprep.subr.mxu0 0.0
  %6501 = vmatpush1.msra.mxu0 0.0
  %6502 = vmatprep.subr.mxu0 0.0
  %6503 = vmatpush1.msra.mxu0 0.0
  %6504 = vmatprep.subr.mxu0 0.0
  %6505 = vmatpush1.msra.mxu0 0.0
  %6506 = vmatprep.subr.mxu0 0.0
  %6507 = vmatpush1.msra.mxu0 0.0
  %6508 = vmatprep.subr.mxu0 0.0
  %6509 = vmatpush1.msra.mxu0 0.0
  %6510 = vmatprep.subr.mxu0 0.0
  %6511 = vmatpush1.msra.mxu0 0.0
  %6512 = vmatprep.subr.mxu0 0.0
  %6513 = vmatpush1.msra.mxu0 0.0
  %6514 = vmatprep.subr.mxu0 0.0
  %6515 = vmatpush1.msra.mxu0 0.0
  %6516 = vmatprep.subr.mxu0 0.0
  %6517 = vmatpush1.msra.mxu0 0.0
  %6518 = vmatprep.subr.mxu0 0.0
  %6519 = vmatpush1.msra.mxu0 0.0
  %6520 = vmatprep.subr.mxu0 0.0
  %6521 = vmatpush1.msra.mxu0 0.0
  %6522 = vmatprep.subr.mxu0 0.0
  %6523 = vmatpush1.msra.mxu0 0.0
  %6524 = vmatprep.subr.mxu0 0.0
  %6525 = vmatpush1.msra.mxu0 0.0
  %6526 = vmatprep.subr.mxu0 0.0
  %6527 = vmatpush1.msra.mxu0 0.0
  %6528 = vmatprep.subr.mxu0 %v6354
  %6529 = vmatpush1.msra.mxu0 %v6352
  %6530 = vmatprep.subr.mxu0 0.0
  %6531 = vmatpush2.msra.mxu0 0.0
  %6532 = vmatprep.subr.mxu0 0.0
  %6533 = vmatpush2.msra.mxu0 0.0
  %6534 = vmatprep.subr.mxu0 0.0
  %6535 = vmatpush2.msra.mxu0 0.0
  %6536 = vmatprep.subr.mxu0 0.0
  %6537 = vmatpush2.msra.mxu0 0.0
  %6538 = vmatprep.subr.mxu0 0.0
  %6539 = vmatpush2.msra.mxu0 0.0
  %6540 = vmatprep.subr.mxu0 0.0
  %6541 = vmatpush2.msra.mxu0 0.0
  %6542 = vmatprep.subr.mxu0 0.0
  %6543 = vmatpush2.msra.mxu0 0.0
  %6544 = vmatprep.subr.mxu0 0.0
  %6545 = vmatpush2.msra.mxu0 0.0
  %6546 = vmatprep.subr.mxu0 0.0
  %6547 = vmatpush2.msra.mxu0 0.0
  %6548 = vmatprep.subr.mxu0 0.0
  %6549 = vmatpush2.msra.mxu0 0.0
  %6550 = vmatprep.subr.mxu0 0.0
  %6551 = vmatpush2.msra.mxu0 0.0
  %6552 = vmatprep.subr.mxu0 0.0
  %6553 = vmatpush2.msra.mxu0 0.0
  %6554 = vmatprep.subr.mxu0 0.0
  %6555 = vmatpush2.msra.mxu0 0.0
  %6556 = vmatprep.subr.mxu0 0.0
  %6557 = vmatpush2.msra.mxu0 0.0
  %6558 = vmatprep.subr.mxu0 0.0
  %6559 = vmatpush2.msra.mxu0 0.0
  %6560 = vmatprep.subr.mxu0 0.0
  %6561 = vmatpush2.msra.mxu0 0.0
  %6562 = vmatprep.mubr.f32.mxu0 0.0
  %6563 = vmatmul.mubr.f32.gmra.mxu0 %v6342
  %v6564 = vpop.f32.mrf.mxu0
  %v6565 = vadd.f32 0.0, %v6564
  %v6566 = vpop.f32.mrf.mxu0
  %v6567 = vadd.f32 0.0, %v6566
  %6568 = vdwg.mxu0
  %v6569 = vadd.f32 %v6306, %v6423
  %v6570 = vadd.f32 %v6307, %v6425
  %v6571 = vadd.f32 %v6308, %v6494
  %v6572 = vadd.f32 %v6309, %v6496
  %v6573 = vadd.f32 %v6310, %v6565
  %v6574 = vadd.f32 %v6311, %v6567
  %v6575 = vld [vmem:[%s7] sm:$0x3f]
  %v6577 = vlaneseq
  %v6578 = vshrl.u32 %v6577, 7
  %v6579 = vsub.s32 0, %v6578
  %v6580 = vrot.slane %v6575, %v6579
  %v6581 = vlaneseq
  %v6582 = vshrl.u32 %v6581, 7
  %v6583 = vsub.s32 1, %v6582
  %v6584 = vrot.slane %v6575, %v6583
  %v6585 = vlaneseq
  %v6586 = vshrl.u32 %v6585, 7
  %v6587 = vsub.s32 2, %v6586
  %v6588 = vrot.slane %v6575, %v6587
  %v6589 = vlaneseq
  %v6590 = vshrl.u32 %v6589, 7
  %v6591 = vsub.s32 3, %v6590
  %v6592 = vrot.slane %v6575, %v6591
  %v6593 = vlaneseq
  %v6594 = vshrl.u32 %v6593, 7
  %v6595 = vsub.s32 4, %v6594
  %v6596 = vrot.slane %v6575, %v6595
  %v6597 = vlaneseq
  %v6598 = vshrl.u32 %v6597, 7
  %v6599 = vsub.s32 5, %v6598
  %v6600 = vrot.slane %v6575, %v6599
  %v6607 = vmul.f32 %v6569, %v6580
  %v6608 = vmul.f32 %v6570, %v6584
  %v6609 = vmul.f32 %v6571, %v6588
  %v6610 = vmul.f32 %v6572, %v6592
  %v6611 = vmul.f32 %v6573, %v6596
  %v6612 = vmul.f32 %v6574, %v6600
  %vm6613 = vcmask 1042432
  %v6614 = vsel %vm6613, %v6607, 0.0
  %v6615 = vsel %vm6613, %v6608, 0.0
  %v6616 = vadd.f32 %v6614, %v6615
  %v6617 = vsel %vm6613, %v6609, 0.0
  %v6618 = vadd.f32 %v6616, %v6617
  %v6619 = vsel %vm6613, %v6610, 0.0
  %v6620 = vadd.f32 %v6618, %v6619
  %v6621 = vsel %vm6613, %v6611, 0.0
  %v6622 = vadd.f32 %v6620, %v6621
  %vm6623 = vcmask 59392
  %v6624 = vsel %vm6623, %v6612, 0.0
  %v6625 = vadd.f32 %v6622, %v6624
  %6626 = vadd.xlane.f32.xlu0 %v6625
  %v6627 = vpop.xlane.xlu0 %6626
  %v6628 = vmul.f32 %v6627, 0.0025510204
  %v6629 = vsub.f32 %v6569, %v6628
  %v6630 = vsub.f32 %v6570, %v6628
  %v6631 = vsub.f32 %v6571, %v6628
  %v6632 = vsub.f32 %v6572, %v6628
  %v6633 = vsub.f32 %v6573, %v6628
  %v6634 = vsub.f32 %v6574, %v6628
  %v6635 = vmul.f32 %v6629, %v6629
  %v6636 = vmul.f32 %v6630, %v6630
  %v6637 = vmul.f32 %v6631, %v6631
  %v6638 = vmul.f32 %v6632, %v6632
  %v6639 = vmul.f32 %v6633, %v6633
  %v6640 = vmul.f32 %v6634, %v6634
  %v6641 = vmul.f32 %v6635, %v6580
  %v6642 = vmul.f32 %v6636, %v6584
  %v6643 = vmul.f32 %v6637, %v6588
  %v6644 = vmul.f32 %v6638, %v6592
  %v6645 = vmul.f32 %v6639, %v6596
  %v6646 = vmul.f32 %v6640, %v6600
  %v6647 = vsel %vm6613, %v6641, 0.0
  %v6648 = vsel %vm6613, %v6642, 0.0
  %v6649 = vadd.f32 %v6647, %v6648
  %v6650 = vsel %vm6613, %v6643, 0.0
  %v6651 = vadd.f32 %v6649, %v6650
  %v6652 = vsel %vm6613, %v6644, 0.0
  %v6653 = vadd.f32 %v6651, %v6652
  %v6654 = vsel %vm6613, %v6645, 0.0
  %v6655 = vadd.f32 %v6653, %v6654
  %v6656 = vsel %vm6623, %v6646, 0.0
  %v6657 = vadd.f32 %v6655, %v6656
  %6658 = vadd.xlane.f32.xlu0 %v6657
  %v6659 = vpop.xlane.xlu0 %6658
  %v6660 = vmul.f32 %v6659, 0.0025510204
  %v6661 = vadd.f32 %v6660, 1e-05
  %v6662 = vrsqrt.pop %v6661
  %v6663 = vmul.f32 %v6629, %v6662
  %v6664 = vmul.f32 %v6630, %v6662
  %v6665 = vmul.f32 %v6631, %v6662
  %v6666 = vmul.f32 %v6632, %v6662
  %v6667 = vmul.f32 %v6633, %v6662
  %v6668 = vmul.f32 %v6634, %v6662
  %v6669 = vld [vmem:[%s3] sm:$0x7]
  %6671 = vset.pattern.permute.xlu0 0
  %6672 = vperm.xlu0 %6671, %v6669
  %v6673 = vpop.permute.xlu0 %6672
  %v6675 = vmul.f32 %v6663, %v6673
  %v6676 = vmul.f32 %v6664, %v6673
  %v6677 = vmul.f32 %v6665, %v6673
  %v6678 = vmul.f32 %v6666, %v6673
  %v6679 = vmul.f32 %v6667, %v6673
  %v6680 = vmul.f32 %v6668, %v6673
  %v6681 = vld [vmem:[%s4] sm:$0x7]
  %6683 = vset.pattern.permute.xlu0 0
  %6684 = vperm.xlu0 %6683, %v6681
  %v6685 = vpop.permute.xlu0 %6684
  %v6687 = vadd.f32 %v6675, %v6685
  %v6688 = vadd.f32 %v6676, %v6685
  %v6689 = vadd.f32 %v6677, %v6685
  %v6690 = vadd.f32 %v6678, %v6685
  %v6691 = vadd.f32 %v6679, %v6685
  %v6692 = vadd.f32 %v6680, %v6685
  %v6693 = vmax.f32 %v6687, 0.0
  %v6694 = vmax.f32 %v6688, 0.0
  %v6695 = vmax.f32 %v6689, 0.0
  %v6696 = vmax.f32 %v6690, 0.0
  %v6697 = vmax.f32 %v6691, 0.0
  %v6698 = vmax.f32 %v6692, 0.0
  %6704 = vrot.lane.b32.xlu0 %v6693, 127
  %v6705 = vpop.permute.xlu0 %6704
  %6706 = vrot.lane.b32.xlu0 %v6694, 127
  %v6707 = vpop.permute.xlu0 %6706
  %6708 = vrot.lane.b32.xlu0 %v6695, 127
  %v6709 = vpop.permute.xlu0 %6708
  %6710 = vrot.lane.b32.xlu0 %v6696, 127
  %v6711 = vpop.permute.xlu0 %6710
  %6712 = vrot.lane.b32.xlu0 %v6697, 127
  %v6713 = vpop.permute.xlu0 %6712
  %v6714 = vsel %vm62, %v6705, %v6707
  %v6715 = vsel %vm62, %v6707, %v6709
  %v6716 = vsel %vm62, %v6709, %v6711
  %v6717 = vsel %vm62, %v6711, %v6713
  %v6723 = vmax.f32 %v6693, %v6714
  %v6724 = vmax.f32 %v6694, %v6715
  %v6725 = vmax.f32 %v6695, %v6716
  %v6726 = vmax.f32 %v6696, %v6717
  %v6727 = vmax.f32 %v6697, %v6713
  %6729 = vrot.lane.b32.xlu0 %v6698, 127
  %v6730 = vpop.permute.xlu0 %6729
  %v6731 = vsel %vm62, %v6713, %v6730
  %v6734 = vmax.f32 %v6697, %v6731
  %v6735 = vmax.f32 %v6698, %v6730
  %6742 = vrot.lane.b32.xlu0 %v6723, 110
  %v6743 = vpop.permute.xlu0 %6742
  %6744 = vrot.lane.b32.xlu0 %v6724, 110
  %v6745 = vpop.permute.xlu0 %6744
  %6746 = vrot.lane.b32.xlu0 %v6725, 110
  %v6747 = vpop.permute.xlu0 %6746
  %6748 = vrot.lane.b32.xlu0 %v6726, 110
  %v6749 = vpop.permute.xlu0 %6748
  %6750 = vrot.lane.b32.xlu0 %v6734, 110
  %v6751 = vpop.permute.xlu0 %6750
  %6752 = vrot.lane.b32.xlu0 %v6735, 110
  %v6753 = vpop.permute.xlu0 %6752
  %v6754 = vsel %vm1338, %v6743, %v6745
  %v6755 = vsel %vm1338, %v6745, %v6747
  %v6756 = vsel %vm1338, %v6747, %v6749
  %v6757 = vsel %vm1338, %v6749, %v6751
  %v6758 = vsel %vm1338, %v6751, %v6753
  %v6764 = vmax.f32 %v6723, %v6754
  %v6765 = vmax.f32 %v6724, %v6755
  %v6766 = vmax.f32 %v6725, %v6756
  %v6767 = vmax.f32 %v6726, %v6757
  %v6768 = vmax.f32 %v6727, %v6758
  %v6769 = vld [vmem:[%s8] sm:$0x1f]
  %v6771 = vlaneseq
  %v6772 = vshrl.u32 %v6771, 7
  %v6773 = vsub.s32 0, %v6772
  %v6774 = vrot.slane %v6769, %v6773
  %v6775 = vlaneseq
  %v6776 = vshrl.u32 %v6775, 7
  %v6777 = vsub.s32 1, %v6776
  %v6778 = vrot.slane %v6769, %v6777
  %v6779 = vlaneseq
  %v6780 = vshrl.u32 %v6779, 7
  %v6781 = vsub.s32 2, %v6780
  %v6782 = vrot.slane %v6769, %v6781
  %v6783 = vlaneseq
  %v6784 = vshrl.u32 %v6783, 7
  %v6785 = vsub.s32 3, %v6784
  %v6786 = vrot.slane %v6769, %v6785
  %v6787 = vlaneseq
  %v6788 = vshrl.u32 %v6787, 7
  %v6789 = vsub.s32 4, %v6788
  %v6790 = vrot.slane %v6769, %v6789
  %v6796 = vmul.f32 %v6764, %v6774
  %v6797 = vmul.f32 %v6765, %v6778
  %v6798 = vmul.f32 %v6766, %v6782
  %v6799 = vmul.f32 %v6767, %v6786
  %v6800 = vmul.f32 %v6768, %v6790
  %v6801 = vld [vmem:[%s2] sm:$0xf]
  %s6802 = scalar_lea.vmem %s2, 4
  %v6803 = vld [vmem:[%s6802] sm:$0xf]
  %6809 = vrot.lane.b32.xlu0 %v6796, 126
  %v6810 = vpop.permute.xlu0 %6809
  %6811 = vrot.lane.b32.xlu0 %v6797, 126
  %v6812 = vpop.permute.xlu0 %6811
  %6813 = vrot.lane.b32.xlu0 %v6798, 126
  %v6814 = vpop.permute.xlu0 %6813
  %6815 = vrot.lane.b32.xlu0 %v6799, 126
  %v6816 = vpop.permute.xlu0 %6815
  %6817 = vrot.lane.b32.xlu0 %v6800, 126
  %v6818 = vpop.permute.xlu0 %6817
  %v6819 = vsel %vm549, %v6810, %v6812
  %v6820 = vsel %vm549, %v6812, %v6814
  %v6821 = vsel %vm549, %v6814, %v6816
  %v6822 = vsel %vm549, %v6816, %v6818
  %vm6823 = vcmask 23552
  %v6825 = vsel %vm6823, %v6803, 0
  %v6827 = vsel %vm6613, %v6819, 0
  %v6829 = vsel %vm6613, %v6820, 0
  %v6831 = vsel %vm6613, %v6821, 0
  %v6833 = vsel %vm6613, %v6822, 0
  %v6835 = vsel %vm6613, %v6818, 0
  %6837 = vmatprep.subr.mxu0 0.0
  %6838 = vmatpush1.msra.mxu0 0.0
  %6839 = vmatprep.subr.mxu0 0.0
  %6840 = vmatpush1.msra.mxu0 0.0
  %6841 = vmatprep.subr.mxu0 0.0
  %6842 = vmatpush1.msra.mxu0 0.0
  %6843 = vmatprep.subr.mxu0 0.0
  %6844 = vmatpush1.msra.mxu0 0.0
  %6845 = vmatprep.subr.mxu0 0.0
  %6846 = vmatpush1.msra.mxu0 0.0
  %6847 = vmatprep.subr.mxu0 0.0
  %6848 = vmatpush1.msra.mxu0 0.0
  %6849 = vmatprep.subr.mxu0 0.0
  %6850 = vmatpush1.msra.mxu0 0.0
  %6851 = vmatprep.subr.mxu0 0.0
  %6852 = vmatpush1.msra.mxu0 0.0
  %6853 = vmatprep.subr.mxu0 0.0
  %6854 = vmatpush1.msra.mxu0 0.0
  %6855 = vmatprep.subr.mxu0 0.0
  %6856 = vmatpush1.msra.mxu0 0.0
  %6857 = vmatprep.subr.mxu0 0.0
  %6858 = vmatpush1.msra.mxu0 0.0
  %6859 = vmatprep.subr.mxu0 0.0
  %6860 = vmatpush1.msra.mxu0 0.0
  %6861 = vmatprep.subr.mxu0 0.0
  %6862 = vmatpush1.msra.mxu0 0.0
  %6863 = vmatprep.subr.mxu0 0.0
  %6864 = vmatpush1.msra.mxu0 0.0
  %6865 = vmatprep.subr.mxu0 0.0
  %6866 = vmatpush1.msra.mxu0 0.0
  %6867 = vmatprep.subr.mxu0 %v6829
  %6868 = vmatpush1.msra.mxu0 %v6827
  %6869 = vmatprep.subr.mxu0 0.0
  %6870 = vmatpush2.msra.mxu0 0.0
  %6871 = vmatprep.subr.mxu0 0.0
  %6872 = vmatpush2.msra.mxu0 0.0
  %6873 = vmatprep.subr.mxu0 0.0
  %6874 = vmatpush2.msra.mxu0 0.0
  %6875 = vmatprep.subr.mxu0 0.0
  %6876 = vmatpush2.msra.mxu0 0.0
  %6877 = vmatprep.subr.mxu0 0.0
  %6878 = vmatpush2.msra.mxu0 0.0
  %6879 = vmatprep.subr.mxu0 0.0
  %6880 = vmatpush2.msra.mxu0 0.0
  %6881 = vmatprep.subr.mxu0 0.0
  %6882 = vmatpush2.msra.mxu0 0.0
  %6883 = vmatprep.subr.mxu0 0.0
  %6884 = vmatpush2.msra.mxu0 0.0
  %6885 = vmatprep.subr.mxu0 0.0
  %6886 = vmatpush2.msra.mxu0 0.0
  %6887 = vmatprep.subr.mxu0 0.0
  %6888 = vmatpush2.msra.mxu0 0.0
  %6889 = vmatprep.subr.mxu0 0.0
  %6890 = vmatpush2.msra.mxu0 0.0
  %6891 = vmatprep.subr.mxu0 0.0
  %6892 = vmatpush2.msra.mxu0 0.0
  %6893 = vmatprep.subr.mxu0 0.0
  %6894 = vmatpush2.msra.mxu0 0.0
  %6895 = vmatprep.subr.mxu0 0.0
  %6896 = vmatpush2.msra.mxu0 0.0
  %6897 = vmatprep.subr.mxu0 0.0
  %6898 = vmatpush2.msra.mxu0 0.0
  %6899 = vmatprep.subr.mxu0 0.0
  %6900 = vmatpush2.msra.mxu0 0.0
  %6901 = vmatprep.mubr.f32.mxu0 0.0
  %6902 = vmatmul.mubr.f32.gmra.mxu0 %v6825
  %v6903 = vpop.f32.mrf.mxu0
  %v6904 = vadd.f32 0.0, %v6903
  %v6905 = vpop.f32.mrf.mxu0
  %v6906 = vadd.f32 0.0, %v6905
  %6907 = vdwg.mxu0
  %6908 = vmatprep.subr.mxu0 0.0
  %6909 = vmatpush1.msra.mxu0 0.0
  %6910 = vmatprep.subr.mxu0 0.0
  %6911 = vmatpush1.msra.mxu0 0.0
  %6912 = vmatprep.subr.mxu0 0.0
  %6913 = vmatpush1.msra.mxu0 0.0
  %6914 = vmatprep.subr.mxu0 0.0
  %6915 = vmatpush1.msra.mxu0 0.0
  %6916 = vmatprep.subr.mxu0 0.0
  %6917 = vmatpush1.msra.mxu0 0.0
  %6918 = vmatprep.subr.mxu0 0.0
  %6919 = vmatpush1.msra.mxu0 0.0
  %6920 = vmatprep.subr.mxu0 0.0
  %6921 = vmatpush1.msra.mxu0 0.0
  %6922 = vmatprep.subr.mxu0 0.0
  %6923 = vmatpush1.msra.mxu0 0.0
  %6924 = vmatprep.subr.mxu0 0.0
  %6925 = vmatpush1.msra.mxu0 0.0
  %6926 = vmatprep.subr.mxu0 0.0
  %6927 = vmatpush1.msra.mxu0 0.0
  %6928 = vmatprep.subr.mxu0 0.0
  %6929 = vmatpush1.msra.mxu0 0.0
  %6930 = vmatprep.subr.mxu0 0.0
  %6931 = vmatpush1.msra.mxu0 0.0
  %6932 = vmatprep.subr.mxu0 0.0
  %6933 = vmatpush1.msra.mxu0 0.0
  %6934 = vmatprep.subr.mxu0 0.0
  %6935 = vmatpush1.msra.mxu0 0.0
  %6936 = vmatprep.subr.mxu0 0.0
  %6937 = vmatpush1.msra.mxu0 0.0
  %6938 = vmatprep.subr.mxu0 %v6833
  %6939 = vmatpush1.msra.mxu0 %v6831
  %6940 = vmatprep.subr.mxu0 0.0
  %6941 = vmatpush2.msra.mxu0 0.0
  %6942 = vmatprep.subr.mxu0 0.0
  %6943 = vmatpush2.msra.mxu0 0.0
  %6944 = vmatprep.subr.mxu0 0.0
  %6945 = vmatpush2.msra.mxu0 0.0
  %6946 = vmatprep.subr.mxu0 0.0
  %6947 = vmatpush2.msra.mxu0 0.0
  %6948 = vmatprep.subr.mxu0 0.0
  %6949 = vmatpush2.msra.mxu0 0.0
  %6950 = vmatprep.subr.mxu0 0.0
  %6951 = vmatpush2.msra.mxu0 0.0
  %6952 = vmatprep.subr.mxu0 0.0
  %6953 = vmatpush2.msra.mxu0 0.0
  %6954 = vmatprep.subr.mxu0 0.0
  %6955 = vmatpush2.msra.mxu0 0.0
  %6956 = vmatprep.subr.mxu0 0.0
  %6957 = vmatpush2.msra.mxu0 0.0
  %6958 = vmatprep.subr.mxu0 0.0
  %6959 = vmatpush2.msra.mxu0 0.0
  %6960 = vmatprep.subr.mxu0 0.0
  %6961 = vmatpush2.msra.mxu0 0.0
  %6962 = vmatprep.subr.mxu0 0.0
  %6963 = vmatpush2.msra.mxu0 0.0
  %6964 = vmatprep.subr.mxu0 0.0
  %6965 = vmatpush2.msra.mxu0 0.0
  %6966 = vmatprep.subr.mxu0 0.0
  %6967 = vmatpush2.msra.mxu0 0.0
  %6968 = vmatprep.subr.mxu0 0.0
  %6969 = vmatpush2.msra.mxu0 0.0
  %6970 = vmatprep.subr.mxu0 0.0
  %6971 = vmatpush2.msra.mxu0 0.0
  %6972 = vmatprep.mubr.f32.mxu0 0.0
  %6973 = vmatmul.mubr.f32.gmra.mxu0 %v6825
  %v6974 = vpop.f32.mrf.mxu0
  %v6975 = vadd.f32 0.0, %v6974
  %v6976 = vpop.f32.mrf.mxu0
  %v6977 = vadd.f32 0.0, %v6976
  %6978 = vdwg.mxu0
  %6979 = vmatprep.subr.mxu0 0.0
  %6980 = vmatpush1.msra.mxu0 0.0
  %6981 = vmatprep.subr.mxu0 0.0
  %6982 = vmatpush1.msra.mxu0 0.0
  %6983 = vmatprep.subr.mxu0 0.0
  %6984 = vmatpush1.msra.mxu0 0.0
  %6985 = vmatprep.subr.mxu0 0.0
  %6986 = vmatpush1.msra.mxu0 0.0
  %6987 = vmatprep.subr.mxu0 0.0
  %6988 = vmatpush1.msra.mxu0 0.0
  %6989 = vmatprep.subr.mxu0 0.0
  %6990 = vmatpush1.msra.mxu0 0.0
  %6991 = vmatprep.subr.mxu0 0.0
  %6992 = vmatpush1.msra.mxu0 0.0
  %6993 = vmatprep.subr.mxu0 0.0
  %6994 = vmatpush1.msra.mxu0 0.0
  %6995 = vmatprep.subr.mxu0 0.0
  %6996 = vmatpush1.msra.mxu0 0.0
  %6997 = vmatprep.subr.mxu0 0.0
  %6998 = vmatpush1.msra.mxu0 0.0
  %6999 = vmatprep.subr.mxu0 0.0
  %7000 = vmatpush1.msra.mxu0 0.0
  %7001 = vmatprep.subr.mxu0 0.0
  %7002 = vmatpush1.msra.mxu0 0.0
  %7003 = vmatprep.subr.mxu0 0.0
  %7004 = vmatpush1.msra.mxu0 0.0
  %7005 = vmatprep.subr.mxu0 0.0
  %7006 = vmatpush1.msra.mxu0 0.0
  %7007 = vmatprep.subr.mxu0 0.0
  %7008 = vmatpush1.msra.mxu0 0.0
  %7009 = vmatprep.subr.mxu0 0.0
  %7010 = vmatpush1.msra.mxu0 %v6835
  %7011 = vmatprep.subr.mxu0 0.0
  %7012 = vmatpush2.msra.mxu0 0.0
  %7013 = vmatprep.subr.mxu0 0.0
  %7014 = vmatpush2.msra.mxu0 0.0
  %7015 = vmatprep.subr.mxu0 0.0
  %7016 = vmatpush2.msra.mxu0 0.0
  %7017 = vmatprep.subr.mxu0 0.0
  %7018 = vmatpush2.msra.mxu0 0.0
  %7019 = vmatprep.subr.mxu0 0.0
  %7020 = vmatpush2.msra.mxu0 0.0
  %7021 = vmatprep.subr.mxu0 0.0
  %7022 = vmatpush2.msra.mxu0 0.0
  %7023 = vmatprep.subr.mxu0 0.0
  %7024 = vmatpush2.msra.mxu0 0.0
  %7025 = vmatprep.subr.mxu0 0.0
  %7026 = vmatpush2.msra.mxu0 0.0
  %7027 = vmatprep.subr.mxu0 0.0
  %7028 = vmatpush2.msra.mxu0 0.0
  %7029 = vmatprep.subr.mxu0 0.0
  %7030 = vmatpush2.msra.mxu0 0.0
  %7031 = vmatprep.subr.mxu0 0.0
  %7032 = vmatpush2.msra.mxu0 0.0
  %7033 = vmatprep.subr.mxu0 0.0
  %7034 = vmatpush2.msra.mxu0 0.0
  %7035 = vmatprep.subr.mxu0 0.0
  %7036 = vmatpush2.msra.mxu0 0.0
  %7037 = vmatprep.subr.mxu0 0.0
  %7038 = vmatpush2.msra.mxu0 0.0
  %7039 = vmatprep.subr.mxu0 0.0
  %7040 = vmatpush2.msra.mxu0 0.0
  %7041 = vmatprep.subr.mxu0 0.0
  %7042 = vmatpush2.msra.mxu0 0.0
  %7043 = vmatprep.mubr.f32.mxu0 0.0
  %7044 = vmatmul.mubr.f32.gmra.mxu0 %v6825
  %v7045 = vpop.f32.mrf.mxu0
  %v7046 = vadd.f32 0.0, %v7045
  %v7047 = vpop.f32.mrf.mxu0
  %7048 = vdwg.mxu0
  %v7050 = vsel %vm6823, %v6801, 0
  %v7052 = vsel %vm6613, %v6796, 0
  %v7054 = vsel %vm6613, %v6797, 0
  %v7056 = vsel %vm6613, %v6798, 0
  %v7058 = vsel %vm6613, %v6799, 0
  %v7060 = vsel %vm6613, %v6800, 0
  %7062 = vmatprep.subr.mxu0 0.0
  %7063 = vmatpush1.msra.mxu0 0.0
  %7064 = vmatprep.subr.mxu0 0.0
  %7065 = vmatpush1.msra.mxu0 0.0
  %7066 = vmatprep.subr.mxu0 0.0
  %7067 = vmatpush1.msra.mxu0 0.0
  %7068 = vmatprep.subr.mxu0 0.0
  %7069 = vmatpush1.msra.mxu0 0.0
  %7070 = vmatprep.subr.mxu0 0.0
  %7071 = vmatpush1.msra.mxu0 0.0
  %7072 = vmatprep.subr.mxu0 0.0
  %7073 = vmatpush1.msra.mxu0 0.0
  %7074 = vmatprep.subr.mxu0 0.0
  %7075 = vmatpush1.msra.mxu0 0.0
  %7076 = vmatprep.subr.mxu0 0.0
  %7077 = vmatpush1.msra.mxu0 0.0
  %7078 = vmatprep.subr.mxu0 0.0
  %7079 = vmatpush1.msra.mxu0 0.0
  %7080 = vmatprep.subr.mxu0 0.0
  %7081 = vmatpush1.msra.mxu0 0.0
  %7082 = vmatprep.subr.mxu0 0.0
  %7083 = vmatpush1.msra.mxu0 0.0
  %7084 = vmatprep.subr.mxu0 0.0
  %7085 = vmatpush1.msra.mxu0 0.0
  %7086 = vmatprep.subr.mxu0 0.0
  %7087 = vmatpush1.msra.mxu0 0.0
  %7088 = vmatprep.subr.mxu0 0.0
  %7089 = vmatpush1.msra.mxu0 0.0
  %7090 = vmatprep.subr.mxu0 0.0
  %7091 = vmatpush1.msra.mxu0 0.0
  %7092 = vmatprep.subr.mxu0 %v7054
  %7093 = vmatpush1.msra.mxu0 %v7052
  %7094 = vmatprep.subr.mxu0 0.0
  %7095 = vmatpush2.msra.mxu0 0.0
  %7096 = vmatprep.subr.mxu0 0.0
  %7097 = vmatpush2.msra.mxu0 0.0
  %7098 = vmatprep.subr.mxu0 0.0
  %7099 = vmatpush2.msra.mxu0 0.0
  %7100 = vmatprep.subr.mxu0 0.0
  %7101 = vmatpush2.msra.mxu0 0.0
  %7102 = vmatprep.subr.mxu0 0.0
  %7103 = vmatpush2.msra.mxu0 0.0
  %7104 = vmatprep.subr.mxu0 0.0
  %7105 = vmatpush2.msra.mxu0 0.0
  %7106 = vmatprep.subr.mxu0 0.0
  %7107 = vmatpush2.msra.mxu0 0.0
  %7108 = vmatprep.subr.mxu0 0.0
  %7109 = vmatpush2.msra.mxu0 0.0
  %7110 = vmatprep.subr.mxu0 0.0
  %7111 = vmatpush2.msra.mxu0 0.0
  %7112 = vmatprep.subr.mxu0 0.0
  %7113 = vmatpush2.msra.mxu0 0.0
  %7114 = vmatprep.subr.mxu0 0.0
  %7115 = vmatpush2.msra.mxu0 0.0
  %7116 = vmatprep.subr.mxu0 0.0
  %7117 = vmatpush2.msra.mxu0 0.0
  %7118 = vmatprep.subr.mxu0 0.0
  %7119 = vmatpush2.msra.mxu0 0.0
  %7120 = vmatprep.subr.mxu0 0.0
  %7121 = vmatpush2.msra.mxu0 0.0
  %7122 = vmatprep.subr.mxu0 0.0
  %7123 = vmatpush2.msra.mxu0 0.0
  %7124 = vmatprep.subr.mxu0 0.0
  %7125 = vmatpush2.msra.mxu0 0.0
  %7126 = vmatprep.mubr.f32.mxu0 0.0
  %7127 = vmatmul.mubr.f32.gmra.mxu0 %v7050
  %v7128 = vpop.f32.mrf.mxu0
  %v7129 = vadd.f32 %v6904, %v7128
  %v7130 = vpop.f32.mrf.mxu0
  %v7131 = vadd.f32 %v6906, %v7130
  %7132 = vdwg.mxu0
  %7133 = vmatprep.subr.mxu0 0.0
  %7134 = vmatpush1.msra.mxu0 0.0
  %7135 = vmatprep.subr.mxu0 0.0
  %7136 = vmatpush1.msra.mxu0 0.0
  %7137 = vmatprep.subr.mxu0 0.0
  %7138 = vmatpush1.msra.mxu0 0.0
  %7139 = vmatprep.subr.mxu0 0.0
  %7140 = vmatpush1.msra.mxu0 0.0
  %7141 = vmatprep.subr.mxu0 0.0
  %7142 = vmatpush1.msra.mxu0 0.0
  %7143 = vmatprep.subr.mxu0 0.0
  %7144 = vmatpush1.msra.mxu0 0.0
  %7145 = vmatprep.subr.mxu0 0.0
  %7146 = vmatpush1.msra.mxu0 0.0
  %7147 = vmatprep.subr.mxu0 0.0
  %7148 = vmatpush1.msra.mxu0 0.0
  %7149 = vmatprep.subr.mxu0 0.0
  %7150 = vmatpush1.msra.mxu0 0.0
  %7151 = vmatprep.subr.mxu0 0.0
  %7152 = vmatpush1.msra.mxu0 0.0
  %7153 = vmatprep.subr.mxu0 0.0
  %7154 = vmatpush1.msra.mxu0 0.0
  %7155 = vmatprep.subr.mxu0 0.0
  %7156 = vmatpush1.msra.mxu0 0.0
  %7157 = vmatprep.subr.mxu0 0.0
  %7158 = vmatpush1.msra.mxu0 0.0
  %7159 = vmatprep.subr.mxu0 0.0
  %7160 = vmatpush1.msra.mxu0 0.0
  %7161 = vmatprep.subr.mxu0 0.0
  %7162 = vmatpush1.msra.mxu0 0.0
  %7163 = vmatprep.subr.mxu0 %v7058
  %7164 = vmatpush1.msra.mxu0 %v7056
  %7165 = vmatprep.subr.mxu0 0.0
  %7166 = vmatpush2.msra.mxu0 0.0
  %7167 = vmatprep.subr.mxu0 0.0
  %7168 = vmatpush2.msra.mxu0 0.0
  %7169 = vmatprep.subr.mxu0 0.0
  %7170 = vmatpush2.msra.mxu0 0.0
  %7171 = vmatprep.subr.mxu0 0.0
  %7172 = vmatpush2.msra.mxu0 0.0
  %7173 = vmatprep.subr.mxu0 0.0
  %7174 = vmatpush2.msra.mxu0 0.0
  %7175 = vmatprep.subr.mxu0 0.0
  %7176 = vmatpush2.msra.mxu0 0.0
  %7177 = vmatprep.subr.mxu0 0.0
  %7178 = vmatpush2.msra.mxu0 0.0
  %7179 = vmatprep.subr.mxu0 0.0
  %7180 = vmatpush2.msra.mxu0 0.0
  %7181 = vmatprep.subr.mxu0 0.0
  %7182 = vmatpush2.msra.mxu0 0.0
  %7183 = vmatprep.subr.mxu0 0.0
  %7184 = vmatpush2.msra.mxu0 0.0
  %7185 = vmatprep.subr.mxu0 0.0
  %7186 = vmatpush2.msra.mxu0 0.0
  %7187 = vmatprep.subr.mxu0 0.0
  %7188 = vmatpush2.msra.mxu0 0.0
  %7189 = vmatprep.subr.mxu0 0.0
  %7190 = vmatpush2.msra.mxu0 0.0
  %7191 = vmatprep.subr.mxu0 0.0
  %7192 = vmatpush2.msra.mxu0 0.0
  %7193 = vmatprep.subr.mxu0 0.0
  %7194 = vmatpush2.msra.mxu0 0.0
  %7195 = vmatprep.subr.mxu0 0.0
  %7196 = vmatpush2.msra.mxu0 0.0
  %7197 = vmatprep.mubr.f32.mxu0 0.0
  %7198 = vmatmul.mubr.f32.gmra.mxu0 %v7050
  %v7199 = vpop.f32.mrf.mxu0
  %v7200 = vadd.f32 %v6975, %v7199
  %v7201 = vpop.f32.mrf.mxu0
  %v7202 = vadd.f32 %v6977, %v7201
  %7203 = vdwg.mxu0
  %7204 = vmatprep.subr.mxu0 0.0
  %7205 = vmatpush1.msra.mxu0 0.0
  %7206 = vmatprep.subr.mxu0 0.0
  %7207 = vmatpush1.msra.mxu0 0.0
  %7208 = vmatprep.subr.mxu0 0.0
  %7209 = vmatpush1.msra.mxu0 0.0
  %7210 = vmatprep.subr.mxu0 0.0
  %7211 = vmatpush1.msra.mxu0 0.0
  %7212 = vmatprep.subr.mxu0 0.0
  %7213 = vmatpush1.msra.mxu0 0.0
  %7214 = vmatprep.subr.mxu0 0.0
  %7215 = vmatpush1.msra.mxu0 0.0
  %7216 = vmatprep.subr.mxu0 0.0
  %7217 = vmatpush1.msra.mxu0 0.0
  %7218 = vmatprep.subr.mxu0 0.0
  %7219 = vmatpush1.msra.mxu0 0.0
  %7220 = vmatprep.subr.mxu0 0.0
  %7221 = vmatpush1.msra.mxu0 0.0
  %7222 = vmatprep.subr.mxu0 0.0
  %7223 = vmatpush1.msra.mxu0 0.0
  %7224 = vmatprep.subr.mxu0 0.0
  %7225 = vmatpush1.msra.mxu0 0.0
  %7226 = vmatprep.subr.mxu0 0.0
  %7227 = vmatpush1.msra.mxu0 0.0
  %7228 = vmatprep.subr.mxu0 0.0
  %7229 = vmatpush1.msra.mxu0 0.0
  %7230 = vmatprep.subr.mxu0 0.0
  %7231 = vmatpush1.msra.mxu0 0.0
  %7232 = vmatprep.subr.mxu0 0.0
  %7233 = vmatpush1.msra.mxu0 0.0
  %7234 = vmatprep.subr.mxu0 0.0
  %7235 = vmatpush1.msra.mxu0 %v7060
  %7236 = vmatprep.subr.mxu0 0.0
  %7237 = vmatpush2.msra.mxu0 0.0
  %7238 = vmatprep.subr.mxu0 0.0
  %7239 = vmatpush2.msra.mxu0 0.0
  %7240 = vmatprep.subr.mxu0 0.0
  %7241 = vmatpush2.msra.mxu0 0.0
  %7242 = vmatprep.subr.mxu0 0.0
  %7243 = vmatpush2.msra.mxu0 0.0
  %7244 = vmatprep.subr.mxu0 0.0
  %7245 = vmatpush2.msra.mxu0 0.0
  %7246 = vmatprep.subr.mxu0 0.0
  %7247 = vmatpush2.msra.mxu0 0.0
  %7248 = vmatprep.subr.mxu0 0.0
  %7249 = vmatpush2.msra.mxu0 0.0
  %7250 = vmatprep.subr.mxu0 0.0
  %7251 = vmatpush2.msra.mxu0 0.0
  %7252 = vmatprep.subr.mxu0 0.0
  %7253 = vmatpush2.msra.mxu0 0.0
  %7254 = vmatprep.subr.mxu0 0.0
  %7255 = vmatpush2.msra.mxu0 0.0
  %7256 = vmatprep.subr.mxu0 0.0
  %7257 = vmatpush2.msra.mxu0 0.0
  %7258 = vmatprep.subr.mxu0 0.0
  %7259 = vmatpush2.msra.mxu0 0.0
  %7260 = vmatprep.subr.mxu0 0.0
  %7261 = vmatpush2.msra.mxu0 0.0
  %7262 = vmatprep.subr.mxu0 0.0
  %7263 = vmatpush2.msra.mxu0 0.0
  %7264 = vmatprep.subr.mxu0 0.0
  %7265 = vmatpush2.msra.mxu0 0.0
  %7266 = vmatprep.subr.mxu0 0.0
  %7267 = vmatpush2.msra.mxu0 0.0
  %7268 = vmatprep.mubr.f32.mxu0 0.0
  %7269 = vmatmul.mubr.f32.gmra.mxu0 %v7050
  %v7270 = vpop.f32.mrf.mxu0
  %v7271 = vadd.f32 %v7046, %v7270
  %v7272 = vpop.f32.mrf.mxu0
  %7273 = vdwg.mxu0
  %s7274 = scalar_lea.vmem %s2, 8
  %v7275 = vld [vmem:[%s7274] sm:$0xf]
  %7276 = vrot.lane.b32.xlu0 %v6796, 124
  %v7277 = vpop.permute.xlu0 %7276
  %7278 = vrot.lane.b32.xlu0 %v6797, 124
  %v7279 = vpop.permute.xlu0 %7278
  %7280 = vrot.lane.b32.xlu0 %v6798, 124
  %v7281 = vpop.permute.xlu0 %7280
  %7282 = vrot.lane.b32.xlu0 %v6799, 124
  %v7283 = vpop.permute.xlu0 %7282
  %7284 = vrot.lane.b32.xlu0 %v6800, 124
  %v7285 = vpop.permute.xlu0 %7284
  %v7286 = vsel %vm1075, %v7277, %v7279
  %v7287 = vsel %vm1075, %v7279, %v7281
  %v7288 = vsel %vm1075, %v7281, %v7283
  %v7289 = vsel %vm1075, %v7283, %v7285
  %v7291 = vsel %vm6823, %v7275, 0
  %v7293 = vsel %vm6613, %v7286, 0
  %v7295 = vsel %vm6613, %v7287, 0
  %v7297 = vsel %vm6613, %v7288, 0
  %v7299 = vsel %vm6613, %v7289, 0
  %v7301 = vsel %vm6613, %v7285, 0
  %7303 = vmatprep.subr.mxu0 0.0
  %7304 = vmatpush1.msra.mxu0 0.0
  %7305 = vmatprep.subr.mxu0 0.0
  %7306 = vmatpush1.msra.mxu0 0.0
  %7307 = vmatprep.subr.mxu0 0.0
  %7308 = vmatpush1.msra.mxu0 0.0
  %7309 = vmatprep.subr.mxu0 0.0
  %7310 = vmatpush1.msra.mxu0 0.0
  %7311 = vmatprep.subr.mxu0 0.0
  %7312 = vmatpush1.msra.mxu0 0.0
  %7313 = vmatprep.subr.mxu0 0.0
  %7314 = vmatpush1.msra.mxu0 0.0
  %7315 = vmatprep.subr.mxu0 0.0
  %7316 = vmatpush1.msra.mxu0 0.0
  %7317 = vmatprep.subr.mxu0 0.0
  %7318 = vmatpush1.msra.mxu0 0.0
  %7319 = vmatprep.subr.mxu0 0.0
  %7320 = vmatpush1.msra.mxu0 0.0
  %7321 = vmatprep.subr.mxu0 0.0
  %7322 = vmatpush1.msra.mxu0 0.0
  %7323 = vmatprep.subr.mxu0 0.0
  %7324 = vmatpush1.msra.mxu0 0.0
  %7325 = vmatprep.subr.mxu0 0.0
  %7326 = vmatpush1.msra.mxu0 0.0
  %7327 = vmatprep.subr.mxu0 0.0
  %7328 = vmatpush1.msra.mxu0 0.0
  %7329 = vmatprep.subr.mxu0 0.0
  %7330 = vmatpush1.msra.mxu0 0.0
  %7331 = vmatprep.subr.mxu0 0.0
  %7332 = vmatpush1.msra.mxu0 0.0
  %7333 = vmatprep.subr.mxu0 %v7295
  %7334 = vmatpush1.msra.mxu0 %v7293
  %7335 = vmatprep.subr.mxu0 0.0
  %7336 = vmatpush2.msra.mxu0 0.0
  %7337 = vmatprep.subr.mxu0 0.0
  %7338 = vmatpush2.msra.mxu0 0.0
  %7339 = vmatprep.subr.mxu0 0.0
  %7340 = vmatpush2.msra.mxu0 0.0
  %7341 = vmatprep.subr.mxu0 0.0
  %7342 = vmatpush2.msra.mxu0 0.0
  %7343 = vmatprep.subr.mxu0 0.0
  %7344 = vmatpush2.msra.mxu0 0.0
  %7345 = vmatprep.subr.mxu0 0.0
  %7346 = vmatpush2.msra.mxu0 0.0
  %7347 = vmatprep.subr.mxu0 0.0
  %7348 = vmatpush2.msra.mxu0 0.0
  %7349 = vmatprep.subr.mxu0 0.0
  %7350 = vmatpush2.msra.mxu0 0.0
  %7351 = vmatprep.subr.mxu0 0.0
  %7352 = vmatpush2.msra.mxu0 0.0
  %7353 = vmatprep.subr.mxu0 0.0
  %7354 = vmatpush2.msra.mxu0 0.0
  %7355 = vmatprep.subr.mxu0 0.0
  %7356 = vmatpush2.msra.mxu0 0.0
  %7357 = vmatprep.subr.mxu0 0.0
  %7358 = vmatpush2.msra.mxu0 0.0
  %7359 = vmatprep.subr.mxu0 0.0
  %7360 = vmatpush2.msra.mxu0 0.0
  %7361 = vmatprep.subr.mxu0 0.0
  %7362 = vmatpush2.msra.mxu0 0.0
  %7363 = vmatprep.subr.mxu0 0.0
  %7364 = vmatpush2.msra.mxu0 0.0
  %7365 = vmatprep.subr.mxu0 0.0
  %7366 = vmatpush2.msra.mxu0 0.0
  %7367 = vmatprep.mubr.f32.mxu0 0.0
  %7368 = vmatmul.mubr.f32.gmra.mxu0 %v7291
  %v7369 = vpop.f32.mrf.mxu0
  %v7370 = vadd.f32 0.0, %v7369
  %v7371 = vpop.f32.mrf.mxu0
  %v7372 = vadd.f32 0.0, %v7371
  %7373 = vdwg.mxu0
  %7374 = vmatprep.subr.mxu0 0.0
  %7375 = vmatpush1.msra.mxu0 0.0
  %7376 = vmatprep.subr.mxu0 0.0
  %7377 = vmatpush1.msra.mxu0 0.0
  %7378 = vmatprep.subr.mxu0 0.0
  %7379 = vmatpush1.msra.mxu0 0.0
  %7380 = vmatprep.subr.mxu0 0.0
  %7381 = vmatpush1.msra.mxu0 0.0
  %7382 = vmatprep.subr.mxu0 0.0
  %7383 = vmatpush1.msra.mxu0 0.0
  %7384 = vmatprep.subr.mxu0 0.0
  %7385 = vmatpush1.msra.mxu0 0.0
  %7386 = vmatprep.subr.mxu0 0.0
  %7387 = vmatpush1.msra.mxu0 0.0
  %7388 = vmatprep.subr.mxu0 0.0
  %7389 = vmatpush1.msra.mxu0 0.0
  %7390 = vmatprep.subr.mxu0 0.0
  %7391 = vmatpush1.msra.mxu0 0.0
  %7392 = vmatprep.subr.mxu0 0.0
  %7393 = vmatpush1.msra.mxu0 0.0
  %7394 = vmatprep.subr.mxu0 0.0
  %7395 = vmatpush1.msra.mxu0 0.0
  %7396 = vmatprep.subr.mxu0 0.0
  %7397 = vmatpush1.msra.mxu0 0.0
  %7398 = vmatprep.subr.mxu0 0.0
  %7399 = vmatpush1.msra.mxu0 0.0
  %7400 = vmatprep.subr.mxu0 0.0
  %7401 = vmatpush1.msra.mxu0 0.0
  %7402 = vmatprep.subr.mxu0 0.0
  %7403 = vmatpush1.msra.mxu0 0.0
  %7404 = vmatprep.subr.mxu0 %v7299
  %7405 = vmatpush1.msra.mxu0 %v7297
  %7406 = vmatprep.subr.mxu0 0.0
  %7407 = vmatpush2.msra.mxu0 0.0
  %7408 = vmatprep.subr.mxu0 0.0
  %7409 = vmatpush2.msra.mxu0 0.0
  %7410 = vmatprep.subr.mxu0 0.0
  %7411 = vmatpush2.msra.mxu0 0.0
  %7412 = vmatprep.subr.mxu0 0.0
  %7413 = vmatpush2.msra.mxu0 0.0
  %7414 = vmatprep.subr.mxu0 0.0
  %7415 = vmatpush2.msra.mxu0 0.0
  %7416 = vmatprep.subr.mxu0 0.0
  %7417 = vmatpush2.msra.mxu0 0.0
  %7418 = vmatprep.subr.mxu0 0.0
  %7419 = vmatpush2.msra.mxu0 0.0
  %7420 = vmatprep.subr.mxu0 0.0
  %7421 = vmatpush2.msra.mxu0 0.0
  %7422 = vmatprep.subr.mxu0 0.0
  %7423 = vmatpush2.msra.mxu0 0.0
  %7424 = vmatprep.subr.mxu0 0.0
  %7425 = vmatpush2.msra.mxu0 0.0
  %7426 = vmatprep.subr.mxu0 0.0
  %7427 = vmatpush2.msra.mxu0 0.0
  %7428 = vmatprep.subr.mxu0 0.0
  %7429 = vmatpush2.msra.mxu0 0.0
  %7430 = vmatprep.subr.mxu0 0.0
  %7431 = vmatpush2.msra.mxu0 0.0
  %7432 = vmatprep.subr.mxu0 0.0
  %7433 = vmatpush2.msra.mxu0 0.0
  %7434 = vmatprep.subr.mxu0 0.0
  %7435 = vmatpush2.msra.mxu0 0.0
  %7436 = vmatprep.subr.mxu0 0.0
  %7437 = vmatpush2.msra.mxu0 0.0
  %7438 = vmatprep.mubr.f32.mxu0 0.0
  %7439 = vmatmul.mubr.f32.gmra.mxu0 %v7291
  %v7440 = vpop.f32.mrf.mxu0
  %v7441 = vadd.f32 0.0, %v7440
  %v7442 = vpop.f32.mrf.mxu0
  %v7443 = vadd.f32 0.0, %v7442
  %7444 = vdwg.mxu0
  %7445 = vmatprep.subr.mxu0 0.0
  %7446 = vmatpush1.msra.mxu0 0.0
  %7447 = vmatprep.subr.mxu0 0.0
  %7448 = vmatpush1.msra.mxu0 0.0
  %7449 = vmatprep.subr.mxu0 0.0
  %7450 = vmatpush1.msra.mxu0 0.0
  %7451 = vmatprep.subr.mxu0 0.0
  %7452 = vmatpush1.msra.mxu0 0.0
  %7453 = vmatprep.subr.mxu0 0.0
  %7454 = vmatpush1.msra.mxu0 0.0
  %7455 = vmatprep.subr.mxu0 0.0
  %7456 = vmatpush1.msra.mxu0 0.0
  %7457 = vmatprep.subr.mxu0 0.0
  %7458 = vmatpush1.msra.mxu0 0.0
  %7459 = vmatprep.subr.mxu0 0.0
  %7460 = vmatpush1.msra.mxu0 0.0
  %7461 = vmatprep.subr.mxu0 0.0
  %7462 = vmatpush1.msra.mxu0 0.0
  %7463 = vmatprep.subr.mxu0 0.0
  %7464 = vmatpush1.msra.mxu0 0.0
  %7465 = vmatprep.subr.mxu0 0.0
  %7466 = vmatpush1.msra.mxu0 0.0
  %7467 = vmatprep.subr.mxu0 0.0
  %7468 = vmatpush1.msra.mxu0 0.0
  %7469 = vmatprep.subr.mxu0 0.0
  %7470 = vmatpush1.msra.mxu0 0.0
  %7471 = vmatprep.subr.mxu0 0.0
  %7472 = vmatpush1.msra.mxu0 0.0
  %7473 = vmatprep.subr.mxu0 0.0
  %7474 = vmatpush1.msra.mxu0 0.0
  %7475 = vmatprep.subr.mxu0 0.0
  %7476 = vmatpush1.msra.mxu0 %v7301
  %7477 = vmatprep.subr.mxu0 0.0
  %7478 = vmatpush2.msra.mxu0 0.0
  %7479 = vmatprep.subr.mxu0 0.0
  %7480 = vmatpush2.msra.mxu0 0.0
  %7481 = vmatprep.subr.mxu0 0.0
  %7482 = vmatpush2.msra.mxu0 0.0
  %7483 = vmatprep.subr.mxu0 0.0
  %7484 = vmatpush2.msra.mxu0 0.0
  %7485 = vmatprep.subr.mxu0 0.0
  %7486 = vmatpush2.msra.mxu0 0.0
  %7487 = vmatprep.subr.mxu0 0.0
  %7488 = vmatpush2.msra.mxu0 0.0
  %7489 = vmatprep.subr.mxu0 0.0
  %7490 = vmatpush2.msra.mxu0 0.0
  %7491 = vmatprep.subr.mxu0 0.0
  %7492 = vmatpush2.msra.mxu0 0.0
  %7493 = vmatprep.subr.mxu0 0.0
  %7494 = vmatpush2.msra.mxu0 0.0
  %7495 = vmatprep.subr.mxu0 0.0
  %7496 = vmatpush2.msra.mxu0 0.0
  %7497 = vmatprep.subr.mxu0 0.0
  %7498 = vmatpush2.msra.mxu0 0.0
  %7499 = vmatprep.subr.mxu0 0.0
  %7500 = vmatpush2.msra.mxu0 0.0
  %7501 = vmatprep.subr.mxu0 0.0
  %7502 = vmatpush2.msra.mxu0 0.0
  %7503 = vmatprep.subr.mxu0 0.0
  %7504 = vmatpush2.msra.mxu0 0.0
  %7505 = vmatprep.subr.mxu0 0.0
  %7506 = vmatpush2.msra.mxu0 0.0
  %7507 = vmatprep.subr.mxu0 0.0
  %7508 = vmatpush2.msra.mxu0 0.0
  %7509 = vmatprep.mubr.f32.mxu0 0.0
  %7510 = vmatmul.mubr.f32.gmra.mxu0 %v7291
  %v7511 = vpop.f32.mrf.mxu0
  %v7512 = vadd.f32 0.0, %v7511
  %v7513 = vpop.f32.mrf.mxu0
  %7514 = vdwg.mxu0
  %v7515 = vadd.f32 %v7129, %v7370
  %v7516 = vadd.f32 %v7131, %v7372
  %v7517 = vadd.f32 %v7200, %v7441
  %v7518 = vadd.f32 %v7202, %v7443
  %v7519 = vadd.f32 %v7271, %v7512
  %s7520 = scalar_lea.vmem %s2, 12
  %v7521 = vld [vmem:[%s7520] sm:$0xf]
  %7522 = vrot.lane.b32.xlu0 %v6796, 122
  %v7523 = vpop.permute.xlu0 %7522
  %7524 = vrot.lane.b32.xlu0 %v6797, 122
  %v7525 = vpop.permute.xlu0 %7524
  %7526 = vrot.lane.b32.xlu0 %v6798, 122
  %v7527 = vpop.permute.xlu0 %7526
  %7528 = vrot.lane.b32.xlu0 %v6799, 122
  %v7529 = vpop.permute.xlu0 %7528
  %7530 = vrot.lane.b32.xlu0 %v6800, 122
  %v7531 = vpop.permute.xlu0 %7530
  %vm7532 = vcmask 998400
  %v7533 = vsel %vm7532, %v7523, %v7525
  %v7534 = vsel %vm7532, %v7525, %v7527
  %v7535 = vsel %vm7532, %v7527, %v7529
  %v7536 = vsel %vm7532, %v7529, %v7531
  %v7538 = vsel %vm6823, %v7521, 0
  %v7540 = vsel %vm6613, %v7533, 0
  %v7542 = vsel %vm6613, %v7534, 0
  %v7544 = vsel %vm6613, %v7535, 0
  %v7546 = vsel %vm6613, %v7536, 0
  %v7548 = vsel %vm6613, %v7531, 0
  %7550 = vmatprep.subr.mxu0 0.0
  %7551 = vmatpush1.msra.mxu0 0.0
  %7552 = vmatprep.subr.mxu0 0.0
  %7553 = vmatpush1.msra.mxu0 0.0
  %7554 = vmatprep.subr.mxu0 0.0
  %7555 = vmatpush1.msra.mxu0 0.0
  %7556 = vmatprep.subr.mxu0 0.0
  %7557 = vmatpush1.msra.mxu0 0.0
  %7558 = vmatprep.subr.mxu0 0.0
  %7559 = vmatpush1.msra.mxu0 0.0
  %7560 = vmatprep.subr.mxu0 0.0
  %7561 = vmatpush1.msra.mxu0 0.0
  %7562 = vmatprep.subr.mxu0 0.0
  %7563 = vmatpush1.msra.mxu0 0.0
  %7564 = vmatprep.subr.mxu0 0.0
  %7565 = vmatpush1.msra.mxu0 0.0
  %7566 = vmatprep.subr.mxu0 0.0
  %7567 = vmatpush1.msra.mxu0 0.0
  %7568 = vmatprep.subr.mxu0 0.0
  %7569 = vmatpush1.msra.mxu0 0.0
  %7570 = vmatprep.subr.mxu0 0.0
  %7571 = vmatpush1.msra.mxu0 0.0
  %7572 = vmatprep.subr.mxu0 0.0
  %7573 = vmatpush1.msra.mxu0 0.0
  %7574 = vmatprep.subr.mxu0 0.0
  %7575 = vmatpush1.msra.mxu0 0.0
  %7576 = vmatprep.subr.mxu0 0.0
  %7577 = vmatpush1.msra.mxu0 0.0
  %7578 = vmatprep.subr.mxu0 0.0
  %7579 = vmatpush1.msra.mxu0 0.0
  %7580 = vmatprep.subr.mxu0 %v7542
  %7581 = vmatpush1.msra.mxu0 %v7540
  %7582 = vmatprep.subr.mxu0 0.0
  %7583 = vmatpush2.msra.mxu0 0.0
  %7584 = vmatprep.subr.mxu0 0.0
  %7585 = vmatpush2.msra.mxu0 0.0
  %7586 = vmatprep.subr.mxu0 0.0
  %7587 = vmatpush2.msra.mxu0 0.0
  %7588 = vmatprep.subr.mxu0 0.0
  %7589 = vmatpush2.msra.mxu0 0.0
  %7590 = vmatprep.subr.mxu0 0.0
  %7591 = vmatpush2.msra.mxu0 0.0
  %7592 = vmatprep.subr.mxu0 0.0
  %7593 = vmatpush2.msra.mxu0 0.0
  %7594 = vmatprep.subr.mxu0 0.0
  %7595 = vmatpush2.msra.mxu0 0.0
  %7596 = vmatprep.subr.mxu0 0.0
  %7597 = vmatpush2.msra.mxu0 0.0
  %7598 = vmatprep.subr.mxu0 0.0
  %7599 = vmatpush2.msra.mxu0 0.0
  %7600 = vmatprep.subr.mxu0 0.0
  %7601 = vmatpush2.msra.mxu0 0.0
  %7602 = vmatprep.subr.mxu0 0.0
  %7603 = vmatpush2.msra.mxu0 0.0
  %7604 = vmatprep.subr.mxu0 0.0
  %7605 = vmatpush2.msra.mxu0 0.0
  %7606 = vmatprep.subr.mxu0 0.0
  %7607 = vmatpush2.msra.mxu0 0.0
  %7608 = vmatprep.subr.mxu0 0.0
  %7609 = vmatpush2.msra.mxu0 0.0
  %7610 = vmatprep.subr.mxu0 0.0
  %7611 = vmatpush2.msra.mxu0 0.0
  %7612 = vmatprep.subr.mxu0 0.0
  %7613 = vmatpush2.msra.mxu0 0.0
  %7614 = vmatprep.mubr.f32.mxu0 0.0
  %7615 = vmatmul.mubr.f32.gmra.mxu0 %v7538
  %v7616 = vpop.f32.mrf.mxu0
  %v7617 = vadd.f32 0.0, %v7616
  %v7618 = vpop.f32.mrf.mxu0
  %v7619 = vadd.f32 0.0, %v7618
  %7620 = vdwg.mxu0
  %7621 = vmatprep.subr.mxu0 0.0
  %7622 = vmatpush1.msra.mxu0 0.0
  %7623 = vmatprep.subr.mxu0 0.0
  %7624 = vmatpush1.msra.mxu0 0.0
  %7625 = vmatprep.subr.mxu0 0.0
  %7626 = vmatpush1.msra.mxu0 0.0
  %7627 = vmatprep.subr.mxu0 0.0
  %7628 = vmatpush1.msra.mxu0 0.0
  %7629 = vmatprep.subr.mxu0 0.0
  %7630 = vmatpush1.msra.mxu0 0.0
  %7631 = vmatprep.subr.mxu0 0.0
  %7632 = vmatpush1.msra.mxu0 0.0
  %7633 = vmatprep.subr.mxu0 0.0
  %7634 = vmatpush1.msra.mxu0 0.0
  %7635 = vmatprep.subr.mxu0 0.0
  %7636 = vmatpush1.msra.mxu0 0.0
  %7637 = vmatprep.subr.mxu0 0.0
  %7638 = vmatpush1.msra.mxu0 0.0
  %7639 = vmatprep.subr.mxu0 0.0
  %7640 = vmatpush1.msra.mxu0 0.0
  %7641 = vmatprep.subr.mxu0 0.0
  %7642 = vmatpush1.msra.mxu0 0.0
  %7643 = vmatprep.subr.mxu0 0.0
  %7644 = vmatpush1.msra.mxu0 0.0
  %7645 = vmatprep.subr.mxu0 0.0
  %7646 = vmatpush1.msra.mxu0 0.0
  %7647 = vmatprep.subr.mxu0 0.0
  %7648 = vmatpush1.msra.mxu0 0.0
  %7649 = vmatprep.subr.mxu0 0.0
  %7650 = vmatpush1.msra.mxu0 0.0
  %7651 = vmatprep.subr.mxu0 %v7546
  %7652 = vmatpush1.msra.mxu0 %v7544
  %7653 = vmatprep.subr.mxu0 0.0
  %7654 = vmatpush2.msra.mxu0 0.0
  %7655 = vmatprep.subr.mxu0 0.0
  %7656 = vmatpush2.msra.mxu0 0.0
  %7657 = vmatprep.subr.mxu0 0.0
  %7658 = vmatpush2.msra.mxu0 0.0
  %7659 = vmatprep.subr.mxu0 0.0
  %7660 = vmatpush2.msra.mxu0 0.0
  %7661 = vmatprep.subr.mxu0 0.0
  %7662 = vmatpush2.msra.mxu0 0.0
  %7663 = vmatprep.subr.mxu0 0.0
  %7664 = vmatpush2.msra.mxu0 0.0
  %7665 = vmatprep.subr.mxu0 0.0
  %7666 = vmatpush2.msra.mxu0 0.0
  %7667 = vmatprep.subr.mxu0 0.0
  %7668 = vmatpush2.msra.mxu0 0.0
  %7669 = vmatprep.subr.mxu0 0.0
  %7670 = vmatpush2.msra.mxu0 0.0
  %7671 = vmatprep.subr.mxu0 0.0
  %7672 = vmatpush2.msra.mxu0 0.0
  %7673 = vmatprep.subr.mxu0 0.0
  %7674 = vmatpush2.msra.mxu0 0.0
  %7675 = vmatprep.subr.mxu0 0.0
  %7676 = vmatpush2.msra.mxu0 0.0
  %7677 = vmatprep.subr.mxu0 0.0
  %7678 = vmatpush2.msra.mxu0 0.0
  %7679 = vmatprep.subr.mxu0 0.0
  %7680 = vmatpush2.msra.mxu0 0.0
  %7681 = vmatprep.subr.mxu0 0.0
  %7682 = vmatpush2.msra.mxu0 0.0
  %7683 = vmatprep.subr.mxu0 0.0
  %7684 = vmatpush2.msra.mxu0 0.0
  %7685 = vmatprep.mubr.f32.mxu0 0.0
  %7686 = vmatmul.mubr.f32.gmra.mxu0 %v7538
  %v7687 = vpop.f32.mrf.mxu0
  %v7688 = vadd.f32 0.0, %v7687
  %v7689 = vpop.f32.mrf.mxu0
  %v7690 = vadd.f32 0.0, %v7689
  %7691 = vdwg.mxu0
  %7692 = vmatprep.subr.mxu0 0.0
  %7693 = vmatpush1.msra.mxu0 0.0
  %7694 = vmatprep.subr.mxu0 0.0
  %7695 = vmatpush1.msra.mxu0 0.0
  %7696 = vmatprep.subr.mxu0 0.0
  %7697 = vmatpush1.msra.mxu0 0.0
  %7698 = vmatprep.subr.mxu0 0.0
  %7699 = vmatpush1.msra.mxu0 0.0
  %7700 = vmatprep.subr.mxu0 0.0
  %7701 = vmatpush1.msra.mxu0 0.0
  %7702 = vmatprep.subr.mxu0 0.0
  %7703 = vmatpush1.msra.mxu0 0.0
  %7704 = vmatprep.subr.mxu0 0.0
  %7705 = vmatpush1.msra.mxu0 0.0
  %7706 = vmatprep.subr.mxu0 0.0
  %7707 = vmatpush1.msra.mxu0 0.0
  %7708 = vmatprep.subr.mxu0 0.0
  %7709 = vmatpush1.msra.mxu0 0.0
  %7710 = vmatprep.subr.mxu0 0.0
  %7711 = vmatpush1.msra.mxu0 0.0
  %7712 = vmatprep.subr.mxu0 0.0
  %7713 = vmatpush1.msra.mxu0 0.0
  %7714 = vmatprep.subr.mxu0 0.0
  %7715 = vmatpush1.msra.mxu0 0.0
  %7716 = vmatprep.subr.mxu0 0.0
  %7717 = vmatpush1.msra.mxu0 0.0
  %7718 = vmatprep.subr.mxu0 0.0
  %7719 = vmatpush1.msra.mxu0 0.0
  %7720 = vmatprep.subr.mxu0 0.0
  %7721 = vmatpush1.msra.mxu0 0.0
  %7722 = vmatprep.subr.mxu0 0.0
  %7723 = vmatpush1.msra.mxu0 %v7548
  %7724 = vmatprep.subr.mxu0 0.0
  %7725 = vmatpush2.msra.mxu0 0.0
  %7726 = vmatprep.subr.mxu0 0.0
  %7727 = vmatpush2.msra.mxu0 0.0
  %7728 = vmatprep.subr.mxu0 0.0
  %7729 = vmatpush2.msra.mxu0 0.0
  %7730 = vmatprep.subr.mxu0 0.0
  %7731 = vmatpush2.msra.mxu0 0.0
  %7732 = vmatprep.subr.mxu0 0.0
  %7733 = vmatpush2.msra.mxu0 0.0
  %7734 = vmatprep.subr.mxu0 0.0
  %7735 = vmatpush2.msra.mxu0 0.0
  %7736 = vmatprep.subr.mxu0 0.0
  %7737 = vmatpush2.msra.mxu0 0.0
  %7738 = vmatprep.subr.mxu0 0.0
  %7739 = vmatpush2.msra.mxu0 0.0
  %7740 = vmatprep.subr.mxu0 0.0
  %7741 = vmatpush2.msra.mxu0 0.0
  %7742 = vmatprep.subr.mxu0 0.0
  %7743 = vmatpush2.msra.mxu0 0.0
  %7744 = vmatprep.subr.mxu0 0.0
  %7745 = vmatpush2.msra.mxu0 0.0
  %7746 = vmatprep.subr.mxu0 0.0
  %7747 = vmatpush2.msra.mxu0 0.0
  %7748 = vmatprep.subr.mxu0 0.0
  %7749 = vmatpush2.msra.mxu0 0.0
  %7750 = vmatprep.subr.mxu0 0.0
  %7751 = vmatpush2.msra.mxu0 0.0
  %7752 = vmatprep.subr.mxu0 0.0
  %7753 = vmatpush2.msra.mxu0 0.0
  %7754 = vmatprep.subr.mxu0 0.0
  %7755 = vmatpush2.msra.mxu0 0.0
  %7756 = vmatprep.mubr.f32.mxu0 0.0
  %7757 = vmatmul.mubr.f32.gmra.mxu0 %v7538
  %v7758 = vpop.f32.mrf.mxu0
  %v7759 = vadd.f32 0.0, %v7758
  %v7760 = vpop.f32.mrf.mxu0
  %7761 = vdwg.mxu0
  %v7762 = vadd.f32 %v7515, %v7617
  %v7763 = vadd.f32 %v7516, %v7619
  %v7764 = vadd.f32 %v7517, %v7688
  %v7765 = vadd.f32 %v7518, %v7690
  %v7766 = vadd.f32 %v7519, %v7759
  %s7767 = scalar_lea.vmem %s2, 16
  %v7768 = vld [vmem:[%s7767] sm:$0xf]
  %7769 = vrot.lane.b32.xlu0 %v6796, 92
  %v7770 = vpop.permute.xlu0 %7769
  %7771 = vrot.lane.b32.xlu0 %v6797, 92
  %v7772 = vpop.permute.xlu0 %7771
  %7773 = vrot.lane.b32.xlu0 %v6798, 92
  %v7774 = vpop.permute.xlu0 %7773
  %7775 = vrot.lane.b32.xlu0 %v6799, 92
  %v7776 = vpop.permute.xlu0 %7775
  %7777 = vrot.lane.b32.xlu0 %v6800, 92
  %v7778 = vpop.permute.xlu0 %7777
  %v7779 = vsel %vm2653, %v7770, %v7772
  %v7780 = vsel %vm2653, %v7772, %v7774
  %v7781 = vsel %vm2653, %v7774, %v7776
  %v7782 = vsel %vm2653, %v7776, %v7778
  %v7784 = vsel %vm6823, %v7768, 0
  %v7786 = vsel %vm6613, %v7779, 0
  %v7788 = vsel %vm6613, %v7780, 0
  %v7790 = vsel %vm6613, %v7781, 0
  %v7792 = vsel %vm6613, %v7782, 0
  %v7794 = vsel %vm6613, %v7778, 0
  %7796 = vmatprep.subr.mxu0 0.0
  %7797 = vmatpush1.msra.mxu0 0.0
  %7798 = vmatprep.subr.mxu0 0.0
  %7799 = vmatpush1.msra.mxu0 0.0
  %7800 = vmatprep.subr.mxu0 0.0
  %7801 = vmatpush1.msra.mxu0 0.0
  %7802 = vmatprep.subr.mxu0 0.0
  %7803 = vmatpush1.msra.mxu0 0.0
  %7804 = vmatprep.subr.mxu0 0.0
  %7805 = vmatpush1.msra.mxu0 0.0
  %7806 = vmatprep.subr.mxu0 0.0
  %7807 = vmatpush1.msra.mxu0 0.0
  %7808 = vmatprep.subr.mxu0 0.0
  %7809 = vmatpush1.msra.mxu0 0.0
  %7810 = vmatprep.subr.mxu0 0.0
  %7811 = vmatpush1.msra.mxu0 0.0
  %7812 = vmatprep.subr.mxu0 0.0
  %7813 = vmatpush1.msra.mxu0 0.0
  %7814 = vmatprep.subr.mxu0 0.0
  %7815 = vmatpush1.msra.mxu0 0.0
  %7816 = vmatprep.subr.mxu0 0.0
  %7817 = vmatpush1.msra.mxu0 0.0
  %7818 = vmatprep.subr.mxu0 0.0
  %7819 = vmatpush1.msra.mxu0 0.0
  %7820 = vmatprep.subr.mxu0 0.0
  %7821 = vmatpush1.msra.mxu0 0.0
  %7822 = vmatprep.subr.mxu0 0.0
  %7823 = vmatpush1.msra.mxu0 0.0
  %7824 = vmatprep.subr.mxu0 0.0
  %7825 = vmatpush1.msra.mxu0 0.0
  %7826 = vmatprep.subr.mxu0 %v7788
  %7827 = vmatpush1.msra.mxu0 %v7786
  %7828 = vmatprep.subr.mxu0 0.0
  %7829 = vmatpush2.msra.mxu0 0.0
  %7830 = vmatprep.subr.mxu0 0.0
  %7831 = vmatpush2.msra.mxu0 0.0
  %7832 = vmatprep.subr.mxu0 0.0
  %7833 = vmatpush2.msra.mxu0 0.0
  %7834 = vmatprep.subr.mxu0 0.0
  %7835 = vmatpush2.msra.mxu0 0.0
  %7836 = vmatprep.subr.mxu0 0.0
  %7837 = vmatpush2.msra.mxu0 0.0
  %7838 = vmatprep.subr.mxu0 0.0
  %7839 = vmatpush2.msra.mxu0 0.0
  %7840 = vmatprep.subr.mxu0 0.0
  %7841 = vmatpush2.msra.mxu0 0.0
  %7842 = vmatprep.subr.mxu0 0.0
  %7843 = vmatpush2.msra.mxu0 0.0
  %7844 = vmatprep.subr.mxu0 0.0
  %7845 = vmatpush2.msra.mxu0 0.0
  %7846 = vmatprep.subr.mxu0 0.0
  %7847 = vmatpush2.msra.mxu0 0.0
  %7848 = vmatprep.subr.mxu0 0.0
  %7849 = vmatpush2.msra.mxu0 0.0
  %7850 = vmatprep.subr.mxu0 0.0
  %7851 = vmatpush2.msra.mxu0 0.0
  %7852 = vmatprep.subr.mxu0 0.0
  %7853 = vmatpush2.msra.mxu0 0.0
  %7854 = vmatprep.subr.mxu0 0.0
  %7855 = vmatpush2.msra.mxu0 0.0
  %7856 = vmatprep.subr.mxu0 0.0
  %7857 = vmatpush2.msra.mxu0 0.0
  %7858 = vmatprep.subr.mxu0 0.0
  %7859 = vmatpush2.msra.mxu0 0.0
  %7860 = vmatprep.mubr.f32.mxu0 0.0
  %7861 = vmatmul.mubr.f32.gmra.mxu0 %v7784
  %v7862 = vpop.f32.mrf.mxu0
  %v7863 = vadd.f32 0.0, %v7862
  %v7864 = vpop.f32.mrf.mxu0
  %v7865 = vadd.f32 0.0, %v7864
  %7866 = vdwg.mxu0
  %7867 = vmatprep.subr.mxu0 0.0
  %7868 = vmatpush1.msra.mxu0 0.0
  %7869 = vmatprep.subr.mxu0 0.0
  %7870 = vmatpush1.msra.mxu0 0.0
  %7871 = vmatprep.subr.mxu0 0.0
  %7872 = vmatpush1.msra.mxu0 0.0
  %7873 = vmatprep.subr.mxu0 0.0
  %7874 = vmatpush1.msra.mxu0 0.0
  %7875 = vmatprep.subr.mxu0 0.0
  %7876 = vmatpush1.msra.mxu0 0.0
  %7877 = vmatprep.subr.mxu0 0.0
  %7878 = vmatpush1.msra.mxu0 0.0
  %7879 = vmatprep.subr.mxu0 0.0
  %7880 = vmatpush1.msra.mxu0 0.0
  %7881 = vmatprep.subr.mxu0 0.0
  %7882 = vmatpush1.msra.mxu0 0.0
  %7883 = vmatprep.subr.mxu0 0.0
  %7884 = vmatpush1.msra.mxu0 0.0
  %7885 = vmatprep.subr.mxu0 0.0
  %7886 = vmatpush1.msra.mxu0 0.0
  %7887 = vmatprep.subr.mxu0 0.0
  %7888 = vmatpush1.msra.mxu0 0.0
  %7889 = vmatprep.subr.mxu0 0.0
  %7890 = vmatpush1.msra.mxu0 0.0
  %7891 = vmatprep.subr.mxu0 0.0
  %7892 = vmatpush1.msra.mxu0 0.0
  %7893 = vmatprep.subr.mxu0 0.0
  %7894 = vmatpush1.msra.mxu0 0.0
  %7895 = vmatprep.subr.mxu0 0.0
  %7896 = vmatpush1.msra.mxu0 0.0
  %7897 = vmatprep.subr.mxu0 %v7792
  %7898 = vmatpush1.msra.mxu0 %v7790
  %7899 = vmatprep.subr.mxu0 0.0
  %7900 = vmatpush2.msra.mxu0 0.0
  %7901 = vmatprep.subr.mxu0 0.0
  %7902 = vmatpush2.msra.mxu0 0.0
  %7903 = vmatprep.subr.mxu0 0.0
  %7904 = vmatpush2.msra.mxu0 0.0
  %7905 = vmatprep.subr.mxu0 0.0
  %7906 = vmatpush2.msra.mxu0 0.0
  %7907 = vmatprep.subr.mxu0 0.0
  %7908 = vmatpush2.msra.mxu0 0.0
  %7909 = vmatprep.subr.mxu0 0.0
  %7910 = vmatpush2.msra.mxu0 0.0
  %7911 = vmatprep.subr.mxu0 0.0
  %7912 = vmatpush2.msra.mxu0 0.0
  %7913 = vmatprep.subr.mxu0 0.0
  %7914 = vmatpush2.msra.mxu0 0.0
  %7915 = vmatprep.subr.mxu0 0.0
  %7916 = vmatpush2.msra.mxu0 0.0
  %7917 = vmatprep.subr.mxu0 0.0
  %7918 = vmatpush2.msra.mxu0 0.0
  %7919 = vmatprep.subr.mxu0 0.0
  %7920 = vmatpush2.msra.mxu0 0.0
  %7921 = vmatprep.subr.mxu0 0.0
  %7922 = vmatpush2.msra.mxu0 0.0
  %7923 = vmatprep.subr.mxu0 0.0
  %7924 = vmatpush2.msra.mxu0 0.0
  %7925 = vmatprep.subr.mxu0 0.0
  %7926 = vmatpush2.msra.mxu0 0.0
  %7927 = vmatprep.subr.mxu0 0.0
  %7928 = vmatpush2.msra.mxu0 0.0
  %7929 = vmatprep.subr.mxu0 0.0
  %7930 = vmatpush2.msra.mxu0 0.0
  %7931 = vmatprep.mubr.f32.mxu0 0.0
  %7932 = vmatmul.mubr.f32.gmra.mxu0 %v7784
  %v7933 = vpop.f32.mrf.mxu0
  %v7934 = vadd.f32 0.0, %v7933
  %v7935 = vpop.f32.mrf.mxu0
  %v7936 = vadd.f32 0.0, %v7935
  %7937 = vdwg.mxu0
  %7938 = vmatprep.subr.mxu0 0.0
  %7939 = vmatpush1.msra.mxu0 0.0
  %7940 = vmatprep.subr.mxu0 0.0
  %7941 = vmatpush1.msra.mxu0 0.0
  %7942 = vmatprep.subr.mxu0 0.0
  %7943 = vmatpush1.msra.mxu0 0.0
  %7944 = vmatprep.subr.mxu0 0.0
  %7945 = vmatpush1.msra.mxu0 0.0
  %7946 = vmatprep.subr.mxu0 0.0
  %7947 = vmatpush1.msra.mxu0 0.0
  %7948 = vmatprep.subr.mxu0 0.0
  %7949 = vmatpush1.msra.mxu0 0.0
  %7950 = vmatprep.subr.mxu0 0.0
  %7951 = vmatpush1.msra.mxu0 0.0
  %7952 = vmatprep.subr.mxu0 0.0
  %7953 = vmatpush1.msra.mxu0 0.0
  %7954 = vmatprep.subr.mxu0 0.0
  %7955 = vmatpush1.msra.mxu0 0.0
  %7956 = vmatprep.subr.mxu0 0.0
  %7957 = vmatpush1.msra.mxu0 0.0
  %7958 = vmatprep.subr.mxu0 0.0
  %7959 = vmatpush1.msra.mxu0 0.0
  %7960 = vmatprep.subr.mxu0 0.0
  %7961 = vmatpush1.msra.mxu0 0.0
  %7962 = vmatprep.subr.mxu0 0.0
  %7963 = vmatpush1.msra.mxu0 0.0
  %7964 = vmatprep.subr.mxu0 0.0
  %7965 = vmatpush1.msra.mxu0 0.0
  %7966 = vmatprep.subr.mxu0 0.0
  %7967 = vmatpush1.msra.mxu0 0.0
  %7968 = vmatprep.subr.mxu0 0.0
  %7969 = vmatpush1.msra.mxu0 %v7794
  %7970 = vmatprep.subr.mxu0 0.0
  %7971 = vmatpush2.msra.mxu0 0.0
  %7972 = vmatprep.subr.mxu0 0.0
  %7973 = vmatpush2.msra.mxu0 0.0
  %7974 = vmatprep.subr.mxu0 0.0
  %7975 = vmatpush2.msra.mxu0 0.0
  %7976 = vmatprep.subr.mxu0 0.0
  %7977 = vmatpush2.msra.mxu0 0.0
  %7978 = vmatprep.subr.mxu0 0.0
  %7979 = vmatpush2.msra.mxu0 0.0
  %7980 = vmatprep.subr.mxu0 0.0
  %7981 = vmatpush2.msra.mxu0 0.0
  %7982 = vmatprep.subr.mxu0 0.0
  %7983 = vmatpush2.msra.mxu0 0.0
  %7984 = vmatprep.subr.mxu0 0.0
  %7985 = vmatpush2.msra.mxu0 0.0
  %7986 = vmatprep.subr.mxu0 0.0
  %7987 = vmatpush2.msra.mxu0 0.0
  %7988 = vmatprep.subr.mxu0 0.0
  %7989 = vmatpush2.msra.mxu0 0.0
  %7990 = vmatprep.subr.mxu0 0.0
  %7991 = vmatpush2.msra.mxu0 0.0
  %7992 = vmatprep.subr.mxu0 0.0
  %7993 = vmatpush2.msra.mxu0 0.0
  %7994 = vmatprep.subr.mxu0 0.0
  %7995 = vmatpush2.msra.mxu0 0.0
  %7996 = vmatprep.subr.mxu0 0.0
  %7997 = vmatpush2.msra.mxu0 0.0
  %7998 = vmatprep.subr.mxu0 0.0
  %7999 = vmatpush2.msra.mxu0 0.0
  %8000 = vmatprep.subr.mxu0 0.0
  %8001 = vmatpush2.msra.mxu0 0.0
  %8002 = vmatprep.mubr.f32.mxu0 0.0
  %8003 = vmatmul.mubr.f32.gmra.mxu0 %v7784
  %v8004 = vpop.f32.mrf.mxu0
  %v8005 = vadd.f32 0.0, %v8004
  %v8006 = vpop.f32.mrf.mxu0
  %8007 = vdwg.mxu0
  %v8008 = vadd.f32 %v7762, %v7863
  %v8009 = vadd.f32 %v7763, %v7865
  %v8010 = vadd.f32 %v7764, %v7934
  %v8011 = vadd.f32 %v7765, %v7936
  %v8012 = vadd.f32 %v7766, %v8005
  %s8013 = scalar_lea.vmem %s2, 20
  %v8014 = vld [vmem:[%s8013] sm:$0xf]
  %8015 = vrot.lane.b32.xlu0 %v6796, 90
  %v8016 = vpop.permute.xlu0 %8015
  %8017 = vrot.lane.b32.xlu0 %v6797, 90
  %v8018 = vpop.permute.xlu0 %8017
  %8019 = vrot.lane.b32.xlu0 %v6798, 90
  %v8020 = vpop.permute.xlu0 %8019
  %8021 = vrot.lane.b32.xlu0 %v6799, 90
  %v8022 = vpop.permute.xlu0 %8021
  %8023 = vrot.lane.b32.xlu0 %v6800, 90
  %v8024 = vpop.permute.xlu0 %8023
  %v8025 = vsel %vm3179, %v8016, %v8018
  %v8026 = vsel %vm3179, %v8018, %v8020
  %v8027 = vsel %vm3179, %v8020, %v8022
  %v8028 = vsel %vm3179, %v8022, %v8024
  %v8030 = vsel %vm6823, %v8014, 0
  %v8032 = vsel %vm6613, %v8025, 0
  %v8034 = vsel %vm6613, %v8026, 0
  %v8036 = vsel %vm6613, %v8027, 0
  %v8038 = vsel %vm6613, %v8028, 0
  %v8040 = vsel %vm6613, %v8024, 0
  %8042 = vmatprep.subr.mxu0 0.0
  %8043 = vmatpush1.msra.mxu0 0.0
  %8044 = vmatprep.subr.mxu0 0.0
  %8045 = vmatpush1.msra.mxu0 0.0
  %8046 = vmatprep.subr.mxu0 0.0
  %8047 = vmatpush1.msra.mxu0 0.0
  %8048 = vmatprep.subr.mxu0 0.0
  %8049 = vmatpush1.msra.mxu0 0.0
  %8050 = vmatprep.subr.mxu0 0.0
  %8051 = vmatpush1.msra.mxu0 0.0
  %8052 = vmatprep.subr.mxu0 0.0
  %8053 = vmatpush1.msra.mxu0 0.0
  %8054 = vmatprep.subr.mxu0 0.0
  %8055 = vmatpush1.msra.mxu0 0.0
  %8056 = vmatprep.subr.mxu0 0.0
  %8057 = vmatpush1.msra.mxu0 0.0
  %8058 = vmatprep.subr.mxu0 0.0
  %8059 = vmatpush1.msra.mxu0 0.0
  %8060 = vmatprep.subr.mxu0 0.0
  %8061 = vmatpush1.msra.mxu0 0.0
  %8062 = vmatprep.subr.mxu0 0.0
  %8063 = vmatpush1.msra.mxu0 0.0
  %8064 = vmatprep.subr.mxu0 0.0
  %8065 = vmatpush1.msra.mxu0 0.0
  %8066 = vmatprep.subr.mxu0 0.0
  %8067 = vmatpush1.msra.mxu0 0.0
  %8068 = vmatprep.subr.mxu0 0.0
  %8069 = vmatpush1.msra.mxu0 0.0
  %8070 = vmatprep.subr.mxu0 0.0
  %8071 = vmatpush1.msra.mxu0 0.0
  %8072 = vmatprep.subr.mxu0 %v8034
  %8073 = vmatpush1.msra.mxu0 %v8032
  %8074 = vmatprep.subr.mxu0 0.0
  %8075 = vmatpush2.msra.mxu0 0.0
  %8076 = vmatprep.subr.mxu0 0.0
  %8077 = vmatpush2.msra.mxu0 0.0
  %8078 = vmatprep.subr.mxu0 0.0
  %8079 = vmatpush2.msra.mxu0 0.0
  %8080 = vmatprep.subr.mxu0 0.0
  %8081 = vmatpush2.msra.mxu0 0.0
  %8082 = vmatprep.subr.mxu0 0.0
  %8083 = vmatpush2.msra.mxu0 0.0
  %8084 = vmatprep.subr.mxu0 0.0
  %8085 = vmatpush2.msra.mxu0 0.0
  %8086 = vmatprep.subr.mxu0 0.0
  %8087 = vmatpush2.msra.mxu0 0.0
  %8088 = vmatprep.subr.mxu0 0.0
  %8089 = vmatpush2.msra.mxu0 0.0
  %8090 = vmatprep.subr.mxu0 0.0
  %8091 = vmatpush2.msra.mxu0 0.0
  %8092 = vmatprep.subr.mxu0 0.0
  %8093 = vmatpush2.msra.mxu0 0.0
  %8094 = vmatprep.subr.mxu0 0.0
  %8095 = vmatpush2.msra.mxu0 0.0
  %8096 = vmatprep.subr.mxu0 0.0
  %8097 = vmatpush2.msra.mxu0 0.0
  %8098 = vmatprep.subr.mxu0 0.0
  %8099 = vmatpush2.msra.mxu0 0.0
  %8100 = vmatprep.subr.mxu0 0.0
  %8101 = vmatpush2.msra.mxu0 0.0
  %8102 = vmatprep.subr.mxu0 0.0
  %8103 = vmatpush2.msra.mxu0 0.0
  %8104 = vmatprep.subr.mxu0 0.0
  %8105 = vmatpush2.msra.mxu0 0.0
  %8106 = vmatprep.mubr.f32.mxu0 0.0
  %8107 = vmatmul.mubr.f32.gmra.mxu0 %v8030
  %v8108 = vpop.f32.mrf.mxu0
  %v8109 = vadd.f32 0.0, %v8108
  %v8110 = vpop.f32.mrf.mxu0
  %v8111 = vadd.f32 0.0, %v8110
  %8112 = vdwg.mxu0
  %8113 = vmatprep.subr.mxu0 0.0
  %8114 = vmatpush1.msra.mxu0 0.0
  %8115 = vmatprep.subr.mxu0 0.0
  %8116 = vmatpush1.msra.mxu0 0.0
  %8117 = vmatprep.subr.mxu0 0.0
  %8118 = vmatpush1.msra.mxu0 0.0
  %8119 = vmatprep.subr.mxu0 0.0
  %8120 = vmatpush1.msra.mxu0 0.0
  %8121 = vmatprep.subr.mxu0 0.0
  %8122 = vmatpush1.msra.mxu0 0.0
  %8123 = vmatprep.subr.mxu0 0.0
  %8124 = vmatpush1.msra.mxu0 0.0
  %8125 = vmatprep.subr.mxu0 0.0
  %8126 = vmatpush1.msra.mxu0 0.0
  %8127 = vmatprep.subr.mxu0 0.0
  %8128 = vmatpush1.msra.mxu0 0.0
  %8129 = vmatprep.subr.mxu0 0.0
  %8130 = vmatpush1.msra.mxu0 0.0
  %8131 = vmatprep.subr.mxu0 0.0
  %8132 = vmatpush1.msra.mxu0 0.0
  %8133 = vmatprep.subr.mxu0 0.0
  %8134 = vmatpush1.msra.mxu0 0.0
  %8135 = vmatprep.subr.mxu0 0.0
  %8136 = vmatpush1.msra.mxu0 0.0
  %8137 = vmatprep.subr.mxu0 0.0
  %8138 = vmatpush1.msra.mxu0 0.0
  %8139 = vmatprep.subr.mxu0 0.0
  %8140 = vmatpush1.msra.mxu0 0.0
  %8141 = vmatprep.subr.mxu0 0.0
  %8142 = vmatpush1.msra.mxu0 0.0
  %8143 = vmatprep.subr.mxu0 %v8038
  %8144 = vmatpush1.msra.mxu0 %v8036
  %8145 = vmatprep.subr.mxu0 0.0
  %8146 = vmatpush2.msra.mxu0 0.0
  %8147 = vmatprep.subr.mxu0 0.0
  %8148 = vmatpush2.msra.mxu0 0.0
  %8149 = vmatprep.subr.mxu0 0.0
  %8150 = vmatpush2.msra.mxu0 0.0
  %8151 = vmatprep.subr.mxu0 0.0
  %8152 = vmatpush2.msra.mxu0 0.0
  %8153 = vmatprep.subr.mxu0 0.0
  %8154 = vmatpush2.msra.mxu0 0.0
  %8155 = vmatprep.subr.mxu0 0.0
  %8156 = vmatpush2.msra.mxu0 0.0
  %8157 = vmatprep.subr.mxu0 0.0
  %8158 = vmatpush2.msra.mxu0 0.0
  %8159 = vmatprep.subr.mxu0 0.0
  %8160 = vmatpush2.msra.mxu0 0.0
  %8161 = vmatprep.subr.mxu0 0.0
  %8162 = vmatpush2.msra.mxu0 0.0
  %8163 = vmatprep.subr.mxu0 0.0
  %8164 = vmatpush2.msra.mxu0 0.0
  %8165 = vmatprep.subr.mxu0 0.0
  %8166 = vmatpush2.msra.mxu0 0.0
  %8167 = vmatprep.subr.mxu0 0.0
  %8168 = vmatpush2.msra.mxu0 0.0
  %8169 = vmatprep.subr.mxu0 0.0
  %8170 = vmatpush2.msra.mxu0 0.0
  %8171 = vmatprep.subr.mxu0 0.0
  %8172 = vmatpush2.msra.mxu0 0.0
  %8173 = vmatprep.subr.mxu0 0.0
  %8174 = vmatpush2.msra.mxu0 0.0
  %8175 = vmatprep.subr.mxu0 0.0
  %8176 = vmatpush2.msra.mxu0 0.0
  %8177 = vmatprep.mubr.f32.mxu0 0.0
  %8178 = vmatmul.mubr.f32.gmra.mxu0 %v8030
  %v8179 = vpop.f32.mrf.mxu0
  %v8180 = vadd.f32 0.0, %v8179
  %v8181 = vpop.f32.mrf.mxu0
  %v8182 = vadd.f32 0.0, %v8181
  %8183 = vdwg.mxu0
  %8184 = vmatprep.subr.mxu0 0.0
  %8185 = vmatpush1.msra.mxu0 0.0
  %8186 = vmatprep.subr.mxu0 0.0
  %8187 = vmatpush1.msra.mxu0 0.0
  %8188 = vmatprep.subr.mxu0 0.0
  %8189 = vmatpush1.msra.mxu0 0.0
  %8190 = vmatprep.subr.mxu0 0.0
  %8191 = vmatpush1.msra.mxu0 0.0
  %8192 = vmatprep.subr.mxu0 0.0
  %8193 = vmatpush1.msra.mxu0 0.0
  %8194 = vmatprep.subr.mxu0 0.0
  %8195 = vmatpush1.msra.mxu0 0.0
  %8196 = vmatprep.subr.mxu0 0.0
  %8197 = vmatpush1.msra.mxu0 0.0
  %8198 = vmatprep.subr.mxu0 0.0
  %8199 = vmatpush1.msra.mxu0 0.0
  %8200 = vmatprep.subr.mxu0 0.0
  %8201 = vmatpush1.msra.mxu0 0.0
  %8202 = vmatprep.subr.mxu0 0.0
  %8203 = vmatpush1.msra.mxu0 0.0
  %8204 = vmatprep.subr.mxu0 0.0
  %8205 = vmatpush1.msra.mxu0 0.0
  %8206 = vmatprep.subr.mxu0 0.0
  %8207 = vmatpush1.msra.mxu0 0.0
  %8208 = vmatprep.subr.mxu0 0.0
  %8209 = vmatpush1.msra.mxu0 0.0
  %8210 = vmatprep.subr.mxu0 0.0
  %8211 = vmatpush1.msra.mxu0 0.0
  %8212 = vmatprep.subr.mxu0 0.0
  %8213 = vmatpush1.msra.mxu0 0.0
  %8214 = vmatprep.subr.mxu0 0.0
  %8215 = vmatpush1.msra.mxu0 %v8040
  %8216 = vmatprep.subr.mxu0 0.0
  %8217 = vmatpush2.msra.mxu0 0.0
  %8218 = vmatprep.subr.mxu0 0.0
  %8219 = vmatpush2.msra.mxu0 0.0
  %8220 = vmatprep.subr.mxu0 0.0
  %8221 = vmatpush2.msra.mxu0 0.0
  %8222 = vmatprep.subr.mxu0 0.0
  %8223 = vmatpush2.msra.mxu0 0.0
  %8224 = vmatprep.subr.mxu0 0.0
  %8225 = vmatpush2.msra.mxu0 0.0
  %8226 = vmatprep.subr.mxu0 0.0
  %8227 = vmatpush2.msra.mxu0 0.0
  %8228 = vmatprep.subr.mxu0 0.0
  %8229 = vmatpush2.msra.mxu0 0.0
  %8230 = vmatprep.subr.mxu0 0.0
  %8231 = vmatpush2.msra.mxu0 0.0
  %8232 = vmatprep.subr.mxu0 0.0
  %8233 = vmatpush2.msra.mxu0 0.0
  %8234 = vmatprep.subr.mxu0 0.0
  %8235 = vmatpush2.msra.mxu0 0.0
  %8236 = vmatprep.subr.mxu0 0.0
  %8237 = vmatpush2.msra.mxu0 0.0
  %8238 = vmatprep.subr.mxu0 0.0
  %8239 = vmatpush2.msra.mxu0 0.0
  %8240 = vmatprep.subr.mxu0 0.0
  %8241 = vmatpush2.msra.mxu0 0.0
  %8242 = vmatprep.subr.mxu0 0.0
  %8243 = vmatpush2.msra.mxu0 0.0
  %8244 = vmatprep.subr.mxu0 0.0
  %8245 = vmatpush2.msra.mxu0 0.0
  %8246 = vmatprep.subr.mxu0 0.0
  %8247 = vmatpush2.msra.mxu0 0.0
  %8248 = vmatprep.mubr.f32.mxu0 0.0
  %8249 = vmatmul.mubr.f32.gmra.mxu0 %v8030
  %v8250 = vpop.f32.mrf.mxu0
  %v8251 = vadd.f32 0.0, %v8250
  %v8252 = vpop.f32.mrf.mxu0
  %8253 = vdwg.mxu0
  %v8254 = vadd.f32 %v8008, %v8109
  %v8255 = vadd.f32 %v8009, %v8111
  %v8256 = vadd.f32 %v8010, %v8180
  %v8257 = vadd.f32 %v8011, %v8182
  %v8258 = vadd.f32 %v8012, %v8251
  %s8259 = scalar_lea.vmem %s2, 24
  %v8260 = vld [vmem:[%s8259] sm:$0xf]
  %8261 = vrot.lane.b32.xlu0 %v6796, 88
  %v8262 = vpop.permute.xlu0 %8261
  %8263 = vrot.lane.b32.xlu0 %v6797, 88
  %v8264 = vpop.permute.xlu0 %8263
  %8265 = vrot.lane.b32.xlu0 %v6798, 88
  %v8266 = vpop.permute.xlu0 %8265
  %8267 = vrot.lane.b32.xlu0 %v6799, 88
  %v8268 = vpop.permute.xlu0 %8267
  %8269 = vrot.lane.b32.xlu0 %v6800, 88
  %v8270 = vpop.permute.xlu0 %8269
  %v8271 = vsel %vm3705, %v8262, %v8264
  %v8272 = vsel %vm3705, %v8264, %v8266
  %v8273 = vsel %vm3705, %v8266, %v8268
  %v8274 = vsel %vm3705, %v8268, %v8270
  %v8276 = vsel %vm6823, %v8260, 0
  %v8278 = vsel %vm6613, %v8271, 0
  %v8280 = vsel %vm6613, %v8272, 0
  %v8282 = vsel %vm6613, %v8273, 0
  %v8284 = vsel %vm6613, %v8274, 0
  %v8286 = vsel %vm6613, %v8270, 0
  %8288 = vmatprep.subr.mxu0 0.0
  %8289 = vmatpush1.msra.mxu0 0.0
  %8290 = vmatprep.subr.mxu0 0.0
  %8291 = vmatpush1.msra.mxu0 0.0
  %8292 = vmatprep.subr.mxu0 0.0
  %8293 = vmatpush1.msra.mxu0 0.0
  %8294 = vmatprep.subr.mxu0 0.0
  %8295 = vmatpush1.msra.mxu0 0.0
  %8296 = vmatprep.subr.mxu0 0.0
  %8297 = vmatpush1.msra.mxu0 0.0
  %8298 = vmatprep.subr.mxu0 0.0
  %8299 = vmatpush1.msra.mxu0 0.0
  %8300 = vmatprep.subr.mxu0 0.0
  %8301 = vmatpush1.msra.mxu0 0.0
  %8302 = vmatprep.subr.mxu0 0.0
  %8303 = vmatpush1.msra.mxu0 0.0
  %8304 = vmatprep.subr.mxu0 0.0
  %8305 = vmatpush1.msra.mxu0 0.0
  %8306 = vmatprep.subr.mxu0 0.0
  %8307 = vmatpush1.msra.mxu0 0.0
  %8308 = vmatprep.subr.mxu0 0.0
  %8309 = vmatpush1.msra.mxu0 0.0
  %8310 = vmatprep.subr.mxu0 0.0
  %8311 = vmatpush1.msra.mxu0 0.0
  %8312 = vmatprep.subr.mxu0 0.0
  %8313 = vmatpush1.msra.mxu0 0.0
  %8314 = vmatprep.subr.mxu0 0.0
  %8315 = vmatpush1.msra.mxu0 0.0
  %8316 = vmatprep.subr.mxu0 0.0
  %8317 = vmatpush1.msra.mxu0 0.0
  %8318 = vmatprep.subr.mxu0 %v8280
  %8319 = vmatpush1.msra.mxu0 %v8278
  %8320 = vmatprep.subr.mxu0 0.0
  %8321 = vmatpush2.msra.mxu0 0.0
  %8322 = vmatprep.subr.mxu0 0.0
  %8323 = vmatpush2.msra.mxu0 0.0
  %8324 = vmatprep.subr.mxu0 0.0
  %8325 = vmatpush2.msra.mxu0 0.0
  %8326 = vmatprep.subr.mxu0 0.0
  %8327 = vmatpush2.msra.mxu0 0.0
  %8328 = vmatprep.subr.mxu0 0.0
  %8329 = vmatpush2.msra.mxu0 0.0
  %8330 = vmatprep.subr.mxu0 0.0
  %8331 = vmatpush2.msra.mxu0 0.0
  %8332 = vmatprep.subr.mxu0 0.0
  %8333 = vmatpush2.msra.mxu0 0.0
  %8334 = vmatprep.subr.mxu0 0.0
  %8335 = vmatpush2.msra.mxu0 0.0
  %8336 = vmatprep.subr.mxu0 0.0
  %8337 = vmatpush2.msra.mxu0 0.0
  %8338 = vmatprep.subr.mxu0 0.0
  %8339 = vmatpush2.msra.mxu0 0.0
  %8340 = vmatprep.subr.mxu0 0.0
  %8341 = vmatpush2.msra.mxu0 0.0
  %8342 = vmatprep.subr.mxu0 0.0
  %8343 = vmatpush2.msra.mxu0 0.0
  %8344 = vmatprep.subr.mxu0 0.0
  %8345 = vmatpush2.msra.mxu0 0.0
  %8346 = vmatprep.subr.mxu0 0.0
  %8347 = vmatpush2.msra.mxu0 0.0
  %8348 = vmatprep.subr.mxu0 0.0
  %8349 = vmatpush2.msra.mxu0 0.0
  %8350 = vmatprep.subr.mxu0 0.0
  %8351 = vmatpush2.msra.mxu0 0.0
  %8352 = vmatprep.mubr.f32.mxu0 0.0
  %8353 = vmatmul.mubr.f32.gmra.mxu0 %v8276
  %v8354 = vpop.f32.mrf.mxu0
  %v8355 = vadd.f32 0.0, %v8354
  %v8356 = vpop.f32.mrf.mxu0
  %v8357 = vadd.f32 0.0, %v8356
  %8358 = vdwg.mxu0
  %8359 = vmatprep.subr.mxu0 0.0
  %8360 = vmatpush1.msra.mxu0 0.0
  %8361 = vmatprep.subr.mxu0 0.0
  %8362 = vmatpush1.msra.mxu0 0.0
  %8363 = vmatprep.subr.mxu0 0.0
  %8364 = vmatpush1.msra.mxu0 0.0
  %8365 = vmatprep.subr.mxu0 0.0
  %8366 = vmatpush1.msra.mxu0 0.0
  %8367 = vmatprep.subr.mxu0 0.0
  %8368 = vmatpush1.msra.mxu0 0.0
  %8369 = vmatprep.subr.mxu0 0.0
  %8370 = vmatpush1.msra.mxu0 0.0
  %8371 = vmatprep.subr.mxu0 0.0
  %8372 = vmatpush1.msra.mxu0 0.0
  %8373 = vmatprep.subr.mxu0 0.0
  %8374 = vmatpush1.msra.mxu0 0.0
  %8375 = vmatprep.subr.mxu0 0.0
  %8376 = vmatpush1.msra.mxu0 0.0
  %8377 = vmatprep.subr.mxu0 0.0
  %8378 = vmatpush1.msra.mxu0 0.0
  %8379 = vmatprep.subr.mxu0 0.0
  %8380 = vmatpush1.msra.mxu0 0.0
  %8381 = vmatprep.subr.mxu0 0.0
  %8382 = vmatpush1.msra.mxu0 0.0
  %8383 = vmatprep.subr.mxu0 0.0
  %8384 = vmatpush1.msra.mxu0 0.0
  %8385 = vmatprep.subr.mxu0 0.0
  %8386 = vmatpush1.msra.mxu0 0.0
  %8387 = vmatprep.subr.mxu0 0.0
  %8388 = vmatpush1.msra.mxu0 0.0
  %8389 = vmatprep.subr.mxu0 %v8284
  %8390 = vmatpush1.msra.mxu0 %v8282
  %8391 = vmatprep.subr.mxu0 0.0
  %8392 = vmatpush2.msra.mxu0 0.0
  %8393 = vmatprep.subr.mxu0 0.0
  %8394 = vmatpush2.msra.mxu0 0.0
  %8395 = vmatprep.subr.mxu0 0.0
  %8396 = vmatpush2.msra.mxu0 0.0
  %8397 = vmatprep.subr.mxu0 0.0
  %8398 = vmatpush2.msra.mxu0 0.0
  %8399 = vmatprep.subr.mxu0 0.0
  %8400 = vmatpush2.msra.mxu0 0.0
  %8401 = vmatprep.subr.mxu0 0.0
  %8402 = vmatpush2.msra.mxu0 0.0
  %8403 = vmatprep.subr.mxu0 0.0
  %8404 = vmatpush2.msra.mxu0 0.0
  %8405 = vmatprep.subr.mxu0 0.0
  %8406 = vmatpush2.msra.mxu0 0.0
  %8407 = vmatprep.subr.mxu0 0.0
  %8408 = vmatpush2.msra.mxu0 0.0
  %8409 = vmatprep.subr.mxu0 0.0
  %8410 = vmatpush2.msra.mxu0 0.0
  %8411 = vmatprep.subr.mxu0 0.0
  %8412 = vmatpush2.msra.mxu0 0.0
  %8413 = vmatprep.subr.mxu0 0.0
  %8414 = vmatpush2.msra.mxu0 0.0
  %8415 = vmatprep.subr.mxu0 0.0
  %8416 = vmatpush2.msra.mxu0 0.0
  %8417 = vmatprep.subr.mxu0 0.0
  %8418 = vmatpush2.msra.mxu0 0.0
  %8419 = vmatprep.subr.mxu0 0.0
  %8420 = vmatpush2.msra.mxu0 0.0
  %8421 = vmatprep.subr.mxu0 0.0
  %8422 = vmatpush2.msra.mxu0 0.0
  %8423 = vmatprep.mubr.f32.mxu0 0.0
  %8424 = vmatmul.mubr.f32.gmra.mxu0 %v8276
  %v8425 = vpop.f32.mrf.mxu0
  %v8426 = vadd.f32 0.0, %v8425
  %v8427 = vpop.f32.mrf.mxu0
  %v8428 = vadd.f32 0.0, %v8427
  %8429 = vdwg.mxu0
  %8430 = vmatprep.subr.mxu0 0.0
  %8431 = vmatpush1.msra.mxu0 0.0
  %8432 = vmatprep.subr.mxu0 0.0
  %8433 = vmatpush1.msra.mxu0 0.0
  %8434 = vmatprep.subr.mxu0 0.0
  %8435 = vmatpush1.msra.mxu0 0.0
  %8436 = vmatprep.subr.mxu0 0.0
  %8437 = vmatpush1.msra.mxu0 0.0
  %8438 = vmatprep.subr.mxu0 0.0
  %8439 = vmatpush1.msra.mxu0 0.0
  %8440 = vmatprep.subr.mxu0 0.0
  %8441 = vmatpush1.msra.mxu0 0.0
  %8442 = vmatprep.subr.mxu0 0.0
  %8443 = vmatpush1.msra.mxu0 0.0
  %8444 = vmatprep.subr.mxu0 0.0
  %8445 = vmatpush1.msra.mxu0 0.0
  %8446 = vmatprep.subr.mxu0 0.0
  %8447 = vmatpush1.msra.mxu0 0.0
  %8448 = vmatprep.subr.mxu0 0.0
  %8449 = vmatpush1.msra.mxu0 0.0
  %8450 = vmatprep.subr.mxu0 0.0
  %8451 = vmatpush1.msra.mxu0 0.0
  %8452 = vmatprep.subr.mxu0 0.0
  %8453 = vmatpush1.msra.mxu0 0.0
  %8454 = vmatprep.subr.mxu0 0.0
  %8455 = vmatpush1.msra.mxu0 0.0
  %8456 = vmatprep.subr.mxu0 0.0
  %8457 = vmatpush1.msra.mxu0 0.0
  %8458 = vmatprep.subr.mxu0 0.0
  %8459 = vmatpush1.msra.mxu0 0.0
  %8460 = vmatprep.subr.mxu0 0.0
  %8461 = vmatpush1.msra.mxu0 %v8286
  %8462 = vmatprep.subr.mxu0 0.0
  %8463 = vmatpush2.msra.mxu0 0.0
  %8464 = vmatprep.subr.mxu0 0.0
  %8465 = vmatpush2.msra.mxu0 0.0
  %8466 = vmatprep.subr.mxu0 0.0
  %8467 = vmatpush2.msra.mxu0 0.0
  %8468 = vmatprep.subr.mxu0 0.0
  %8469 = vmatpush2.msra.mxu0 0.0
  %8470 = vmatprep.subr.mxu0 0.0
  %8471 = vmatpush2.msra.mxu0 0.0
  %8472 = vmatprep.subr.mxu0 0.0
  %8473 = vmatpush2.msra.mxu0 0.0
  %8474 = vmatprep.subr.mxu0 0.0
  %8475 = vmatpush2.msra.mxu0 0.0
  %8476 = vmatprep.subr.mxu0 0.0
  %8477 = vmatpush2.msra.mxu0 0.0
  %8478 = vmatprep.subr.mxu0 0.0
  %8479 = vmatpush2.msra.mxu0 0.0
  %8480 = vmatprep.subr.mxu0 0.0
  %8481 = vmatpush2.msra.mxu0 0.0
  %8482 = vmatprep.subr.mxu0 0.0
  %8483 = vmatpush2.msra.mxu0 0.0
  %8484 = vmatprep.subr.mxu0 0.0
  %8485 = vmatpush2.msra.mxu0 0.0
  %8486 = vmatprep.subr.mxu0 0.0
  %8487 = vmatpush2.msra.mxu0 0.0
  %8488 = vmatprep.subr.mxu0 0.0
  %8489 = vmatpush2.msra.mxu0 0.0
  %8490 = vmatprep.subr.mxu0 0.0
  %8491 = vmatpush2.msra.mxu0 0.0
  %8492 = vmatprep.subr.mxu0 0.0
  %8493 = vmatpush2.msra.mxu0 0.0
  %8494 = vmatprep.mubr.f32.mxu0 0.0
  %8495 = vmatmul.mubr.f32.gmra.mxu0 %v8276
  %v8496 = vpop.f32.mrf.mxu0
  %v8497 = vadd.f32 0.0, %v8496
  %v8498 = vpop.f32.mrf.mxu0
  %8499 = vdwg.mxu0
  %v8500 = vadd.f32 %v8254, %v8355
  %v8501 = vadd.f32 %v8255, %v8357
  %v8502 = vadd.f32 %v8256, %v8426
  %v8503 = vadd.f32 %v8257, %v8428
  %v8504 = vadd.f32 %v8258, %v8497
  %s8505 = scalar_lea.vmem %s2, 28
  %v8506 = vld [vmem:[%s8505] sm:$0xf]
  %8507 = vrot.lane.b32.xlu0 %v6796, 86
  %v8508 = vpop.permute.xlu0 %8507
  %8509 = vrot.lane.b32.xlu0 %v6797, 86
  %v8510 = vpop.permute.xlu0 %8509
  %8511 = vrot.lane.b32.xlu0 %v6798, 86
  %v8512 = vpop.permute.xlu0 %8511
  %8513 = vrot.lane.b32.xlu0 %v6799, 86
  %v8514 = vpop.permute.xlu0 %8513
  %8515 = vrot.lane.b32.xlu0 %v6800, 86
  %v8516 = vpop.permute.xlu0 %8515
  %vm8517 = vcmask 703488
  %v8518 = vsel %vm8517, %v8508, %v8510
  %v8519 = vsel %vm8517, %v8510, %v8512
  %v8520 = vsel %vm8517, %v8512, %v8514
  %v8521 = vsel %vm8517, %v8514, %v8516
  %v8523 = vsel %vm6823, %v8506, 0
  %v8525 = vsel %vm6613, %v8518, 0
  %v8527 = vsel %vm6613, %v8519, 0
  %v8529 = vsel %vm6613, %v8520, 0
  %v8531 = vsel %vm6613, %v8521, 0
  %v8533 = vsel %vm6613, %v8516, 0
  %8535 = vmatprep.subr.mxu0 0.0
  %8536 = vmatpush1.msra.mxu0 0.0
  %8537 = vmatprep.subr.mxu0 0.0
  %8538 = vmatpush1.msra.mxu0 0.0
  %8539 = vmatprep.subr.mxu0 0.0
  %8540 = vmatpush1.msra.mxu0 0.0
  %8541 = vmatprep.subr.mxu0 0.0
  %8542 = vmatpush1.msra.mxu0 0.0
  %8543 = vmatprep.subr.mxu0 0.0
  %8544 = vmatpush1.msra.mxu0 0.0
  %8545 = vmatprep.subr.mxu0 0.0
  %8546 = vmatpush1.msra.mxu0 0.0
  %8547 = vmatprep.subr.mxu0 0.0
  %8548 = vmatpush1.msra.mxu0 0.0
  %8549 = vmatprep.subr.mxu0 0.0
  %8550 = vmatpush1.msra.mxu0 0.0
  %8551 = vmatprep.subr.mxu0 0.0
  %8552 = vmatpush1.msra.mxu0 0.0
  %8553 = vmatprep.subr.mxu0 0.0
  %8554 = vmatpush1.msra.mxu0 0.0
  %8555 = vmatprep.subr.mxu0 0.0
  %8556 = vmatpush1.msra.mxu0 0.0
  %8557 = vmatprep.subr.mxu0 0.0
  %8558 = vmatpush1.msra.mxu0 0.0
  %8559 = vmatprep.subr.mxu0 0.0
  %8560 = vmatpush1.msra.mxu0 0.0
  %8561 = vmatprep.subr.mxu0 0.0
  %8562 = vmatpush1.msra.mxu0 0.0
  %8563 = vmatprep.subr.mxu0 0.0
  %8564 = vmatpush1.msra.mxu0 0.0
  %8565 = vmatprep.subr.mxu0 %v8527
  %8566 = vmatpush1.msra.mxu0 %v8525
  %8567 = vmatprep.subr.mxu0 0.0
  %8568 = vmatpush2.msra.mxu0 0.0
  %8569 = vmatprep.subr.mxu0 0.0
  %8570 = vmatpush2.msra.mxu0 0.0
  %8571 = vmatprep.subr.mxu0 0.0
  %8572 = vmatpush2.msra.mxu0 0.0
  %8573 = vmatprep.subr.mxu0 0.0
  %8574 = vmatpush2.msra.mxu0 0.0
  %8575 = vmatprep.subr.mxu0 0.0
  %8576 = vmatpush2.msra.mxu0 0.0
  %8577 = vmatprep.subr.mxu0 0.0
  %8578 = vmatpush2.msra.mxu0 0.0
  %8579 = vmatprep.subr.mxu0 0.0
  %8580 = vmatpush2.msra.mxu0 0.0
  %8581 = vmatprep.subr.mxu0 0.0
  %8582 = vmatpush2.msra.mxu0 0.0
  %8583 = vmatprep.subr.mxu0 0.0
  %8584 = vmatpush2.msra.mxu0 0.0
  %8585 = vmatprep.subr.mxu0 0.0
  %8586 = vmatpush2.msra.mxu0 0.0
  %8587 = vmatprep.subr.mxu0 0.0
  %8588 = vmatpush2.msra.mxu0 0.0
  %8589 = vmatprep.subr.mxu0 0.0
  %8590 = vmatpush2.msra.mxu0 0.0
  %8591 = vmatprep.subr.mxu0 0.0
  %8592 = vmatpush2.msra.mxu0 0.0
  %8593 = vmatprep.subr.mxu0 0.0
  %8594 = vmatpush2.msra.mxu0 0.0
  %8595 = vmatprep.subr.mxu0 0.0
  %8596 = vmatpush2.msra.mxu0 0.0
  %8597 = vmatprep.subr.mxu0 0.0
  %8598 = vmatpush2.msra.mxu0 0.0
  %8599 = vmatprep.mubr.f32.mxu0 0.0
  %8600 = vmatmul.mubr.f32.gmra.mxu0 %v8523
  %v8601 = vpop.f32.mrf.mxu0
  %v8602 = vadd.f32 0.0, %v8601
  %v8603 = vpop.f32.mrf.mxu0
  %v8604 = vadd.f32 0.0, %v8603
  %8605 = vdwg.mxu0
  %8606 = vmatprep.subr.mxu0 0.0
  %8607 = vmatpush1.msra.mxu0 0.0
  %8608 = vmatprep.subr.mxu0 0.0
  %8609 = vmatpush1.msra.mxu0 0.0
  %8610 = vmatprep.subr.mxu0 0.0
  %8611 = vmatpush1.msra.mxu0 0.0
  %8612 = vmatprep.subr.mxu0 0.0
  %8613 = vmatpush1.msra.mxu0 0.0
  %8614 = vmatprep.subr.mxu0 0.0
  %8615 = vmatpush1.msra.mxu0 0.0
  %8616 = vmatprep.subr.mxu0 0.0
  %8617 = vmatpush1.msra.mxu0 0.0
  %8618 = vmatprep.subr.mxu0 0.0
  %8619 = vmatpush1.msra.mxu0 0.0
  %8620 = vmatprep.subr.mxu0 0.0
  %8621 = vmatpush1.msra.mxu0 0.0
  %8622 = vmatprep.subr.mxu0 0.0
  %8623 = vmatpush1.msra.mxu0 0.0
  %8624 = vmatprep.subr.mxu0 0.0
  %8625 = vmatpush1.msra.mxu0 0.0
  %8626 = vmatprep.subr.mxu0 0.0
  %8627 = vmatpush1.msra.mxu0 0.0
  %8628 = vmatprep.subr.mxu0 0.0
  %8629 = vmatpush1.msra.mxu0 0.0
  %8630 = vmatprep.subr.mxu0 0.0
  %8631 = vmatpush1.msra.mxu0 0.0
  %8632 = vmatprep.subr.mxu0 0.0
  %8633 = vmatpush1.msra.mxu0 0.0
  %8634 = vmatprep.subr.mxu0 0.0
  %8635 = vmatpush1.msra.mxu0 0.0
  %8636 = vmatprep.subr.mxu0 %v8531
  %8637 = vmatpush1.msra.mxu0 %v8529
  %8638 = vmatprep.subr.mxu0 0.0
  %8639 = vmatpush2.msra.mxu0 0.0
  %8640 = vmatprep.subr.mxu0 0.0
  %8641 = vmatpush2.msra.mxu0 0.0
  %8642 = vmatprep.subr.mxu0 0.0
  %8643 = vmatpush2.msra.mxu0 0.0
  %8644 = vmatprep.subr.mxu0 0.0
  %8645 = vmatpush2.msra.mxu0 0.0
  %8646 = vmatprep.subr.mxu0 0.0
  %8647 = vmatpush2.msra.mxu0 0.0
  %8648 = vmatprep.subr.mxu0 0.0
  %8649 = vmatpush2.msra.mxu0 0.0
  %8650 = vmatprep.subr.mxu0 0.0
  %8651 = vmatpush2.msra.mxu0 0.0
  %8652 = vmatprep.subr.mxu0 0.0
  %8653 = vmatpush2.msra.mxu0 0.0
  %8654 = vmatprep.subr.mxu0 0.0
  %8655 = vmatpush2.msra.mxu0 0.0
  %8656 = vmatprep.subr.mxu0 0.0
  %8657 = vmatpush2.msra.mxu0 0.0
  %8658 = vmatprep.subr.mxu0 0.0
  %8659 = vmatpush2.msra.mxu0 0.0
  %8660 = vmatprep.subr.mxu0 0.0
  %8661 = vmatpush2.msra.mxu0 0.0
  %8662 = vmatprep.subr.mxu0 0.0
  %8663 = vmatpush2.msra.mxu0 0.0
  %8664 = vmatprep.subr.mxu0 0.0
  %8665 = vmatpush2.msra.mxu0 0.0
  %8666 = vmatprep.subr.mxu0 0.0
  %8667 = vmatpush2.msra.mxu0 0.0
  %8668 = vmatprep.subr.mxu0 0.0
  %8669 = vmatpush2.msra.mxu0 0.0
  %8670 = vmatprep.mubr.f32.mxu0 0.0
  %8671 = vmatmul.mubr.f32.gmra.mxu0 %v8523
  %v8672 = vpop.f32.mrf.mxu0
  %v8673 = vadd.f32 0.0, %v8672
  %v8674 = vpop.f32.mrf.mxu0
  %v8675 = vadd.f32 0.0, %v8674
  %8676 = vdwg.mxu0
  %8677 = vmatprep.subr.mxu0 0.0
  %8678 = vmatpush1.msra.mxu0 0.0
  %8679 = vmatprep.subr.mxu0 0.0
  %8680 = vmatpush1.msra.mxu0 0.0
  %8681 = vmatprep.subr.mxu0 0.0
  %8682 = vmatpush1.msra.mxu0 0.0
  %8683 = vmatprep.subr.mxu0 0.0
  %8684 = vmatpush1.msra.mxu0 0.0
  %8685 = vmatprep.subr.mxu0 0.0
  %8686 = vmatpush1.msra.mxu0 0.0
  %8687 = vmatprep.subr.mxu0 0.0
  %8688 = vmatpush1.msra.mxu0 0.0
  %8689 = vmatprep.subr.mxu0 0.0
  %8690 = vmatpush1.msra.mxu0 0.0
  %8691 = vmatprep.subr.mxu0 0.0
  %8692 = vmatpush1.msra.mxu0 0.0
  %8693 = vmatprep.subr.mxu0 0.0
  %8694 = vmatpush1.msra.mxu0 0.0
  %8695 = vmatprep.subr.mxu0 0.0
  %8696 = vmatpush1.msra.mxu0 0.0
  %8697 = vmatprep.subr.mxu0 0.0
  %8698 = vmatpush1.msra.mxu0 0.0
  %8699 = vmatprep.subr.mxu0 0.0
  %8700 = vmatpush1.msra.mxu0 0.0
  %8701 = vmatprep.subr.mxu0 0.0
  %8702 = vmatpush1.msra.mxu0 0.0
  %8703 = vmatprep.subr.mxu0 0.0
  %8704 = vmatpush1.msra.mxu0 0.0
  %8705 = vmatprep.subr.mxu0 0.0
  %8706 = vmatpush1.msra.mxu0 0.0
  %8707 = vmatprep.subr.mxu0 0.0
  %8708 = vmatpush1.msra.mxu0 %v8533
  %8709 = vmatprep.subr.mxu0 0.0
  %8710 = vmatpush2.msra.mxu0 0.0
  %8711 = vmatprep.subr.mxu0 0.0
  %8712 = vmatpush2.msra.mxu0 0.0
  %8713 = vmatprep.subr.mxu0 0.0
  %8714 = vmatpush2.msra.mxu0 0.0
  %8715 = vmatprep.subr.mxu0 0.0
  %8716 = vmatpush2.msra.mxu0 0.0
  %8717 = vmatprep.subr.mxu0 0.0
  %8718 = vmatpush2.msra.mxu0 0.0
  %8719 = vmatprep.subr.mxu0 0.0
  %8720 = vmatpush2.msra.mxu0 0.0
  %8721 = vmatprep.subr.mxu0 0.0
  %8722 = vmatpush2.msra.mxu0 0.0
  %8723 = vmatprep.subr.mxu0 0.0
  %8724 = vmatpush2.msra.mxu0 0.0
  %8725 = vmatprep.subr.mxu0 0.0
  %8726 = vmatpush2.msra.mxu0 0.0
  %8727 = vmatprep.subr.mxu0 0.0
  %8728 = vmatpush2.msra.mxu0 0.0
  %8729 = vmatprep.subr.mxu0 0.0
  %8730 = vmatpush2.msra.mxu0 0.0
  %8731 = vmatprep.subr.mxu0 0.0
  %8732 = vmatpush2.msra.mxu0 0.0
  %8733 = vmatprep.subr.mxu0 0.0
  %8734 = vmatpush2.msra.mxu0 0.0
  %8735 = vmatprep.subr.mxu0 0.0
  %8736 = vmatpush2.msra.mxu0 0.0
  %8737 = vmatprep.subr.mxu0 0.0
  %8738 = vmatpush2.msra.mxu0 0.0
  %8739 = vmatprep.subr.mxu0 0.0
  %8740 = vmatpush2.msra.mxu0 0.0
  %8741 = vmatprep.mubr.f32.mxu0 0.0
  %8742 = vmatmul.mubr.f32.gmra.mxu0 %v8523
  %v8743 = vpop.f32.mrf.mxu0
  %v8744 = vadd.f32 0.0, %v8743
  %v8745 = vpop.f32.mrf.mxu0
  %8746 = vdwg.mxu0
  %v8747 = vadd.f32 %v8500, %v8602
  %v8748 = vadd.f32 %v8501, %v8604
  %v8749 = vadd.f32 %v8502, %v8673
  %v8750 = vadd.f32 %v8503, %v8675
  %v8751 = vadd.f32 %v8504, %v8744
  %s8752 = scalar_lea.vmem %s2, 32
  %v8753 = vld [vmem:[%s8752] sm:$0xf]
  %8754 = vrot.lane.b32.xlu0 %v6796, 56
  %v8755 = vpop.permute.xlu0 %8754
  %8756 = vrot.lane.b32.xlu0 %v6797, 56
  %v8757 = vpop.permute.xlu0 %8756
  %8758 = vrot.lane.b32.xlu0 %v6798, 56
  %v8759 = vpop.permute.xlu0 %8758
  %8760 = vrot.lane.b32.xlu0 %v6799, 56
  %v8761 = vpop.permute.xlu0 %8760
  %8762 = vrot.lane.b32.xlu0 %v6800, 56
  %v8763 = vpop.permute.xlu0 %8762
  %v8764 = vsel %vm5283, %v8755, %v8757
  %v8765 = vsel %vm5283, %v8757, %v8759
  %v8766 = vsel %vm5283, %v8759, %v8761
  %v8767 = vsel %vm5283, %v8761, %v8763
  %v8769 = vsel %vm6823, %v8753, 0
  %v8771 = vsel %vm6613, %v8764, 0
  %v8773 = vsel %vm6613, %v8765, 0
  %v8775 = vsel %vm6613, %v8766, 0
  %v8777 = vsel %vm6613, %v8767, 0
  %v8779 = vsel %vm6613, %v8763, 0
  %8781 = vmatprep.subr.mxu0 0.0
  %8782 = vmatpush1.msra.mxu0 0.0
  %8783 = vmatprep.subr.mxu0 0.0
  %8784 = vmatpush1.msra.mxu0 0.0
  %8785 = vmatprep.subr.mxu0 0.0
  %8786 = vmatpush1.msra.mxu0 0.0
  %8787 = vmatprep.subr.mxu0 0.0
  %8788 = vmatpush1.msra.mxu0 0.0
  %8789 = vmatprep.subr.mxu0 0.0
  %8790 = vmatpush1.msra.mxu0 0.0
  %8791 = vmatprep.subr.mxu0 0.0
  %8792 = vmatpush1.msra.mxu0 0.0
  %8793 = vmatprep.subr.mxu0 0.0
  %8794 = vmatpush1.msra.mxu0 0.0
  %8795 = vmatprep.subr.mxu0 0.0
  %8796 = vmatpush1.msra.mxu0 0.0
  %8797 = vmatprep.subr.mxu0 0.0
  %8798 = vmatpush1.msra.mxu0 0.0
  %8799 = vmatprep.subr.mxu0 0.0
  %8800 = vmatpush1.msra.mxu0 0.0
  %8801 = vmatprep.subr.mxu0 0.0
  %8802 = vmatpush1.msra.mxu0 0.0
  %8803 = vmatprep.subr.mxu0 0.0
  %8804 = vmatpush1.msra.mxu0 0.0
  %8805 = vmatprep.subr.mxu0 0.0
  %8806 = vmatpush1.msra.mxu0 0.0
  %8807 = vmatprep.subr.mxu0 0.0
  %8808 = vmatpush1.msra.mxu0 0.0
  %8809 = vmatprep.subr.mxu0 0.0
  %8810 = vmatpush1.msra.mxu0 0.0
  %8811 = vmatprep.subr.mxu0 %v8773
  %8812 = vmatpush1.msra.mxu0 %v8771
  %8813 = vmatprep.subr.mxu0 0.0
  %8814 = vmatpush2.msra.mxu0 0.0
  %8815 = vmatprep.subr.mxu0 0.0
  %8816 = vmatpush2.msra.mxu0 0.0
  %8817 = vmatprep.subr.mxu0 0.0
  %8818 = vmatpush2.msra.mxu0 0.0
  %8819 = vmatprep.subr.mxu0 0.0
  %8820 = vmatpush2.msra.mxu0 0.0
  %8821 = vmatprep.subr.mxu0 0.0
  %8822 = vmatpush2.msra.mxu0 0.0
  %8823 = vmatprep.subr.mxu0 0.0
  %8824 = vmatpush2.msra.mxu0 0.0
  %8825 = vmatprep.subr.mxu0 0.0
  %8826 = vmatpush2.msra.mxu0 0.0
  %8827 = vmatprep.subr.mxu0 0.0
  %8828 = vmatpush2.msra.mxu0 0.0
  %8829 = vmatprep.subr.mxu0 0.0
  %8830 = vmatpush2.msra.mxu0 0.0
  %8831 = vmatprep.subr.mxu0 0.0
  %8832 = vmatpush2.msra.mxu0 0.0
  %8833 = vmatprep.subr.mxu0 0.0
  %8834 = vmatpush2.msra.mxu0 0.0
  %8835 = vmatprep.subr.mxu0 0.0
  %8836 = vmatpush2.msra.mxu0 0.0
  %8837 = vmatprep.subr.mxu0 0.0
  %8838 = vmatpush2.msra.mxu0 0.0
  %8839 = vmatprep.subr.mxu0 0.0
  %8840 = vmatpush2.msra.mxu0 0.0
  %8841 = vmatprep.subr.mxu0 0.0
  %8842 = vmatpush2.msra.mxu0 0.0
  %8843 = vmatprep.subr.mxu0 0.0
  %8844 = vmatpush2.msra.mxu0 0.0
  %8845 = vmatprep.mubr.f32.mxu0 0.0
  %8846 = vmatmul.mubr.f32.gmra.mxu0 %v8769
  %v8847 = vpop.f32.mrf.mxu0
  %v8848 = vadd.f32 0.0, %v8847
  %v8849 = vpop.f32.mrf.mxu0
  %v8850 = vadd.f32 0.0, %v8849
  %8851 = vdwg.mxu0
  %8852 = vmatprep.subr.mxu0 0.0
  %8853 = vmatpush1.msra.mxu0 0.0
  %8854 = vmatprep.subr.mxu0 0.0
  %8855 = vmatpush1.msra.mxu0 0.0
  %8856 = vmatprep.subr.mxu0 0.0
  %8857 = vmatpush1.msra.mxu0 0.0
  %8858 = vmatprep.subr.mxu0 0.0
  %8859 = vmatpush1.msra.mxu0 0.0
  %8860 = vmatprep.subr.mxu0 0.0
  %8861 = vmatpush1.msra.mxu0 0.0
  %8862 = vmatprep.subr.mxu0 0.0
  %8863 = vmatpush1.msra.mxu0 0.0
  %8864 = vmatprep.subr.mxu0 0.0
  %8865 = vmatpush1.msra.mxu0 0.0
  %8866 = vmatprep.subr.mxu0 0.0
  %8867 = vmatpush1.msra.mxu0 0.0
  %8868 = vmatprep.subr.mxu0 0.0
  %8869 = vmatpush1.msra.mxu0 0.0
  %8870 = vmatprep.subr.mxu0 0.0
  %8871 = vmatpush1.msra.mxu0 0.0
  %8872 = vmatprep.subr.mxu0 0.0
  %8873 = vmatpush1.msra.mxu0 0.0
  %8874 = vmatprep.subr.mxu0 0.0
  %8875 = vmatpush1.msra.mxu0 0.0
  %8876 = vmatprep.subr.mxu0 0.0
  %8877 = vmatpush1.msra.mxu0 0.0
  %8878 = vmatprep.subr.mxu0 0.0
  %8879 = vmatpush1.msra.mxu0 0.0
  %8880 = vmatprep.subr.mxu0 0.0
  %8881 = vmatpush1.msra.mxu0 0.0
  %8882 = vmatprep.subr.mxu0 %v8777
  %8883 = vmatpush1.msra.mxu0 %v8775
  %8884 = vmatprep.subr.mxu0 0.0
  %8885 = vmatpush2.msra.mxu0 0.0
  %8886 = vmatprep.subr.mxu0 0.0
  %8887 = vmatpush2.msra.mxu0 0.0
  %8888 = vmatprep.subr.mxu0 0.0
  %8889 = vmatpush2.msra.mxu0 0.0
  %8890 = vmatprep.subr.mxu0 0.0
  %8891 = vmatpush2.msra.mxu0 0.0
  %8892 = vmatprep.subr.mxu0 0.0
  %8893 = vmatpush2.msra.mxu0 0.0
  %8894 = vmatprep.subr.mxu0 0.0
  %8895 = vmatpush2.msra.mxu0 0.0
  %8896 = vmatprep.subr.mxu0 0.0
  %8897 = vmatpush2.msra.mxu0 0.0
  %8898 = vmatprep.subr.mxu0 0.0
  %8899 = vmatpush2.msra.mxu0 0.0
  %8900 = vmatprep.subr.mxu0 0.0
  %8901 = vmatpush2.msra.mxu0 0.0
  %8902 = vmatprep.subr.mxu0 0.0
  %8903 = vmatpush2.msra.mxu0 0.0
  %8904 = vmatprep.subr.mxu0 0.0
  %8905 = vmatpush2.msra.mxu0 0.0
  %8906 = vmatprep.subr.mxu0 0.0
  %8907 = vmatpush2.msra.mxu0 0.0
  %8908 = vmatprep.subr.mxu0 0.0
  %8909 = vmatpush2.msra.mxu0 0.0
  %8910 = vmatprep.subr.mxu0 0.0
  %8911 = vmatpush2.msra.mxu0 0.0
  %8912 = vmatprep.subr.mxu0 0.0
  %8913 = vmatpush2.msra.mxu0 0.0
  %8914 = vmatprep.subr.mxu0 0.0
  %8915 = vmatpush2.msra.mxu0 0.0
  %8916 = vmatprep.mubr.f32.mxu0 0.0
  %8917 = vmatmul.mubr.f32.gmra.mxu0 %v8769
  %v8918 = vpop.f32.mrf.mxu0
  %v8919 = vadd.f32 0.0, %v8918
  %v8920 = vpop.f32.mrf.mxu0
  %v8921 = vadd.f32 0.0, %v8920
  %8922 = vdwg.mxu0
  %8923 = vmatprep.subr.mxu0 0.0
  %8924 = vmatpush1.msra.mxu0 0.0
  %8925 = vmatprep.subr.mxu0 0.0
  %8926 = vmatpush1.msra.mxu0 0.0
  %8927 = vmatprep.subr.mxu0 0.0
  %8928 = vmatpush1.msra.mxu0 0.0
  %8929 = vmatprep.subr.mxu0 0.0
  %8930 = vmatpush1.msra.mxu0 0.0
  %8931 = vmatprep.subr.mxu0 0.0
  %8932 = vmatpush1.msra.mxu0 0.0
  %8933 = vmatprep.subr.mxu0 0.0
  %8934 = vmatpush1.msra.mxu0 0.0
  %8935 = vmatprep.subr.mxu0 0.0
  %8936 = vmatpush1.msra.mxu0 0.0
  %8937 = vmatprep.subr.mxu0 0.0
  %8938 = vmatpush1.msra.mxu0 0.0
  %8939 = vmatprep.subr.mxu0 0.0
  %8940 = vmatpush1.msra.mxu0 0.0
  %8941 = vmatprep.subr.mxu0 0.0
  %8942 = vmatpush1.msra.mxu0 0.0
  %8943 = vmatprep.subr.mxu0 0.0
  %8944 = vmatpush1.msra.mxu0 0.0
  %8945 = vmatprep.subr.mxu0 0.0
  %8946 = vmatpush1.msra.mxu0 0.0
  %8947 = vmatprep.subr.mxu0 0.0
  %8948 = vmatpush1.msra.mxu0 0.0
  %8949 = vmatprep.subr.mxu0 0.0
  %8950 = vmatpush1.msra.mxu0 0.0
  %8951 = vmatprep.subr.mxu0 0.0
  %8952 = vmatpush1.msra.mxu0 0.0
  %8953 = vmatprep.subr.mxu0 0.0
  %8954 = vmatpush1.msra.mxu0 %v8779
  %8955 = vmatprep.subr.mxu0 0.0
  %8956 = vmatpush2.msra.mxu0 0.0
  %8957 = vmatprep.subr.mxu0 0.0
  %8958 = vmatpush2.msra.mxu0 0.0
  %8959 = vmatprep.subr.mxu0 0.0
  %8960 = vmatpush2.msra.mxu0 0.0
  %8961 = vmatprep.subr.mxu0 0.0
  %8962 = vmatpush2.msra.mxu0 0.0
  %8963 = vmatprep.subr.mxu0 0.0
  %8964 = vmatpush2.msra.mxu0 0.0
  %8965 = vmatprep.subr.mxu0 0.0
  %8966 = vmatpush2.msra.mxu0 0.0
  %8967 = vmatprep.subr.mxu0 0.0
  %8968 = vmatpush2.msra.mxu0 0.0
  %8969 = vmatprep.subr.mxu0 0.0
  %8970 = vmatpush2.msra.mxu0 0.0
  %8971 = vmatprep.subr.mxu0 0.0
  %8972 = vmatpush2.msra.mxu0 0.0
  %8973 = vmatprep.subr.mxu0 0.0
  %8974 = vmatpush2.msra.mxu0 0.0
  %8975 = vmatprep.subr.mxu0 0.0
  %8976 = vmatpush2.msra.mxu0 0.0
  %8977 = vmatprep.subr.mxu0 0.0
  %8978 = vmatpush2.msra.mxu0 0.0
  %8979 = vmatprep.subr.mxu0 0.0
  %8980 = vmatpush2.msra.mxu0 0.0
  %8981 = vmatprep.subr.mxu0 0.0
  %8982 = vmatpush2.msra.mxu0 0.0
  %8983 = vmatprep.subr.mxu0 0.0
  %8984 = vmatpush2.msra.mxu0 0.0
  %8985 = vmatprep.subr.mxu0 0.0
  %8986 = vmatpush2.msra.mxu0 0.0
  %8987 = vmatprep.mubr.f32.mxu0 0.0
  %8988 = vmatmul.mubr.f32.gmra.mxu0 %v8769
  %v8989 = vpop.f32.mrf.mxu0
  %v8990 = vadd.f32 0.0, %v8989
  %v8991 = vpop.f32.mrf.mxu0
  %8992 = vdwg.mxu0
  %v8993 = vadd.f32 %v8747, %v8848
  %v8994 = vadd.f32 %v8748, %v8850
  %v8995 = vadd.f32 %v8749, %v8919
  %v8996 = vadd.f32 %v8750, %v8921
  %v8997 = vadd.f32 %v8751, %v8990
  %s8998 = scalar_lea.vmem %s2, 36
  %v8999 = vld [vmem:[%s8998] sm:$0xf]
  %9000 = vrot.lane.b32.xlu0 %v6796, 54
  %v9001 = vpop.permute.xlu0 %9000
  %9002 = vrot.lane.b32.xlu0 %v6797, 54
  %v9003 = vpop.permute.xlu0 %9002
  %9004 = vrot.lane.b32.xlu0 %v6798, 54
  %v9005 = vpop.permute.xlu0 %9004
  %9006 = vrot.lane.b32.xlu0 %v6799, 54
  %v9007 = vpop.permute.xlu0 %9006
  %9008 = vrot.lane.b32.xlu0 %v6800, 54
  %v9009 = vpop.permute.xlu0 %9008
  %v9010 = vsel %vm5809, %v9001, %v9003
  %v9011 = vsel %vm5809, %v9003, %v9005
  %v9012 = vsel %vm5809, %v9005, %v9007
  %v9013 = vsel %vm5809, %v9007, %v9009
  %v9015 = vsel %vm6823, %v8999, 0
  %v9017 = vsel %vm6613, %v9010, 0
  %v9019 = vsel %vm6613, %v9011, 0
  %v9021 = vsel %vm6613, %v9012, 0
  %v9023 = vsel %vm6613, %v9013, 0
  %v9025 = vsel %vm6613, %v9009, 0
  %9027 = vmatprep.subr.mxu0 0.0
  %9028 = vmatpush1.msra.mxu0 0.0
  %9029 = vmatprep.subr.mxu0 0.0
  %9030 = vmatpush1.msra.mxu0 0.0
  %9031 = vmatprep.subr.mxu0 0.0
  %9032 = vmatpush1.msra.mxu0 0.0
  %9033 = vmatprep.subr.mxu0 0.0
  %9034 = vmatpush1.msra.mxu0 0.0
  %9035 = vmatprep.subr.mxu0 0.0
  %9036 = vmatpush1.msra.mxu0 0.0
  %9037 = vmatprep.subr.mxu0 0.0
  %9038 = vmatpush1.msra.mxu0 0.0
  %9039 = vmatprep.subr.mxu0 0.0
  %9040 = vmatpush1.msra.mxu0 0.0
  %9041 = vmatprep.subr.mxu0 0.0
  %9042 = vmatpush1.msra.mxu0 0.0
  %9043 = vmatprep.subr.mxu0 0.0
  %9044 = vmatpush1.msra.mxu0 0.0
  %9045 = vmatprep.subr.mxu0 0.0
  %9046 = vmatpush1.msra.mxu0 0.0
  %9047 = vmatprep.subr.mxu0 0.0
  %9048 = vmatpush1.msra.mxu0 0.0
  %9049 = vmatprep.subr.mxu0 0.0
  %9050 = vmatpush1.msra.mxu0 0.0
  %9051 = vmatprep.subr.mxu0 0.0
  %9052 = vmatpush1.msra.mxu0 0.0
  %9053 = vmatprep.subr.mxu0 0.0
  %9054 = vmatpush1.msra.mxu0 0.0
  %9055 = vmatprep.subr.mxu0 0.0
  %9056 = vmatpush1.msra.mxu0 0.0
  %9057 = vmatprep.subr.mxu0 %v9019
  %9058 = vmatpush1.msra.mxu0 %v9017
  %9059 = vmatprep.subr.mxu0 0.0
  %9060 = vmatpush2.msra.mxu0 0.0
  %9061 = vmatprep.subr.mxu0 0.0
  %9062 = vmatpush2.msra.mxu0 0.0
  %9063 = vmatprep.subr.mxu0 0.0
  %9064 = vmatpush2.msra.mxu0 0.0
  %9065 = vmatprep.subr.mxu0 0.0
  %9066 = vmatpush2.msra.mxu0 0.0
  %9067 = vmatprep.subr.mxu0 0.0
  %9068 = vmatpush2.msra.mxu0 0.0
  %9069 = vmatprep.subr.mxu0 0.0
  %9070 = vmatpush2.msra.mxu0 0.0
  %9071 = vmatprep.subr.mxu0 0.0
  %9072 = vmatpush2.msra.mxu0 0.0
  %9073 = vmatprep.subr.mxu0 0.0
  %9074 = vmatpush2.msra.mxu0 0.0
  %9075 = vmatprep.subr.mxu0 0.0
  %9076 = vmatpush2.msra.mxu0 0.0
  %9077 = vmatprep.subr.mxu0 0.0
  %9078 = vmatpush2.msra.mxu0 0.0
  %9079 = vmatprep.subr.mxu0 0.0
  %9080 = vmatpush2.msra.mxu0 0.0
  %9081 = vmatprep.subr.mxu0 0.0
  %9082 = vmatpush2.msra.mxu0 0.0
  %9083 = vmatprep.subr.mxu0 0.0
  %9084 = vmatpush2.msra.mxu0 0.0
  %9085 = vmatprep.subr.mxu0 0.0
  %9086 = vmatpush2.msra.mxu0 0.0
  %9087 = vmatprep.subr.mxu0 0.0
  %9088 = vmatpush2.msra.mxu0 0.0
  %9089 = vmatprep.subr.mxu0 0.0
  %9090 = vmatpush2.msra.mxu0 0.0
  %9091 = vmatprep.mubr.f32.mxu0 0.0
  %9092 = vmatmul.mubr.f32.gmra.mxu0 %v9015
  %v9093 = vpop.f32.mrf.mxu0
  %v9094 = vadd.f32 0.0, %v9093
  %v9095 = vpop.f32.mrf.mxu0
  %v9096 = vadd.f32 0.0, %v9095
  %9097 = vdwg.mxu0
  %9098 = vmatprep.subr.mxu0 0.0
  %9099 = vmatpush1.msra.mxu0 0.0
  %9100 = vmatprep.subr.mxu0 0.0
  %9101 = vmatpush1.msra.mxu0 0.0
  %9102 = vmatprep.subr.mxu0 0.0
  %9103 = vmatpush1.msra.mxu0 0.0
  %9104 = vmatprep.subr.mxu0 0.0
  %9105 = vmatpush1.msra.mxu0 0.0
  %9106 = vmatprep.subr.mxu0 0.0
  %9107 = vmatpush1.msra.mxu0 0.0
  %9108 = vmatprep.subr.mxu0 0.0
  %9109 = vmatpush1.msra.mxu0 0.0
  %9110 = vmatprep.subr.mxu0 0.0
  %9111 = vmatpush1.msra.mxu0 0.0
  %9112 = vmatprep.subr.mxu0 0.0
  %9113 = vmatpush1.msra.mxu0 0.0
  %9114 = vmatprep.subr.mxu0 0.0
  %9115 = vmatpush1.msra.mxu0 0.0
  %9116 = vmatprep.subr.mxu0 0.0
  %9117 = vmatpush1.msra.mxu0 0.0
  %9118 = vmatprep.subr.mxu0 0.0
  %9119 = vmatpush1.msra.mxu0 0.0
  %9120 = vmatprep.subr.mxu0 0.0
  %9121 = vmatpush1.msra.mxu0 0.0
  %9122 = vmatprep.subr.mxu0 0.0
  %9123 = vmatpush1.msra.mxu0 0.0
  %9124 = vmatprep.subr.mxu0 0.0
  %9125 = vmatpush1.msra.mxu0 0.0
  %9126 = vmatprep.subr.mxu0 0.0
  %9127 = vmatpush1.msra.mxu0 0.0
  %9128 = vmatprep.subr.mxu0 %v9023
  %9129 = vmatpush1.msra.mxu0 %v9021
  %9130 = vmatprep.subr.mxu0 0.0
  %9131 = vmatpush2.msra.mxu0 0.0
  %9132 = vmatprep.subr.mxu0 0.0
  %9133 = vmatpush2.msra.mxu0 0.0
  %9134 = vmatprep.subr.mxu0 0.0
  %9135 = vmatpush2.msra.mxu0 0.0
  %9136 = vmatprep.subr.mxu0 0.0
  %9137 = vmatpush2.msra.mxu0 0.0
  %9138 = vmatprep.subr.mxu0 0.0
  %9139 = vmatpush2.msra.mxu0 0.0
  %9140 = vmatprep.subr.mxu0 0.0
  %9141 = vmatpush2.msra.mxu0 0.0
  %9142 = vmatprep.subr.mxu0 0.0
  %9143 = vmatpush2.msra.mxu0 0.0
  %9144 = vmatprep.subr.mxu0 0.0
  %9145 = vmatpush2.msra.mxu0 0.0
  %9146 = vmatprep.subr.mxu0 0.0
  %9147 = vmatpush2.msra.mxu0 0.0
  %9148 = vmatprep.subr.mxu0 0.0
  %9149 = vmatpush2.msra.mxu0 0.0
  %9150 = vmatprep.subr.mxu0 0.0
  %9151 = vmatpush2.msra.mxu0 0.0
  %9152 = vmatprep.subr.mxu0 0.0
  %9153 = vmatpush2.msra.mxu0 0.0
  %9154 = vmatprep.subr.mxu0 0.0
  %9155 = vmatpush2.msra.mxu0 0.0
  %9156 = vmatprep.subr.mxu0 0.0
  %9157 = vmatpush2.msra.mxu0 0.0
  %9158 = vmatprep.subr.mxu0 0.0
  %9159 = vmatpush2.msra.mxu0 0.0
  %9160 = vmatprep.subr.mxu0 0.0
  %9161 = vmatpush2.msra.mxu0 0.0
  %9162 = vmatprep.mubr.f32.mxu0 0.0
  %9163 = vmatmul.mubr.f32.gmra.mxu0 %v9015
  %v9164 = vpop.f32.mrf.mxu0
  %v9165 = vadd.f32 0.0, %v9164
  %v9166 = vpop.f32.mrf.mxu0
  %v9167 = vadd.f32 0.0, %v9166
  %9168 = vdwg.mxu0
  %9169 = vmatprep.subr.mxu0 0.0
  %9170 = vmatpush1.msra.mxu0 0.0
  %9171 = vmatprep.subr.mxu0 0.0
  %9172 = vmatpush1.msra.mxu0 0.0
  %9173 = vmatprep.subr.mxu0 0.0
  %9174 = vmatpush1.msra.mxu0 0.0
  %9175 = vmatprep.subr.mxu0 0.0
  %9176 = vmatpush1.msra.mxu0 0.0
  %9177 = vmatprep.subr.mxu0 0.0
  %9178 = vmatpush1.msra.mxu0 0.0
  %9179 = vmatprep.subr.mxu0 0.0
  %9180 = vmatpush1.msra.mxu0 0.0
  %9181 = vmatprep.subr.mxu0 0.0
  %9182 = vmatpush1.msra.mxu0 0.0
  %9183 = vmatprep.subr.mxu0 0.0
  %9184 = vmatpush1.msra.mxu0 0.0
  %9185 = vmatprep.subr.mxu0 0.0
  %9186 = vmatpush1.msra.mxu0 0.0
  %9187 = vmatprep.subr.mxu0 0.0
  %9188 = vmatpush1.msra.mxu0 0.0
  %9189 = vmatprep.subr.mxu0 0.0
  %9190 = vmatpush1.msra.mxu0 0.0
  %9191 = vmatprep.subr.mxu0 0.0
  %9192 = vmatpush1.msra.mxu0 0.0
  %9193 = vmatprep.subr.mxu0 0.0
  %9194 = vmatpush1.msra.mxu0 0.0
  %9195 = vmatprep.subr.mxu0 0.0
  %9196 = vmatpush1.msra.mxu0 0.0
  %9197 = vmatprep.subr.mxu0 0.0
  %9198 = vmatpush1.msra.mxu0 0.0
  %9199 = vmatprep.subr.mxu0 0.0
  %9200 = vmatpush1.msra.mxu0 %v9025
  %9201 = vmatprep.subr.mxu0 0.0
  %9202 = vmatpush2.msra.mxu0 0.0
  %9203 = vmatprep.subr.mxu0 0.0
  %9204 = vmatpush2.msra.mxu0 0.0
  %9205 = vmatprep.subr.mxu0 0.0
  %9206 = vmatpush2.msra.mxu0 0.0
  %9207 = vmatprep.subr.mxu0 0.0
  %9208 = vmatpush2.msra.mxu0 0.0
  %9209 = vmatprep.subr.mxu0 0.0
  %9210 = vmatpush2.msra.mxu0 0.0
  %9211 = vmatprep.subr.mxu0 0.0
  %9212 = vmatpush2.msra.mxu0 0.0
  %9213 = vmatprep.subr.mxu0 0.0
  %9214 = vmatpush2.msra.mxu0 0.0
  %9215 = vmatprep.subr.mxu0 0.0
  %9216 = vmatpush2.msra.mxu0 0.0
  %9217 = vmatprep.subr.mxu0 0.0
  %9218 = vmatpush2.msra.mxu0 0.0
  %9219 = vmatprep.subr.mxu0 0.0
  %9220 = vmatpush2.msra.mxu0 0.0
  %9221 = vmatprep.subr.mxu0 0.0
  %9222 = vmatpush2.msra.mxu0 0.0
  %9223 = vmatprep.subr.mxu0 0.0
  %9224 = vmatpush2.msra.mxu0 0.0
  %9225 = vmatprep.subr.mxu0 0.0
  %9226 = vmatpush2.msra.mxu0 0.0
  %9227 = vmatprep.subr.mxu0 0.0
  %9228 = vmatpush2.msra.mxu0 0.0
  %9229 = vmatprep.subr.mxu0 0.0
  %9230 = vmatpush2.msra.mxu0 0.0
  %9231 = vmatprep.subr.mxu0 0.0
  %9232 = vmatpush2.msra.mxu0 0.0
  %9233 = vmatprep.mubr.f32.mxu0 0.0
  %9234 = vmatmul.mubr.f32.gmra.mxu0 %v9015
  %v9235 = vpop.f32.mrf.mxu0
  %v9236 = vadd.f32 0.0, %v9235
  %v9237 = vpop.f32.mrf.mxu0
  %9238 = vdwg.mxu0
  %v9239 = vadd.f32 %v8993, %v9094
  %v9240 = vadd.f32 %v8994, %v9096
  %v9241 = vadd.f32 %v8995, %v9165
  %v9242 = vadd.f32 %v8996, %v9167
  %v9243 = vadd.f32 %v8997, %v9236
  %s9244 = scalar_lea.vmem %s2, 40
  %v9245 = vld [vmem:[%s9244] sm:$0xf]
  %9246 = vrot.lane.b32.xlu0 %v6796, 52
  %v9247 = vpop.permute.xlu0 %9246
  %9248 = vrot.lane.b32.xlu0 %v6797, 52
  %v9249 = vpop.permute.xlu0 %9248
  %9250 = vrot.lane.b32.xlu0 %v6798, 52
  %v9251 = vpop.permute.xlu0 %9250
  %9252 = vrot.lane.b32.xlu0 %v6799, 52
  %v9253 = vpop.permute.xlu0 %9252
  %9254 = vrot.lane.b32.xlu0 %v6800, 52
  %v9255 = vpop.permute.xlu0 %9254
  %v9256 = vsel %vm6335, %v9247, %v9249
  %v9257 = vsel %vm6335, %v9249, %v9251
  %v9258 = vsel %vm6335, %v9251, %v9253
  %v9259 = vsel %vm6335, %v9253, %v9255
  %v9261 = vsel %vm6823, %v9245, 0
  %v9263 = vsel %vm6613, %v9256, 0
  %v9265 = vsel %vm6613, %v9257, 0
  %v9267 = vsel %vm6613, %v9258, 0
  %v9269 = vsel %vm6613, %v9259, 0
  %v9271 = vsel %vm6613, %v9255, 0
  %9273 = vmatprep.subr.mxu0 0.0
  %9274 = vmatpush1.msra.mxu0 0.0
  %9275 = vmatprep.subr.mxu0 0.0
  %9276 = vmatpush1.msra.mxu0 0.0
  %9277 = vmatprep.subr.mxu0 0.0
  %9278 = vmatpush1.msra.mxu0 0.0
  %9279 = vmatprep.subr.mxu0 0.0
  %9280 = vmatpush1.msra.mxu0 0.0
  %9281 = vmatprep.subr.mxu0 0.0
  %9282 = vmatpush1.msra.mxu0 0.0
  %9283 = vmatprep.subr.mxu0 0.0
  %9284 = vmatpush1.msra.mxu0 0.0
  %9285 = vmatprep.subr.mxu0 0.0
  %9286 = vmatpush1.msra.mxu0 0.0
  %9287 = vmatprep.subr.mxu0 0.0
  %9288 = vmatpush1.msra.mxu0 0.0
  %9289 = vmatprep.subr.mxu0 0.0
  %9290 = vmatpush1.msra.mxu0 0.0
  %9291 = vmatprep.subr.mxu0 0.0
  %9292 = vmatpush1.msra.mxu0 0.0
  %9293 = vmatprep.subr.mxu0 0.0
  %9294 = vmatpush1.msra.mxu0 0.0
  %9295 = vmatprep.subr.mxu0 0.0
  %9296 = vmatpush1.msra.mxu0 0.0
  %9297 = vmatprep.subr.mxu0 0.0
  %9298 = vmatpush1.msra.mxu0 0.0
  %9299 = vmatprep.subr.mxu0 0.0
  %9300 = vmatpush1.msra.mxu0 0.0
  %9301 = vmatprep.subr.mxu0 0.0
  %9302 = vmatpush1.msra.mxu0 0.0
  %9303 = vmatprep.subr.mxu0 %v9265
  %9304 = vmatpush1.msra.mxu0 %v9263
  %9305 = vmatprep.subr.mxu0 0.0
  %9306 = vmatpush2.msra.mxu0 0.0
  %9307 = vmatprep.subr.mxu0 0.0
  %9308 = vmatpush2.msra.mxu0 0.0
  %9309 = vmatprep.subr.mxu0 0.0
  %9310 = vmatpush2.msra.mxu0 0.0
  %9311 = vmatprep.subr.mxu0 0.0
  %9312 = vmatpush2.msra.mxu0 0.0
  %9313 = vmatprep.subr.mxu0 0.0
  %9314 = vmatpush2.msra.mxu0 0.0
  %9315 = vmatprep.subr.mxu0 0.0
  %9316 = vmatpush2.msra.mxu0 0.0
  %9317 = vmatprep.subr.mxu0 0.0
  %9318 = vmatpush2.msra.mxu0 0.0
  %9319 = vmatprep.subr.mxu0 0.0
  %9320 = vmatpush2.msra.mxu0 0.0
  %9321 = vmatprep.subr.mxu0 0.0
  %9322 = vmatpush2.msra.mxu0 0.0
  %9323 = vmatprep.subr.mxu0 0.0
  %9324 = vmatpush2.msra.mxu0 0.0
  %9325 = vmatprep.subr.mxu0 0.0
  %9326 = vmatpush2.msra.mxu0 0.0
  %9327 = vmatprep.subr.mxu0 0.0
  %9328 = vmatpush2.msra.mxu0 0.0
  %9329 = vmatprep.subr.mxu0 0.0
  %9330 = vmatpush2.msra.mxu0 0.0
  %9331 = vmatprep.subr.mxu0 0.0
  %9332 = vmatpush2.msra.mxu0 0.0
  %9333 = vmatprep.subr.mxu0 0.0
  %9334 = vmatpush2.msra.mxu0 0.0
  %9335 = vmatprep.subr.mxu0 0.0
  %9336 = vmatpush2.msra.mxu0 0.0
  %9337 = vmatprep.mubr.f32.mxu0 0.0
  %9338 = vmatmul.mubr.f32.gmra.mxu0 %v9261
  %v9339 = vpop.f32.mrf.mxu0
  %v9340 = vadd.f32 0.0, %v9339
  %v9341 = vpop.f32.mrf.mxu0
  %v9342 = vadd.f32 0.0, %v9341
  %9343 = vdwg.mxu0
  %9344 = vmatprep.subr.mxu0 0.0
  %9345 = vmatpush1.msra.mxu0 0.0
  %9346 = vmatprep.subr.mxu0 0.0
  %9347 = vmatpush1.msra.mxu0 0.0
  %9348 = vmatprep.subr.mxu0 0.0
  %9349 = vmatpush1.msra.mxu0 0.0
  %9350 = vmatprep.subr.mxu0 0.0
  %9351 = vmatpush1.msra.mxu0 0.0
  %9352 = vmatprep.subr.mxu0 0.0
  %9353 = vmatpush1.msra.mxu0 0.0
  %9354 = vmatprep.subr.mxu0 0.0
  %9355 = vmatpush1.msra.mxu0 0.0
  %9356 = vmatprep.subr.mxu0 0.0
  %9357 = vmatpush1.msra.mxu0 0.0
  %9358 = vmatprep.subr.mxu0 0.0
  %9359 = vmatpush1.msra.mxu0 0.0
  %9360 = vmatprep.subr.mxu0 0.0
  %9361 = vmatpush1.msra.mxu0 0.0
  %9362 = vmatprep.subr.mxu0 0.0
  %9363 = vmatpush1.msra.mxu0 0.0
  %9364 = vmatprep.subr.mxu0 0.0
  %9365 = vmatpush1.msra.mxu0 0.0
  %9366 = vmatprep.subr.mxu0 0.0
  %9367 = vmatpush1.msra.mxu0 0.0
  %9368 = vmatprep.subr.mxu0 0.0
  %9369 = vmatpush1.msra.mxu0 0.0
  %9370 = vmatprep.subr.mxu0 0.0
  %9371 = vmatpush1.msra.mxu0 0.0
  %9372 = vmatprep.subr.mxu0 0.0
  %9373 = vmatpush1.msra.mxu0 0.0
  %9374 = vmatprep.subr.mxu0 %v9269
  %9375 = vmatpush1.msra.mxu0 %v9267
  %9376 = vmatprep.subr.mxu0 0.0
  %9377 = vmatpush2.msra.mxu0 0.0
  %9378 = vmatprep.subr.mxu0 0.0
  %9379 = vmatpush2.msra.mxu0 0.0
  %9380 = vmatprep.subr.mxu0 0.0
  %9381 = vmatpush2.msra.mxu0 0.0
  %9382 = vmatprep.subr.mxu0 0.0
  %9383 = vmatpush2.msra.mxu0 0.0
  %9384 = vmatprep.subr.mxu0 0.0
  %9385 = vmatpush2.msra.mxu0 0.0
  %9386 = vmatprep.subr.mxu0 0.0
  %9387 = vmatpush2.msra.mxu0 0.0
  %9388 = vmatprep.subr.mxu0 0.0
  %9389 = vmatpush2.msra.mxu0 0.0
  %9390 = vmatprep.subr.mxu0 0.0
  %9391 = vmatpush2.msra.mxu0 0.0
  %9392 = vmatprep.subr.mxu0 0.0
  %9393 = vmatpush2.msra.mxu0 0.0
  %9394 = vmatprep.subr.mxu0 0.0
  %9395 = vmatpush2.msra.mxu0 0.0
  %9396 = vmatprep.subr.mxu0 0.0
  %9397 = vmatpush2.msra.mxu0 0.0
  %9398 = vmatprep.subr.mxu0 0.0
  %9399 = vmatpush2.msra.mxu0 0.0
  %9400 = vmatprep.subr.mxu0 0.0
  %9401 = vmatpush2.msra.mxu0 0.0
  %9402 = vmatprep.subr.mxu0 0.0
  %9403 = vmatpush2.msra.mxu0 0.0
  %9404 = vmatprep.subr.mxu0 0.0
  %9405 = vmatpush2.msra.mxu0 0.0
  %9406 = vmatprep.subr.mxu0 0.0
  %9407 = vmatpush2.msra.mxu0 0.0
  %9408 = vmatprep.mubr.f32.mxu0 0.0
  %9409 = vmatmul.mubr.f32.gmra.mxu0 %v9261
  %v9410 = vpop.f32.mrf.mxu0
  %v9411 = vadd.f32 0.0, %v9410
  %v9412 = vpop.f32.mrf.mxu0
  %v9413 = vadd.f32 0.0, %v9412
  %9414 = vdwg.mxu0
  %9415 = vmatprep.subr.mxu0 0.0
  %9416 = vmatpush1.msra.mxu0 0.0
  %9417 = vmatprep.subr.mxu0 0.0
  %9418 = vmatpush1.msra.mxu0 0.0
  %9419 = vmatprep.subr.mxu0 0.0
  %9420 = vmatpush1.msra.mxu0 0.0
  %9421 = vmatprep.subr.mxu0 0.0
  %9422 = vmatpush1.msra.mxu0 0.0
  %9423 = vmatprep.subr.mxu0 0.0
  %9424 = vmatpush1.msra.mxu0 0.0
  %9425 = vmatprep.subr.mxu0 0.0
  %9426 = vmatpush1.msra.mxu0 0.0
  %9427 = vmatprep.subr.mxu0 0.0
  %9428 = vmatpush1.msra.mxu0 0.0
  %9429 = vmatprep.subr.mxu0 0.0
  %9430 = vmatpush1.msra.mxu0 0.0
  %9431 = vmatprep.subr.mxu0 0.0
  %9432 = vmatpush1.msra.mxu0 0.0
  %9433 = vmatprep.subr.mxu0 0.0
  %9434 = vmatpush1.msra.mxu0 0.0
  %9435 = vmatprep.subr.mxu0 0.0
  %9436 = vmatpush1.msra.mxu0 0.0
  %9437 = vmatprep.subr.mxu0 0.0
  %9438 = vmatpush1.msra.mxu0 0.0
  %9439 = vmatprep.subr.mxu0 0.0
  %9440 = vmatpush1.msra.mxu0 0.0
  %9441 = vmatprep.subr.mxu0 0.0
  %9442 = vmatpush1.msra.mxu0 0.0
  %9443 = vmatprep.subr.mxu0 0.0
  %9444 = vmatpush1.msra.mxu0 0.0
  %9445 = vmatprep.subr.mxu0 0.0
  %9446 = vmatpush1.msra.mxu0 %v9271
  %9447 = vmatprep.subr.mxu0 0.0
  %9448 = vmatpush2.msra.mxu0 0.0
  %9449 = vmatprep.subr.mxu0 0.0
  %9450 = vmatpush2.msra.mxu0 0.0
  %9451 = vmatprep.subr.mxu0 0.0
  %9452 = vmatpush2.msra.mxu0 0.0
  %9453 = vmatprep.subr.mxu0 0.0
  %9454 = vmatpush2.msra.mxu0 0.0
  %9455 = vmatprep.subr.mxu0 0.0
  %9456 = vmatpush2.msra.mxu0 0.0
  %9457 = vmatprep.subr.mxu0 0.0
  %9458 = vmatpush2.msra.mxu0 0.0
  %9459 = vmatprep.subr.mxu0 0.0
  %9460 = vmatpush2.msra.mxu0 0.0
  %9461 = vmatprep.subr.mxu0 0.0
  %9462 = vmatpush2.msra.mxu0 0.0
  %9463 = vmatprep.subr.mxu0 0.0
  %9464 = vmatpush2.msra.mxu0 0.0
  %9465 = vmatprep.subr.mxu0 0.0
  %9466 = vmatpush2.msra.mxu0 0.0
  %9467 = vmatprep.subr.mxu0 0.0
  %9468 = vmatpush2.msra.mxu0 0.0
  %9469 = vmatprep.subr.mxu0 0.0
  %9470 = vmatpush2.msra.mxu0 0.0
  %9471 = vmatprep.subr.mxu0 0.0
  %9472 = vmatpush2.msra.mxu0 0.0
  %9473 = vmatprep.subr.mxu0 0.0
  %9474 = vmatpush2.msra.mxu0 0.0
  %9475 = vmatprep.subr.mxu0 0.0
  %9476 = vmatpush2.msra.mxu0 0.0
  %9477 = vmatprep.subr.mxu0 0.0
  %9478 = vmatpush2.msra.mxu0 0.0
  %9479 = vmatprep.mubr.f32.mxu0 0.0
  %9480 = vmatmul.mubr.f32.gmra.mxu0 %v9261
  %v9481 = vpop.f32.mrf.mxu0
  %v9482 = vadd.f32 0.0, %v9481
  %v9483 = vpop.f32.mrf.mxu0
  %9484 = vdwg.mxu0
  %v9485 = vadd.f32 %v9239, %v9340
  %v9486 = vadd.f32 %v9240, %v9342
  %v9487 = vadd.f32 %v9241, %v9411
  %v9488 = vadd.f32 %v9242, %v9413
  %v9489 = vadd.f32 %v9243, %v9482
  %s9490 = scalar_lea.vmem %s2, 44
  %v9491 = vld [vmem:[%s9490] sm:$0xf]
  %9492 = vrot.lane.b32.xlu0 %v6796, 50
  %v9493 = vpop.permute.xlu0 %9492
  %9494 = vrot.lane.b32.xlu0 %v6797, 50
  %v9495 = vpop.permute.xlu0 %9494
  %9496 = vrot.lane.b32.xlu0 %v6798, 50
  %v9497 = vpop.permute.xlu0 %9496
  %9498 = vrot.lane.b32.xlu0 %v6799, 50
  %v9499 = vpop.permute.xlu0 %9498
  %9500 = vrot.lane.b32.xlu0 %v6800, 50
  %v9501 = vpop.permute.xlu0 %9500
  %vm9502 = vcmask 408576
  %v9503 = vsel %vm9502, %v9493, %v9495
  %v9504 = vsel %vm9502, %v9495, %v9497
  %v9505 = vsel %vm9502, %v9497, %v9499
  %v9506 = vsel %vm9502, %v9499, %v9501
  %v9508 = vsel %vm6823, %v9491, 0
  %v9510 = vsel %vm6613, %v9503, 0
  %v9512 = vsel %vm6613, %v9504, 0
  %v9514 = vsel %vm6613, %v9505, 0
  %v9516 = vsel %vm6613, %v9506, 0
  %v9518 = vsel %vm6613, %v9501, 0
  %9520 = vmatprep.subr.mxu0 0.0
  %9521 = vmatpush1.msra.mxu0 0.0
  %9522 = vmatprep.subr.mxu0 0.0
  %9523 = vmatpush1.msra.mxu0 0.0
  %9524 = vmatprep.subr.mxu0 0.0
  %9525 = vmatpush1.msra.mxu0 0.0
  %9526 = vmatprep.subr.mxu0 0.0
  %9527 = vmatpush1.msra.mxu0 0.0
  %9528 = vmatprep.subr.mxu0 0.0
  %9529 = vmatpush1.msra.mxu0 0.0
  %9530 = vmatprep.subr.mxu0 0.0
  %9531 = vmatpush1.msra.mxu0 0.0
  %9532 = vmatprep.subr.mxu0 0.0
  %9533 = vmatpush1.msra.mxu0 0.0
  %9534 = vmatprep.subr.mxu0 0.0
  %9535 = vmatpush1.msra.mxu0 0.0
  %9536 = vmatprep.subr.mxu0 0.0
  %9537 = vmatpush1.msra.mxu0 0.0
  %9538 = vmatprep.subr.mxu0 0.0
  %9539 = vmatpush1.msra.mxu0 0.0
  %9540 = vmatprep.subr.mxu0 0.0
  %9541 = vmatpush1.msra.mxu0 0.0
  %9542 = vmatprep.subr.mxu0 0.0
  %9543 = vmatpush1.msra.mxu0 0.0
  %9544 = vmatprep.subr.mxu0 0.0
  %9545 = vmatpush1.msra.mxu0 0.0
  %9546 = vmatprep.subr.mxu0 0.0
  %9547 = vmatpush1.msra.mxu0 0.0
  %9548 = vmatprep.subr.mxu0 0.0
  %9549 = vmatpush1.msra.mxu0 0.0
  %9550 = vmatprep.subr.mxu0 %v9512
  %9551 = vmatpush1.msra.mxu0 %v9510
  %9552 = vmatprep.subr.mxu0 0.0
  %9553 = vmatpush2.msra.mxu0 0.0
  %9554 = vmatprep.subr.mxu0 0.0
  %9555 = vmatpush2.msra.mxu0 0.0
  %9556 = vmatprep.subr.mxu0 0.0
  %9557 = vmatpush2.msra.mxu0 0.0
  %9558 = vmatprep.subr.mxu0 0.0
  %9559 = vmatpush2.msra.mxu0 0.0
  %9560 = vmatprep.subr.mxu0 0.0
  %9561 = vmatpush2.msra.mxu0 0.0
  %9562 = vmatprep.subr.mxu0 0.0
  %9563 = vmatpush2.msra.mxu0 0.0
  %9564 = vmatprep.subr.mxu0 0.0
  %9565 = vmatpush2.msra.mxu0 0.0
  %9566 = vmatprep.subr.mxu0 0.0
  %9567 = vmatpush2.msra.mxu0 0.0
  %9568 = vmatprep.subr.mxu0 0.0
  %9569 = vmatpush2.msra.mxu0 0.0
  %9570 = vmatprep.subr.mxu0 0.0
  %9571 = vmatpush2.msra.mxu0 0.0
  %9572 = vmatprep.subr.mxu0 0.0
  %9573 = vmatpush2.msra.mxu0 0.0
  %9574 = vmatprep.subr.mxu0 0.0
  %9575 = vmatpush2.msra.mxu0 0.0
  %9576 = vmatprep.subr.mxu0 0.0
  %9577 = vmatpush2.msra.mxu0 0.0
  %9578 = vmatprep.subr.mxu0 0.0
  %9579 = vmatpush2.msra.mxu0 0.0
  %9580 = vmatprep.subr.mxu0 0.0
  %9581 = vmatpush2.msra.mxu0 0.0
  %9582 = vmatprep.subr.mxu0 0.0
  %9583 = vmatpush2.msra.mxu0 0.0
  %9584 = vmatprep.mubr.f32.mxu0 0.0
  %9585 = vmatmul.mubr.f32.gmra.mxu0 %v9508
  %v9586 = vpop.f32.mrf.mxu0
  %v9587 = vadd.f32 0.0, %v9586
  %v9588 = vpop.f32.mrf.mxu0
  %v9589 = vadd.f32 0.0, %v9588
  %9590 = vdwg.mxu0
  %9591 = vmatprep.subr.mxu0 0.0
  %9592 = vmatpush1.msra.mxu0 0.0
  %9593 = vmatprep.subr.mxu0 0.0
  %9594 = vmatpush1.msra.mxu0 0.0
  %9595 = vmatprep.subr.mxu0 0.0
  %9596 = vmatpush1.msra.mxu0 0.0
  %9597 = vmatprep.subr.mxu0 0.0
  %9598 = vmatpush1.msra.mxu0 0.0
  %9599 = vmatprep.subr.mxu0 0.0
  %9600 = vmatpush1.msra.mxu0 0.0
  %9601 = vmatprep.subr.mxu0 0.0
  %9602 = vmatpush1.msra.mxu0 0.0
  %9603 = vmatprep.subr.mxu0 0.0
  %9604 = vmatpush1.msra.mxu0 0.0
  %9605 = vmatprep.subr.mxu0 0.0
  %9606 = vmatpush1.msra.mxu0 0.0
  %9607 = vmatprep.subr.mxu0 0.0
  %9608 = vmatpush1.msra.mxu0 0.0
  %9609 = vmatprep.subr.mxu0 0.0
  %9610 = vmatpush1.msra.mxu0 0.0
  %9611 = vmatprep.subr.mxu0 0.0
  %9612 = vmatpush1.msra.mxu0 0.0
  %9613 = vmatprep.subr.mxu0 0.0
  %9614 = vmatpush1.msra.mxu0 0.0
  %9615 = vmatprep.subr.mxu0 0.0
  %9616 = vmatpush1.msra.mxu0 0.0
  %9617 = vmatprep.subr.mxu0 0.0
  %9618 = vmatpush1.msra.mxu0 0.0
  %9619 = vmatprep.subr.mxu0 0.0
  %9620 = vmatpush1.msra.mxu0 0.0
  %9621 = vmatprep.subr.mxu0 %v9516
  %9622 = vmatpush1.msra.mxu0 %v9514
  %9623 = vmatprep.subr.mxu0 0.0
  %9624 = vmatpush2.msra.mxu0 0.0
  %9625 = vmatprep.subr.mxu0 0.0
  %9626 = vmatpush2.msra.mxu0 0.0
  %9627 = vmatprep.subr.mxu0 0.0
  %9628 = vmatpush2.msra.mxu0 0.0
  %9629 = vmatprep.subr.mxu0 0.0
  %9630 = vmatpush2.msra.mxu0 0.0
  %9631 = vmatprep.subr.mxu0 0.0
  %9632 = vmatpush2.msra.mxu0 0.0
  %9633 = vmatprep.subr.mxu0 0.0
  %9634 = vmatpush2.msra.mxu0 0.0
  %9635 = vmatprep.subr.mxu0 0.0
  %9636 = vmatpush2.msra.mxu0 0.0
  %9637 = vmatprep.subr.mxu0 0.0
  %9638 = vmatpush2.msra.mxu0 0.0
  %9639 = vmatprep.subr.mxu0 0.0
  %9640 = vmatpush2.msra.mxu0 0.0
  %9641 = vmatprep.subr.mxu0 0.0
  %9642 = vmatpush2.msra.mxu0 0.0
  %9643 = vmatprep.subr.mxu0 0.0
  %9644 = vmatpush2.msra.mxu0 0.0
  %9645 = vmatprep.subr.mxu0 0.0
  %9646 = vmatpush2.msra.mxu0 0.0
  %9647 = vmatprep.subr.mxu0 0.0
  %9648 = vmatpush2.msra.mxu0 0.0
  %9649 = vmatprep.subr.mxu0 0.0
  %9650 = vmatpush2.msra.mxu0 0.0
  %9651 = vmatprep.subr.mxu0 0.0
  %9652 = vmatpush2.msra.mxu0 0.0
  %9653 = vmatprep.subr.mxu0 0.0
  %9654 = vmatpush2.msra.mxu0 0.0
  %9655 = vmatprep.mubr.f32.mxu0 0.0
  %9656 = vmatmul.mubr.f32.gmra.mxu0 %v9508
  %v9657 = vpop.f32.mrf.mxu0
  %v9658 = vadd.f32 0.0, %v9657
  %v9659 = vpop.f32.mrf.mxu0
  %v9660 = vadd.f32 0.0, %v9659
  %9661 = vdwg.mxu0
  %9662 = vmatprep.subr.mxu0 0.0
  %9663 = vmatpush1.msra.mxu0 0.0
  %9664 = vmatprep.subr.mxu0 0.0
  %9665 = vmatpush1.msra.mxu0 0.0
  %9666 = vmatprep.subr.mxu0 0.0
  %9667 = vmatpush1.msra.mxu0 0.0
  %9668 = vmatprep.subr.mxu0 0.0
  %9669 = vmatpush1.msra.mxu0 0.0
  %9670 = vmatprep.subr.mxu0 0.0
  %9671 = vmatpush1.msra.mxu0 0.0
  %9672 = vmatprep.subr.mxu0 0.0
  %9673 = vmatpush1.msra.mxu0 0.0
  %9674 = vmatprep.subr.mxu0 0.0
  %9675 = vmatpush1.msra.mxu0 0.0
  %9676 = vmatprep.subr.mxu0 0.0
  %9677 = vmatpush1.msra.mxu0 0.0
  %9678 = vmatprep.subr.mxu0 0.0
  %9679 = vmatpush1.msra.mxu0 0.0
  %9680 = vmatprep.subr.mxu0 0.0
  %9681 = vmatpush1.msra.mxu0 0.0
  %9682 = vmatprep.subr.mxu0 0.0
  %9683 = vmatpush1.msra.mxu0 0.0
  %9684 = vmatprep.subr.mxu0 0.0
  %9685 = vmatpush1.msra.mxu0 0.0
  %9686 = vmatprep.subr.mxu0 0.0
  %9687 = vmatpush1.msra.mxu0 0.0
  %9688 = vmatprep.subr.mxu0 0.0
  %9689 = vmatpush1.msra.mxu0 0.0
  %9690 = vmatprep.subr.mxu0 0.0
  %9691 = vmatpush1.msra.mxu0 0.0
  %9692 = vmatprep.subr.mxu0 0.0
  %9693 = vmatpush1.msra.mxu0 %v9518
  %9694 = vmatprep.subr.mxu0 0.0
  %9695 = vmatpush2.msra.mxu0 0.0
  %9696 = vmatprep.subr.mxu0 0.0
  %9697 = vmatpush2.msra.mxu0 0.0
  %9698 = vmatprep.subr.mxu0 0.0
  %9699 = vmatpush2.msra.mxu0 0.0
  %9700 = vmatprep.subr.mxu0 0.0
  %9701 = vmatpush2.msra.mxu0 0.0
  %9702 = vmatprep.subr.mxu0 0.0
  %9703 = vmatpush2.msra.mxu0 0.0
  %9704 = vmatprep.subr.mxu0 0.0
  %9705 = vmatpush2.msra.mxu0 0.0
  %9706 = vmatprep.subr.mxu0 0.0
  %9707 = vmatpush2.msra.mxu0 0.0
  %9708 = vmatprep.subr.mxu0 0.0
  %9709 = vmatpush2.msra.mxu0 0.0
  %9710 = vmatprep.subr.mxu0 0.0
  %9711 = vmatpush2.msra.mxu0 0.0
  %9712 = vmatprep.subr.mxu0 0.0
  %9713 = vmatpush2.msra.mxu0 0.0
  %9714 = vmatprep.subr.mxu0 0.0
  %9715 = vmatpush2.msra.mxu0 0.0
  %9716 = vmatprep.subr.mxu0 0.0
  %9717 = vmatpush2.msra.mxu0 0.0
  %9718 = vmatprep.subr.mxu0 0.0
  %9719 = vmatpush2.msra.mxu0 0.0
  %9720 = vmatprep.subr.mxu0 0.0
  %9721 = vmatpush2.msra.mxu0 0.0
  %9722 = vmatprep.subr.mxu0 0.0
  %9723 = vmatpush2.msra.mxu0 0.0
  %9724 = vmatprep.subr.mxu0 0.0
  %9725 = vmatpush2.msra.mxu0 0.0
  %9726 = vmatprep.mubr.f32.mxu0 0.0
  %9727 = vmatmul.mubr.f32.gmra.mxu0 %v9508
  %v9728 = vpop.f32.mrf.mxu0
  %v9729 = vadd.f32 0.0, %v9728
  %v9730 = vpop.f32.mrf.mxu0
  %9731 = vdwg.mxu0
  %v9732 = vadd.f32 %v9485, %v9587
  %v9733 = vadd.f32 %v9486, %v9589
  %v9734 = vadd.f32 %v9487, %v9658
  %v9735 = vadd.f32 %v9488, %v9660
  %v9736 = vadd.f32 %v9489, %v9729
  %s9737 = scalar_lea.vmem %s2, 48
  %v9738 = vld [vmem:[%s9737] sm:$0xf]
  %9739 = vrot.lane.b32.xlu0 %v6796, 20
  %v9740 = vpop.permute.xlu0 %9739
  %9741 = vrot.lane.b32.xlu0 %v6797, 20
  %v9742 = vpop.permute.xlu0 %9741
  %9743 = vrot.lane.b32.xlu0 %v6798, 20
  %v9744 = vpop.permute.xlu0 %9743
  %9745 = vrot.lane.b32.xlu0 %v6799, 20
  %v9746 = vpop.permute.xlu0 %9745
  %9747 = vrot.lane.b32.xlu0 %v6800, 20
  %v9748 = vpop.permute.xlu0 %9747
  %vm9749 = vcmask 162816
  %v9750 = vsel %vm9749, %v9740, %v9742
  %v9751 = vsel %vm9749, %v9742, %v9744
  %v9752 = vsel %vm9749, %v9744, %v9746
  %v9753 = vsel %vm9749, %v9746, %v9748
  %v9755 = vsel %vm6823, %v9738, 0
  %v9757 = vsel %vm6613, %v9750, 0
  %v9759 = vsel %vm6613, %v9751, 0
  %v9761 = vsel %vm6613, %v9752, 0
  %v9763 = vsel %vm6613, %v9753, 0
  %v9765 = vsel %vm6613, %v9748, 0
  %9767 = vmatprep.subr.mxu0 0.0
  %9768 = vmatpush1.msra.mxu0 0.0
  %9769 = vmatprep.subr.mxu0 0.0
  %9770 = vmatpush1.msra.mxu0 0.0
  %9771 = vmatprep.subr.mxu0 0.0
  %9772 = vmatpush1.msra.mxu0 0.0
  %9773 = vmatprep.subr.mxu0 0.0
  %9774 = vmatpush1.msra.mxu0 0.0
  %9775 = vmatprep.subr.mxu0 0.0
  %9776 = vmatpush1.msra.mxu0 0.0
  %9777 = vmatprep.subr.mxu0 0.0
  %9778 = vmatpush1.msra.mxu0 0.0
  %9779 = vmatprep.subr.mxu0 0.0
  %9780 = vmatpush1.msra.mxu0 0.0
  %9781 = vmatprep.subr.mxu0 0.0
  %9782 = vmatpush1.msra.mxu0 0.0
  %9783 = vmatprep.subr.mxu0 0.0
  %9784 = vmatpush1.msra.mxu0 0.0
  %9785 = vmatprep.subr.mxu0 0.0
  %9786 = vmatpush1.msra.mxu0 0.0
  %9787 = vmatprep.subr.mxu0 0.0
  %9788 = vmatpush1.msra.mxu0 0.0
  %9789 = vmatprep.subr.mxu0 0.0
  %9790 = vmatpush1.msra.mxu0 0.0
  %9791 = vmatprep.subr.mxu0 0.0
  %9792 = vmatpush1.msra.mxu0 0.0
  %9793 = vmatprep.subr.mxu0 0.0
  %9794 = vmatpush1.msra.mxu0 0.0
  %9795 = vmatprep.subr.mxu0 0.0
  %9796 = vmatpush1.msra.mxu0 0.0
  %9797 = vmatprep.subr.mxu0 %v9759
  %9798 = vmatpush1.msra.mxu0 %v9757
  %9799 = vmatprep.subr.mxu0 0.0
  %9800 = vmatpush2.msra.mxu0 0.0
  %9801 = vmatprep.subr.mxu0 0.0
  %9802 = vmatpush2.msra.mxu0 0.0
  %9803 = vmatprep.subr.mxu0 0.0
  %9804 = vmatpush2.msra.mxu0 0.0
  %9805 = vmatprep.subr.mxu0 0.0
  %9806 = vmatpush2.msra.mxu0 0.0
  %9807 = vmatprep.subr.mxu0 0.0
  %9808 = vmatpush2.msra.mxu0 0.0
  %9809 = vmatprep.subr.mxu0 0.0
  %9810 = vmatpush2.msra.mxu0 0.0
  %9811 = vmatprep.subr.mxu0 0.0
  %9812 = vmatpush2.msra.mxu0 0.0
  %9813 = vmatprep.subr.mxu0 0.0
  %9814 = vmatpush2.msra.mxu0 0.0
  %9815 = vmatprep.subr.mxu0 0.0
  %9816 = vmatpush2.msra.mxu0 0.0
  %9817 = vmatprep.subr.mxu0 0.0
  %9818 = vmatpush2.msra.mxu0 0.0
  %9819 = vmatprep.subr.mxu0 0.0
  %9820 = vmatpush2.msra.mxu0 0.0
  %9821 = vmatprep.subr.mxu0 0.0
  %9822 = vmatpush2.msra.mxu0 0.0
  %9823 = vmatprep.subr.mxu0 0.0
  %9824 = vmatpush2.msra.mxu0 0.0
  %9825 = vmatprep.subr.mxu0 0.0
  %9826 = vmatpush2.msra.mxu0 0.0
  %9827 = vmatprep.subr.mxu0 0.0
  %9828 = vmatpush2.msra.mxu0 0.0
  %9829 = vmatprep.subr.mxu0 0.0
  %9830 = vmatpush2.msra.mxu0 0.0
  %9831 = vmatprep.mubr.f32.mxu0 0.0
  %9832 = vmatmul.mubr.f32.gmra.mxu0 %v9755
  %v9833 = vpop.f32.mrf.mxu0
  %v9834 = vadd.f32 0.0, %v9833
  %v9835 = vpop.f32.mrf.mxu0
  %v9836 = vadd.f32 0.0, %v9835
  %9837 = vdwg.mxu0
  %9838 = vmatprep.subr.mxu0 0.0
  %9839 = vmatpush1.msra.mxu0 0.0
  %9840 = vmatprep.subr.mxu0 0.0
  %9841 = vmatpush1.msra.mxu0 0.0
  %9842 = vmatprep.subr.mxu0 0.0
  %9843 = vmatpush1.msra.mxu0 0.0
  %9844 = vmatprep.subr.mxu0 0.0
  %9845 = vmatpush1.msra.mxu0 0.0
  %9846 = vmatprep.subr.mxu0 0.0
  %9847 = vmatpush1.msra.mxu0 0.0
  %9848 = vmatprep.subr.mxu0 0.0
  %9849 = vmatpush1.msra.mxu0 0.0
  %9850 = vmatprep.subr.mxu0 0.0
  %9851 = vmatpush1.msra.mxu0 0.0
  %9852 = vmatprep.subr.mxu0 0.0
  %9853 = vmatpush1.msra.mxu0 0.0
  %9854 = vmatprep.subr.mxu0 0.0
  %9855 = vmatpush1.msra.mxu0 0.0
  %9856 = vmatprep.subr.mxu0 0.0
  %9857 = vmatpush1.msra.mxu0 0.0
  %9858 = vmatprep.subr.mxu0 0.0
  %9859 = vmatpush1.msra.mxu0 0.0
  %9860 = vmatprep.subr.mxu0 0.0
  %9861 = vmatpush1.msra.mxu0 0.0
  %9862 = vmatprep.subr.mxu0 0.0
  %9863 = vmatpush1.msra.mxu0 0.0
  %9864 = vmatprep.subr.mxu0 0.0
  %9865 = vmatpush1.msra.mxu0 0.0
  %9866 = vmatprep.subr.mxu0 0.0
  %9867 = vmatpush1.msra.mxu0 0.0
  %9868 = vmatprep.subr.mxu0 %v9763
  %9869 = vmatpush1.msra.mxu0 %v9761
  %9870 = vmatprep.subr.mxu0 0.0
  %9871 = vmatpush2.msra.mxu0 0.0
  %9872 = vmatprep.subr.mxu0 0.0
  %9873 = vmatpush2.msra.mxu0 0.0
  %9874 = vmatprep.subr.mxu0 0.0
  %9875 = vmatpush2.msra.mxu0 0.0
  %9876 = vmatprep.subr.mxu0 0.0
  %9877 = vmatpush2.msra.mxu0 0.0
  %9878 = vmatprep.subr.mxu0 0.0
  %9879 = vmatpush2.msra.mxu0 0.0
  %9880 = vmatprep.subr.mxu0 0.0
  %9881 = vmatpush2.msra.mxu0 0.0
  %9882 = vmatprep.subr.mxu0 0.0
  %9883 = vmatpush2.msra.mxu0 0.0
  %9884 = vmatprep.subr.mxu0 0.0
  %9885 = vmatpush2.msra.mxu0 0.0
  %9886 = vmatprep.subr.mxu0 0.0
  %9887 = vmatpush2.msra.mxu0 0.0
  %9888 = vmatprep.subr.mxu0 0.0
  %9889 = vmatpush2.msra.mxu0 0.0
  %9890 = vmatprep.subr.mxu0 0.0
  %9891 = vmatpush2.msra.mxu0 0.0
  %9892 = vmatprep.subr.mxu0 0.0
  %9893 = vmatpush2.msra.mxu0 0.0
  %9894 = vmatprep.subr.mxu0 0.0
  %9895 = vmatpush2.msra.mxu0 0.0
  %9896 = vmatprep.subr.mxu0 0.0
  %9897 = vmatpush2.msra.mxu0 0.0
  %9898 = vmatprep.subr.mxu0 0.0
  %9899 = vmatpush2.msra.mxu0 0.0
  %9900 = vmatprep.subr.mxu0 0.0
  %9901 = vmatpush2.msra.mxu0 0.0
  %9902 = vmatprep.mubr.f32.mxu0 0.0
  %9903 = vmatmul.mubr.f32.gmra.mxu0 %v9755
  %v9904 = vpop.f32.mrf.mxu0
  %v9905 = vadd.f32 0.0, %v9904
  %v9906 = vpop.f32.mrf.mxu0
  %v9907 = vadd.f32 0.0, %v9906
  %9908 = vdwg.mxu0
  %9909 = vmatprep.subr.mxu0 0.0
  %9910 = vmatpush1.msra.mxu0 0.0
  %9911 = vmatprep.subr.mxu0 0.0
  %9912 = vmatpush1.msra.mxu0 0.0
  %9913 = vmatprep.subr.mxu0 0.0
  %9914 = vmatpush1.msra.mxu0 0.0
  %9915 = vmatprep.subr.mxu0 0.0
  %9916 = vmatpush1.msra.mxu0 0.0
  %9917 = vmatprep.subr.mxu0 0.0
  %9918 = vmatpush1.msra.mxu0 0.0
  %9919 = vmatprep.subr.mxu0 0.0
  %9920 = vmatpush1.msra.mxu0 0.0
  %9921 = vmatprep.subr.mxu0 0.0
  %9922 = vmatpush1.msra.mxu0 0.0
  %9923 = vmatprep.subr.mxu0 0.0
  %9924 = vmatpush1.msra.mxu0 0.0
  %9925 = vmatprep.subr.mxu0 0.0
  %9926 = vmatpush1.msra.mxu0 0.0
  %9927 = vmatprep.subr.mxu0 0.0
  %9928 = vmatpush1.msra.mxu0 0.0
  %9929 = vmatprep.subr.mxu0 0.0
  %9930 = vmatpush1.msra.mxu0 0.0
  %9931 = vmatprep.subr.mxu0 0.0
  %9932 = vmatpush1.msra.mxu0 0.0
  %9933 = vmatprep.subr.mxu0 0.0
  %9934 = vmatpush1.msra.mxu0 0.0
  %9935 = vmatprep.subr.mxu0 0.0
  %9936 = vmatpush1.msra.mxu0 0.0
  %9937 = vmatprep.subr.mxu0 0.0
  %9938 = vmatpush1.msra.mxu0 0.0
  %9939 = vmatprep.subr.mxu0 0.0
  %9940 = vmatpush1.msra.mxu0 %v9765
  %9941 = vmatprep.subr.mxu0 0.0
  %9942 = vmatpush2.msra.mxu0 0.0
  %9943 = vmatprep.subr.mxu0 0.0
  %9944 = vmatpush2.msra.mxu0 0.0
  %9945 = vmatprep.subr.mxu0 0.0
  %9946 = vmatpush2.msra.mxu0 0.0
  %9947 = vmatprep.subr.mxu0 0.0
  %9948 = vmatpush2.msra.mxu0 0.0
  %9949 = vmatprep.subr.mxu0 0.0
  %9950 = vmatpush2.msra.mxu0 0.0
  %9951 = vmatprep.subr.mxu0 0.0
  %9952 = vmatpush2.msra.mxu0 0.0
  %9953 = vmatprep.subr.mxu0 0.0
  %9954 = vmatpush2.msra.mxu0 0.0
  %9955 = vmatprep.subr.mxu0 0.0
  %9956 = vmatpush2.msra.mxu0 0.0
  %9957 = vmatprep.subr.mxu0 0.0
  %9958 = vmatpush2.msra.mxu0 0.0
  %9959 = vmatprep.subr.mxu0 0.0
  %9960 = vmatpush2.msra.mxu0 0.0
  %9961 = vmatprep.subr.mxu0 0.0
  %9962 = vmatpush2.msra.mxu0 0.0
  %9963 = vmatprep.subr.mxu0 0.0
  %9964 = vmatpush2.msra.mxu0 0.0
  %9965 = vmatprep.subr.mxu0 0.0
  %9966 = vmatpush2.msra.mxu0 0.0
  %9967 = vmatprep.subr.mxu0 0.0
  %9968 = vmatpush2.msra.mxu0 0.0
  %9969 = vmatprep.subr.mxu0 0.0
  %9970 = vmatpush2.msra.mxu0 0.0
  %9971 = vmatprep.subr.mxu0 0.0
  %9972 = vmatpush2.msra.mxu0 0.0
  %9973 = vmatprep.mubr.f32.mxu0 0.0
  %9974 = vmatmul.mubr.f32.gmra.mxu0 %v9755
  %v9975 = vpop.f32.mrf.mxu0
  %v9976 = vadd.f32 0.0, %v9975
  %v9977 = vpop.f32.mrf.mxu0
  %9978 = vdwg.mxu0
  %v9979 = vadd.f32 %v9732, %v9834
  %v9980 = vadd.f32 %v9733, %v9836
  %v9981 = vadd.f32 %v9734, %v9905
  %v9982 = vadd.f32 %v9735, %v9907
  %v9983 = vadd.f32 %v9736, %v9976
  %s9984 = scalar_lea.vmem %s2, 52
  %v9985 = vld [vmem:[%s9984] sm:$0xf]
  %9986 = vrot.lane.b32.xlu0 %v6796, 18
  %v9987 = vpop.permute.xlu0 %9986
  %9988 = vrot.lane.b32.xlu0 %v6797, 18
  %v9989 = vpop.permute.xlu0 %9988
  %9990 = vrot.lane.b32.xlu0 %v6798, 18
  %v9991 = vpop.permute.xlu0 %9990
  %9992 = vrot.lane.b32.xlu0 %v6799, 18
  %v9993 = vpop.permute.xlu0 %9992
  %9994 = vrot.lane.b32.xlu0 %v6800, 18
  %v9995 = vpop.permute.xlu0 %9994
  %vm9996 = vcmask 146432
  %v9997 = vsel %vm9996, %v9987, %v9989
  %v9998 = vsel %vm9996, %v9989, %v9991
  %v9999 = vsel %vm9996, %v9991, %v9993
  %v10000 = vsel %vm9996, %v9993, %v9995
  %v10002 = vsel %vm6823, %v9985, 0
  %v10004 = vsel %vm6613, %v9997, 0
  %v10006 = vsel %vm6613, %v9998, 0
  %v10008 = vsel %vm6613, %v9999, 0
  %v10010 = vsel %vm6613, %v10000, 0
  %v10012 = vsel %vm6613, %v9995, 0
  %10014 = vmatprep.subr.mxu0 0.0
  %10015 = vmatpush1.msra.mxu0 0.0
  %10016 = vmatprep.subr.mxu0 0.0
  %10017 = vmatpush1.msra.mxu0 0.0
  %10018 = vmatprep.subr.mxu0 0.0
  %10019 = vmatpush1.msra.mxu0 0.0
  %10020 = vmatprep.subr.mxu0 0.0
  %10021 = vmatpush1.msra.mxu0 0.0
  %10022 = vmatprep.subr.mxu0 0.0
  %10023 = vmatpush1.msra.mxu0 0.0
  %10024 = vmatprep.subr.mxu0 0.0
  %10025 = vmatpush1.msra.mxu0 0.0
  %10026 = vmatprep.subr.mxu0 0.0
  %10027 = vmatpush1.msra.mxu0 0.0
  %10028 = vmatprep.subr.mxu0 0.0
  %10029 = vmatpush1.msra.mxu0 0.0
  %10030 = vmatprep.subr.mxu0 0.0
  %10031 = vmatpush1.msra.mxu0 0.0
  %10032 = vmatprep.subr.mxu0 0.0
  %10033 = vmatpush1.msra.mxu0 0.0
  %10034 = vmatprep.subr.mxu0 0.0
  %10035 = vmatpush1.msra.mxu0 0.0
  %10036 = vmatprep.subr.mxu0 0.0
  %10037 = vmatpush1.msra.mxu0 0.0
  %10038 = vmatprep.subr.mxu0 0.0
  %10039 = vmatpush1.msra.mxu0 0.0
  %10040 = vmatprep.subr.mxu0 0.0
  %10041 = vmatpush1.msra.mxu0 0.0
  %10042 = vmatprep.subr.mxu0 0.0
  %10043 = vmatpush1.msra.mxu0 0.0
  %10044 = vmatprep.subr.mxu0 %v10006
  %10045 = vmatpush1.msra.mxu0 %v10004
  %10046 = vmatprep.subr.mxu0 0.0
  %10047 = vmatpush2.msra.mxu0 0.0
  %10048 = vmatprep.subr.mxu0 0.0
  %10049 = vmatpush2.msra.mxu0 0.0
  %10050 = vmatprep.subr.mxu0 0.0
  %10051 = vmatpush2.msra.mxu0 0.0
  %10052 = vmatprep.subr.mxu0 0.0
  %10053 = vmatpush2.msra.mxu0 0.0
  %10054 = vmatprep.subr.mxu0 0.0
  %10055 = vmatpush2.msra.mxu0 0.0
  %10056 = vmatprep.subr.mxu0 0.0
  %10057 = vmatpush2.msra.mxu0 0.0
  %10058 = vmatprep.subr.mxu0 0.0
  %10059 = vmatpush2.msra.mxu0 0.0
  %10060 = vmatprep.subr.mxu0 0.0
  %10061 = vmatpush2.msra.mxu0 0.0
  %10062 = vmatprep.subr.mxu0 0.0
  %10063 = vmatpush2.msra.mxu0 0.0
  %10064 = vmatprep.subr.mxu0 0.0
  %10065 = vmatpush2.msra.mxu0 0.0
  %10066 = vmatprep.subr.mxu0 0.0
  %10067 = vmatpush2.msra.mxu0 0.0
  %10068 = vmatprep.subr.mxu0 0.0
  %10069 = vmatpush2.msra.mxu0 0.0
  %10070 = vmatprep.subr.mxu0 0.0
  %10071 = vmatpush2.msra.mxu0 0.0
  %10072 = vmatprep.subr.mxu0 0.0
  %10073 = vmatpush2.msra.mxu0 0.0
  %10074 = vmatprep.subr.mxu0 0.0
  %10075 = vmatpush2.msra.mxu0 0.0
  %10076 = vmatprep.subr.mxu0 0.0
  %10077 = vmatpush2.msra.mxu0 0.0
  %10078 = vmatprep.mubr.f32.mxu0 0.0
  %10079 = vmatmul.mubr.f32.gmra.mxu0 %v10002
  %v10080 = vpop.f32.mrf.mxu0
  %v10081 = vadd.f32 0.0, %v10080
  %v10082 = vpop.f32.mrf.mxu0
  %v10083 = vadd.f32 0.0, %v10082
  %10084 = vdwg.mxu0
  %10085 = vmatprep.subr.mxu0 0.0
  %10086 = vmatpush1.msra.mxu0 0.0
  %10087 = vmatprep.subr.mxu0 0.0
  %10088 = vmatpush1.msra.mxu0 0.0
  %10089 = vmatprep.subr.mxu0 0.0
  %10090 = vmatpush1.msra.mxu0 0.0
  %10091 = vmatprep.subr.mxu0 0.0
  %10092 = vmatpush1.msra.mxu0 0.0
  %10093 = vmatprep.subr.mxu0 0.0
  %10094 = vmatpush1.msra.mxu0 0.0
  %10095 = vmatprep.subr.mxu0 0.0
  %10096 = vmatpush1.msra.mxu0 0.0
  %10097 = vmatprep.subr.mxu0 0.0
  %10098 = vmatpush1.msra.mxu0 0.0
  %10099 = vmatprep.subr.mxu0 0.0
  %10100 = vmatpush1.msra.mxu0 0.0
  %10101 = vmatprep.subr.mxu0 0.0
  %10102 = vmatpush1.msra.mxu0 0.0
  %10103 = vmatprep.subr.mxu0 0.0
  %10104 = vmatpush1.msra.mxu0 0.0
  %10105 = vmatprep.subr.mxu0 0.0
  %10106 = vmatpush1.msra.mxu0 0.0
  %10107 = vmatprep.subr.mxu0 0.0
  %10108 = vmatpush1.msra.mxu0 0.0
  %10109 = vmatprep.subr.mxu0 0.0
  %10110 = vmatpush1.msra.mxu0 0.0
  %10111 = vmatprep.subr.mxu0 0.0
  %10112 = vmatpush1.msra.mxu0 0.0
  %10113 = vmatprep.subr.mxu0 0.0
  %10114 = vmatpush1.msra.mxu0 0.0
  %10115 = vmatprep.subr.mxu0 %v10010
  %10116 = vmatpush1.msra.mxu0 %v10008
  %10117 = vmatprep.subr.mxu0 0.0
  %10118 = vmatpush2.msra.mxu0 0.0
  %10119 = vmatprep.subr.mxu0 0.0
  %10120 = vmatpush2.msra.mxu0 0.0
  %10121 = vmatprep.subr.mxu0 0.0
  %10122 = vmatpush2.msra.mxu0 0.0
  %10123 = vmatprep.subr.mxu0 0.0
  %10124 = vmatpush2.msra.mxu0 0.0
  %10125 = vmatprep.subr.mxu0 0.0
  %10126 = vmatpush2.msra.mxu0 0.0
  %10127 = vmatprep.subr.mxu0 0.0
  %10128 = vmatpush2.msra.mxu0 0.0
  %10129 = vmatprep.subr.mxu0 0.0
  %10130 = vmatpush2.msra.mxu0 0.0
  %10131 = vmatprep.subr.mxu0 0.0
  %10132 = vmatpush2.msra.mxu0 0.0
  %10133 = vmatprep.subr.mxu0 0.0
  %10134 = vmatpush2.msra.mxu0 0.0
  %10135 = vmatprep.subr.mxu0 0.0
  %10136 = vmatpush2.msra.mxu0 0.0
  %10137 = vmatprep.subr.mxu0 0.0
  %10138 = vmatpush2.msra.mxu0 0.0
  %10139 = vmatprep.subr.mxu0 0.0
  %10140 = vmatpush2.msra.mxu0 0.0
  %10141 = vmatprep.subr.mxu0 0.0
  %10142 = vmatpush2.msra.mxu0 0.0
  %10143 = vmatprep.subr.mxu0 0.0
  %10144 = vmatpush2.msra.mxu0 0.0
  %10145 = vmatprep.subr.mxu0 0.0
  %10146 = vmatpush2.msra.mxu0 0.0
  %10147 = vmatprep.subr.mxu0 0.0
  %10148 = vmatpush2.msra.mxu0 0.0
  %10149 = vmatprep.mubr.f32.mxu0 0.0
  %10150 = vmatmul.mubr.f32.gmra.mxu0 %v10002
  %v10151 = vpop.f32.mrf.mxu0
  %v10152 = vadd.f32 0.0, %v10151
  %v10153 = vpop.f32.mrf.mxu0
  %v10154 = vadd.f32 0.0, %v10153
  %10155 = vdwg.mxu0
  %10156 = vmatprep.subr.mxu0 0.0
  %10157 = vmatpush1.msra.mxu0 0.0
  %10158 = vmatprep.subr.mxu0 0.0
  %10159 = vmatpush1.msra.mxu0 0.0
  %10160 = vmatprep.subr.mxu0 0.0
  %10161 = vmatpush1.msra.mxu0 0.0
  %10162 = vmatprep.subr.mxu0 0.0
  %10163 = vmatpush1.msra.mxu0 0.0
  %10164 = vmatprep.subr.mxu0 0.0
  %10165 = vmatpush1.msra.mxu0 0.0
  %10166 = vmatprep.subr.mxu0 0.0
  %10167 = vmatpush1.msra.mxu0 0.0
  %10168 = vmatprep.subr.mxu0 0.0
  %10169 = vmatpush1.msra.mxu0 0.0
  %10170 = vmatprep.subr.mxu0 0.0
  %10171 = vmatpush1.msra.mxu0 0.0
  %10172 = vmatprep.subr.mxu0 0.0
  %10173 = vmatpush1.msra.mxu0 0.0
  %10174 = vmatprep.subr.mxu0 0.0
  %10175 = vmatpush1.msra.mxu0 0.0
  %10176 = vmatprep.subr.mxu0 0.0
  %10177 = vmatpush1.msra.mxu0 0.0
  %10178 = vmatprep.subr.mxu0 0.0
  %10179 = vmatpush1.msra.mxu0 0.0
  %10180 = vmatprep.subr.mxu0 0.0
  %10181 = vmatpush1.msra.mxu0 0.0
  %10182 = vmatprep.subr.mxu0 0.0
  %10183 = vmatpush1.msra.mxu0 0.0
  %10184 = vmatprep.subr.mxu0 0.0
  %10185 = vmatpush1.msra.mxu0 0.0
  %10186 = vmatprep.subr.mxu0 0.0
  %10187 = vmatpush1.msra.mxu0 %v10012
  %10188 = vmatprep.subr.mxu0 0.0
  %10189 = vmatpush2.msra.mxu0 0.0
  %10190 = vmatprep.subr.mxu0 0.0
  %10191 = vmatpush2.msra.mxu0 0.0
  %10192 = vmatprep.subr.mxu0 0.0
  %10193 = vmatpush2.msra.mxu0 0.0
  %10194 = vmatprep.subr.mxu0 0.0
  %10195 = vmatpush2.msra.mxu0 0.0
  %10196 = vmatprep.subr.mxu0 0.0
  %10197 = vmatpush2.msra.mxu0 0.0
  %10198 = vmatprep.subr.mxu0 0.0
  %10199 = vmatpush2.msra.mxu0 0.0
  %10200 = vmatprep.subr.mxu0 0.0
  %10201 = vmatpush2.msra.mxu0 0.0
  %10202 = vmatprep.subr.mxu0 0.0
  %10203 = vmatpush2.msra.mxu0 0.0
  %10204 = vmatprep.subr.mxu0 0.0
  %10205 = vmatpush2.msra.mxu0 0.0
  %10206 = vmatprep.subr.mxu0 0.0
  %10207 = vmatpush2.msra.mxu0 0.0
  %10208 = vmatprep.subr.mxu0 0.0
  %10209 = vmatpush2.msra.mxu0 0.0
  %10210 = vmatprep.subr.mxu0 0.0
  %10211 = vmatpush2.msra.mxu0 0.0
  %10212 = vmatprep.subr.mxu0 0.0
  %10213 = vmatpush2.msra.mxu0 0.0
  %10214 = vmatprep.subr.mxu0 0.0
  %10215 = vmatpush2.msra.mxu0 0.0
  %10216 = vmatprep.subr.mxu0 0.0
  %10217 = vmatpush2.msra.mxu0 0.0
  %10218 = vmatprep.subr.mxu0 0.0
  %10219 = vmatpush2.msra.mxu0 0.0
  %10220 = vmatprep.mubr.f32.mxu0 0.0
  %10221 = vmatmul.mubr.f32.gmra.mxu0 %v10002
  %v10222 = vpop.f32.mrf.mxu0
  %v10223 = vadd.f32 0.0, %v10222
  %v10224 = vpop.f32.mrf.mxu0
  %10225 = vdwg.mxu0
  %v10226 = vadd.f32 %v9979, %v10081
  %v10227 = vadd.f32 %v9980, %v10083
  %v10228 = vadd.f32 %v9981, %v10152
  %v10229 = vadd.f32 %v9982, %v10154
  %v10230 = vadd.f32 %v9983, %v10223
  %s10231 = scalar_lea.vmem %s2, 56
  %v10232 = vld [vmem:[%s10231] sm:$0xf]
  %10233 = vrot.lane.b32.xlu0 %v6796, 16
  %v10234 = vpop.permute.xlu0 %10233
  %10235 = vrot.lane.b32.xlu0 %v6797, 16
  %v10236 = vpop.permute.xlu0 %10235
  %10237 = vrot.lane.b32.xlu0 %v6798, 16
  %v10238 = vpop.permute.xlu0 %10237
  %10239 = vrot.lane.b32.xlu0 %v6799, 16
  %v10240 = vpop.permute.xlu0 %10239
  %10241 = vrot.lane.b32.xlu0 %v6800, 16
  %v10242 = vpop.permute.xlu0 %10241
  %vm10243 = vcmask 130048
  %v10244 = vsel %vm10243, %v10234, %v10236
  %v10245 = vsel %vm10243, %v10236, %v10238
  %v10246 = vsel %vm10243, %v10238, %v10240
  %v10247 = vsel %vm10243, %v10240, %v10242
  %v10249 = vsel %vm6823, %v10232, 0
  %v10251 = vsel %vm6613, %v10244, 0
  %v10253 = vsel %vm6613, %v10245, 0
  %v10255 = vsel %vm6613, %v10246, 0
  %v10257 = vsel %vm6613, %v10247, 0
  %v10259 = vsel %vm6613, %v10242, 0
  %10261 = vmatprep.subr.mxu0 0.0
  %10262 = vmatpush1.msra.mxu0 0.0
  %10263 = vmatprep.subr.mxu0 0.0
  %10264 = vmatpush1.msra.mxu0 0.0
  %10265 = vmatprep.subr.mxu0 0.0
  %10266 = vmatpush1.msra.mxu0 0.0
  %10267 = vmatprep.subr.mxu0 0.0
  %10268 = vmatpush1.msra.mxu0 0.0
  %10269 = vmatprep.subr.mxu0 0.0
  %10270 = vmatpush1.msra.mxu0 0.0
  %10271 = vmatprep.subr.mxu0 0.0
  %10272 = vmatpush1.msra.mxu0 0.0
  %10273 = vmatprep.subr.mxu0 0.0
  %10274 = vmatpush1.msra.mxu0 0.0
  %10275 = vmatprep.subr.mxu0 0.0
  %10276 = vmatpush1.msra.mxu0 0.0
  %10277 = vmatprep.subr.mxu0 0.0
  %10278 = vmatpush1.msra.mxu0 0.0
  %10279 = vmatprep.subr.mxu0 0.0
  %10280 = vmatpush1.msra.mxu0 0.0
  %10281 = vmatprep.subr.mxu0 0.0
  %10282 = vmatpush1.msra.mxu0 0.0
  %10283 = vmatprep.subr.mxu0 0.0
  %10284 = vmatpush1.msra.mxu0 0.0
  %10285 = vmatprep.subr.mxu0 0.0
  %10286 = vmatpush1.msra.mxu0 0.0
  %10287 = vmatprep.subr.mxu0 0.0
  %10288 = vmatpush1.msra.mxu0 0.0
  %10289 = vmatprep.subr.mxu0 0.0
  %10290 = vmatpush1.msra.mxu0 0.0
  %10291 = vmatprep.subr.mxu0 %v10253
  %10292 = vmatpush1.msra.mxu0 %v10251
  %10293 = vmatprep.subr.mxu0 0.0
  %10294 = vmatpush2.msra.mxu0 0.0
  %10295 = vmatprep.subr.mxu0 0.0
  %10296 = vmatpush2.msra.mxu0 0.0
  %10297 = vmatprep.subr.mxu0 0.0
  %10298 = vmatpush2.msra.mxu0 0.0
  %10299 = vmatprep.subr.mxu0 0.0
  %10300 = vmatpush2.msra.mxu0 0.0
  %10301 = vmatprep.subr.mxu0 0.0
  %10302 = vmatpush2.msra.mxu0 0.0
  %10303 = vmatprep.subr.mxu0 0.0
  %10304 = vmatpush2.msra.mxu0 0.0
  %10305 = vmatprep.subr.mxu0 0.0
  %10306 = vmatpush2.msra.mxu0 0.0
  %10307 = vmatprep.subr.mxu0 0.0
  %10308 = vmatpush2.msra.mxu0 0.0
  %10309 = vmatprep.subr.mxu0 0.0
  %10310 = vmatpush2.msra.mxu0 0.0
  %10311 = vmatprep.subr.mxu0 0.0
  %10312 = vmatpush2.msra.mxu0 0.0
  %10313 = vmatprep.subr.mxu0 0.0
  %10314 = vmatpush2.msra.mxu0 0.0
  %10315 = vmatprep.subr.mxu0 0.0
  %10316 = vmatpush2.msra.mxu0 0.0
  %10317 = vmatprep.subr.mxu0 0.0
  %10318 = vmatpush2.msra.mxu0 0.0
  %10319 = vmatprep.subr.mxu0 0.0
  %10320 = vmatpush2.msra.mxu0 0.0
  %10321 = vmatprep.subr.mxu0 0.0
  %10322 = vmatpush2.msra.mxu0 0.0
  %10323 = vmatprep.subr.mxu0 0.0
  %10324 = vmatpush2.msra.mxu0 0.0
  %10325 = vmatprep.mubr.f32.mxu0 0.0
  %10326 = vmatmul.mubr.f32.gmra.mxu0 %v10249
  %v10327 = vpop.f32.mrf.mxu0
  %v10328 = vadd.f32 0.0, %v10327
  %v10329 = vpop.f32.mrf.mxu0
  %v10330 = vadd.f32 0.0, %v10329
  %10331 = vdwg.mxu0
  %10332 = vmatprep.subr.mxu0 0.0
  %10333 = vmatpush1.msra.mxu0 0.0
  %10334 = vmatprep.subr.mxu0 0.0
  %10335 = vmatpush1.msra.mxu0 0.0
  %10336 = vmatprep.subr.mxu0 0.0
  %10337 = vmatpush1.msra.mxu0 0.0
  %10338 = vmatprep.subr.mxu0 0.0
  %10339 = vmatpush1.msra.mxu0 0.0
  %10340 = vmatprep.subr.mxu0 0.0
  %10341 = vmatpush1.msra.mxu0 0.0
  %10342 = vmatprep.subr.mxu0 0.0
  %10343 = vmatpush1.msra.mxu0 0.0
  %10344 = vmatprep.subr.mxu0 0.0
  %10345 = vmatpush1.msra.mxu0 0.0
  %10346 = vmatprep.subr.mxu0 0.0
  %10347 = vmatpush1.msra.mxu0 0.0
  %10348 = vmatprep.subr.mxu0 0.0
  %10349 = vmatpush1.msra.mxu0 0.0
  %10350 = vmatprep.subr.mxu0 0.0
  %10351 = vmatpush1.msra.mxu0 0.0
  %10352 = vmatprep.subr.mxu0 0.0
  %10353 = vmatpush1.msra.mxu0 0.0
  %10354 = vmatprep.subr.mxu0 0.0
  %10355 = vmatpush1.msra.mxu0 0.0
  %10356 = vmatprep.subr.mxu0 0.0
  %10357 = vmatpush1.msra.mxu0 0.0
  %10358 = vmatprep.subr.mxu0 0.0
  %10359 = vmatpush1.msra.mxu0 0.0
  %10360 = vmatprep.subr.mxu0 0.0
  %10361 = vmatpush1.msra.mxu0 0.0
  %10362 = vmatprep.subr.mxu0 %v10257
  %10363 = vmatpush1.msra.mxu0 %v10255
  %10364 = vmatprep.subr.mxu0 0.0
  %10365 = vmatpush2.msra.mxu0 0.0
  %10366 = vmatprep.subr.mxu0 0.0
  %10367 = vmatpush2.msra.mxu0 0.0
  %10368 = vmatprep.subr.mxu0 0.0
  %10369 = vmatpush2.msra.mxu0 0.0
  %10370 = vmatprep.subr.mxu0 0.0
  %10371 = vmatpush2.msra.mxu0 0.0
  %10372 = vmatprep.subr.mxu0 0.0
  %10373 = vmatpush2.msra.mxu0 0.0
  %10374 = vmatprep.subr.mxu0 0.0
  %10375 = vmatpush2.msra.mxu0 0.0
  %10376 = vmatprep.subr.mxu0 0.0
  %10377 = vmatpush2.msra.mxu0 0.0
  %10378 = vmatprep.subr.mxu0 0.0
  %10379 = vmatpush2.msra.mxu0 0.0
  %10380 = vmatprep.subr.mxu0 0.0
  %10381 = vmatpush2.msra.mxu0 0.0
  %10382 = vmatprep.subr.mxu0 0.0
  %10383 = vmatpush2.msra.mxu0 0.0
  %10384 = vmatprep.subr.mxu0 0.0
  %10385 = vmatpush2.msra.mxu0 0.0
  %10386 = vmatprep.subr.mxu0 0.0
  %10387 = vmatpush2.msra.mxu0 0.0
  %10388 = vmatprep.subr.mxu0 0.0
  %10389 = vmatpush2.msra.mxu0 0.0
  %10390 = vmatprep.subr.mxu0 0.0
  %10391 = vmatpush2.msra.mxu0 0.0
  %10392 = vmatprep.subr.mxu0 0.0
  %10393 = vmatpush2.msra.mxu0 0.0
  %10394 = vmatprep.subr.mxu0 0.0
  %10395 = vmatpush2.msra.mxu0 0.0
  %10396 = vmatprep.mubr.f32.mxu0 0.0
  %10397 = vmatmul.mubr.f32.gmra.mxu0 %v10249
  %v10398 = vpop.f32.mrf.mxu0
  %v10399 = vadd.f32 0.0, %v10398
  %v10400 = vpop.f32.mrf.mxu0
  %v10401 = vadd.f32 0.0, %v10400
  %10402 = vdwg.mxu0
  %10403 = vmatprep.subr.mxu0 0.0
  %10404 = vmatpush1.msra.mxu0 0.0
  %10405 = vmatprep.subr.mxu0 0.0
  %10406 = vmatpush1.msra.mxu0 0.0
  %10407 = vmatprep.subr.mxu0 0.0
  %10408 = vmatpush1.msra.mxu0 0.0
  %10409 = vmatprep.subr.mxu0 0.0
  %10410 = vmatpush1.msra.mxu0 0.0
  %10411 = vmatprep.subr.mxu0 0.0
  %10412 = vmatpush1.msra.mxu0 0.0
  %10413 = vmatprep.subr.mxu0 0.0
  %10414 = vmatpush1.msra.mxu0 0.0
  %10415 = vmatprep.subr.mxu0 0.0
  %10416 = vmatpush1.msra.mxu0 0.0
  %10417 = vmatprep.subr.mxu0 0.0
  %10418 = vmatpush1.msra.mxu0 0.0
  %10419 = vmatprep.subr.mxu0 0.0
  %10420 = vmatpush1.msra.mxu0 0.0
  %10421 = vmatprep.subr.mxu0 0.0
  %10422 = vmatpush1.msra.mxu0 0.0
  %10423 = vmatprep.subr.mxu0 0.0
  %10424 = vmatpush1.msra.mxu0 0.0
  %10425 = vmatprep.subr.mxu0 0.0
  %10426 = vmatpush1.msra.mxu0 0.0
  %10427 = vmatprep.subr.mxu0 0.0
  %10428 = vmatpush1.msra.mxu0 0.0
  %10429 = vmatprep.subr.mxu0 0.0
  %10430 = vmatpush1.msra.mxu0 0.0
  %10431 = vmatprep.subr.mxu0 0.0
  %10432 = vmatpush1.msra.mxu0 0.0
  %10433 = vmatprep.subr.mxu0 0.0
  %10434 = vmatpush1.msra.mxu0 %v10259
  %10435 = vmatprep.subr.mxu0 0.0
  %10436 = vmatpush2.msra.mxu0 0.0
  %10437 = vmatprep.subr.mxu0 0.0
  %10438 = vmatpush2.msra.mxu0 0.0
  %10439 = vmatprep.subr.mxu0 0.0
  %10440 = vmatpush2.msra.mxu0 0.0
  %10441 = vmatprep.subr.mxu0 0.0
  %10442 = vmatpush2.msra.mxu0 0.0
  %10443 = vmatprep.subr.mxu0 0.0
  %10444 = vmatpush2.msra.mxu0 0.0
  %10445 = vmatprep.subr.mxu0 0.0
  %10446 = vmatpush2.msra.mxu0 0.0
  %10447 = vmatprep.subr.mxu0 0.0
  %10448 = vmatpush2.msra.mxu0 0.0
  %10449 = vmatprep.subr.mxu0 0.0
  %10450 = vmatpush2.msra.mxu0 0.0
  %10451 = vmatprep.subr.mxu0 0.0
  %10452 = vmatpush2.msra.mxu0 0.0
  %10453 = vmatprep.subr.mxu0 0.0
  %10454 = vmatpush2.msra.mxu0 0.0
  %10455 = vmatprep.subr.mxu0 0.0
  %10456 = vmatpush2.msra.mxu0 0.0
  %10457 = vmatprep.subr.mxu0 0.0
  %10458 = vmatpush2.msra.mxu0 0.0
  %10459 = vmatprep.subr.mxu0 0.0
  %10460 = vmatpush2.msra.mxu0 0.0
  %10461 = vmatprep.subr.mxu0 0.0
  %10462 = vmatpush2.msra.mxu0 0.0
  %10463 = vmatprep.subr.mxu0 0.0
  %10464 = vmatpush2.msra.mxu0 0.0
  %10465 = vmatprep.subr.mxu0 0.0
  %10466 = vmatpush2.msra.mxu0 0.0
  %10467 = vmatprep.mubr.f32.mxu0 0.0
  %10468 = vmatmul.mubr.f32.gmra.mxu0 %v10249
  %v10469 = vpop.f32.mrf.mxu0
  %v10470 = vadd.f32 0.0, %v10469
  %v10471 = vpop.f32.mrf.mxu0
  %10472 = vdwg.mxu0
  %v10473 = vadd.f32 %v10226, %v10328
  %v10474 = vadd.f32 %v10227, %v10330
  %v10475 = vadd.f32 %v10228, %v10399
  %v10476 = vadd.f32 %v10229, %v10401
  %v10477 = vadd.f32 %v10230, %v10470
  %s10478 = scalar_lea.vmem %s2, 60
  %v10479 = vld [vmem:[%s10478] sm:$0xf]
  %10480 = vrot.lane.b32.xlu0 %v6796, 14
  %v10481 = vpop.permute.xlu0 %10480
  %10482 = vrot.lane.b32.xlu0 %v6797, 14
  %v10483 = vpop.permute.xlu0 %10482
  %10484 = vrot.lane.b32.xlu0 %v6798, 14
  %v10485 = vpop.permute.xlu0 %10484
  %10486 = vrot.lane.b32.xlu0 %v6799, 14
  %v10487 = vpop.permute.xlu0 %10486
  %10488 = vrot.lane.b32.xlu0 %v6800, 14
  %v10489 = vpop.permute.xlu0 %10488
  %vm10490 = vcmask 113664
  %v10491 = vsel %vm10490, %v10481, %v10483
  %v10492 = vsel %vm10490, %v10483, %v10485
  %v10493 = vsel %vm10490, %v10485, %v10487
  %v10494 = vsel %vm10490, %v10487, %v10489
  %v10496 = vsel %vm6823, %v10479, 0
  %v10498 = vsel %vm6613, %v10491, 0
  %v10500 = vsel %vm6613, %v10492, 0
  %v10502 = vsel %vm6613, %v10493, 0
  %v10504 = vsel %vm6613, %v10494, 0
  %v10506 = vsel %vm6613, %v10489, 0
  %10508 = vmatprep.subr.mxu0 0.0
  %10509 = vmatpush1.msra.mxu0 0.0
  %10510 = vmatprep.subr.mxu0 0.0
  %10511 = vmatpush1.msra.mxu0 0.0
  %10512 = vmatprep.subr.mxu0 0.0
  %10513 = vmatpush1.msra.mxu0 0.0
  %10514 = vmatprep.subr.mxu0 0.0
  %10515 = vmatpush1.msra.mxu0 0.0
  %10516 = vmatprep.subr.mxu0 0.0
  %10517 = vmatpush1.msra.mxu0 0.0
  %10518 = vmatprep.subr.mxu0 0.0
  %10519 = vmatpush1.msra.mxu0 0.0
  %10520 = vmatprep.subr.mxu0 0.0
  %10521 = vmatpush1.msra.mxu0 0.0
  %10522 = vmatprep.subr.mxu0 0.0
  %10523 = vmatpush1.msra.mxu0 0.0
  %10524 = vmatprep.subr.mxu0 0.0
  %10525 = vmatpush1.msra.mxu0 0.0
  %10526 = vmatprep.subr.mxu0 0.0
  %10527 = vmatpush1.msra.mxu0 0.0
  %10528 = vmatprep.subr.mxu0 0.0
  %10529 = vmatpush1.msra.mxu0 0.0
  %10530 = vmatprep.subr.mxu0 0.0
  %10531 = vmatpush1.msra.mxu0 0.0
  %10532 = vmatprep.subr.mxu0 0.0
  %10533 = vmatpush1.msra.mxu0 0.0
  %10534 = vmatprep.subr.mxu0 0.0
  %10535 = vmatpush1.msra.mxu0 0.0
  %10536 = vmatprep.subr.mxu0 0.0
  %10537 = vmatpush1.msra.mxu0 0.0
  %10538 = vmatprep.subr.mxu0 %v10500
  %10539 = vmatpush1.msra.mxu0 %v10498
  %10540 = vmatprep.subr.mxu0 0.0
  %10541 = vmatpush2.msra.mxu0 0.0
  %10542 = vmatprep.subr.mxu0 0.0
  %10543 = vmatpush2.msra.mxu0 0.0
  %10544 = vmatprep.subr.mxu0 0.0
  %10545 = vmatpush2.msra.mxu0 0.0
  %10546 = vmatprep.subr.mxu0 0.0
  %10547 = vmatpush2.msra.mxu0 0.0
  %10548 = vmatprep.subr.mxu0 0.0
  %10549 = vmatpush2.msra.mxu0 0.0
  %10550 = vmatprep.subr.mxu0 0.0
  %10551 = vmatpush2.msra.mxu0 0.0
  %10552 = vmatprep.subr.mxu0 0.0
  %10553 = vmatpush2.msra.mxu0 0.0
  %10554 = vmatprep.subr.mxu0 0.0
  %10555 = vmatpush2.msra.mxu0 0.0
  %10556 = vmatprep.subr.mxu0 0.0
  %10557 = vmatpush2.msra.mxu0 0.0
  %10558 = vmatprep.subr.mxu0 0.0
  %10559 = vmatpush2.msra.mxu0 0.0
  %10560 = vmatprep.subr.mxu0 0.0
  %10561 = vmatpush2.msra.mxu0 0.0
  %10562 = vmatprep.subr.mxu0 0.0
  %10563 = vmatpush2.msra.mxu0 0.0
  %10564 = vmatprep.subr.mxu0 0.0
  %10565 = vmatpush2.msra.mxu0 0.0
  %10566 = vmatprep.subr.mxu0 0.0
  %10567 = vmatpush2.msra.mxu0 0.0
  %10568 = vmatprep.subr.mxu0 0.0
  %10569 = vmatpush2.msra.mxu0 0.0
  %10570 = vmatprep.subr.mxu0 0.0
  %10571 = vmatpush2.msra.mxu0 0.0
  %10572 = vmatprep.mubr.f32.mxu0 0.0
  %10573 = vmatmul.mubr.f32.gmra.mxu0 %v10496
  %v10574 = vpop.f32.mrf.mxu0
  %v10575 = vadd.f32 0.0, %v10574
  %v10576 = vpop.f32.mrf.mxu0
  %v10577 = vadd.f32 0.0, %v10576
  %10578 = vdwg.mxu0
  %10579 = vmatprep.subr.mxu0 0.0
  %10580 = vmatpush1.msra.mxu0 0.0
  %10581 = vmatprep.subr.mxu0 0.0
  %10582 = vmatpush1.msra.mxu0 0.0
  %10583 = vmatprep.subr.mxu0 0.0
  %10584 = vmatpush1.msra.mxu0 0.0
  %10585 = vmatprep.subr.mxu0 0.0
  %10586 = vmatpush1.msra.mxu0 0.0
  %10587 = vmatprep.subr.mxu0 0.0
  %10588 = vmatpush1.msra.mxu0 0.0
  %10589 = vmatprep.subr.mxu0 0.0
  %10590 = vmatpush1.msra.mxu0 0.0
  %10591 = vmatprep.subr.mxu0 0.0
  %10592 = vmatpush1.msra.mxu0 0.0
  %10593 = vmatprep.subr.mxu0 0.0
  %10594 = vmatpush1.msra.mxu0 0.0
  %10595 = vmatprep.subr.mxu0 0.0
  %10596 = vmatpush1.msra.mxu0 0.0
  %10597 = vmatprep.subr.mxu0 0.0
  %10598 = vmatpush1.msra.mxu0 0.0
  %10599 = vmatprep.subr.mxu0 0.0
  %10600 = vmatpush1.msra.mxu0 0.0
  %10601 = vmatprep.subr.mxu0 0.0
  %10602 = vmatpush1.msra.mxu0 0.0
  %10603 = vmatprep.subr.mxu0 0.0
  %10604 = vmatpush1.msra.mxu0 0.0
  %10605 = vmatprep.subr.mxu0 0.0
  %10606 = vmatpush1.msra.mxu0 0.0
  %10607 = vmatprep.subr.mxu0 0.0
  %10608 = vmatpush1.msra.mxu0 0.0
  %10609 = vmatprep.subr.mxu0 %v10504
  %10610 = vmatpush1.msra.mxu0 %v10502
  %10611 = vmatprep.subr.mxu0 0.0
  %10612 = vmatpush2.msra.mxu0 0.0
  %10613 = vmatprep.subr.mxu0 0.0
  %10614 = vmatpush2.msra.mxu0 0.0
  %10615 = vmatprep.subr.mxu0 0.0
  %10616 = vmatpush2.msra.mxu0 0.0
  %10617 = vmatprep.subr.mxu0 0.0
  %10618 = vmatpush2.msra.mxu0 0.0
  %10619 = vmatprep.subr.mxu0 0.0
  %10620 = vmatpush2.msra.mxu0 0.0
  %10621 = vmatprep.subr.mxu0 0.0
  %10622 = vmatpush2.msra.mxu0 0.0
  %10623 = vmatprep.subr.mxu0 0.0
  %10624 = vmatpush2.msra.mxu0 0.0
  %10625 = vmatprep.subr.mxu0 0.0
  %10626 = vmatpush2.msra.mxu0 0.0
  %10627 = vmatprep.subr.mxu0 0.0
  %10628 = vmatpush2.msra.mxu0 0.0
  %10629 = vmatprep.subr.mxu0 0.0
  %10630 = vmatpush2.msra.mxu0 0.0
  %10631 = vmatprep.subr.mxu0 0.0
  %10632 = vmatpush2.msra.mxu0 0.0
  %10633 = vmatprep.subr.mxu0 0.0
  %10634 = vmatpush2.msra.mxu0 0.0
  %10635 = vmatprep.subr.mxu0 0.0
  %10636 = vmatpush2.msra.mxu0 0.0
  %10637 = vmatprep.subr.mxu0 0.0
  %10638 = vmatpush2.msra.mxu0 0.0
  %10639 = vmatprep.subr.mxu0 0.0
  %10640 = vmatpush2.msra.mxu0 0.0
  %10641 = vmatprep.subr.mxu0 0.0
  %10642 = vmatpush2.msra.mxu0 0.0
  %10643 = vmatprep.mubr.f32.mxu0 0.0
  %10644 = vmatmul.mubr.f32.gmra.mxu0 %v10496
  %v10645 = vpop.f32.mrf.mxu0
  %v10646 = vadd.f32 0.0, %v10645
  %v10647 = vpop.f32.mrf.mxu0
  %v10648 = vadd.f32 0.0, %v10647
  %10649 = vdwg.mxu0
  %10650 = vmatprep.subr.mxu0 0.0
  %10651 = vmatpush1.msra.mxu0 0.0
  %10652 = vmatprep.subr.mxu0 0.0
  %10653 = vmatpush1.msra.mxu0 0.0
  %10654 = vmatprep.subr.mxu0 0.0
  %10655 = vmatpush1.msra.mxu0 0.0
  %10656 = vmatprep.subr.mxu0 0.0
  %10657 = vmatpush1.msra.mxu0 0.0
  %10658 = vmatprep.subr.mxu0 0.0
  %10659 = vmatpush1.msra.mxu0 0.0
  %10660 = vmatprep.subr.mxu0 0.0
  %10661 = vmatpush1.msra.mxu0 0.0
  %10662 = vmatprep.subr.mxu0 0.0
  %10663 = vmatpush1.msra.mxu0 0.0
  %10664 = vmatprep.subr.mxu0 0.0
  %10665 = vmatpush1.msra.mxu0 0.0
  %10666 = vmatprep.subr.mxu0 0.0
  %10667 = vmatpush1.msra.mxu0 0.0
  %10668 = vmatprep.subr.mxu0 0.0
  %10669 = vmatpush1.msra.mxu0 0.0
  %10670 = vmatprep.subr.mxu0 0.0
  %10671 = vmatpush1.msra.mxu0 0.0
  %10672 = vmatprep.subr.mxu0 0.0
  %10673 = vmatpush1.msra.mxu0 0.0
  %10674 = vmatprep.subr.mxu0 0.0
  %10675 = vmatpush1.msra.mxu0 0.0
  %10676 = vmatprep.subr.mxu0 0.0
  %10677 = vmatpush1.msra.mxu0 0.0
  %10678 = vmatprep.subr.mxu0 0.0
  %10679 = vmatpush1.msra.mxu0 0.0
  %10680 = vmatprep.subr.mxu0 0.0
  %10681 = vmatpush1.msra.mxu0 %v10506
  %10682 = vmatprep.subr.mxu0 0.0
  %10683 = vmatpush2.msra.mxu0 0.0
  %10684 = vmatprep.subr.mxu0 0.0
  %10685 = vmatpush2.msra.mxu0 0.0
  %10686 = vmatprep.subr.mxu0 0.0
  %10687 = vmatpush2.msra.mxu0 0.0
  %10688 = vmatprep.subr.mxu0 0.0
  %10689 = vmatpush2.msra.mxu0 0.0
  %10690 = vmatprep.subr.mxu0 0.0
  %10691 = vmatpush2.msra.mxu0 0.0
  %10692 = vmatprep.subr.mxu0 0.0
  %10693 = vmatpush2.msra.mxu0 0.0
  %10694 = vmatprep.subr.mxu0 0.0
  %10695 = vmatpush2.msra.mxu0 0.0
  %10696 = vmatprep.subr.mxu0 0.0
  %10697 = vmatpush2.msra.mxu0 0.0
  %10698 = vmatprep.subr.mxu0 0.0
  %10699 = vmatpush2.msra.mxu0 0.0
  %10700 = vmatprep.subr.mxu0 0.0
  %10701 = vmatpush2.msra.mxu0 0.0
  %10702 = vmatprep.subr.mxu0 0.0
  %10703 = vmatpush2.msra.mxu0 0.0
  %10704 = vmatprep.subr.mxu0 0.0
  %10705 = vmatpush2.msra.mxu0 0.0
  %10706 = vmatprep.subr.mxu0 0.0
  %10707 = vmatpush2.msra.mxu0 0.0
  %10708 = vmatprep.subr.mxu0 0.0
  %10709 = vmatpush2.msra.mxu0 0.0
  %10710 = vmatprep.subr.mxu0 0.0
  %10711 = vmatpush2.msra.mxu0 0.0
  %10712 = vmatprep.subr.mxu0 0.0
  %10713 = vmatpush2.msra.mxu0 0.0
  %10714 = vmatprep.mubr.f32.mxu0 0.0
  %10715 = vmatmul.mubr.f32.gmra.mxu0 %v10496
  %v10716 = vpop.f32.mrf.mxu0
  %v10717 = vadd.f32 0.0, %v10716
  %v10718 = vpop.f32.mrf.mxu0
  %10719 = vdwg.mxu0
  %v10720 = vadd.f32 %v10473, %v10575
  %v10721 = vadd.f32 %v10474, %v10577
  %v10722 = vadd.f32 %v10475, %v10646
  %v10723 = vadd.f32 %v10476, %v10648
  %v10724 = vadd.f32 %v10477, %v10717
  %v10725 = vld [vmem:[%s9] sm:$0x1f]
  %v10727 = vlaneseq
  %v10728 = vshrl.u32 %v10727, 7
  %v10729 = vsub.s32 0, %v10728
  %v10730 = vrot.slane %v10725, %v10729
  %v10731 = vlaneseq
  %v10732 = vshrl.u32 %v10731, 7
  %v10733 = vsub.s32 1, %v10732
  %v10734 = vrot.slane %v10725, %v10733
  %v10735 = vlaneseq
  %v10736 = vshrl.u32 %v10735, 7
  %v10737 = vsub.s32 2, %v10736
  %v10738 = vrot.slane %v10725, %v10737
  %v10739 = vlaneseq
  %v10740 = vshrl.u32 %v10739, 7
  %v10741 = vsub.s32 3, %v10740
  %v10742 = vrot.slane %v10725, %v10741
  %v10743 = vlaneseq
  %v10744 = vshrl.u32 %v10743, 7
  %v10745 = vsub.s32 4, %v10744
  %v10746 = vrot.slane %v10725, %v10745
  %v10752 = vmul.f32 %v10720, %v10730
  %v10753 = vmul.f32 %v10721, %v10734
  %v10754 = vmul.f32 %v10722, %v10738
  %v10755 = vmul.f32 %v10723, %v10742
  %v10756 = vmul.f32 %v10724, %v10746
  %v10757 = vsel %vm72, %v10752, 0.0
  %v10758 = vsel %vm72, %v10753, 0.0
  %v10759 = vadd.f32 %v10757, %v10758
  %v10760 = vsel %vm72, %v10754, 0.0
  %v10761 = vadd.f32 %v10759, %v10760
  %v10762 = vsel %vm72, %v10755, 0.0
  %v10763 = vadd.f32 %v10761, %v10762
  %vm10764 = vcmask 19456
  %v10765 = vsel %vm10764, %v10756, 0.0
  %v10766 = vadd.f32 %v10763, %v10765
  %10767 = vadd.xlane.f32.xlu0 %v10766
  %v10768 = vpop.xlane.xlu0 %10767
  %v10769 = vmul.f32 %v10768, 0.013888889
  %v10770 = vsub.f32 %v10720, %v10769
  %v10771 = vsub.f32 %v10721, %v10769
  %v10772 = vsub.f32 %v10722, %v10769
  %v10773 = vsub.f32 %v10723, %v10769
  %v10774 = vsub.f32 %v10724, %v10769
  %v10775 = vmul.f32 %v10770, %v10770
  %v10776 = vmul.f32 %v10771, %v10771
  %v10777 = vmul.f32 %v10772, %v10772
  %v10778 = vmul.f32 %v10773, %v10773
  %v10779 = vmul.f32 %v10774, %v10774
  %v10780 = vmul.f32 %v10775, %v10730
  %v10781 = vmul.f32 %v10776, %v10734
  %v10782 = vmul.f32 %v10777, %v10738
  %v10783 = vmul.f32 %v10778, %v10742
  %v10784 = vmul.f32 %v10779, %v10746
  %v10785 = vsel %vm72, %v10780, 0.0
  %v10786 = vsel %vm72, %v10781, 0.0
  %v10787 = vadd.f32 %v10785, %v10786
  %v10788 = vsel %vm72, %v10782, 0.0
  %v10789 = vadd.f32 %v10787, %v10788
  %v10790 = vsel %vm72, %v10783, 0.0
  %v10791 = vadd.f32 %v10789, %v10790
  %v10792 = vsel %vm10764, %v10784, 0.0
  %v10793 = vadd.f32 %v10791, %v10792
  %10794 = vadd.xlane.f32.xlu0 %v10793
  %v10795 = vpop.xlane.xlu0 %10794
  %v10796 = vmul.f32 %v10795, 0.013888889
  %v10797 = vadd.f32 %v10796, 1e-05
  %v10798 = vrsqrt.pop %v10797
  %v10799 = vmul.f32 %v10770, %v10798
  %v10800 = vmul.f32 %v10771, %v10798
  %v10801 = vmul.f32 %v10772, %v10798
  %v10802 = vmul.f32 %v10773, %v10798
  %v10803 = vmul.f32 %v10774, %v10798
  %v10804 = vld [vmem:[%s5] sm:$0xf]
  %10806 = vset.pattern.permute.xlu0 0
  %10807 = vperm.xlu0 %10806, %v10804
  %v10808 = vpop.permute.xlu0 %10807
  %v10810 = vmul.f32 %v10799, %v10808
  %v10811 = vmul.f32 %v10800, %v10808
  %v10812 = vmul.f32 %v10801, %v10808
  %v10813 = vmul.f32 %v10802, %v10808
  %v10814 = vmul.f32 %v10803, %v10808
  %v10815 = vld [vmem:[%s6] sm:$0xf]
  %10817 = vset.pattern.permute.xlu0 0
  %10818 = vperm.xlu0 %10817, %v10815
  %v10819 = vpop.permute.xlu0 %10818
  %v10821 = vadd.f32 %v10810, %v10819
  %v10822 = vadd.f32 %v10811, %v10819
  %v10823 = vadd.f32 %v10812, %v10819
  %v10824 = vadd.f32 %v10813, %v10819
  %v10825 = vadd.f32 %v10814, %v10819
  %v10826 = vmax.f32 %v10821, 0.0
  %v10827 = vmax.f32 %v10822, 0.0
  %v10828 = vmax.f32 %v10823, 0.0
  %v10829 = vmax.f32 %v10824, 0.0
  %v10830 = vmax.f32 %v10825, 0.0
  %10835 = vrot.lane.b32.xlu0 %v10826, 126
  %v10836 = vpop.permute.xlu0 %10835
  %10837 = vrot.lane.b32.xlu0 %v10827, 126
  %v10838 = vpop.permute.xlu0 %10837
  %10839 = vrot.lane.b32.xlu0 %v10828, 126
  %v10840 = vpop.permute.xlu0 %10839
  %10841 = vrot.lane.b32.xlu0 %v10829, 126
  %v10842 = vpop.permute.xlu0 %10841
  %v10843 = vsel %vm549, %v10836, %v10838
  %v10844 = vsel %vm549, %v10838, %v10840
  %v10845 = vsel %vm549, %v10840, %v10842
  %v10850 = vmax.f32 %v10826, %v10843
  %v10851 = vmax.f32 %v10827, %v10844
  %v10852 = vmax.f32 %v10828, %v10845
  %v10853 = vmax.f32 %v10829, %v10842
  %10855 = vrot.lane.b32.xlu0 %v10830, 126
  %v10856 = vpop.permute.xlu0 %10855
  %v10857 = vsel %vm549, %v10842, %v10856
  %v10860 = vmax.f32 %v10829, %v10857
  %v10861 = vmax.f32 %v10830, %v10856
  %10867 = vrot.lane.b32.xlu0 %v10850, 92
  %v10868 = vpop.permute.xlu0 %10867
  %10869 = vrot.lane.b32.xlu0 %v10851, 92
  %v10870 = vpop.permute.xlu0 %10869
  %10871 = vrot.lane.b32.xlu0 %v10852, 92
  %v10872 = vpop.permute.xlu0 %10871
  %10873 = vrot.lane.b32.xlu0 %v10860, 92
  %v10874 = vpop.permute.xlu0 %10873
  %10875 = vrot.lane.b32.xlu0 %v10861, 92
  %v10876 = vpop.permute.xlu0 %10875
  %v10877 = vsel %vm2653, %v10868, %v10870
  %v10878 = vsel %vm2653, %v10870, %v10872
  %v10879 = vsel %vm2653, %v10872, %v10874
  %v10880 = vsel %vm2653, %v10874, %v10876
  %v10885 = vmax.f32 %v10850, %v10877
  %v10886 = vmax.f32 %v10851, %v10878
  %v10887 = vmax.f32 %v10852, %v10879
  %v10888 = vmax.f32 %v10853, %v10880
  %v10889 = vld [vmem:[%s10] sm:$0xff]
  %v10890 = vld [vmem:[%s10 + $0x8] sm:$0xff]
  %v10891 = vld [vmem:[%s10 + $0x10] sm:$0xff]
  %v10892 = vld [vmem:[%s10 + $0x18] sm:$0xff]
  %v10893 = vld [vmem:[%s10 + $0x20] sm:$0xff]
  %v10894 = vld [vmem:[%s10 + $0x28] sm:$0xff]
  %v10895 = vld [vmem:[%s10 + $0x30] sm:$0xff]
  %v10896 = vld [vmem:[%s10 + $0x38] sm:$0xff]
  %v10897 = vld [vmem:[%s10 + $0x40] sm:$0xff]
  %v10898 = vld [vmem:[%s10 + $0x48] sm:$0xff]
  %v10899 = vld [vmem:[%s10 + $0x50] sm:$0xff]
  %v10900 = vld [vmem:[%s10 + $0x58] sm:$0xff]
  %v10901 = vld [vmem:[%s10 + $0x60] sm:$0xff]
  %v10902 = vld [vmem:[%s10 + $0x68] sm:$0xff]
  %v10903 = vld [vmem:[%s10 + $0x70] sm:$0xff]
  %v10904 = vld [vmem:[%s10 + $0x78] sm:$0xff]
  %v10905 = vld [vmem:[%s10 + $0x80] sm:$0xff]
  %v10906 = vld [vmem:[%s10 + $0x88] sm:$0xff]
  %v10907 = vld [vmem:[%s10 + $0x90] sm:$0xff]
  %v10908 = vld [vmem:[%s10 + $0x98] sm:$0xff]
  %v10909 = vld [vmem:[%s10 + $0xa0] sm:$0xff]
  %v10910 = vld [vmem:[%s10 + $0xa8] sm:$0xff]
  %v10911 = vld [vmem:[%s10 + $0xb0] sm:$0xff]
  %v10912 = vld [vmem:[%s10 + $0xb8] sm:$0xff]
  %v10913 = vld [vmem:[%s10 + $0xc0] sm:$0xff]
  %v10914 = vld [vmem:[%s10 + $0xc8] sm:$0xff]
  %v10915 = vld [vmem:[%s10 + $0xd0] sm:$0xff]
  %v10916 = vld [vmem:[%s10 + $0xd8] sm:$0xff]
  %v10917 = vld [vmem:[%s10 + $0xe0] sm:$0xff]
  %v10918 = vld [vmem:[%s10 + $0xe8] sm:$0xff]
  %v10919 = vld [vmem:[%s10 + $0xf0] sm:$0xff]
  %v10920 = vld [vmem:[%s10 + $0xf8] sm:$0xff]
  %v10921 = vld [vmem:[%s10 + $0x100] sm:$0xff]
  %v10922 = vld [vmem:[%s10 + $0x108] sm:$0xff]
  %v10923 = vld [vmem:[%s10 + $0x110] sm:$0xff]
  %v10924 = vld [vmem:[%s10 + $0x118] sm:$0xff]
  %v10925 = vld [vmem:[%s10 + $0x120] sm:$0xff]
  %v10926 = vld [vmem:[%s10 + $0x128] sm:$0xff]
  %v10927 = vld [vmem:[%s10 + $0x130] sm:$0xff]
  %v10928 = vld [vmem:[%s10 + $0x138] sm:$0xff]
  %v10929 = vld [vmem:[%s10 + $0x140] sm:$0xff]
  %v10930 = vld [vmem:[%s10 + $0x148] sm:$0xff]
  %v10931 = vld [vmem:[%s10 + $0x150] sm:$0xff]
  %v10932 = vld [vmem:[%s10 + $0x158] sm:$0xff]
  %v10933 = vld [vmem:[%s10 + $0x160] sm:$0xff]
  %v10934 = vld [vmem:[%s10 + $0x168] sm:$0xff]
  %v10935 = vld [vmem:[%s10 + $0x170] sm:$0xff]
  %v10936 = vld [vmem:[%s10 + $0x178] sm:$0xff]
  %v10937 = vld [vmem:[%s10 + $0x180] sm:$0xff]
  %v10938 = vld [vmem:[%s10 + $0x188] sm:$0xff]
  %v10939 = vld [vmem:[%s10 + $0x190] sm:$0xff]
  %v10940 = vld [vmem:[%s10 + $0x198] sm:$0xff]
  %v10941 = vld [vmem:[%s10 + $0x1a0] sm:$0xff]
  %v10942 = vld [vmem:[%s10 + $0x1a8] sm:$0xff]
  %v10943 = vld [vmem:[%s10 + $0x1b0] sm:$0xff]
  %v10944 = vld [vmem:[%s10 + $0x1b8] sm:$0xff]
  %v10945 = vld [vmem:[%s10 + $0x1c0] sm:$0xff]
  %v10946 = vld [vmem:[%s10 + $0x1c8] sm:$0xff]
  %v10947 = vld [vmem:[%s10 + $0x1d0] sm:$0xff]
  %v10948 = vld [vmem:[%s10 + $0x1d8] sm:$0x1f]
  %vm10949 = vcmask 760832
  %v10951 = vsel %vm10949, %v10888, 0
  %vm10953 = vcmask 1044480
  %v10955 = vsel %vm10953, %v10948, 0
  %10957 = vmatprep.subr.mxu0 0.0
  %10958 = vmatpush1.msra.mxu0 %v10904
  %10959 = vmatprep.subr.mxu0 0.0
  %10960 = vmatpush1.msra.mxu0 %v10903
  %10961 = vmatprep.subr.mxu0 0.0
  %10962 = vmatpush1.msra.mxu0 %v10902
  %10963 = vmatprep.subr.mxu0 0.0
  %10964 = vmatpush1.msra.mxu0 %v10901
  %10965 = vmatprep.subr.mxu0 0.0
  %10966 = vmatpush1.msra.mxu0 %v10900
  %10967 = vmatprep.subr.mxu0 0.0
  %10968 = vmatpush1.msra.mxu0 %v10899
  %10969 = vmatprep.subr.mxu0 0.0
  %10970 = vmatpush1.msra.mxu0 %v10898
  %10971 = vmatprep.subr.mxu0 0.0
  %10972 = vmatpush1.msra.mxu0 %v10897
  %10973 = vmatprep.subr.mxu0 0.0
  %10974 = vmatpush1.msra.mxu0 %v10896
  %10975 = vmatprep.subr.mxu0 0.0
  %10976 = vmatpush1.msra.mxu0 %v10895
  %10977 = vmatprep.subr.mxu0 0.0
  %10978 = vmatpush1.msra.mxu0 %v10894
  %10979 = vmatprep.subr.mxu0 0.0
  %10980 = vmatpush1.msra.mxu0 %v10893
  %10981 = vmatprep.subr.mxu0 0.0
  %10982 = vmatpush1.msra.mxu0 %v10892
  %10983 = vmatprep.subr.mxu0 0.0
  %10984 = vmatpush1.msra.mxu0 %v10891
  %10985 = vmatprep.subr.mxu0 0.0
  %10986 = vmatpush1.msra.mxu0 %v10890
  %10987 = vmatprep.subr.mxu0 0.0
  %10988 = vmatpush1.msra.mxu0 %v10889
  %10989 = vmatprep.subr.mxu0 0.0
  %10990 = vmatpush2.msra.mxu0 %v10920
  %10991 = vmatprep.subr.mxu0 0.0
  %10992 = vmatpush2.msra.mxu0 %v10919
  %10993 = vmatprep.subr.mxu0 0.0
  %10994 = vmatpush2.msra.mxu0 %v10918
  %10995 = vmatprep.subr.mxu0 0.0
  %10996 = vmatpush2.msra.mxu0 %v10917
  %10997 = vmatprep.subr.mxu0 0.0
  %10998 = vmatpush2.msra.mxu0 %v10916
  %10999 = vmatprep.subr.mxu0 0.0
  %11000 = vmatpush2.msra.mxu0 %v10915
  %11001 = vmatprep.subr.mxu0 0.0
  %11002 = vmatpush2.msra.mxu0 %v10914
  %11003 = vmatprep.subr.mxu0 0.0
  %11004 = vmatpush2.msra.mxu0 %v10913
  %11005 = vmatprep.subr.mxu0 0.0
  %11006 = vmatpush2.msra.mxu0 %v10912
  %11007 = vmatprep.subr.mxu0 0.0
  %11008 = vmatpush2.msra.mxu0 %v10911
  %11009 = vmatprep.subr.mxu0 0.0
  %11010 = vmatpush2.msra.mxu0 %v10910
  %11011 = vmatprep.subr.mxu0 0.0
  %11012 = vmatpush2.msra.mxu0 %v10909
  %11013 = vmatprep.subr.mxu0 0.0
  %11014 = vmatpush2.msra.mxu0 %v10908
  %11015 = vmatprep.subr.mxu0 0.0
  %11016 = vmatpush2.msra.mxu0 %v10907
  %11017 = vmatprep.subr.mxu0 0.0
  %11018 = vmatpush2.msra.mxu0 %v10906
  %11019 = vmatprep.subr.mxu0 0.0
  %11020 = vmatpush2.msra.mxu0 %v10905
  %11021 = vmatprep.mubr.f32.mxu0 %v10886
  %11022 = vmatmul.mubr.f32.gmra.mxu0 %v10885
  %v11023 = vpop.f32.mrf.mxu0
  %v11024 = vadd.f32 0.0, %v11023
  %v11025 = vpop.f32.mrf.mxu0
  %11026 = vdwg.mxu0
  %11027 = vmatprep.subr.mxu0 0.0
  %11028 = vmatpush1.msra.mxu0 %v10936
  %11029 = vmatprep.subr.mxu0 0.0
  %11030 = vmatpush1.msra.mxu0 %v10935
  %11031 = vmatprep.subr.mxu0 0.0
  %11032 = vmatpush1.msra.mxu0 %v10934
  %11033 = vmatprep.subr.mxu0 0.0
  %11034 = vmatpush1.msra.mxu0 %v10933
  %11035 = vmatprep.subr.mxu0 0.0
  %11036 = vmatpush1.msra.mxu0 %v10932
  %11037 = vmatprep.subr.mxu0 0.0
  %11038 = vmatpush1.msra.mxu0 %v10931
  %11039 = vmatprep.subr.mxu0 0.0
  %11040 = vmatpush1.msra.mxu0 %v10930
  %11041 = vmatprep.subr.mxu0 0.0
  %11042 = vmatpush1.msra.mxu0 %v10929
  %11043 = vmatprep.subr.mxu0 0.0
  %11044 = vmatpush1.msra.mxu0 %v10928
  %11045 = vmatprep.subr.mxu0 0.0
  %11046 = vmatpush1.msra.mxu0 %v10927
  %11047 = vmatprep.subr.mxu0 0.0
  %11048 = vmatpush1.msra.mxu0 %v10926
  %11049 = vmatprep.subr.mxu0 0.0
  %11050 = vmatpush1.msra.mxu0 %v10925
  %11051 = vmatprep.subr.mxu0 0.0
  %11052 = vmatpush1.msra.mxu0 %v10924
  %11053 = vmatprep.subr.mxu0 0.0
  %11054 = vmatpush1.msra.mxu0 %v10923
  %11055 = vmatprep.subr.mxu0 0.0
  %11056 = vmatpush1.msra.mxu0 %v10922
  %11057 = vmatprep.subr.mxu0 0.0
  %11058 = vmatpush1.msra.mxu0 %v10921
  %11059 = vmatprep.subr.mxu0 0.0
  %11060 = vmatpush2.msra.mxu0 0.0
  %11061 = vmatprep.subr.mxu0 0.0
  %11062 = vmatpush2.msra.mxu0 0.0
  %11063 = vmatprep.subr.mxu0 0.0
  %11064 = vmatpush2.msra.mxu0 0.0
  %11065 = vmatprep.subr.mxu0 0.0
  %11066 = vmatpush2.msra.mxu0 0.0
  %11067 = vmatprep.subr.mxu0 0.0
  %11068 = vmatpush2.msra.mxu0 %v10955
  %11069 = vmatprep.subr.mxu0 0.0
  %11070 = vmatpush2.msra.mxu0 %v10947
  %11071 = vmatprep.subr.mxu0 0.0
  %11072 = vmatpush2.msra.mxu0 %v10946
  %11073 = vmatprep.subr.mxu0 0.0
  %11074 = vmatpush2.msra.mxu0 %v10945
  %11075 = vmatprep.subr.mxu0 0.0
  %11076 = vmatpush2.msra.mxu0 %v10944
  %11077 = vmatprep.subr.mxu0 0.0
  %11078 = vmatpush2.msra.mxu0 %v10943
  %11079 = vmatprep.subr.mxu0 0.0
  %11080 = vmatpush2.msra.mxu0 %v10942
  %11081 = vmatprep.subr.mxu0 0.0
  %11082 = vmatpush2.msra.mxu0 %v10941
  %11083 = vmatprep.subr.mxu0 0.0
  %11084 = vmatpush2.msra.mxu0 %v10940
  %11085 = vmatprep.subr.mxu0 0.0
  %11086 = vmatpush2.msra.mxu0 %v10939
  %11087 = vmatprep.subr.mxu0 0.0
  %11088 = vmatpush2.msra.mxu0 %v10938
  %11089 = vmatprep.subr.mxu0 0.0
  %11090 = vmatpush2.msra.mxu0 %v10937
  %11091 = vmatprep.mubr.f32.mxu0 %v10951
  %11092 = vmatmul.mubr.f32.gmra.mxu0 %v10887
  %v11093 = vpop.f32.mrf.mxu0
  %v11094 = vadd.f32 %v11024, %v11093
  %v11095 = vpop.f32.mrf.mxu0
  %11096 = vdwg.mxu0
  %vm11097 = vcmask 142336
  %11098 = vst.msk [vmem:[%s11] sm:$0xf] %vm11097, %v11094
  // Predicated region
  $region46: #{cnn_forward.1} parent=0 // pred_check
    _
  $region47: #{cnn_forward.1} parent=0 // pred_check_branch
    %11100 = sbr.rel (0) target = $region49
  $region48: #{cnn_forward.1} parent=0 // pred_region
    _
  $region49: #{cnn_forward.1} parent=0 // pred_fallthru
    _
  // Predicated region
  $region50: #{cnn_forward.1} parent=0 // pred_check
    _
  $region51: #{cnn_forward.1} parent=0 // pred_check_branch
    %11102 = sbr.rel (0) target = $region53
  $region52: #{cnn_forward.1} parent=0 // pred_region
    _
  $region53: #{cnn_forward.1} parent=0 // pred_fallthru
    _

</llo_original>
